<compile_context>
chip_gen: v5e
topology: v5e:2x2
jax: 0.10.0
libtpu: 0.0.40
codegen_flags: <defaults>
</compile_context>

<pallas_src>
import jax
import jax.numpy as jnp
import numpy as np
from jax.experimental import pallas as pl
from jax.experimental.pallas import tpu as pltpu


def _sd_kernel(x_ref, w1_ref, u_ref, w34_ref, coef_ref, fwc_ref, sem_ref):
    # Blocks for the current (batch, class-tile) grid point.
    x = x_ref[0]                                                 # (HW, C) f32

    # fc1 on the MXU: bf16 operands, f32 accumulation.
    h = jnp.dot(x.astype(jnp.bfloat16), w1_ref[...],
                preferred_element_type=jnp.float32)              # (HW, D) f32

    # tanh gate for every class of this tile (broadcast over K, VPU + EUP):
    #   gate[k, p, d] = tanh(h[p, d] * u[k, d])
    gate = jnp.tanh(u_ref[...][:, None, :] * h[None, :, :])      # (Kt, HW, D)

    # Fused fc3+fc4 (bias dropped -- softmax over HW is shift-invariant):
    #   logits[k, p] = sum_d gate[k, p, d] * w34[d]   (VPU mul + lane reduce)
    logits = jnp.sum(gate * w34_ref[...], axis=-1)               # (Kt, HW)

    # Lane-dense softmax over the spatial axis (HW on lanes).
    m = jnp.max(logits, axis=-1, keepdims=True)                  # (Kt, 1)
    e = jnp.exp(logits - m)                                      # (Kt, HW)
    s = jnp.sum(e, axis=-1, keepdims=True)                       # (Kt, 1)
    coef = e * pl.reciprocal(s, approx=True)                     # (Kt, HW)
    coef_ref[0] = coef                                           # lane-dense store

    # semanticFeature: one MXU contraction over HW per class tile.
    sem_ref[0] = jnp.dot(coef, x, preferred_element_type=jnp.float32)   # (Kt, C)

    # featuremap * coefficient as a pure VPU broadcast (no MXU, no 0/1 expanders),
    # stored with C on lanes / K on sublanes.  The coef transpose is tiny (Kt*HW).
    coef_pk = coef.T                                             # (HW, Kt)
    fwc_ref[0] = x[:, None, :] * coef_pk[:, :, None]             # (HW, Kt, C)


def semantic_decoupling_pallas(img_featuremap, word_features, params, *,
                               class_tile=None,
                               vmem_limit_bytes=64 * 1024 * 1024):
    B, C, H, W = img_featuremap.shape
    assert H == W, "module assumes square feature maps"
    HW = H * W
    K, _ = word_features.shape
    D = params["fc3_w"].shape[0]
    f32 = jnp.float32
    hp = jax.lax.Precision.HIGHEST

    kt = K if class_tile is None else class_tile
    assert K % kt == 0 and (kt == K or kt % 8 == 0), \
        "class_tile must be K or a multiple of 8 dividing K"
    nk = K // kt

    # Same raw-buffer reinterpretation the PyTorch NCHW .view() performs.
    x = jnp.reshape(img_featuremap, (B, HW, C)).astype(f32)

    # ---- tiny, grid-invariant weight prep (wrapper side) ----
    w1t = params["fc1_w"].T.astype(jnp.bfloat16)                         # (C, D) MXU operand
    # fc2 on word features is batch-independent -> hoisted out of the grid.
    u = jnp.dot(word_features.astype(f32), params["fc2_w"].T.astype(f32),
                precision=hp)                                            # (K, D)
    # Fused fc3+fc4 row (no nonlinearity between them).  The fused bias
    # (fc4_w @ fc3_b + fc4_b) is a per-logit constant -> dropped (softmax over
    # the spatial axis is shift-invariant).
    w34 = jnp.dot(params["fc4_w"].astype(f32), params["fc3_w"].astype(f32),
                  precision=hp)                                          # (1, D)

    coef_khw, fwc_flat, sem = pl.pallas_call(
        _sd_kernel,
        out_shape=(
            jax.ShapeDtypeStruct((B, K, HW), f32),       # Coefficient (class-major, lane-dense)
            jax.ShapeDtypeStruct((B, HW, K, C), f32),    # featuremapWithCoefficient
            jax.ShapeDtypeStruct((B, K, C), f32),        # semanticFeature
        ),
        grid_spec=pltpu.PrefetchScalarGridSpec(
            num_scalar_prefetch=0,
            grid=(B, nk),
            in_specs=[
                pl.BlockSpec((1, HW, C), lambda b, k: (b, 0, 0)),   # x (raw-view)
                pl.BlockSpec((C, D), lambda b, k: (0, 0)),          # fc1^T (bf16, un-replicated)
                pl.BlockSpec((kt, D), lambda b, k: (k, 0)),         # fc2(word) tile
                pl.BlockSpec((1, D), lambda b, k: (0, 0)),          # fused fc3+fc4 row
            ],
            out_specs=(
                pl.BlockSpec((1, kt, HW), lambda b, k: (b, k, 0)),
                pl.BlockSpec((1, HW, kt, C), lambda b, k: (b, 0, k, 0)),
                pl.BlockSpec((1, kt, C), lambda b, k: (b, k, 0)),
            ),
        ),
        compiler_params=pltpu.CompilerParams(
            dimension_semantics=("parallel", "parallel"),
            vmem_limit_bytes=vmem_limit_bytes,
        ),
    )(x, w1t, u, w34)

    semantic_feature = sem                                           # (B, K, C)
    featuremap_with_coefficient = fwc_flat.reshape(B, H, W, K, C)    # free reshape
    # Small transpose of coef back to the API layout (B, H, W, K).
    coefficient = jnp.transpose(coef_khw, (0, 2, 1)).reshape(B, H, W, K)
    return semantic_feature, featuremap_with_coefficient, coefficient


def semantic_decoupling_ref(img_featuremap, word_features, params):
    """Pure-JAX reference mirroring the PyTorch forward (unfused fc3/fc4, f32)."""
    B, C, H, W = img_featuremap.shape
    HW = H * W
    K, _ = word_features.shape
    D = params["fc3_w"].shape[0]
    hp = jax.lax.Precision.HIGHEST

    x = img_featuremap.reshape(B * HW, C).astype(jnp.float32)
    h = jnp.dot(x, params["fc1_w"].T, precision=hp)                      # (N, D)
    u = jnp.dot(word_features, params["fc2_w"].T, precision=hp)          # (K, D)
    t = jnp.tanh(h[:, None, :] * u[None, :, :])                          # (N, K, D)
    f = jnp.dot(t.reshape(-1, D), params["fc3_w"].T, precision=hp) + params["fc3_b"]
    logits = (jnp.dot(f, params["fc4_w"].T, precision=hp) + params["fc4_b"]).reshape(B, HW, K)
    coef = jax.nn.softmax(logits, axis=1)                                # softmax over spatial
    coef = coef.reshape(B, H, W, K)
    fwc = x.reshape(B, H, W, 1, C) * coef[..., None]                     # (B,H,W,K,C)
    sem = fwc.sum(axis=(1, 2))                                           # (B,K,C)
    return sem, fwc, coef


if __name__ == "__main__":
    # Small shapes consistent with the module:
    # classNum=8, imgFeatureDim(C)=4, wordFeatureDim=16, intermediaDim=32, B=2, imgSize=16
    class_num, img_dim, word_dim, inter_dim = 8, 4, 16, 32
    B, H = 2, 16

    key = jax.random.PRNGKey(0)
    k_img, k_word, k1, k2, k3, k3b, k4, k4b = jax.random.split(key, 8)
    img_featuremap = jax.random.normal(k_img, (B, img_dim, H, H), dtype=jnp.float32)
    word_features = jax.random.normal(k_word, (class_num, word_dim), dtype=jnp.float32)
    params = {
        "fc1_w": 0.2 * jax.random.normal(k1, (inter_dim, img_dim), dtype=jnp.float32),
        "fc2_w": 0.2 * jax.random.normal(k2, (inter_dim, word_dim), dtype=jnp.float32),
        "fc3_w": 0.2 * jax.random.normal(k3, (inter_dim, inter_dim), dtype=jnp.float32),
        "fc3_b": 0.1 * jax.random.normal(k3b, (inter_dim,), dtype=jnp.float32),
        "fc4_w": 0.2 * jax.random.normal(k4, (1, inter_dim), dtype=jnp.float32),
        "fc4_b": 0.1 * jax.random.normal(k4b, (1,), dtype=jnp.float32),
    }

    sem, fwc, coef = jax.block_until_ready(
        jax.jit(semantic_decoupling_pallas)(img_featuremap, word_features, params))

    sem_r, fwc_r, coef_r = semantic_decoupling_ref(img_featuremap, word_features, params)
    # Tolerances account for bf16 MXU operands on fc1 and the EUP approx reciprocal.
    np.testing.assert_allclose(np.asarray(coef), np.asarray(coef_r), rtol=1e-2, atol=3e-4)
    np.testing.assert_allclose(np.asarray(fwc), np.asarray(fwc_r), rtol=1e-2, atol=3e-4)
    np.testing.assert_allclose(np.asarray(sem), np.asarray(sem_r), rtol=1e-2, atol=2e-3)

    print("KERNEL_OK")
</pallas_src>

<mosaic_0001>
module attributes {stable_mosaic.version = 11 : i64} {
  func.func @_sd_kernel(%arg0: i32, %arg1: i32, %arg2: memref<1x256x4xf32, #tpu.memory_space<vmem>>, %arg3: memref<4x32xbf16, #tpu.memory_space<vmem>>, %arg4: memref<8x32xf32, #tpu.memory_space<vmem>>, %arg5: memref<1x32xf32, #tpu.memory_space<vmem>>, %arg6: memref<1x8x256xf32, #tpu.memory_space<vmem>>, %arg7: memref<1x256x8x4xf32, #tpu.memory_space<vmem>>, %arg8: memref<1x8x4xf32, #tpu.memory_space<vmem>>) attributes {dimension_semantics = [#tpu.dimension_semantics<parallel>, #tpu.dimension_semantics<parallel>], iteration_bounds = array<i64: 2, 1>, scalar_prefetch = 0 : i64, scratch_operands = 0 : i64, tpu.core_type = #tpu.core_type<tc>, window_params = [{transform_indices = @transform_0, window_bounds = array<i64: 1, 256, 4>}, {pipeline_mode = #tpu.pipeline_mode<synchronous>, transform_indices = @transform_1, window_bounds = array<i64: 4, 32>}, {transform_indices = @transform_2, window_bounds = array<i64: 8, 32>}, {pipeline_mode = #tpu.pipeline_mode<synchronous>, transform_indices = @transform_3, window_bounds = array<i64: 1, 32>}, {transform_indices = @transform_4, window_bounds = array<i64: 1, 8, 256>}, {transform_indices = @transform_5, window_bounds = array<i64: 1, 256, 8, 4>}, {transform_indices = @transform_6, window_bounds = array<i64: 1, 8, 4>}]} {
    %c0 = arith.constant 0 : index
    %c0_0 = arith.constant 0 : index
    %c0_1 = arith.constant 0 : index
    %0 = vector.load %arg2[%c0, %c0_0, %c0_1] : memref<1x256x4xf32, #tpu.memory_space<vmem>>, vector<1x256x4xf32>
    %1 = vector.shape_cast %0 : vector<1x256x4xf32> to vector<256x4xf32>
    %2 = arith.truncf %1 : vector<256x4xf32> to vector<256x4xbf16>
    %c0_2 = arith.constant 0 : index
    %c0_3 = arith.constant 0 : index
    %3 = vector.load %arg3[%c0_2, %c0_3] : memref<4x32xbf16, #tpu.memory_space<vmem>>, vector<4x32xbf16>
    %cst = arith.constant dense<0.000000e+00> : vector<256x32xf32>
    %4 = tpu.matmul %2, %3, %cst {dimension_numbers = #tpu.dot_dimension_numbers<[1], [0], [0], [1], [0, 0, 1, 1], [], []>} : vector<256x4xbf16>, vector<4x32xbf16>, vector<256x32xf32> -> vector<256x32xf32>
    %c0_4 = arith.constant 0 : index
    %c0_5 = arith.constant 0 : index
    %5 = vector.load %arg4[%c0_4, %c0_5] : memref<8x32xf32, #tpu.memory_space<vmem>>, vector<8x32xf32>
    %6 = vector.shape_cast %5 : vector<8x32xf32> to vector<8x1x32xf32>
    %7 = vector.shape_cast %4 : vector<256x32xf32> to vector<1x256x32xf32>
    %8 = vector.broadcast %6 : vector<8x1x32xf32> to vector<8x256x32xf32>
    %9 = vector.broadcast %7 : vector<1x256x32xf32> to vector<8x256x32xf32>
    %10 = arith.mulf %8, %9 : vector<8x256x32xf32>
    %11 = math.tanh %10 : vector<8x256x32xf32>
    %c0_6 = arith.constant 0 : index
    %c0_7 = arith.constant 0 : index
    %12 = vector.load %arg5[%c0_6, %c0_7] : memref<1x32xf32, #tpu.memory_space<vmem>>, vector<1x32xf32>
    %13 = vector.shape_cast %12 : vector<1x32xf32> to vector<1x1x32xf32>
    %14 = vector.broadcast %13 : vector<1x1x32xf32> to vector<8x256x32xf32>
    %15 = arith.mulf %11, %14 : vector<8x256x32xf32>
    %cst_8 = arith.constant dense<0.000000e+00> : vector<8x256xf32>
    %16 = vector.multi_reduction <add>, %15, %cst_8 [2] : vector<8x256x32xf32> to vector<8x256xf32>
    %cst_9 = arith.constant dense<0xFF800000> : vector<8xf32>
    %17 = vector.multi_reduction <maximumf>, %16, %cst_9 [1] : vector<8x256xf32> to vector<8xf32>
    %18 = vector.shape_cast %17 : vector<8xf32> to vector<8x1xf32>
    %19 = vector.broadcast %18 : vector<8x1xf32> to vector<8x256xf32>
    %20 = arith.subf %16, %19 : vector<8x256xf32>
    %21 = math.exp %20 : vector<8x256xf32>
    %cst_10 = arith.constant dense<0.000000e+00> : vector<8xf32>
    %22 = vector.multi_reduction <add>, %21, %cst_10 [1] : vector<8x256xf32> to vector<8xf32>
    %23 = vector.shape_cast %22 : vector<8xf32> to vector<8x1xf32>
    %24 = tpu.reciprocal %23 {approx = true} : vector<8x1xf32> -> vector<8x1xf32>
    %25 = vector.broadcast %24 : vector<8x1xf32> to vector<8x256xf32>
    %26 = arith.mulf %21, %25 : vector<8x256xf32>
    %c0_11 = arith.constant 0 : index
    %c0_12 = arith.constant 0 : index
    %c0_13 = arith.constant 0 : index
    %27 = vector.load %arg6[%c0_11, %c0_12, %c0_13] : memref<1x8x256xf32, #tpu.memory_space<vmem>>, vector<1x8x256xf32>
    %28 = vector.shape_cast %27 : vector<1x8x256xf32> to vector<8x256xf32>
    %29 = vector.shape_cast %26 : vector<8x256xf32> to vector<1x8x256xf32>
    tpu.vector_store %arg6[%c0_11, %c0_12, %c0_13], %29 {strides = array<i32>} : memref<1x8x256xf32, #tpu.memory_space<vmem>>, vector<1x8x256xf32>,
    %cst_14 = arith.constant dense<0.000000e+00> : vector<8x4xf32>
    %30 = tpu.matmul %26, %1, %cst_14 {dimension_numbers = #tpu.dot_dimension_numbers<[1], [0], [0], [1], [0, 0, 1, 1], [], []>} : vector<8x256xf32>, vector<256x4xf32>, vector<8x4xf32> -> vector<8x4xf32>
    %c0_15 = arith.constant 0 : index
    %c0_16 = arith.constant 0 : index
    %c0_17 = arith.constant 0 : index
    %31 = vector.load %arg8[%c0_15, %c0_16, %c0_17] : memref<1x8x4xf32, #tpu.memory_space<vmem>>, vector<1x8x4xf32>
    %32 = vector.shape_cast %31 : vector<1x8x4xf32> to vector<8x4xf32>
    %33 = vector.shape_cast %30 : vector<8x4xf32> to vector<1x8x4xf32>
    tpu.vector_store %arg8[%c0_15, %c0_16, %c0_17], %33 {strides = array<i32>} : memref<1x8x4xf32, #tpu.memory_space<vmem>>, vector<1x8x4xf32>,
    %34 = tpu.transpose %26, [1, 0] : vector<8x256xf32> -> vector<256x8xf32>
    %35 = vector.shape_cast %1 : vector<256x4xf32> to vector<256x1x4xf32>
    %36 = vector.shape_cast %34 : vector<256x8xf32> to vector<256x8x1xf32>
    %37 = vector.broadcast %35 : vector<256x1x4xf32> to vector<256x8x4xf32>
    %38 = vector.broadcast %36 : vector<256x8x1xf32> to vector<256x8x4xf32>
    %39 = arith.mulf %37, %38 : vector<256x8x4xf32>
    %c0_18 = arith.constant 0 : index
    %c0_19 = arith.constant 0 : index
    %c0_20 = arith.constant 0 : index
    %c0_21 = arith.constant 0 : index
    %40 = vector.load %arg7[%c0_18, %c0_19, %c0_20, %c0_21] : memref<1x256x8x4xf32, #tpu.memory_space<vmem>>, vector<1x256x8x4xf32>
    %41 = vector.shape_cast %40 : vector<1x256x8x4xf32> to vector<256x8x4xf32>
    %42 = vector.shape_cast %39 : vector<256x8x4xf32> to vector<1x256x8x4xf32>
    tpu.vector_store %arg7[%c0_18, %c0_19, %c0_20, %c0_21], %42 {strides = array<i32>} : memref<1x256x8x4xf32, #tpu.memory_space<vmem>>, vector<1x256x8x4xf32>,
    return
  }
  func.func @transform_0(%arg0: i32, %arg1: i32) -> (i32, i32, i32) {
    %c0_i32 = arith.constant 0 : i32
    %c0_i32_0 = arith.constant 0 : i32
    %c0_i32_1 = arith.constant 0 : i32
    return %arg0, %c0_i32, %c0_i32_0 : i32, i32, i32
  }
  func.func @transform_1(%arg0: i32, %arg1: i32) -> (i32, i32) {
    %c0_i32 = arith.constant 0 : i32
    %c0_i32_0 = arith.constant 0 : i32
    %c0_i32_1 = arith.constant 0 : i32
    return %c0_i32, %c0_i32_0 : i32, i32
  }
  func.func @transform_2(%arg0: i32, %arg1: i32) -> (i32, i32) {
    %c0_i32 = arith.constant 0 : i32
    %c0_i32_0 = arith.constant 0 : i32
    return %arg1, %c0_i32 : i32, i32
  }
  func.func @transform_3(%arg0: i32, %arg1: i32) -> (i32, i32) {
    %c0_i32 = arith.constant 0 : i32
    %c0_i32_0 = arith.constant 0 : i32
    %c0_i32_1 = arith.constant 0 : i32
    return %c0_i32, %c0_i32_0 : i32, i32
  }
  func.func @transform_4(%arg0: i32, %arg1: i32) -> (i32, i32, i32) {
    %c0_i32 = arith.constant 0 : i32
    %c0_i32_0 = arith.constant 0 : i32
    return %arg0, %arg1, %c0_i32 : i32, i32, i32
  }
  func.func @transform_5(%arg0: i32, %arg1: i32) -> (i32, i32, i32, i32) {
    %c0_i32 = arith.constant 0 : i32
    %c0_i32_0 = arith.constant 0 : i32
    %c0_i32_1 = arith.constant 0 : i32
    return %arg0, %c0_i32, %arg1, %c0_i32_0 : i32, i32, i32, i32
  }
  func.func @transform_6(%arg0: i32, %arg1: i32) -> (i32, i32, i32) {
    %c0_i32 = arith.constant 0 : i32
    %c0_i32_0 = arith.constant 0 : i32
    return %arg0, %arg1, %c0_i32 : i32, i32, i32
  }
}

</mosaic_0001>

<llo_original>
// kernel: semantic_decoupling_pallas.1
$region0: #{semantic_decoupling_pallas.1}
  #allocation0 [shape = 'u32[]', space=smem, size = 0x4, offset = 0x4, fixed_abs, tag = 'smem constant byte address 0x4 - core index']
  #allocation1 [shape = 'u32[72,128]{1,0:T(1,128)}', space=vmem, size = 0x9000, scoped, tag = 'internal scratch']
  %s0 = inlined_call_operand.vmem [shape: f32[2,256,4], index: 0, kind: input, shape index: {}]
  %s1 = inlined_call_operand.vmem [shape: bf16[4,32], index: 1, kind: input, shape index: {}]
  %s2 = inlined_call_operand.vmem [shape: f32[8,32], index: 2, kind: input, shape index: {}]
  %s3 = inlined_call_operand.vmem [shape: f32[1,32], index: 3, kind: input, shape index: {}]
  %s4 = inlined_call_operand.vmem [shape: f32[2,8,256], index: 4, kind: output, shape index: {0}]
  %s5 = inlined_call_operand.vmem [shape: f32[2,256,8,4], index: 5, kind: output, shape index: {1}]
  %s6 = inlined_call_operand.vmem [shape: f32[2,8,4], index: 6, kind: output, shape index: {2}]
  %7 = xla_tuple %s4, %s5, %s6
  %s8 = sld [smem:[#allocation0]]
  $region65: #{semantic_decoupling_pallas.1} parent=0
    _
  %s10 = ssub.s32 1, %s8
  %s11 = scalar_select 0, %s10, %s8
  loop: start=0, step=1, limit=4
  $region2: #{semantic_decoupling_pallas.1} parent=0 // loop_pre_header
    _
  $region3: #{semantic_decoupling_pallas.1} parent=0 // loop_header
    %s13 = sphi 0, %s17
    %p14 = scmp.ge.s32.totalorder %s13, 4
    %s20 = sphi 0, %s32
    %s21 = sphi 0, %s28
    %s22 = sphi 0, %s20
    %s23 = sphi 0, %s21
    %s24 = sphi 0, %s22
    %s25 = sphi 0, %s23
    %s35 = sphi 0, %s37
    %s38 = sphi 0, %s35
    %s39 = sphi 0, %s38
    %s55 = sphi 0, %s39
    %s59 = sphi 0, %s59
    %s61 = sphi 0, %s59
    %s62 = sphi 0, %s61
    %s76 = sphi 0, %s62
    %s82 = sphi 0, %s84
    %s85 = sphi 0, %s82
    %s86 = sphi 0, %s85
    %s102 = sphi 0, %s86
    %s106 = sphi 0, %s106
    %s108 = sphi 0, %s106
    %s109 = sphi 0, %s108
    %s123 = sphi 0, %s109
    %s131 = sphi 0, %s133
    %s134 = sphi 0, %s131
    %s135 = sphi 0, %s134
    %s151 = sphi 0, %s135
    %s159 = sphi 0, %s161
    %s162 = sphi 0, %s159
    %s163 = sphi 0, %s162
    %s179 = sphi 0, %s163
    %s187 = sphi 0, %s189
    %s190 = sphi 0, %s187
    %s191 = sphi 0, %s190
    %s207 = sphi 0, %s191
  $region4: #{semantic_decoupling_pallas.1} parent=0 // loop_header_branch
    %16 = sbr.rel (%p14) target = $region8
  $region5: #{semantic_decoupling_pallas.1} parent=0 // loop_body
    %s18 = ssub.s32 %s13, 1
    %s19 = ssub.s32 %s13, 2
    %s26 = sadd.s32 1, %s21
    %p27 = scmp.ge.s32.totalorder %s26, 1
    %s28 = scalar_select %p27, 0, %s26
    %s29 = sadd.s32 1, %s20
    %s30 = scalar_select %p27, %s29, %s20
    %p31 = scmp.ge.s32.totalorder %s30, 2
    %s32 = scalar_select %p31, 0, %s30
    %s33 = ssub.s32 %s20, %s32
    %p34 = scmp.eq.s32.totalorder %s33, 0
    %s36 = sadd.s32 %s35, 1
    %s37 = scalar_select %p34, %s35, %s36
    %p40 = pneg %p34
    %p41 = scmp.eq.s32.totalorder %s13, 1
    %p42 = por %p40, %p41
    %p43 = scmp.ne.s32.totalorder %s35, %s38
    %p44 = scmp.eq.s32.totalorder %s13, 0
    %p45 = por %p43, %p44
    %p46 = scmp.ne.s32.totalorder %s35, %s38
    %p47 = scmp.eq.s32.totalorder %s18, 1
    %p48 = por %p46, %p47
    %p49 = scmp.ne.s32.totalorder %s38, %s39
    %p50 = scmp.eq.s32.totalorder %s18, 0
    %p51 = por %p49, %p50
    %p52 = scmp.ne.s32.totalorder %s38, %s39
    %p53 = scmp.eq.s32.totalorder %s19, 1
    %p54 = por %p52, %p53
    %p56 = scmp.ne.s32.totalorder %s39, %s55
    %p57 = scmp.eq.s32.totalorder %s19, 0
    %p58 = por %p56, %p57
    %s60 = sadd.s32 %s59, 1
    %p63 = scmp.eq.s32.totalorder %s13, 1
    %p64 = scmp.ne.s32.totalorder %s59, %s61
    %p65 = scmp.eq.s32.totalorder %s13, 0
    %p66 = por %p64, %p65
    %p67 = scmp.ne.s32.totalorder %s59, %s61
    %p68 = scmp.eq.s32.totalorder %s18, 1
    %p69 = por %p67, %p68
    %p70 = scmp.ne.s32.totalorder %s61, %s62
    %p71 = scmp.eq.s32.totalorder %s18, 0
    %p72 = por %p70, %p71
    %p73 = scmp.ne.s32.totalorder %s61, %s62
    %p74 = scmp.eq.s32.totalorder %s19, 1
    %p75 = por %p73, %p74
    %p77 = scmp.ne.s32.totalorder %s62, %s76
    %p78 = scmp.eq.s32.totalorder %s19, 0
    %p79 = por %p77, %p78
    %s80 = ssub.s32 %s21, %s28
    %p81 = scmp.eq.s32.totalorder %s80, 0
    %s83 = sadd.s32 %s82, 1
    %s84 = scalar_select %p81, %s82, %s83
    %p87 = pneg %p81
    %p88 = scmp.eq.s32.totalorder %s13, 1
    %p89 = por %p87, %p88
    %p90 = scmp.ne.s32.totalorder %s82, %s85
    %p91 = scmp.eq.s32.totalorder %s13, 0
    %p92 = por %p90, %p91
    %p93 = scmp.ne.s32.totalorder %s82, %s85
    %p94 = scmp.eq.s32.totalorder %s18, 1
    %p95 = por %p93, %p94
    %p96 = scmp.ne.s32.totalorder %s85, %s86
    %p97 = scmp.eq.s32.totalorder %s18, 0
    %p98 = por %p96, %p97
    %p99 = scmp.ne.s32.totalorder %s85, %s86
    %p100 = scmp.eq.s32.totalorder %s19, 1
    %p101 = por %p99, %p100
    %p103 = scmp.ne.s32.totalorder %s86, %s102
    %p104 = scmp.eq.s32.totalorder %s19, 0
    %p105 = por %p103, %p104
    %s107 = sadd.s32 %s106, 1
    %p110 = scmp.eq.s32.totalorder %s13, 1
    %p111 = scmp.ne.s32.totalorder %s106, %s108
    %p112 = scmp.eq.s32.totalorder %s13, 0
    %p113 = por %p111, %p112
    %p114 = scmp.ne.s32.totalorder %s106, %s108
    %p115 = scmp.eq.s32.totalorder %s18, 1
    %p116 = por %p114, %p115
    %p117 = scmp.ne.s32.totalorder %s108, %s109
    %p118 = scmp.eq.s32.totalorder %s18, 0
    %p119 = por %p117, %p118
    %p120 = scmp.ne.s32.totalorder %s108, %s109
    %p121 = scmp.eq.s32.totalorder %s19, 1
    %p122 = por %p120, %p121
    %p124 = scmp.ne.s32.totalorder %s109, %s123
    %p125 = scmp.eq.s32.totalorder %s19, 0
    %p126 = por %p124, %p125
    %s127 = ssub.s32 %s20, %s32
    %s128 = ssub.s32 %s21, %s28
    %s129 = sor.u32 %s127, %s128
    %p130 = scmp.eq.s32.totalorder %s129, 0
    %s132 = sadd.s32 %s131, 1
    %s133 = scalar_select %p130, %s131, %s132
    %p136 = pneg %p130
    %p137 = scmp.eq.s32.totalorder %s13, 1
    %p138 = por %p136, %p137
    %p139 = scmp.ne.s32.totalorder %s131, %s134
    %p140 = scmp.eq.s32.totalorder %s13, 0
    %p141 = por %p139, %p140
    %p142 = scmp.ne.s32.totalorder %s131, %s134
    %p143 = scmp.eq.s32.totalorder %s18, 1
    %p144 = por %p142, %p143
    %p145 = scmp.ne.s32.totalorder %s134, %s135
    %p146 = scmp.eq.s32.totalorder %s18, 0
    %p147 = por %p145, %p146
    %p148 = scmp.ne.s32.totalorder %s134, %s135
    %p149 = scmp.eq.s32.totalorder %s19, 1
    %p150 = por %p148, %p149
    %p152 = scmp.ne.s32.totalorder %s135, %s151
    %p153 = scmp.eq.s32.totalorder %s19, 0
    %p154 = por %p152, %p153
    %s155 = ssub.s32 %s20, %s32
    %s156 = ssub.s32 %s21, %s28
    %s157 = sor.u32 %s155, %s156
    %p158 = scmp.eq.s32.totalorder %s157, 0
    %s160 = sadd.s32 %s159, 1
    %s161 = scalar_select %p158, %s159, %s160
    %p164 = pneg %p158
    %p165 = scmp.eq.s32.totalorder %s13, 1
    %p166 = por %p164, %p165
    %p167 = scmp.ne.s32.totalorder %s159, %s162
    %p168 = scmp.eq.s32.totalorder %s13, 0
    %p169 = por %p167, %p168
    %p170 = scmp.ne.s32.totalorder %s159, %s162
    %p171 = scmp.eq.s32.totalorder %s18, 1
    %p172 = por %p170, %p171
    %p173 = scmp.ne.s32.totalorder %s162, %s163
    %p174 = scmp.eq.s32.totalorder %s18, 0
    %p175 = por %p173, %p174
    %p176 = scmp.ne.s32.totalorder %s162, %s163
    %p177 = scmp.eq.s32.totalorder %s19, 1
    %p178 = por %p176, %p177
    %p180 = scmp.ne.s32.totalorder %s163, %s179
    %p181 = scmp.eq.s32.totalorder %s19, 0
    %p182 = por %p180, %p181
    %s183 = ssub.s32 %s20, %s32
    %s184 = ssub.s32 %s21, %s28
    %s185 = sor.u32 %s183, %s184
    %p186 = scmp.eq.s32.totalorder %s185, 0
    %s188 = sadd.s32 %s187, 1
    %s189 = scalar_select %p186, %s187, %s188
    %p192 = pneg %p186
    %p193 = scmp.eq.s32.totalorder %s13, 1
    %p194 = por %p192, %p193
    %p195 = scmp.ne.s32.totalorder %s187, %s190
    %p196 = scmp.eq.s32.totalorder %s13, 0
    %p197 = por %p195, %p196
    %p198 = scmp.ne.s32.totalorder %s187, %s190
    %p199 = scmp.eq.s32.totalorder %s18, 1
    %p200 = por %p198, %p199
    %p201 = scmp.ne.s32.totalorder %s190, %s191
    %p202 = scmp.eq.s32.totalorder %s18, 0
    %p203 = por %p201, %p202
    %p204 = scmp.ne.s32.totalorder %s190, %s191
    %p205 = scmp.eq.s32.totalorder %s19, 1
    %p206 = por %p204, %p205
    %p208 = scmp.ne.s32.totalorder %s191, %s207
    %p209 = scmp.eq.s32.totalorder %s19, 0
    %p210 = por %p208, %p209
    %p211 = scmp.le.s32.totalorder 1, %s13
    %p212 = scmp.lt.s32.totalorder %s13, 3
    %p213 = pnand %p211, %p212
    %p214 = pneg %p213
    // Predicated region
    $region9: #{semantic_decoupling_pallas.1} parent=5 // pred_check
      _
    $region10: #{semantic_decoupling_pallas.1} parent=5 // pred_check_branch
      %216 = sbr.rel (%p213) target = $region12
    $region11: #{semantic_decoupling_pallas.1} parent=5 // pred_region
      %s217 = ssub.s32 %s13, 1
      // Predicated region
      $region13: #{semantic_decoupling_pallas.1} parent=11 // pred_check
        %p218 = pneg %p72
      $region14: #{semantic_decoupling_pallas.1} parent=11 // pred_check_branch
        %220 = sbr.rel (%p218) target = $region16
      $region15: #{semantic_decoupling_pallas.1} parent=11 // pred_region
        _
      $region16: #{semantic_decoupling_pallas.1} parent=11 // pred_fallthru
        _
      // Predicated region
      $region17: #{semantic_decoupling_pallas.1} parent=11 // pred_check
        %p221 = pneg %p98
      $region18: #{semantic_decoupling_pallas.1} parent=11 // pred_check_branch
        %223 = sbr.rel (%p221) target = $region20
      $region19: #{semantic_decoupling_pallas.1} parent=11 // pred_region
        %p224 = scmp.lt.s32.totalorder %s23, 0
        %s225 = scalar_select %p224, %s23, 0
        %s226 = smul.addr %s225, 8
        %s227 = scalar_lea.vmem %s2, %s226
      $region20: #{semantic_decoupling_pallas.1} parent=11 // pred_fallthru
        _
      // Predicated region
      $region21: #{semantic_decoupling_pallas.1} parent=11 // pred_check
        %p228 = pneg %p119
      $region22: #{semantic_decoupling_pallas.1} parent=11 // pred_check_branch
        %230 = sbr.rel (%p228) target = $region24
      $region23: #{semantic_decoupling_pallas.1} parent=11 // pred_region
        _
      $region24: #{semantic_decoupling_pallas.1} parent=11 // pred_fallthru
        _
    $region12: #{semantic_decoupling_pallas.1} parent=5 // pred_fallthru
      _
    %p231 = scmp.lt.s32.totalorder %s13, 2
    // Predicated region
    $region25: #{semantic_decoupling_pallas.1} parent=5 // pred_check
      %p232 = pneg %p231
    $region26: #{semantic_decoupling_pallas.1} parent=5 // pred_check_branch
      %234 = sbr.rel (%p232) target = $region28
    $region27: #{semantic_decoupling_pallas.1} parent=5 // pred_region
      // Predicated region
      $region29: #{semantic_decoupling_pallas.1} parent=27 // pred_check
        %p235 = pneg %p45
      $region30: #{semantic_decoupling_pallas.1} parent=27 // pred_check_branch
        %237 = sbr.rel (%p235) target = $region32
      $region31: #{semantic_decoupling_pallas.1} parent=27 // pred_region
        %p238 = scmp.lt.s32.totalorder %s20, 1
        %s239 = scalar_select %p238, %s20, 1
        %s240 = smul.addr %s239, 32
        %s241 = smul.addr %s240, 8
        %s242 = scalar_lea.vmem %s0, %s241
      $region32: #{semantic_decoupling_pallas.1} parent=27 // pred_fallthru
        _
    $region28: #{semantic_decoupling_pallas.1} parent=5 // pred_fallthru
      _
    %p243 = scmp.le.s32.totalorder 1, %s13
    %p244 = scmp.lt.s32.totalorder %s13, 3
    %p245 = pnand %p243, %p244
    %p246 = pneg %p245
    // Predicated region
    $region33: #{semantic_decoupling_pallas.1} parent=5 // pred_check
      _
    $region34: #{semantic_decoupling_pallas.1} parent=5 // pred_check_branch
      %248 = sbr.rel (%p245) target = $region36
    $region35: #{semantic_decoupling_pallas.1} parent=5 // pred_region
      %s249 = ssub.s32 %s13, 1
      %p250 = scmp.lt.s32.totalorder %s22, 1
      %s251 = scalar_select %p250, %s22, 1
      %s252 = smul.addr %s251, 32
      %s253 = smul.addr %s252, 8
      %s254 = scalar_lea.vmem %s0, %s253
      %p255 = pneg %p51
      %p256 = pneg %p48
      %p257 = pneg %p72
      %p258 = pneg %p69
      %p259 = scmp.lt.s32.totalorder %s23, 0
      %s260 = scalar_select %p259, %s23, 0
      %s261 = smul.addr %s260, 8
      %s262 = scalar_lea.vmem %s2, %s261
      %p263 = pneg %p98
      %p264 = pneg %p95
      %p265 = pneg %p119
      %p266 = pneg %p116
      %p267 = pneg %p147
      %p268 = pneg %p144
      %p269 = scmp.lt.s32.totalorder %s22, 1
      %s270 = scalar_select %p269, %s22, 1
      %p271 = scmp.lt.s32.totalorder %s23, 0
      %s272 = scalar_select %p271, %s23, 0
      %s273 = smul.addr %s272, 2
      %s274 = smul.addr %s270, 2
      %s275 = sadd.s32 %s273, %s274
      %s276 = smul.addr %s275, 8
      %s277 = scalar_lea.vmem %s4, %s276
      %p278 = pneg %p175
      %p279 = pneg %p172
      %p280 = scmp.lt.s32.totalorder %s22, 1
      %s281 = scalar_select %p280, %s22, 1
      %p282 = scmp.lt.s32.totalorder %s23, 0
      %s283 = scalar_select %p282, %s23, 0
      %s284 = smul.addr %s281, 256
      %s285 = sadd.s32 %s283, %s284
      %s286 = smul.addr %s285, 8
      %s287 = scalar_lea.vmem %s5, %s286
      %p288 = pneg %p203
      %p289 = pneg %p200
      %p290 = scmp.lt.s32.totalorder %s22, 1
      %s291 = scalar_select %p290, %s22, 1
      %p292 = scmp.lt.s32.totalorder %s23, 0
      %s293 = scalar_select %p292, %s23, 0
      %s294 = sadd.s32 %s293, %s291
      %s295 = smul.addr %s294, 8
      %s296 = scalar_lea.vmem %s6, %s295
      %p297 = scmp.lt.s32.totalorder %s22, 1
      %s298 = scalar_select %p297, %s22, 1
      %s299 = smul.addr %s298, 32
      %s300 = smul.addr %s299, 8
      %s301 = scalar_lea.vmem %s0, %s300
      %p302 = scmp.lt.s32.totalorder %s23, 0
      %s303 = scalar_select %p302, %s23, 0
      %s304 = smul.addr %s303, 8
      %s305 = scalar_lea.vmem %s2, %s304
      %p306 = scmp.lt.s32.totalorder %s22, 1
      %s307 = scalar_select %p306, %s22, 1
      %p308 = scmp.lt.s32.totalorder %s23, 0
      %s309 = scalar_select %p308, %s23, 0
      %s310 = smul.addr %s309, 2
      %s311 = smul.addr %s307, 2
      %s312 = sadd.s32 %s310, %s311
      %s313 = smul.addr %s312, 8
      %s314 = scalar_lea.vmem %s4, %s313
      %p315 = scmp.lt.s32.totalorder %s22, 1
      %s316 = scalar_select %p315, %s22, 1
      %p317 = scmp.lt.s32.totalorder %s23, 0
      %s318 = scalar_select %p317, %s23, 0
      %s319 = smul.addr %s316, 256
      %s320 = sadd.s32 %s318, %s319
      %s321 = smul.addr %s320, 8
      %s322 = scalar_lea.vmem %s5, %s321
      %p323 = scmp.lt.s32.totalorder %s22, 1
      %s324 = scalar_select %p323, %s22, 1
      %p325 = scmp.lt.s32.totalorder %s23, 0
      %s326 = scalar_select %p325, %s23, 0
      %s327 = sadd.s32 %s326, %s324
      %s328 = smul.addr %s327, 8
      %s329 = scalar_lea.vmem %s6, %s328
      %v331 = vld [vmem:[%s301] sm:$0xff]
      %v332 = vld [vmem:[%s301 + $0x8] sm:$0xff]
      %v333 = vld [vmem:[%s301 + $0x10] sm:$0xff]
      %v334 = vld [vmem:[%s301 + $0x18] sm:$0xff]
      %v335 = vld [vmem:[%s301 + $0x20] sm:$0xff]
      %v336 = vld [vmem:[%s301 + $0x28] sm:$0xff]
      %v337 = vld [vmem:[%s301 + $0x30] sm:$0xff]
      %v338 = vld [vmem:[%s301 + $0x38] sm:$0xff]
      %v339 = vld [vmem:[%s301 + $0x40] sm:$0xff]
      %v340 = vld [vmem:[%s301 + $0x48] sm:$0xff]
      %v341 = vld [vmem:[%s301 + $0x50] sm:$0xff]
      %v342 = vld [vmem:[%s301 + $0x58] sm:$0xff]
      %v343 = vld [vmem:[%s301 + $0x60] sm:$0xff]
      %v344 = vld [vmem:[%s301 + $0x68] sm:$0xff]
      %v345 = vld [vmem:[%s301 + $0x70] sm:$0xff]
      %v346 = vld [vmem:[%s301 + $0x78] sm:$0xff]
      %v347 = vld [vmem:[%s301 + $0x80] sm:$0xff]
      %v348 = vld [vmem:[%s301 + $0x88] sm:$0xff]
      %v349 = vld [vmem:[%s301 + $0x90] sm:$0xff]
      %v350 = vld [vmem:[%s301 + $0x98] sm:$0xff]
      %v351 = vld [vmem:[%s301 + $0xa0] sm:$0xff]
      %v352 = vld [vmem:[%s301 + $0xa8] sm:$0xff]
      %v353 = vld [vmem:[%s301 + $0xb0] sm:$0xff]
      %v354 = vld [vmem:[%s301 + $0xb8] sm:$0xff]
      %v355 = vld [vmem:[%s301 + $0xc0] sm:$0xff]
      %v356 = vld [vmem:[%s301 + $0xc8] sm:$0xff]
      %v357 = vld [vmem:[%s301 + $0xd0] sm:$0xff]
      %v358 = vld [vmem:[%s301 + $0xd8] sm:$0xff]
      %v359 = vld [vmem:[%s301 + $0xe0] sm:$0xff]
      %v360 = vld [vmem:[%s301 + $0xe8] sm:$0xff]
      %v361 = vld [vmem:[%s301 + $0xf0] sm:$0xff]
      %v362 = vld [vmem:[%s301 + $0xf8] sm:$0xff]
      %v363 = vpack.c.bf16 %v332, %v331
      %v364 = vpack.c.bf16 %v334, %v333
      %v365 = vpack.c.bf16 %v336, %v335
      %v366 = vpack.c.bf16 %v338, %v337
      %v367 = vpack.c.bf16 %v340, %v339
      %v368 = vpack.c.bf16 %v342, %v341
      %v369 = vpack.c.bf16 %v344, %v343
      %v370 = vpack.c.bf16 %v346, %v345
      %v371 = vpack.c.bf16 %v348, %v347
      %v372 = vpack.c.bf16 %v350, %v349
      %v373 = vpack.c.bf16 %v352, %v351
      %v374 = vpack.c.bf16 %v354, %v353
      %v375 = vpack.c.bf16 %v356, %v355
      %v376 = vpack.c.bf16 %v358, %v357
      %v377 = vpack.c.bf16 %v360, %v359
      %v378 = vpack.c.bf16 %v362, %v361
      %v379 = vld [vmem:[%s1] sm:$0x3]
      %vm380 = vcmask 31744
      %v382 = vsel %vm380, %v363, 0
      %v385 = vsel %vm380, %v364, 0
      %v388 = vsel %vm380, %v365, 0
      %v391 = vsel %vm380, %v366, 0
      %v394 = vsel %vm380, %v367, 0
      %v397 = vsel %vm380, %v368, 0
      %v400 = vsel %vm380, %v369, 0
      %v403 = vsel %vm380, %v370, 0
      %v406 = vsel %vm380, %v371, 0
      %v409 = vsel %vm380, %v372, 0
      %v412 = vsel %vm380, %v373, 0
      %v415 = vsel %vm380, %v374, 0
      %v418 = vsel %vm380, %v375, 0
      %v421 = vsel %vm380, %v376, 0
      %v424 = vsel %vm380, %v377, 0
      %v427 = vsel %vm380, %v378, 0
      %vm429 = vcmask 1041408
      %v431 = vsel %vm429, %v379, 0
      %433 = vmatpush.bf16.msra.mxu0 0
      %434 = vmatpush.bf16.msra.mxu0 0
      %435 = vmatpush.bf16.msra.mxu0 0
      %436 = vmatpush.bf16.msra.mxu0 0
      %437 = vmatpush.bf16.msra.mxu0 0
      %438 = vmatpush.bf16.msra.mxu0 0
      %439 = vmatpush.bf16.msra.mxu0 0
      %440 = vmatpush.bf16.msra.mxu0 %v431
      %441 = vmatmul.bf16.gmra.mxu0 %v382
      %v442 = vpop.f32.mrf.mxu0
      %v443 = vadd.f32 0.0, %v442
      %v444 = vpop.f32.mrf.mxu0
      %v445 = vadd.f32 0.0, %v444
      %446 = vmatmul.bf16.gmra.mxu0 %v385
      %v447 = vpop.f32.mrf.mxu0
      %v448 = vadd.f32 0.0, %v447
      %v449 = vpop.f32.mrf.mxu0
      %v450 = vadd.f32 0.0, %v449
      %451 = vmatmul.bf16.gmra.mxu0 %v388
      %v452 = vpop.f32.mrf.mxu0
      %v453 = vadd.f32 0.0, %v452
      %v454 = vpop.f32.mrf.mxu0
      %v455 = vadd.f32 0.0, %v454
      %456 = vmatmul.bf16.gmra.mxu0 %v391
      %v457 = vpop.f32.mrf.mxu0
      %v458 = vadd.f32 0.0, %v457
      %v459 = vpop.f32.mrf.mxu0
      %v460 = vadd.f32 0.0, %v459
      %461 = vmatmul.bf16.gmra.mxu0 %v394
      %v462 = vpop.f32.mrf.mxu0
      %v463 = vadd.f32 0.0, %v462
      %v464 = vpop.f32.mrf.mxu0
      %v465 = vadd.f32 0.0, %v464
      %466 = vmatmul.bf16.gmra.mxu0 %v397
      %v467 = vpop.f32.mrf.mxu0
      %v468 = vadd.f32 0.0, %v467
      %v469 = vpop.f32.mrf.mxu0
      %v470 = vadd.f32 0.0, %v469
      %471 = vmatmul.bf16.gmra.mxu0 %v400
      %v472 = vpop.f32.mrf.mxu0
      %v473 = vadd.f32 0.0, %v472
      %v474 = vpop.f32.mrf.mxu0
      %v475 = vadd.f32 0.0, %v474
      %476 = vmatmul.bf16.gmra.mxu0 %v403
      %v477 = vpop.f32.mrf.mxu0
      %v478 = vadd.f32 0.0, %v477
      %v479 = vpop.f32.mrf.mxu0
      %v480 = vadd.f32 0.0, %v479
      %481 = vmatmul.bf16.gmra.mxu0 %v406
      %v482 = vpop.f32.mrf.mxu0
      %v483 = vadd.f32 0.0, %v482
      %v484 = vpop.f32.mrf.mxu0
      %v485 = vadd.f32 0.0, %v484
      %486 = vmatmul.bf16.gmra.mxu0 %v409
      %v487 = vpop.f32.mrf.mxu0
      %v488 = vadd.f32 0.0, %v487
      %v489 = vpop.f32.mrf.mxu0
      %v490 = vadd.f32 0.0, %v489
      %491 = vmatmul.bf16.gmra.mxu0 %v412
      %v492 = vpop.f32.mrf.mxu0
      %v493 = vadd.f32 0.0, %v492
      %v494 = vpop.f32.mrf.mxu0
      %v495 = vadd.f32 0.0, %v494
      %496 = vmatmul.bf16.gmra.mxu0 %v415
      %v497 = vpop.f32.mrf.mxu0
      %v498 = vadd.f32 0.0, %v497
      %v499 = vpop.f32.mrf.mxu0
      %v500 = vadd.f32 0.0, %v499
      %501 = vmatmul.bf16.gmra.mxu0 %v418
      %v502 = vpop.f32.mrf.mxu0
      %v503 = vadd.f32 0.0, %v502
      %v504 = vpop.f32.mrf.mxu0
      %v505 = vadd.f32 0.0, %v504
      %506 = vmatmul.bf16.gmra.mxu0 %v421
      %v507 = vpop.f32.mrf.mxu0
      %v508 = vadd.f32 0.0, %v507
      %v509 = vpop.f32.mrf.mxu0
      %v510 = vadd.f32 0.0, %v509
      %511 = vmatmul.bf16.gmra.mxu0 %v424
      %v512 = vpop.f32.mrf.mxu0
      %v513 = vadd.f32 0.0, %v512
      %v514 = vpop.f32.mrf.mxu0
      %v515 = vadd.f32 0.0, %v514
      %516 = vmatmul.bf16.gmra.mxu0 %v427
      %v517 = vpop.f32.mrf.mxu0
      %v518 = vadd.f32 0.0, %v517
      %v519 = vpop.f32.mrf.mxu0
      %v520 = vadd.f32 0.0, %v519
      %521 = vdwg.mxu0
      %v522 = vld [vmem:[%s305] sm:$0xff]
      %v524 = vrot.slane %v522, 1
      %v525 = vrot.slane %v522, 2
      %v526 = vrot.slane %v522, 3
      %v527 = vrot.slane %v522, 4
      %v528 = vrot.slane %v522, 5
      %v529 = vrot.slane %v522, 6
      %v530 = vrot.slane %v522, 7
      %v531 = vperm.slane %v522, 0
      %v532 = vperm.slane %v524, 0
      %v533 = vperm.slane %v525, 0
      %v534 = vperm.slane %v526, 0
      %v535 = vperm.slane %v527, 0
      %v536 = vperm.slane %v528, 0
      %v537 = vperm.slane %v529, 0
      %v538 = vperm.slane %v530, 0
      %v547 = vmul.f32 %v531, %v443
      %v548 = vmul.f32 %v531, %v445
      %v549 = vmul.f32 %v531, %v448
      %v550 = vmul.f32 %v531, %v450
      %v551 = vmul.f32 %v531, %v453
      %v552 = vmul.f32 %v531, %v455
      %v553 = vmul.f32 %v531, %v458
      %v554 = vmul.f32 %v531, %v460
      %v555 = vmul.f32 %v531, %v463
      %v556 = vmul.f32 %v531, %v465
      %v557 = vmul.f32 %v531, %v468
      %v558 = vmul.f32 %v531, %v470
      %v559 = vmul.f32 %v531, %v473
      %v560 = vmul.f32 %v531, %v475
      %v561 = vmul.f32 %v531, %v478
      %v562 = vmul.f32 %v531, %v480
      %v563 = vmul.f32 %v531, %v483
      %v564 = vmul.f32 %v531, %v485
      %v565 = vmul.f32 %v531, %v488
      %v566 = vmul.f32 %v531, %v490
      %v567 = vmul.f32 %v531, %v493
      %v568 = vmul.f32 %v531, %v495
      %v569 = vmul.f32 %v531, %v498
      %v570 = vmul.f32 %v531, %v500
      %v571 = vmul.f32 %v531, %v503
      %v572 = vmul.f32 %v531, %v505
      %v573 = vmul.f32 %v531, %v508
      %v574 = vmul.f32 %v531, %v510
      %v575 = vmul.f32 %v531, %v513
      %v576 = vmul.f32 %v531, %v515
      %v577 = vmul.f32 %v531, %v518
      %v578 = vmul.f32 %v531, %v520
      %v579 = vmul.f32 %v532, %v443
      %v580 = vmul.f32 %v532, %v445
      %v581 = vmul.f32 %v532, %v448
      %v582 = vmul.f32 %v532, %v450
      %v583 = vmul.f32 %v532, %v453
      %v584 = vmul.f32 %v532, %v455
      %v585 = vmul.f32 %v532, %v458
      %v586 = vmul.f32 %v532, %v460
      %v587 = vmul.f32 %v532, %v463
      %v588 = vmul.f32 %v532, %v465
      %v589 = vmul.f32 %v532, %v468
      %v590 = vmul.f32 %v532, %v470
      %v591 = vmul.f32 %v532, %v473
      %v592 = vmul.f32 %v532, %v475
      %v593 = vmul.f32 %v532, %v478
      %v594 = vmul.f32 %v532, %v480
      %v595 = vmul.f32 %v532, %v483
      %v596 = vmul.f32 %v532, %v485
      %v597 = vmul.f32 %v532, %v488
      %v598 = vmul.f32 %v532, %v490
      %v599 = vmul.f32 %v532, %v493
      %v600 = vmul.f32 %v532, %v495
      %v601 = vmul.f32 %v532, %v498
      %v602 = vmul.f32 %v532, %v500
      %v603 = vmul.f32 %v532, %v503
      %v604 = vmul.f32 %v532, %v505
      %v605 = vmul.f32 %v532, %v508
      %v606 = vmul.f32 %v532, %v510
      %v607 = vmul.f32 %v532, %v513
      %v608 = vmul.f32 %v532, %v515
      %v609 = vmul.f32 %v532, %v518
      %v610 = vmul.f32 %v532, %v520
      %v611 = vmul.f32 %v533, %v443
      %v612 = vmul.f32 %v533, %v445
      %v613 = vmul.f32 %v533, %v448
      %v614 = vmul.f32 %v533, %v450
      %v615 = vmul.f32 %v533, %v453
      %v616 = vmul.f32 %v533, %v455
      %v617 = vmul.f32 %v533, %v458
      %v618 = vmul.f32 %v533, %v460
      %v619 = vmul.f32 %v533, %v463
      %v620 = vmul.f32 %v533, %v465
      %v621 = vmul.f32 %v533, %v468
      %v622 = vmul.f32 %v533, %v470
      %v623 = vmul.f32 %v533, %v473
      %v624 = vmul.f32 %v533, %v475
      %v625 = vmul.f32 %v533, %v478
      %v626 = vmul.f32 %v533, %v480
      %v627 = vmul.f32 %v533, %v483
      %v628 = vmul.f32 %v533, %v485
      %v629 = vmul.f32 %v533, %v488
      %v630 = vmul.f32 %v533, %v490
      %v631 = vmul.f32 %v533, %v493
      %v632 = vmul.f32 %v533, %v495
      %v633 = vmul.f32 %v533, %v498
      %v634 = vmul.f32 %v533, %v500
      %v635 = vmul.f32 %v533, %v503
      %v636 = vmul.f32 %v533, %v505
      %v637 = vmul.f32 %v533, %v508
      %v638 = vmul.f32 %v533, %v510
      %v639 = vmul.f32 %v533, %v513
      %v640 = vmul.f32 %v533, %v515
      %v641 = vmul.f32 %v533, %v518
      %v642 = vmul.f32 %v533, %v520
      %v643 = vmul.f32 %v534, %v443
      %v644 = vmul.f32 %v534, %v445
      %v645 = vmul.f32 %v534, %v448
      %v646 = vmul.f32 %v534, %v450
      %v647 = vmul.f32 %v534, %v453
      %v648 = vmul.f32 %v534, %v455
      %v649 = vmul.f32 %v534, %v458
      %v650 = vmul.f32 %v534, %v460
      %v651 = vmul.f32 %v534, %v463
      %v652 = vmul.f32 %v534, %v465
      %v653 = vmul.f32 %v534, %v468
      %v654 = vmul.f32 %v534, %v470
      %v655 = vmul.f32 %v534, %v473
      %v656 = vmul.f32 %v534, %v475
      %v657 = vmul.f32 %v534, %v478
      %v658 = vmul.f32 %v534, %v480
      %v659 = vmul.f32 %v534, %v483
      %v660 = vmul.f32 %v534, %v485
      %v661 = vmul.f32 %v534, %v488
      %v662 = vmul.f32 %v534, %v490
      %v663 = vmul.f32 %v534, %v493
      %v664 = vmul.f32 %v534, %v495
      %v665 = vmul.f32 %v534, %v498
      %v666 = vmul.f32 %v534, %v500
      %v667 = vmul.f32 %v534, %v503
      %v668 = vmul.f32 %v534, %v505
      %v669 = vmul.f32 %v534, %v508
      %v670 = vmul.f32 %v534, %v510
      %v671 = vmul.f32 %v534, %v513
      %v672 = vmul.f32 %v534, %v515
      %v673 = vmul.f32 %v534, %v518
      %v674 = vmul.f32 %v534, %v520
      %v675 = vmul.f32 %v535, %v443
      %v676 = vmul.f32 %v535, %v445
      %v677 = vmul.f32 %v535, %v448
      %v678 = vmul.f32 %v535, %v450
      %v679 = vmul.f32 %v535, %v453
      %v680 = vmul.f32 %v535, %v455
      %v681 = vmul.f32 %v535, %v458
      %v682 = vmul.f32 %v535, %v460
      %v683 = vmul.f32 %v535, %v463
      %v684 = vmul.f32 %v535, %v465
      %v685 = vmul.f32 %v535, %v468
      %v686 = vmul.f32 %v535, %v470
      %v687 = vmul.f32 %v535, %v473
      %v688 = vmul.f32 %v535, %v475
      %v689 = vmul.f32 %v535, %v478
      %v690 = vmul.f32 %v535, %v480
      %v691 = vmul.f32 %v535, %v483
      %v692 = vmul.f32 %v535, %v485
      %v693 = vmul.f32 %v535, %v488
      %v694 = vmul.f32 %v535, %v490
      %v695 = vmul.f32 %v535, %v493
      %v696 = vmul.f32 %v535, %v495
      %v697 = vmul.f32 %v535, %v498
      %v698 = vmul.f32 %v535, %v500
      %v699 = vmul.f32 %v535, %v503
      %v700 = vmul.f32 %v535, %v505
      %v701 = vmul.f32 %v535, %v508
      %v702 = vmul.f32 %v535, %v510
      %v703 = vmul.f32 %v535, %v513
      %v704 = vmul.f32 %v535, %v515
      %v705 = vmul.f32 %v535, %v518
      %v706 = vmul.f32 %v535, %v520
      %v707 = vmul.f32 %v536, %v443
      %v708 = vmul.f32 %v536, %v445
      %v709 = vmul.f32 %v536, %v448
      %v710 = vmul.f32 %v536, %v450
      %v711 = vmul.f32 %v536, %v453
      %v712 = vmul.f32 %v536, %v455
      %v713 = vmul.f32 %v536, %v458
      %v714 = vmul.f32 %v536, %v460
      %v715 = vmul.f32 %v536, %v463
      %v716 = vmul.f32 %v536, %v465
      %v717 = vmul.f32 %v536, %v468
      %v718 = vmul.f32 %v536, %v470
      %v719 = vmul.f32 %v536, %v473
      %v720 = vmul.f32 %v536, %v475
      %v721 = vmul.f32 %v536, %v478
      %v722 = vmul.f32 %v536, %v480
      %v723 = vmul.f32 %v536, %v483
      %v724 = vmul.f32 %v536, %v485
      %v725 = vmul.f32 %v536, %v488
      %v726 = vmul.f32 %v536, %v490
      %v727 = vmul.f32 %v536, %v493
      %v728 = vmul.f32 %v536, %v495
      %v729 = vmul.f32 %v536, %v498
      %v730 = vmul.f32 %v536, %v500
      %v731 = vmul.f32 %v536, %v503
      %v732 = vmul.f32 %v536, %v505
      %v733 = vmul.f32 %v536, %v508
      %v734 = vmul.f32 %v536, %v510
      %v735 = vmul.f32 %v536, %v513
      %v736 = vmul.f32 %v536, %v515
      %v737 = vmul.f32 %v536, %v518
      %v738 = vmul.f32 %v536, %v520
      %v739 = vmul.f32 %v537, %v443
      %v740 = vmul.f32 %v537, %v445
      %v741 = vmul.f32 %v537, %v448
      %v742 = vmul.f32 %v537, %v450
      %v743 = vmul.f32 %v537, %v453
      %v744 = vmul.f32 %v537, %v455
      %v745 = vmul.f32 %v537, %v458
      %v746 = vmul.f32 %v537, %v460
      %v747 = vmul.f32 %v537, %v463
      %v748 = vmul.f32 %v537, %v465
      %v749 = vmul.f32 %v537, %v468
      %v750 = vmul.f32 %v537, %v470
      %v751 = vmul.f32 %v537, %v473
      %v752 = vmul.f32 %v537, %v475
      %v753 = vmul.f32 %v537, %v478
      %v754 = vmul.f32 %v537, %v480
      %v755 = vmul.f32 %v537, %v483
      %v756 = vmul.f32 %v537, %v485
      %v757 = vmul.f32 %v537, %v488
      %v758 = vmul.f32 %v537, %v490
      %v759 = vmul.f32 %v537, %v493
      %v760 = vmul.f32 %v537, %v495
      %v761 = vmul.f32 %v537, %v498
      %v762 = vmul.f32 %v537, %v500
      %v763 = vmul.f32 %v537, %v503
      %v764 = vmul.f32 %v537, %v505
      %v765 = vmul.f32 %v537, %v508
      %v766 = vmul.f32 %v537, %v510
      %v767 = vmul.f32 %v537, %v513
      %v768 = vmul.f32 %v537, %v515
      %v769 = vmul.f32 %v537, %v518
      %v770 = vmul.f32 %v537, %v520
      %v771 = vmul.f32 %v538, %v443
      %v772 = vmul.f32 %v538, %v445
      %v773 = vmul.f32 %v538, %v448
      %v774 = vmul.f32 %v538, %v450
      %v775 = vmul.f32 %v538, %v453
      %v776 = vmul.f32 %v538, %v455
      %v777 = vmul.f32 %v538, %v458
      %v778 = vmul.f32 %v538, %v460
      %v779 = vmul.f32 %v538, %v463
      %v780 = vmul.f32 %v538, %v465
      %v781 = vmul.f32 %v538, %v468
      %v782 = vmul.f32 %v538, %v470
      %v783 = vmul.f32 %v538, %v473
      %v784 = vmul.f32 %v538, %v475
      %v785 = vmul.f32 %v538, %v478
      %v786 = vmul.f32 %v538, %v480
      %v787 = vmul.f32 %v538, %v483
      %v788 = vmul.f32 %v538, %v485
      %v789 = vmul.f32 %v538, %v488
      %v790 = vmul.f32 %v538, %v490
      %v791 = vmul.f32 %v538, %v493
      %v792 = vmul.f32 %v538, %v495
      %v793 = vmul.f32 %v538, %v498
      %v794 = vmul.f32 %v538, %v500
      %v795 = vmul.f32 %v538, %v503
      %v796 = vmul.f32 %v538, %v505
      %v797 = vmul.f32 %v538, %v508
      %v798 = vmul.f32 %v538, %v510
      %v799 = vmul.f32 %v538, %v513
      %v800 = vmul.f32 %v538, %v515
      %v801 = vmul.f32 %v538, %v518
      %v802 = vmul.f32 %v538, %v520
      %v803 = vtanh.pop %v547
      %v804 = vtanh.pop %v548
      %v805 = vtanh.pop %v549
      %v806 = vtanh.pop %v550
      %v807 = vtanh.pop %v551
      %v808 = vtanh.pop %v552
      %v809 = vtanh.pop %v553
      %v810 = vtanh.pop %v554
      %v811 = vtanh.pop %v555
      %v812 = vtanh.pop %v556
      %v813 = vtanh.pop %v557
      %v814 = vtanh.pop %v558
      %v815 = vtanh.pop %v559
      %v816 = vtanh.pop %v560
      %v817 = vtanh.pop %v561
      %v818 = vtanh.pop %v562
      %v819 = vtanh.pop %v563
      %v820 = vtanh.pop %v564
      %v821 = vtanh.pop %v565
      %v822 = vtanh.pop %v566
      %v823 = vtanh.pop %v567
      %v824 = vtanh.pop %v568
      %v825 = vtanh.pop %v569
      %v826 = vtanh.pop %v570
      %v827 = vtanh.pop %v571
      %v828 = vtanh.pop %v572
      %v829 = vtanh.pop %v573
      %v830 = vtanh.pop %v574
      %v831 = vtanh.pop %v575
      %v832 = vtanh.pop %v576
      %v833 = vtanh.pop %v577
      %v834 = vtanh.pop %v578
      %v835 = vtanh.pop %v579
      %v836 = vtanh.pop %v580
      %v837 = vtanh.pop %v581
      %v838 = vtanh.pop %v582
      %v839 = vtanh.pop %v583
      %v840 = vtanh.pop %v584
      %v841 = vtanh.pop %v585
      %v842 = vtanh.pop %v586
      %v843 = vtanh.pop %v587
      %v844 = vtanh.pop %v588
      %v845 = vtanh.pop %v589
      %v846 = vtanh.pop %v590
      %v847 = vtanh.pop %v591
      %v848 = vtanh.pop %v592
      %v849 = vtanh.pop %v593
      %v850 = vtanh.pop %v594
      %v851 = vtanh.pop %v595
      %v852 = vtanh.pop %v596
      %v853 = vtanh.pop %v597
      %v854 = vtanh.pop %v598
      %v855 = vtanh.pop %v599
      %v856 = vtanh.pop %v600
      %v857 = vtanh.pop %v601
      %v858 = vtanh.pop %v602
      %v859 = vtanh.pop %v603
      %v860 = vtanh.pop %v604
      %v861 = vtanh.pop %v605
      %v862 = vtanh.pop %v606
      %v863 = vtanh.pop %v607
      %v864 = vtanh.pop %v608
      %v865 = vtanh.pop %v609
      %v866 = vtanh.pop %v610
      %v867 = vtanh.pop %v611
      %v868 = vtanh.pop %v612
      %v869 = vtanh.pop %v613
      %v870 = vtanh.pop %v614
      %v871 = vtanh.pop %v615
      %v872 = vtanh.pop %v616
      %v873 = vtanh.pop %v617
      %v874 = vtanh.pop %v618
      %v875 = vtanh.pop %v619
      %v876 = vtanh.pop %v620
      %v877 = vtanh.pop %v621
      %v878 = vtanh.pop %v622
      %v879 = vtanh.pop %v623
      %v880 = vtanh.pop %v624
      %v881 = vtanh.pop %v625
      %v882 = vtanh.pop %v626
      %v883 = vtanh.pop %v627
      %v884 = vtanh.pop %v628
      %v885 = vtanh.pop %v629
      %v886 = vtanh.pop %v630
      %v887 = vtanh.pop %v631
      %v888 = vtanh.pop %v632
      %v889 = vtanh.pop %v633
      %v890 = vtanh.pop %v634
      %v891 = vtanh.pop %v635
      %v892 = vtanh.pop %v636
      %v893 = vtanh.pop %v637
      %v894 = vtanh.pop %v638
      %v895 = vtanh.pop %v639
      %v896 = vtanh.pop %v640
      %v897 = vtanh.pop %v641
      %v898 = vtanh.pop %v642
      %v899 = vtanh.pop %v643
      %v900 = vtanh.pop %v644
      %v901 = vtanh.pop %v645
      %v902 = vtanh.pop %v646
      %v903 = vtanh.pop %v647
      %v904 = vtanh.pop %v648
      %v905 = vtanh.pop %v649
      %v906 = vtanh.pop %v650
      %v907 = vtanh.pop %v651
      %v908 = vtanh.pop %v652
      %v909 = vtanh.pop %v653
      %v910 = vtanh.pop %v654
      %v911 = vtanh.pop %v655
      %v912 = vtanh.pop %v656
      %v913 = vtanh.pop %v657
      %v914 = vtanh.pop %v658
      %v915 = vtanh.pop %v659
      %v916 = vtanh.pop %v660
      %v917 = vtanh.pop %v661
      %v918 = vtanh.pop %v662
      %v919 = vtanh.pop %v663
      %v920 = vtanh.pop %v664
      %v921 = vtanh.pop %v665
      %v922 = vtanh.pop %v666
      %v923 = vtanh.pop %v667
      %v924 = vtanh.pop %v668
      %v925 = vtanh.pop %v669
      %v926 = vtanh.pop %v670
      %v927 = vtanh.pop %v671
      %v928 = vtanh.pop %v672
      %v929 = vtanh.pop %v673
      %v930 = vtanh.pop %v674
      %v931 = vtanh.pop %v675
      %v932 = vtanh.pop %v676
      %v933 = vtanh.pop %v677
      %v934 = vtanh.pop %v678
      %v935 = vtanh.pop %v679
      %v936 = vtanh.pop %v680
      %v937 = vtanh.pop %v681
      %v938 = vtanh.pop %v682
      %v939 = vtanh.pop %v683
      %v940 = vtanh.pop %v684
      %v941 = vtanh.pop %v685
      %v942 = vtanh.pop %v686
      %v943 = vtanh.pop %v687
      %v944 = vtanh.pop %v688
      %v945 = vtanh.pop %v689
      %v946 = vtanh.pop %v690
      %v947 = vtanh.pop %v691
      %v948 = vtanh.pop %v692
      %v949 = vtanh.pop %v693
      %v950 = vtanh.pop %v694
      %v951 = vtanh.pop %v695
      %v952 = vtanh.pop %v696
      %v953 = vtanh.pop %v697
      %v954 = vtanh.pop %v698
      %v955 = vtanh.pop %v699
      %v956 = vtanh.pop %v700
      %v957 = vtanh.pop %v701
      %v958 = vtanh.pop %v702
      %v959 = vtanh.pop %v703
      %v960 = vtanh.pop %v704
      %v961 = vtanh.pop %v705
      %v962 = vtanh.pop %v706
      %v963 = vtanh.pop %v707
      %v964 = vtanh.pop %v708
      %v965 = vtanh.pop %v709
      %v966 = vtanh.pop %v710
      %v967 = vtanh.pop %v711
      %v968 = vtanh.pop %v712
      %v969 = vtanh.pop %v713
      %v970 = vtanh.pop %v714
      %v971 = vtanh.pop %v715
      %v972 = vtanh.pop %v716
      %v973 = vtanh.pop %v717
      %v974 = vtanh.pop %v718
      %v975 = vtanh.pop %v719
      %v976 = vtanh.pop %v720
      %v977 = vtanh.pop %v721
      %v978 = vtanh.pop %v722
      %v979 = vtanh.pop %v723
      %v980 = vtanh.pop %v724
      %v981 = vtanh.pop %v725
      %v982 = vtanh.pop %v726
      %v983 = vtanh.pop %v727
      %v984 = vtanh.pop %v728
      %v985 = vtanh.pop %v729
      %v986 = vtanh.pop %v730
      %v987 = vtanh.pop %v731
      %v988 = vtanh.pop %v732
      %v989 = vtanh.pop %v733
      %v990 = vtanh.pop %v734
      %v991 = vtanh.pop %v735
      %v992 = vtanh.pop %v736
      %v993 = vtanh.pop %v737
      %v994 = vtanh.pop %v738
      %v995 = vtanh.pop %v739
      %v996 = vtanh.pop %v740
      %v997 = vtanh.pop %v741
      %v998 = vtanh.pop %v742
      %v999 = vtanh.pop %v743
      %v1000 = vtanh.pop %v744
      %v1001 = vtanh.pop %v745
      %v1002 = vtanh.pop %v746
      %v1003 = vtanh.pop %v747
      %v1004 = vtanh.pop %v748
      %v1005 = vtanh.pop %v749
      %v1006 = vtanh.pop %v750
      %v1007 = vtanh.pop %v751
      %v1008 = vtanh.pop %v752
      %v1009 = vtanh.pop %v753
      %v1010 = vtanh.pop %v754
      %v1011 = vtanh.pop %v755
      %v1012 = vtanh.pop %v756
      %v1013 = vtanh.pop %v757
      %v1014 = vtanh.pop %v758
      %v1015 = vtanh.pop %v759
      %v1016 = vtanh.pop %v760
      %v1017 = vtanh.pop %v761
      %v1018 = vtanh.pop %v762
      %v1019 = vtanh.pop %v763
      %v1020 = vtanh.pop %v764
      %v1021 = vtanh.pop %v765
      %v1022 = vtanh.pop %v766
      %v1023 = vtanh.pop %v767
      %v1024 = vtanh.pop %v768
      %v1025 = vtanh.pop %v769
      %v1026 = vtanh.pop %v770
      %v1027 = vtanh.pop %v771
      %v1028 = vtanh.pop %v772
      %v1029 = vtanh.pop %v773
      %v1030 = vtanh.pop %v774
      %v1031 = vtanh.pop %v775
      %v1032 = vtanh.pop %v776
      %v1033 = vtanh.pop %v777
      %v1034 = vtanh.pop %v778
      %v1035 = vtanh.pop %v779
      %v1036 = vtanh.pop %v780
      %v1037 = vtanh.pop %v781
      %v1038 = vtanh.pop %v782
      %v1039 = vtanh.pop %v783
      %v1040 = vtanh.pop %v784
      %v1041 = vtanh.pop %v785
      %v1042 = vtanh.pop %v786
      %v1043 = vtanh.pop %v787
      %v1044 = vtanh.pop %v788
      %v1045 = vtanh.pop %v789
      %v1046 = vtanh.pop %v790
      %v1047 = vtanh.pop %v791
      %v1048 = vtanh.pop %v792
      %v1049 = vtanh.pop %v793
      %v1050 = vtanh.pop %v794
      %v1051 = vtanh.pop %v795
      %v1052 = vtanh.pop %v796
      %v1053 = vtanh.pop %v797
      %v1054 = vtanh.pop %v798
      %v1055 = vtanh.pop %v799
      %v1056 = vtanh.pop %v800
      %v1057 = vtanh.pop %v801
      %v1058 = vtanh.pop %v802
      %v1059 = vld [vmem:[%s3] sm:$0x1]
      %v1061 = vperm.slane %v1059, 0
      %v1063 = vmul.f32 %v803, %v1061
      %v1064 = vmul.f32 %v804, %v1061
      %v1065 = vmul.f32 %v805, %v1061
      %v1066 = vmul.f32 %v806, %v1061
      %v1067 = vmul.f32 %v807, %v1061
      %v1068 = vmul.f32 %v808, %v1061
      %v1069 = vmul.f32 %v809, %v1061
      %v1070 = vmul.f32 %v810, %v1061
      %v1071 = vmul.f32 %v811, %v1061
      %v1072 = vmul.f32 %v812, %v1061
      %v1073 = vmul.f32 %v813, %v1061
      %v1074 = vmul.f32 %v814, %v1061
      %v1075 = vmul.f32 %v815, %v1061
      %v1076 = vmul.f32 %v816, %v1061
      %v1077 = vmul.f32 %v817, %v1061
      %v1078 = vmul.f32 %v818, %v1061
      %v1079 = vmul.f32 %v819, %v1061
      %v1080 = vmul.f32 %v820, %v1061
      %v1081 = vmul.f32 %v821, %v1061
      %v1082 = vmul.f32 %v822, %v1061
      %v1083 = vmul.f32 %v823, %v1061
      %v1084 = vmul.f32 %v824, %v1061
      %v1085 = vmul.f32 %v825, %v1061
      %v1086 = vmul.f32 %v826, %v1061
      %v1087 = vmul.f32 %v827, %v1061
      %v1088 = vmul.f32 %v828, %v1061
      %v1089 = vmul.f32 %v829, %v1061
      %v1090 = vmul.f32 %v830, %v1061
      %v1091 = vmul.f32 %v831, %v1061
      %v1092 = vmul.f32 %v832, %v1061
      %v1093 = vmul.f32 %v833, %v1061
      %v1094 = vmul.f32 %v834, %v1061
      %v1095 = vmul.f32 %v835, %v1061
      %v1096 = vmul.f32 %v836, %v1061
      %v1097 = vmul.f32 %v837, %v1061
      %v1098 = vmul.f32 %v838, %v1061
      %v1099 = vmul.f32 %v839, %v1061
      %v1100 = vmul.f32 %v840, %v1061
      %v1101 = vmul.f32 %v841, %v1061
      %v1102 = vmul.f32 %v842, %v1061
      %v1103 = vmul.f32 %v843, %v1061
      %v1104 = vmul.f32 %v844, %v1061
      %v1105 = vmul.f32 %v845, %v1061
      %v1106 = vmul.f32 %v846, %v1061
      %v1107 = vmul.f32 %v847, %v1061
      %v1108 = vmul.f32 %v848, %v1061
      %v1109 = vmul.f32 %v849, %v1061
      %v1110 = vmul.f32 %v850, %v1061
      %v1111 = vmul.f32 %v851, %v1061
      %v1112 = vmul.f32 %v852, %v1061
      %v1113 = vmul.f32 %v853, %v1061
      %v1114 = vmul.f32 %v854, %v1061
      %v1115 = vmul.f32 %v855, %v1061
      %v1116 = vmul.f32 %v856, %v1061
      %v1117 = vmul.f32 %v857, %v1061
      %v1118 = vmul.f32 %v858, %v1061
      %v1119 = vmul.f32 %v859, %v1061
      %v1120 = vmul.f32 %v860, %v1061
      %v1121 = vmul.f32 %v861, %v1061
      %v1122 = vmul.f32 %v862, %v1061
      %v1123 = vmul.f32 %v863, %v1061
      %v1124 = vmul.f32 %v864, %v1061
      %v1125 = vmul.f32 %v865, %v1061
      %v1126 = vmul.f32 %v866, %v1061
      %v1127 = vmul.f32 %v867, %v1061
      %v1128 = vmul.f32 %v868, %v1061
      %v1129 = vmul.f32 %v869, %v1061
      %v1130 = vmul.f32 %v870, %v1061
      %v1131 = vmul.f32 %v871, %v1061
      %v1132 = vmul.f32 %v872, %v1061
      %v1133 = vmul.f32 %v873, %v1061
      %v1134 = vmul.f32 %v874, %v1061
      %v1135 = vmul.f32 %v875, %v1061
      %v1136 = vmul.f32 %v876, %v1061
      %v1137 = vmul.f32 %v877, %v1061
      %v1138 = vmul.f32 %v878, %v1061
      %v1139 = vmul.f32 %v879, %v1061
      %v1140 = vmul.f32 %v880, %v1061
      %v1141 = vmul.f32 %v881, %v1061
      %v1142 = vmul.f32 %v882, %v1061
      %v1143 = vmul.f32 %v883, %v1061
      %v1144 = vmul.f32 %v884, %v1061
      %v1145 = vmul.f32 %v885, %v1061
      %v1146 = vmul.f32 %v886, %v1061
      %v1147 = vmul.f32 %v887, %v1061
      %v1148 = vmul.f32 %v888, %v1061
      %v1149 = vmul.f32 %v889, %v1061
      %v1150 = vmul.f32 %v890, %v1061
      %v1151 = vmul.f32 %v891, %v1061
      %v1152 = vmul.f32 %v892, %v1061
      %v1153 = vmul.f32 %v893, %v1061
      %v1154 = vmul.f32 %v894, %v1061
      %v1155 = vmul.f32 %v895, %v1061
      %v1156 = vmul.f32 %v896, %v1061
      %v1157 = vmul.f32 %v897, %v1061
      %v1158 = vmul.f32 %v898, %v1061
      %v1159 = vmul.f32 %v899, %v1061
      %v1160 = vmul.f32 %v900, %v1061
      %v1161 = vmul.f32 %v901, %v1061
      %v1162 = vmul.f32 %v902, %v1061
      %v1163 = vmul.f32 %v903, %v1061
      %v1164 = vmul.f32 %v904, %v1061
      %v1165 = vmul.f32 %v905, %v1061
      %v1166 = vmul.f32 %v906, %v1061
      %v1167 = vmul.f32 %v907, %v1061
      %v1168 = vmul.f32 %v908, %v1061
      %v1169 = vmul.f32 %v909, %v1061
      %v1170 = vmul.f32 %v910, %v1061
      %v1171 = vmul.f32 %v911, %v1061
      %v1172 = vmul.f32 %v912, %v1061
      %v1173 = vmul.f32 %v913, %v1061
      %v1174 = vmul.f32 %v914, %v1061
      %v1175 = vmul.f32 %v915, %v1061
      %v1176 = vmul.f32 %v916, %v1061
      %v1177 = vmul.f32 %v917, %v1061
      %v1178 = vmul.f32 %v918, %v1061
      %v1179 = vmul.f32 %v919, %v1061
      %v1180 = vmul.f32 %v920, %v1061
      %v1181 = vmul.f32 %v921, %v1061
      %v1182 = vmul.f32 %v922, %v1061
      %v1183 = vmul.f32 %v923, %v1061
      %v1184 = vmul.f32 %v924, %v1061
      %v1185 = vmul.f32 %v925, %v1061
      %v1186 = vmul.f32 %v926, %v1061
      %v1187 = vmul.f32 %v927, %v1061
      %v1188 = vmul.f32 %v928, %v1061
      %v1189 = vmul.f32 %v929, %v1061
      %v1190 = vmul.f32 %v930, %v1061
      %v1191 = vmul.f32 %v931, %v1061
      %v1192 = vmul.f32 %v932, %v1061
      %v1193 = vmul.f32 %v933, %v1061
      %v1194 = vmul.f32 %v934, %v1061
      %v1195 = vmul.f32 %v935, %v1061
      %v1196 = vmul.f32 %v936, %v1061
      %v1197 = vmul.f32 %v937, %v1061
      %v1198 = vmul.f32 %v938, %v1061
      %v1199 = vmul.f32 %v939, %v1061
      %v1200 = vmul.f32 %v940, %v1061
      %v1201 = vmul.f32 %v941, %v1061
      %v1202 = vmul.f32 %v942, %v1061
      %v1203 = vmul.f32 %v943, %v1061
      %v1204 = vmul.f32 %v944, %v1061
      %v1205 = vmul.f32 %v945, %v1061
      %v1206 = vmul.f32 %v946, %v1061
      %v1207 = vmul.f32 %v947, %v1061
      %v1208 = vmul.f32 %v948, %v1061
      %v1209 = vmul.f32 %v949, %v1061
      %v1210 = vmul.f32 %v950, %v1061
      %v1211 = vmul.f32 %v951, %v1061
      %v1212 = vmul.f32 %v952, %v1061
      %v1213 = vmul.f32 %v953, %v1061
      %v1214 = vmul.f32 %v954, %v1061
      %v1215 = vmul.f32 %v955, %v1061
      %v1216 = vmul.f32 %v956, %v1061
      %v1217 = vmul.f32 %v957, %v1061
      %v1218 = vmul.f32 %v958, %v1061
      %v1219 = vmul.f32 %v959, %v1061
      %v1220 = vmul.f32 %v960, %v1061
      %v1221 = vmul.f32 %v961, %v1061
      %v1222 = vmul.f32 %v962, %v1061
      %v1223 = vmul.f32 %v963, %v1061
      %v1224 = vmul.f32 %v964, %v1061
      %v1225 = vmul.f32 %v965, %v1061
      %v1226 = vmul.f32 %v966, %v1061
      %v1227 = vmul.f32 %v967, %v1061
      %v1228 = vmul.f32 %v968, %v1061
      %v1229 = vmul.f32 %v969, %v1061
      %v1230 = vmul.f32 %v970, %v1061
      %v1231 = vmul.f32 %v971, %v1061
      %v1232 = vmul.f32 %v972, %v1061
      %v1233 = vmul.f32 %v973, %v1061
      %v1234 = vmul.f32 %v974, %v1061
      %v1235 = vmul.f32 %v975, %v1061
      %v1236 = vmul.f32 %v976, %v1061
      %v1237 = vmul.f32 %v977, %v1061
      %v1238 = vmul.f32 %v978, %v1061
      %v1239 = vmul.f32 %v979, %v1061
      %v1240 = vmul.f32 %v980, %v1061
      %v1241 = vmul.f32 %v981, %v1061
      %v1242 = vmul.f32 %v982, %v1061
      %v1243 = vmul.f32 %v983, %v1061
      %v1244 = vmul.f32 %v984, %v1061
      %v1245 = vmul.f32 %v985, %v1061
      %v1246 = vmul.f32 %v986, %v1061
      %v1247 = vmul.f32 %v987, %v1061
      %v1248 = vmul.f32 %v988, %v1061
      %v1249 = vmul.f32 %v989, %v1061
      %v1250 = vmul.f32 %v990, %v1061
      %v1251 = vmul.f32 %v991, %v1061
      %v1252 = vmul.f32 %v992, %v1061
      %v1253 = vmul.f32 %v993, %v1061
      %v1254 = vmul.f32 %v994, %v1061
      %v1255 = vmul.f32 %v995, %v1061
      %v1256 = vmul.f32 %v996, %v1061
      %v1257 = vmul.f32 %v997, %v1061
      %v1258 = vmul.f32 %v998, %v1061
      %v1259 = vmul.f32 %v999, %v1061
      %v1260 = vmul.f32 %v1000, %v1061
      %v1261 = vmul.f32 %v1001, %v1061
      %v1262 = vmul.f32 %v1002, %v1061
      %v1263 = vmul.f32 %v1003, %v1061
      %v1264 = vmul.f32 %v1004, %v1061
      %v1265 = vmul.f32 %v1005, %v1061
      %v1266 = vmul.f32 %v1006, %v1061
      %v1267 = vmul.f32 %v1007, %v1061
      %v1268 = vmul.f32 %v1008, %v1061
      %v1269 = vmul.f32 %v1009, %v1061
      %v1270 = vmul.f32 %v1010, %v1061
      %v1271 = vmul.f32 %v1011, %v1061
      %v1272 = vmul.f32 %v1012, %v1061
      %v1273 = vmul.f32 %v1013, %v1061
      %v1274 = vmul.f32 %v1014, %v1061
      %v1275 = vmul.f32 %v1015, %v1061
      %v1276 = vmul.f32 %v1016, %v1061
      %v1277 = vmul.f32 %v1017, %v1061
      %v1278 = vmul.f32 %v1018, %v1061
      %v1279 = vmul.f32 %v1019, %v1061
      %v1280 = vmul.f32 %v1020, %v1061
      %v1281 = vmul.f32 %v1021, %v1061
      %v1282 = vmul.f32 %v1022, %v1061
      %v1283 = vmul.f32 %v1023, %v1061
      %v1284 = vmul.f32 %v1024, %v1061
      %v1285 = vmul.f32 %v1025, %v1061
      %v1286 = vmul.f32 %v1026, %v1061
      %v1287 = vmul.f32 %v1027, %v1061
      %v1288 = vmul.f32 %v1028, %v1061
      %v1289 = vmul.f32 %v1029, %v1061
      %v1290 = vmul.f32 %v1030, %v1061
      %v1291 = vmul.f32 %v1031, %v1061
      %v1292 = vmul.f32 %v1032, %v1061
      %v1293 = vmul.f32 %v1033, %v1061
      %v1294 = vmul.f32 %v1034, %v1061
      %v1295 = vmul.f32 %v1035, %v1061
      %v1296 = vmul.f32 %v1036, %v1061
      %v1297 = vmul.f32 %v1037, %v1061
      %v1298 = vmul.f32 %v1038, %v1061
      %v1299 = vmul.f32 %v1039, %v1061
      %v1300 = vmul.f32 %v1040, %v1061
      %v1301 = vmul.f32 %v1041, %v1061
      %v1302 = vmul.f32 %v1042, %v1061
      %v1303 = vmul.f32 %v1043, %v1061
      %v1304 = vmul.f32 %v1044, %v1061
      %v1305 = vmul.f32 %v1045, %v1061
      %v1306 = vmul.f32 %v1046, %v1061
      %v1307 = vmul.f32 %v1047, %v1061
      %v1308 = vmul.f32 %v1048, %v1061
      %v1309 = vmul.f32 %v1049, %v1061
      %v1310 = vmul.f32 %v1050, %v1061
      %v1311 = vmul.f32 %v1051, %v1061
      %v1312 = vmul.f32 %v1052, %v1061
      %v1313 = vmul.f32 %v1053, %v1061
      %v1314 = vmul.f32 %v1054, %v1061
      %v1315 = vmul.f32 %v1055, %v1061
      %v1316 = vmul.f32 %v1056, %v1061
      %v1317 = vmul.f32 %v1057, %v1061
      %v1318 = vmul.f32 %v1058, %v1061
      %vm1319 = vcmask 261120
      %v1320 = vsel %vm1319, %v1063, 0.0
      %1321 = vadd.xlane.f32.xlu0 %v1320
      %v1322 = vpop.xlane.xlu0 %1321
      %v1323 = vsel %vm1319, %v1064, 0.0
      %1324 = vadd.xlane.f32.xlu0 %v1323
      %v1325 = vpop.xlane.xlu0 %1324
      %v1326 = vsel %vm1319, %v1065, 0.0
      %1327 = vadd.xlane.f32.xlu0 %v1326
      %v1328 = vpop.xlane.xlu0 %1327
      %v1329 = vsel %vm1319, %v1066, 0.0
      %1330 = vadd.xlane.f32.xlu0 %v1329
      %v1331 = vpop.xlane.xlu0 %1330
      %v1332 = vsel %vm1319, %v1067, 0.0
      %1333 = vadd.xlane.f32.xlu0 %v1332
      %v1334 = vpop.xlane.xlu0 %1333
      %v1335 = vsel %vm1319, %v1068, 0.0
      %1336 = vadd.xlane.f32.xlu0 %v1335
      %v1337 = vpop.xlane.xlu0 %1336
      %v1338 = vsel %vm1319, %v1069, 0.0
      %1339 = vadd.xlane.f32.xlu0 %v1338
      %v1340 = vpop.xlane.xlu0 %1339
      %v1341 = vsel %vm1319, %v1070, 0.0
      %1342 = vadd.xlane.f32.xlu0 %v1341
      %v1343 = vpop.xlane.xlu0 %1342
      %v1344 = vsel %vm1319, %v1071, 0.0
      %1345 = vadd.xlane.f32.xlu0 %v1344
      %v1346 = vpop.xlane.xlu0 %1345
      %v1347 = vsel %vm1319, %v1072, 0.0
      %1348 = vadd.xlane.f32.xlu0 %v1347
      %v1349 = vpop.xlane.xlu0 %1348
      %v1350 = vsel %vm1319, %v1073, 0.0
      %1351 = vadd.xlane.f32.xlu0 %v1350
      %v1352 = vpop.xlane.xlu0 %1351
      %v1353 = vsel %vm1319, %v1074, 0.0
      %1354 = vadd.xlane.f32.xlu0 %v1353
      %v1355 = vpop.xlane.xlu0 %1354
      %v1356 = vsel %vm1319, %v1075, 0.0
      %1357 = vadd.xlane.f32.xlu0 %v1356
      %v1358 = vpop.xlane.xlu0 %1357
      %v1359 = vsel %vm1319, %v1076, 0.0
      %1360 = vadd.xlane.f32.xlu0 %v1359
      %v1361 = vpop.xlane.xlu0 %1360
      %v1362 = vsel %vm1319, %v1077, 0.0
      %1363 = vadd.xlane.f32.xlu0 %v1362
      %v1364 = vpop.xlane.xlu0 %1363
      %v1365 = vsel %vm1319, %v1078, 0.0
      %1366 = vadd.xlane.f32.xlu0 %v1365
      %v1367 = vpop.xlane.xlu0 %1366
      %v1368 = vsel %vm1319, %v1079, 0.0
      %1369 = vadd.xlane.f32.xlu0 %v1368
      %v1370 = vpop.xlane.xlu0 %1369
      %v1371 = vsel %vm1319, %v1080, 0.0
      %1372 = vadd.xlane.f32.xlu0 %v1371
      %v1373 = vpop.xlane.xlu0 %1372
      %v1374 = vsel %vm1319, %v1081, 0.0
      %1375 = vadd.xlane.f32.xlu0 %v1374
      %v1376 = vpop.xlane.xlu0 %1375
      %v1377 = vsel %vm1319, %v1082, 0.0
      %1378 = vadd.xlane.f32.xlu0 %v1377
      %v1379 = vpop.xlane.xlu0 %1378
      %v1380 = vsel %vm1319, %v1083, 0.0
      %1381 = vadd.xlane.f32.xlu0 %v1380
      %v1382 = vpop.xlane.xlu0 %1381
      %v1383 = vsel %vm1319, %v1084, 0.0
      %1384 = vadd.xlane.f32.xlu0 %v1383
      %v1385 = vpop.xlane.xlu0 %1384
      %v1386 = vsel %vm1319, %v1085, 0.0
      %1387 = vadd.xlane.f32.xlu0 %v1386
      %v1388 = vpop.xlane.xlu0 %1387
      %v1389 = vsel %vm1319, %v1086, 0.0
      %1390 = vadd.xlane.f32.xlu0 %v1389
      %v1391 = vpop.xlane.xlu0 %1390
      %v1392 = vsel %vm1319, %v1087, 0.0
      %1393 = vadd.xlane.f32.xlu0 %v1392
      %v1394 = vpop.xlane.xlu0 %1393
      %v1395 = vsel %vm1319, %v1088, 0.0
      %1396 = vadd.xlane.f32.xlu0 %v1395
      %v1397 = vpop.xlane.xlu0 %1396
      %v1398 = vsel %vm1319, %v1089, 0.0
      %1399 = vadd.xlane.f32.xlu0 %v1398
      %v1400 = vpop.xlane.xlu0 %1399
      %v1401 = vsel %vm1319, %v1090, 0.0
      %1402 = vadd.xlane.f32.xlu0 %v1401
      %v1403 = vpop.xlane.xlu0 %1402
      %v1404 = vsel %vm1319, %v1091, 0.0
      %1405 = vadd.xlane.f32.xlu0 %v1404
      %v1406 = vpop.xlane.xlu0 %1405
      %v1407 = vsel %vm1319, %v1092, 0.0
      %1408 = vadd.xlane.f32.xlu0 %v1407
      %v1409 = vpop.xlane.xlu0 %1408
      %v1410 = vsel %vm1319, %v1093, 0.0
      %1411 = vadd.xlane.f32.xlu0 %v1410
      %v1412 = vpop.xlane.xlu0 %1411
      %v1413 = vsel %vm1319, %v1094, 0.0
      %1414 = vadd.xlane.f32.xlu0 %v1413
      %v1415 = vpop.xlane.xlu0 %1414
      %v1416 = vsel %vm1319, %v1095, 0.0
      %1417 = vadd.xlane.f32.xlu0 %v1416
      %v1418 = vpop.xlane.xlu0 %1417
      %v1419 = vsel %vm1319, %v1096, 0.0
      %1420 = vadd.xlane.f32.xlu0 %v1419
      %v1421 = vpop.xlane.xlu0 %1420
      %v1422 = vsel %vm1319, %v1097, 0.0
      %1423 = vadd.xlane.f32.xlu0 %v1422
      %v1424 = vpop.xlane.xlu0 %1423
      %v1425 = vsel %vm1319, %v1098, 0.0
      %1426 = vadd.xlane.f32.xlu0 %v1425
      %v1427 = vpop.xlane.xlu0 %1426
      %v1428 = vsel %vm1319, %v1099, 0.0
      %1429 = vadd.xlane.f32.xlu0 %v1428
      %v1430 = vpop.xlane.xlu0 %1429
      %v1431 = vsel %vm1319, %v1100, 0.0
      %1432 = vadd.xlane.f32.xlu0 %v1431
      %v1433 = vpop.xlane.xlu0 %1432
      %v1434 = vsel %vm1319, %v1101, 0.0
      %1435 = vadd.xlane.f32.xlu0 %v1434
      %v1436 = vpop.xlane.xlu0 %1435
      %v1437 = vsel %vm1319, %v1102, 0.0
      %1438 = vadd.xlane.f32.xlu0 %v1437
      %v1439 = vpop.xlane.xlu0 %1438
      %v1440 = vsel %vm1319, %v1103, 0.0
      %1441 = vadd.xlane.f32.xlu0 %v1440
      %v1442 = vpop.xlane.xlu0 %1441
      %v1443 = vsel %vm1319, %v1104, 0.0
      %1444 = vadd.xlane.f32.xlu0 %v1443
      %v1445 = vpop.xlane.xlu0 %1444
      %v1446 = vsel %vm1319, %v1105, 0.0
      %1447 = vadd.xlane.f32.xlu0 %v1446
      %v1448 = vpop.xlane.xlu0 %1447
      %v1449 = vsel %vm1319, %v1106, 0.0
      %1450 = vadd.xlane.f32.xlu0 %v1449
      %v1451 = vpop.xlane.xlu0 %1450
      %v1452 = vsel %vm1319, %v1107, 0.0
      %1453 = vadd.xlane.f32.xlu0 %v1452
      %v1454 = vpop.xlane.xlu0 %1453
      %v1455 = vsel %vm1319, %v1108, 0.0
      %1456 = vadd.xlane.f32.xlu0 %v1455
      %v1457 = vpop.xlane.xlu0 %1456
      %v1458 = vsel %vm1319, %v1109, 0.0
      %1459 = vadd.xlane.f32.xlu0 %v1458
      %v1460 = vpop.xlane.xlu0 %1459
      %v1461 = vsel %vm1319, %v1110, 0.0
      %1462 = vadd.xlane.f32.xlu0 %v1461
      %v1463 = vpop.xlane.xlu0 %1462
      %v1464 = vsel %vm1319, %v1111, 0.0
      %1465 = vadd.xlane.f32.xlu0 %v1464
      %v1466 = vpop.xlane.xlu0 %1465
      %v1467 = vsel %vm1319, %v1112, 0.0
      %1468 = vadd.xlane.f32.xlu0 %v1467
      %v1469 = vpop.xlane.xlu0 %1468
      %v1470 = vsel %vm1319, %v1113, 0.0
      %1471 = vadd.xlane.f32.xlu0 %v1470
      %v1472 = vpop.xlane.xlu0 %1471
      %v1473 = vsel %vm1319, %v1114, 0.0
      %1474 = vadd.xlane.f32.xlu0 %v1473
      %v1475 = vpop.xlane.xlu0 %1474
      %v1476 = vsel %vm1319, %v1115, 0.0
      %1477 = vadd.xlane.f32.xlu0 %v1476
      %v1478 = vpop.xlane.xlu0 %1477
      %v1479 = vsel %vm1319, %v1116, 0.0
      %1480 = vadd.xlane.f32.xlu0 %v1479
      %v1481 = vpop.xlane.xlu0 %1480
      %v1482 = vsel %vm1319, %v1117, 0.0
      %1483 = vadd.xlane.f32.xlu0 %v1482
      %v1484 = vpop.xlane.xlu0 %1483
      %v1485 = vsel %vm1319, %v1118, 0.0
      %1486 = vadd.xlane.f32.xlu0 %v1485
      %v1487 = vpop.xlane.xlu0 %1486
      %v1488 = vsel %vm1319, %v1119, 0.0
      %1489 = vadd.xlane.f32.xlu0 %v1488
      %v1490 = vpop.xlane.xlu0 %1489
      %v1491 = vsel %vm1319, %v1120, 0.0
      %1492 = vadd.xlane.f32.xlu0 %v1491
      %v1493 = vpop.xlane.xlu0 %1492
      %v1494 = vsel %vm1319, %v1121, 0.0
      %1495 = vadd.xlane.f32.xlu0 %v1494
      %v1496 = vpop.xlane.xlu0 %1495
      %v1497 = vsel %vm1319, %v1122, 0.0
      %1498 = vadd.xlane.f32.xlu0 %v1497
      %v1499 = vpop.xlane.xlu0 %1498
      %v1500 = vsel %vm1319, %v1123, 0.0
      %1501 = vadd.xlane.f32.xlu0 %v1500
      %v1502 = vpop.xlane.xlu0 %1501
      %v1503 = vsel %vm1319, %v1124, 0.0
      %1504 = vadd.xlane.f32.xlu0 %v1503
      %v1505 = vpop.xlane.xlu0 %1504
      %v1506 = vsel %vm1319, %v1125, 0.0
      %1507 = vadd.xlane.f32.xlu0 %v1506
      %v1508 = vpop.xlane.xlu0 %1507
      %v1509 = vsel %vm1319, %v1126, 0.0
      %1510 = vadd.xlane.f32.xlu0 %v1509
      %v1511 = vpop.xlane.xlu0 %1510
      %v1512 = vsel %vm1319, %v1127, 0.0
      %1513 = vadd.xlane.f32.xlu0 %v1512
      %v1514 = vpop.xlane.xlu0 %1513
      %v1515 = vsel %vm1319, %v1128, 0.0
      %1516 = vadd.xlane.f32.xlu0 %v1515
      %v1517 = vpop.xlane.xlu0 %1516
      %v1518 = vsel %vm1319, %v1129, 0.0
      %1519 = vadd.xlane.f32.xlu0 %v1518
      %v1520 = vpop.xlane.xlu0 %1519
      %v1521 = vsel %vm1319, %v1130, 0.0
      %1522 = vadd.xlane.f32.xlu0 %v1521
      %v1523 = vpop.xlane.xlu0 %1522
      %v1524 = vsel %vm1319, %v1131, 0.0
      %1525 = vadd.xlane.f32.xlu0 %v1524
      %v1526 = vpop.xlane.xlu0 %1525
      %v1527 = vsel %vm1319, %v1132, 0.0
      %1528 = vadd.xlane.f32.xlu0 %v1527
      %v1529 = vpop.xlane.xlu0 %1528
      %v1530 = vsel %vm1319, %v1133, 0.0
      %1531 = vadd.xlane.f32.xlu0 %v1530
      %v1532 = vpop.xlane.xlu0 %1531
      %v1533 = vsel %vm1319, %v1134, 0.0
      %1534 = vadd.xlane.f32.xlu0 %v1533
      %v1535 = vpop.xlane.xlu0 %1534
      %v1536 = vsel %vm1319, %v1135, 0.0
      %1537 = vadd.xlane.f32.xlu0 %v1536
      %v1538 = vpop.xlane.xlu0 %1537
      %v1539 = vsel %vm1319, %v1136, 0.0
      %1540 = vadd.xlane.f32.xlu0 %v1539
      %v1541 = vpop.xlane.xlu0 %1540
      %v1542 = vsel %vm1319, %v1137, 0.0
      %1543 = vadd.xlane.f32.xlu0 %v1542
      %v1544 = vpop.xlane.xlu0 %1543
      %v1545 = vsel %vm1319, %v1138, 0.0
      %1546 = vadd.xlane.f32.xlu0 %v1545
      %v1547 = vpop.xlane.xlu0 %1546
      %v1548 = vsel %vm1319, %v1139, 0.0
      %1549 = vadd.xlane.f32.xlu0 %v1548
      %v1550 = vpop.xlane.xlu0 %1549
      %v1551 = vsel %vm1319, %v1140, 0.0
      %1552 = vadd.xlane.f32.xlu0 %v1551
      %v1553 = vpop.xlane.xlu0 %1552
      %v1554 = vsel %vm1319, %v1141, 0.0
      %1555 = vadd.xlane.f32.xlu0 %v1554
      %v1556 = vpop.xlane.xlu0 %1555
      %v1557 = vsel %vm1319, %v1142, 0.0
      %1558 = vadd.xlane.f32.xlu0 %v1557
      %v1559 = vpop.xlane.xlu0 %1558
      %v1560 = vsel %vm1319, %v1143, 0.0
      %1561 = vadd.xlane.f32.xlu0 %v1560
      %v1562 = vpop.xlane.xlu0 %1561
      %v1563 = vsel %vm1319, %v1144, 0.0
      %1564 = vadd.xlane.f32.xlu0 %v1563
      %v1565 = vpop.xlane.xlu0 %1564
      %v1566 = vsel %vm1319, %v1145, 0.0
      %1567 = vadd.xlane.f32.xlu0 %v1566
      %v1568 = vpop.xlane.xlu0 %1567
      %v1569 = vsel %vm1319, %v1146, 0.0
      %1570 = vadd.xlane.f32.xlu0 %v1569
      %v1571 = vpop.xlane.xlu0 %1570
      %v1572 = vsel %vm1319, %v1147, 0.0
      %1573 = vadd.xlane.f32.xlu0 %v1572
      %v1574 = vpop.xlane.xlu0 %1573
      %v1575 = vsel %vm1319, %v1148, 0.0
      %1576 = vadd.xlane.f32.xlu0 %v1575
      %v1577 = vpop.xlane.xlu0 %1576
      %v1578 = vsel %vm1319, %v1149, 0.0
      %1579 = vadd.xlane.f32.xlu0 %v1578
      %v1580 = vpop.xlane.xlu0 %1579
      %v1581 = vsel %vm1319, %v1150, 0.0
      %1582 = vadd.xlane.f32.xlu0 %v1581
      %v1583 = vpop.xlane.xlu0 %1582
      %v1584 = vsel %vm1319, %v1151, 0.0
      %1585 = vadd.xlane.f32.xlu0 %v1584
      %v1586 = vpop.xlane.xlu0 %1585
      %v1587 = vsel %vm1319, %v1152, 0.0
      %1588 = vadd.xlane.f32.xlu0 %v1587
      %v1589 = vpop.xlane.xlu0 %1588
      %v1590 = vsel %vm1319, %v1153, 0.0
      %1591 = vadd.xlane.f32.xlu0 %v1590
      %v1592 = vpop.xlane.xlu0 %1591
      %v1593 = vsel %vm1319, %v1154, 0.0
      %1594 = vadd.xlane.f32.xlu0 %v1593
      %v1595 = vpop.xlane.xlu0 %1594
      %v1596 = vsel %vm1319, %v1155, 0.0
      %1597 = vadd.xlane.f32.xlu0 %v1596
      %v1598 = vpop.xlane.xlu0 %1597
      %v1599 = vsel %vm1319, %v1156, 0.0
      %1600 = vadd.xlane.f32.xlu0 %v1599
      %v1601 = vpop.xlane.xlu0 %1600
      %v1602 = vsel %vm1319, %v1157, 0.0
      %1603 = vadd.xlane.f32.xlu0 %v1602
      %v1604 = vpop.xlane.xlu0 %1603
      %v1605 = vsel %vm1319, %v1158, 0.0
      %1606 = vadd.xlane.f32.xlu0 %v1605
      %v1607 = vpop.xlane.xlu0 %1606
      %v1608 = vsel %vm1319, %v1159, 0.0
      %1609 = vadd.xlane.f32.xlu0 %v1608
      %v1610 = vpop.xlane.xlu0 %1609
      %v1611 = vsel %vm1319, %v1160, 0.0
      %1612 = vadd.xlane.f32.xlu0 %v1611
      %v1613 = vpop.xlane.xlu0 %1612
      %v1614 = vsel %vm1319, %v1161, 0.0
      %1615 = vadd.xlane.f32.xlu0 %v1614
      %v1616 = vpop.xlane.xlu0 %1615
      %v1617 = vsel %vm1319, %v1162, 0.0
      %1618 = vadd.xlane.f32.xlu0 %v1617
      %v1619 = vpop.xlane.xlu0 %1618
      %v1620 = vsel %vm1319, %v1163, 0.0
      %1621 = vadd.xlane.f32.xlu0 %v1620
      %v1622 = vpop.xlane.xlu0 %1621
      %v1623 = vsel %vm1319, %v1164, 0.0
      %1624 = vadd.xlane.f32.xlu0 %v1623
      %v1625 = vpop.xlane.xlu0 %1624
      %v1626 = vsel %vm1319, %v1165, 0.0
      %1627 = vadd.xlane.f32.xlu0 %v1626
      %v1628 = vpop.xlane.xlu0 %1627
      %v1629 = vsel %vm1319, %v1166, 0.0
      %1630 = vadd.xlane.f32.xlu0 %v1629
      %v1631 = vpop.xlane.xlu0 %1630
      %v1632 = vsel %vm1319, %v1167, 0.0
      %1633 = vadd.xlane.f32.xlu0 %v1632
      %v1634 = vpop.xlane.xlu0 %1633
      %v1635 = vsel %vm1319, %v1168, 0.0
      %1636 = vadd.xlane.f32.xlu0 %v1635
      %v1637 = vpop.xlane.xlu0 %1636
      %v1638 = vsel %vm1319, %v1169, 0.0
      %1639 = vadd.xlane.f32.xlu0 %v1638
      %v1640 = vpop.xlane.xlu0 %1639
      %v1641 = vsel %vm1319, %v1170, 0.0
      %1642 = vadd.xlane.f32.xlu0 %v1641
      %v1643 = vpop.xlane.xlu0 %1642
      %v1644 = vsel %vm1319, %v1171, 0.0
      %1645 = vadd.xlane.f32.xlu0 %v1644
      %v1646 = vpop.xlane.xlu0 %1645
      %v1647 = vsel %vm1319, %v1172, 0.0
      %1648 = vadd.xlane.f32.xlu0 %v1647
      %v1649 = vpop.xlane.xlu0 %1648
      %v1650 = vsel %vm1319, %v1173, 0.0
      %1651 = vadd.xlane.f32.xlu0 %v1650
      %v1652 = vpop.xlane.xlu0 %1651
      %v1653 = vsel %vm1319, %v1174, 0.0
      %1654 = vadd.xlane.f32.xlu0 %v1653
      %v1655 = vpop.xlane.xlu0 %1654
      %v1656 = vsel %vm1319, %v1175, 0.0
      %1657 = vadd.xlane.f32.xlu0 %v1656
      %v1658 = vpop.xlane.xlu0 %1657
      %v1659 = vsel %vm1319, %v1176, 0.0
      %1660 = vadd.xlane.f32.xlu0 %v1659
      %v1661 = vpop.xlane.xlu0 %1660
      %v1662 = vsel %vm1319, %v1177, 0.0
      %1663 = vadd.xlane.f32.xlu0 %v1662
      %v1664 = vpop.xlane.xlu0 %1663
      %v1665 = vsel %vm1319, %v1178, 0.0
      %1666 = vadd.xlane.f32.xlu0 %v1665
      %v1667 = vpop.xlane.xlu0 %1666
      %v1668 = vsel %vm1319, %v1179, 0.0
      %1669 = vadd.xlane.f32.xlu0 %v1668
      %v1670 = vpop.xlane.xlu0 %1669
      %v1671 = vsel %vm1319, %v1180, 0.0
      %1672 = vadd.xlane.f32.xlu0 %v1671
      %v1673 = vpop.xlane.xlu0 %1672
      %v1674 = vsel %vm1319, %v1181, 0.0
      %1675 = vadd.xlane.f32.xlu0 %v1674
      %v1676 = vpop.xlane.xlu0 %1675
      %v1677 = vsel %vm1319, %v1182, 0.0
      %1678 = vadd.xlane.f32.xlu0 %v1677
      %v1679 = vpop.xlane.xlu0 %1678
      %v1680 = vsel %vm1319, %v1183, 0.0
      %1681 = vadd.xlane.f32.xlu0 %v1680
      %v1682 = vpop.xlane.xlu0 %1681
      %v1683 = vsel %vm1319, %v1184, 0.0
      %1684 = vadd.xlane.f32.xlu0 %v1683
      %v1685 = vpop.xlane.xlu0 %1684
      %v1686 = vsel %vm1319, %v1185, 0.0
      %1687 = vadd.xlane.f32.xlu0 %v1686
      %v1688 = vpop.xlane.xlu0 %1687
      %v1689 = vsel %vm1319, %v1186, 0.0
      %1690 = vadd.xlane.f32.xlu0 %v1689
      %v1691 = vpop.xlane.xlu0 %1690
      %v1692 = vsel %vm1319, %v1187, 0.0
      %1693 = vadd.xlane.f32.xlu0 %v1692
      %v1694 = vpop.xlane.xlu0 %1693
      %v1695 = vsel %vm1319, %v1188, 0.0
      %1696 = vadd.xlane.f32.xlu0 %v1695
      %v1697 = vpop.xlane.xlu0 %1696
      %v1698 = vsel %vm1319, %v1189, 0.0
      %1699 = vadd.xlane.f32.xlu0 %v1698
      %v1700 = vpop.xlane.xlu0 %1699
      %v1701 = vsel %vm1319, %v1190, 0.0
      %1702 = vadd.xlane.f32.xlu0 %v1701
      %v1703 = vpop.xlane.xlu0 %1702
      %v1704 = vsel %vm1319, %v1191, 0.0
      %1705 = vadd.xlane.f32.xlu0 %v1704
      %v1706 = vpop.xlane.xlu0 %1705
      %v1707 = vsel %vm1319, %v1192, 0.0
      %1708 = vadd.xlane.f32.xlu0 %v1707
      %v1709 = vpop.xlane.xlu0 %1708
      %v1710 = vsel %vm1319, %v1193, 0.0
      %1711 = vadd.xlane.f32.xlu0 %v1710
      %v1712 = vpop.xlane.xlu0 %1711
      %v1713 = vsel %vm1319, %v1194, 0.0
      %1714 = vadd.xlane.f32.xlu0 %v1713
      %v1715 = vpop.xlane.xlu0 %1714
      %v1716 = vsel %vm1319, %v1195, 0.0
      %1717 = vadd.xlane.f32.xlu0 %v1716
      %v1718 = vpop.xlane.xlu0 %1717
      %v1719 = vsel %vm1319, %v1196, 0.0
      %1720 = vadd.xlane.f32.xlu0 %v1719
      %v1721 = vpop.xlane.xlu0 %1720
      %v1722 = vsel %vm1319, %v1197, 0.0
      %1723 = vadd.xlane.f32.xlu0 %v1722
      %v1724 = vpop.xlane.xlu0 %1723
      %v1725 = vsel %vm1319, %v1198, 0.0
      %1726 = vadd.xlane.f32.xlu0 %v1725
      %v1727 = vpop.xlane.xlu0 %1726
      %v1728 = vsel %vm1319, %v1199, 0.0
      %1729 = vadd.xlane.f32.xlu0 %v1728
      %v1730 = vpop.xlane.xlu0 %1729
      %v1731 = vsel %vm1319, %v1200, 0.0
      %1732 = vadd.xlane.f32.xlu0 %v1731
      %v1733 = vpop.xlane.xlu0 %1732
      %v1734 = vsel %vm1319, %v1201, 0.0
      %1735 = vadd.xlane.f32.xlu0 %v1734
      %v1736 = vpop.xlane.xlu0 %1735
      %v1737 = vsel %vm1319, %v1202, 0.0
      %1738 = vadd.xlane.f32.xlu0 %v1737
      %v1739 = vpop.xlane.xlu0 %1738
      %v1740 = vsel %vm1319, %v1203, 0.0
      %1741 = vadd.xlane.f32.xlu0 %v1740
      %v1742 = vpop.xlane.xlu0 %1741
      %v1743 = vsel %vm1319, %v1204, 0.0
      %1744 = vadd.xlane.f32.xlu0 %v1743
      %v1745 = vpop.xlane.xlu0 %1744
      %v1746 = vsel %vm1319, %v1205, 0.0
      %1747 = vadd.xlane.f32.xlu0 %v1746
      %v1748 = vpop.xlane.xlu0 %1747
      %v1749 = vsel %vm1319, %v1206, 0.0
      %1750 = vadd.xlane.f32.xlu0 %v1749
      %v1751 = vpop.xlane.xlu0 %1750
      %v1752 = vsel %vm1319, %v1207, 0.0
      %1753 = vadd.xlane.f32.xlu0 %v1752
      %v1754 = vpop.xlane.xlu0 %1753
      %v1755 = vsel %vm1319, %v1208, 0.0
      %1756 = vadd.xlane.f32.xlu0 %v1755
      %v1757 = vpop.xlane.xlu0 %1756
      %v1758 = vsel %vm1319, %v1209, 0.0
      %1759 = vadd.xlane.f32.xlu0 %v1758
      %v1760 = vpop.xlane.xlu0 %1759
      %v1761 = vsel %vm1319, %v1210, 0.0
      %1762 = vadd.xlane.f32.xlu0 %v1761
      %v1763 = vpop.xlane.xlu0 %1762
      %v1764 = vsel %vm1319, %v1211, 0.0
      %1765 = vadd.xlane.f32.xlu0 %v1764
      %v1766 = vpop.xlane.xlu0 %1765
      %v1767 = vsel %vm1319, %v1212, 0.0
      %1768 = vadd.xlane.f32.xlu0 %v1767
      %v1769 = vpop.xlane.xlu0 %1768
      %v1770 = vsel %vm1319, %v1213, 0.0
      %1771 = vadd.xlane.f32.xlu0 %v1770
      %v1772 = vpop.xlane.xlu0 %1771
      %v1773 = vsel %vm1319, %v1214, 0.0
      %1774 = vadd.xlane.f32.xlu0 %v1773
      %v1775 = vpop.xlane.xlu0 %1774
      %v1776 = vsel %vm1319, %v1215, 0.0
      %1777 = vadd.xlane.f32.xlu0 %v1776
      %v1778 = vpop.xlane.xlu0 %1777
      %v1779 = vsel %vm1319, %v1216, 0.0
      %1780 = vadd.xlane.f32.xlu0 %v1779
      %v1781 = vpop.xlane.xlu0 %1780
      %v1782 = vsel %vm1319, %v1217, 0.0
      %1783 = vadd.xlane.f32.xlu0 %v1782
      %v1784 = vpop.xlane.xlu0 %1783
      %v1785 = vsel %vm1319, %v1218, 0.0
      %1786 = vadd.xlane.f32.xlu0 %v1785
      %v1787 = vpop.xlane.xlu0 %1786
      %v1788 = vsel %vm1319, %v1219, 0.0
      %1789 = vadd.xlane.f32.xlu0 %v1788
      %v1790 = vpop.xlane.xlu0 %1789
      %v1791 = vsel %vm1319, %v1220, 0.0
      %1792 = vadd.xlane.f32.xlu0 %v1791
      %v1793 = vpop.xlane.xlu0 %1792
      %v1794 = vsel %vm1319, %v1221, 0.0
      %1795 = vadd.xlane.f32.xlu0 %v1794
      %v1796 = vpop.xlane.xlu0 %1795
      %v1797 = vsel %vm1319, %v1222, 0.0
      %1798 = vadd.xlane.f32.xlu0 %v1797
      %v1799 = vpop.xlane.xlu0 %1798
      %v1800 = vsel %vm1319, %v1223, 0.0
      %1801 = vadd.xlane.f32.xlu0 %v1800
      %v1802 = vpop.xlane.xlu0 %1801
      %v1803 = vsel %vm1319, %v1224, 0.0
      %1804 = vadd.xlane.f32.xlu0 %v1803
      %v1805 = vpop.xlane.xlu0 %1804
      %v1806 = vsel %vm1319, %v1225, 0.0
      %1807 = vadd.xlane.f32.xlu0 %v1806
      %v1808 = vpop.xlane.xlu0 %1807
      %v1809 = vsel %vm1319, %v1226, 0.0
      %1810 = vadd.xlane.f32.xlu0 %v1809
      %v1811 = vpop.xlane.xlu0 %1810
      %v1812 = vsel %vm1319, %v1227, 0.0
      %1813 = vadd.xlane.f32.xlu0 %v1812
      %v1814 = vpop.xlane.xlu0 %1813
      %v1815 = vsel %vm1319, %v1228, 0.0
      %1816 = vadd.xlane.f32.xlu0 %v1815
      %v1817 = vpop.xlane.xlu0 %1816
      %v1818 = vsel %vm1319, %v1229, 0.0
      %1819 = vadd.xlane.f32.xlu0 %v1818
      %v1820 = vpop.xlane.xlu0 %1819
      %v1821 = vsel %vm1319, %v1230, 0.0
      %1822 = vadd.xlane.f32.xlu0 %v1821
      %v1823 = vpop.xlane.xlu0 %1822
      %v1824 = vsel %vm1319, %v1231, 0.0
      %1825 = vadd.xlane.f32.xlu0 %v1824
      %v1826 = vpop.xlane.xlu0 %1825
      %v1827 = vsel %vm1319, %v1232, 0.0
      %1828 = vadd.xlane.f32.xlu0 %v1827
      %v1829 = vpop.xlane.xlu0 %1828
      %v1830 = vsel %vm1319, %v1233, 0.0
      %1831 = vadd.xlane.f32.xlu0 %v1830
      %v1832 = vpop.xlane.xlu0 %1831
      %v1833 = vsel %vm1319, %v1234, 0.0
      %1834 = vadd.xlane.f32.xlu0 %v1833
      %v1835 = vpop.xlane.xlu0 %1834
      %v1836 = vsel %vm1319, %v1235, 0.0
      %1837 = vadd.xlane.f32.xlu0 %v1836
      %v1838 = vpop.xlane.xlu0 %1837
      %v1839 = vsel %vm1319, %v1236, 0.0
      %1840 = vadd.xlane.f32.xlu0 %v1839
      %v1841 = vpop.xlane.xlu0 %1840
      %v1842 = vsel %vm1319, %v1237, 0.0
      %1843 = vadd.xlane.f32.xlu0 %v1842
      %v1844 = vpop.xlane.xlu0 %1843
      %v1845 = vsel %vm1319, %v1238, 0.0
      %1846 = vadd.xlane.f32.xlu0 %v1845
      %v1847 = vpop.xlane.xlu0 %1846
      %v1848 = vsel %vm1319, %v1239, 0.0
      %1849 = vadd.xlane.f32.xlu0 %v1848
      %v1850 = vpop.xlane.xlu0 %1849
      %v1851 = vsel %vm1319, %v1240, 0.0
      %1852 = vadd.xlane.f32.xlu0 %v1851
      %v1853 = vpop.xlane.xlu0 %1852
      %v1854 = vsel %vm1319, %v1241, 0.0
      %1855 = vadd.xlane.f32.xlu0 %v1854
      %v1856 = vpop.xlane.xlu0 %1855
      %v1857 = vsel %vm1319, %v1242, 0.0
      %1858 = vadd.xlane.f32.xlu0 %v1857
      %v1859 = vpop.xlane.xlu0 %1858
      %v1860 = vsel %vm1319, %v1243, 0.0
      %1861 = vadd.xlane.f32.xlu0 %v1860
      %v1862 = vpop.xlane.xlu0 %1861
      %v1863 = vsel %vm1319, %v1244, 0.0
      %1864 = vadd.xlane.f32.xlu0 %v1863
      %v1865 = vpop.xlane.xlu0 %1864
      %v1866 = vsel %vm1319, %v1245, 0.0
      %1867 = vadd.xlane.f32.xlu0 %v1866
      %v1868 = vpop.xlane.xlu0 %1867
      %v1869 = vsel %vm1319, %v1246, 0.0
      %1870 = vadd.xlane.f32.xlu0 %v1869
      %v1871 = vpop.xlane.xlu0 %1870
      %v1872 = vsel %vm1319, %v1247, 0.0
      %1873 = vadd.xlane.f32.xlu0 %v1872
      %v1874 = vpop.xlane.xlu0 %1873
      %v1875 = vsel %vm1319, %v1248, 0.0
      %1876 = vadd.xlane.f32.xlu0 %v1875
      %v1877 = vpop.xlane.xlu0 %1876
      %v1878 = vsel %vm1319, %v1249, 0.0
      %1879 = vadd.xlane.f32.xlu0 %v1878
      %v1880 = vpop.xlane.xlu0 %1879
      %v1881 = vsel %vm1319, %v1250, 0.0
      %1882 = vadd.xlane.f32.xlu0 %v1881
      %v1883 = vpop.xlane.xlu0 %1882
      %v1884 = vsel %vm1319, %v1251, 0.0
      %1885 = vadd.xlane.f32.xlu0 %v1884
      %v1886 = vpop.xlane.xlu0 %1885
      %v1887 = vsel %vm1319, %v1252, 0.0
      %1888 = vadd.xlane.f32.xlu0 %v1887
      %v1889 = vpop.xlane.xlu0 %1888
      %v1890 = vsel %vm1319, %v1253, 0.0
      %1891 = vadd.xlane.f32.xlu0 %v1890
      %v1892 = vpop.xlane.xlu0 %1891
      %v1893 = vsel %vm1319, %v1254, 0.0
      %1894 = vadd.xlane.f32.xlu0 %v1893
      %v1895 = vpop.xlane.xlu0 %1894
      %v1896 = vsel %vm1319, %v1255, 0.0
      %1897 = vadd.xlane.f32.xlu0 %v1896
      %v1898 = vpop.xlane.xlu0 %1897
      %v1899 = vsel %vm1319, %v1256, 0.0
      %1900 = vadd.xlane.f32.xlu0 %v1899
      %v1901 = vpop.xlane.xlu0 %1900
      %v1902 = vsel %vm1319, %v1257, 0.0
      %1903 = vadd.xlane.f32.xlu0 %v1902
      %v1904 = vpop.xlane.xlu0 %1903
      %v1905 = vsel %vm1319, %v1258, 0.0
      %1906 = vadd.xlane.f32.xlu0 %v1905
      %v1907 = vpop.xlane.xlu0 %1906
      %v1908 = vsel %vm1319, %v1259, 0.0
      %1909 = vadd.xlane.f32.xlu0 %v1908
      %v1910 = vpop.xlane.xlu0 %1909
      %v1911 = vsel %vm1319, %v1260, 0.0
      %1912 = vadd.xlane.f32.xlu0 %v1911
      %v1913 = vpop.xlane.xlu0 %1912
      %v1914 = vsel %vm1319, %v1261, 0.0
      %1915 = vadd.xlane.f32.xlu0 %v1914
      %v1916 = vpop.xlane.xlu0 %1915
      %v1917 = vsel %vm1319, %v1262, 0.0
      %1918 = vadd.xlane.f32.xlu0 %v1917
      %v1919 = vpop.xlane.xlu0 %1918
      %v1920 = vsel %vm1319, %v1263, 0.0
      %1921 = vadd.xlane.f32.xlu0 %v1920
      %v1922 = vpop.xlane.xlu0 %1921
      %v1923 = vsel %vm1319, %v1264, 0.0
      %1924 = vadd.xlane.f32.xlu0 %v1923
      %v1925 = vpop.xlane.xlu0 %1924
      %v1926 = vsel %vm1319, %v1265, 0.0
      %1927 = vadd.xlane.f32.xlu0 %v1926
      %v1928 = vpop.xlane.xlu0 %1927
      %v1929 = vsel %vm1319, %v1266, 0.0
      %1930 = vadd.xlane.f32.xlu0 %v1929
      %v1931 = vpop.xlane.xlu0 %1930
      %v1932 = vsel %vm1319, %v1267, 0.0
      %1933 = vadd.xlane.f32.xlu0 %v1932
      %v1934 = vpop.xlane.xlu0 %1933
      %v1935 = vsel %vm1319, %v1268, 0.0
      %1936 = vadd.xlane.f32.xlu0 %v1935
      %v1937 = vpop.xlane.xlu0 %1936
      %v1938 = vsel %vm1319, %v1269, 0.0
      %1939 = vadd.xlane.f32.xlu0 %v1938
      %v1940 = vpop.xlane.xlu0 %1939
      %v1941 = vsel %vm1319, %v1270, 0.0
      %1942 = vadd.xlane.f32.xlu0 %v1941
      %v1943 = vpop.xlane.xlu0 %1942
      %v1944 = vsel %vm1319, %v1271, 0.0
      %1945 = vadd.xlane.f32.xlu0 %v1944
      %v1946 = vpop.xlane.xlu0 %1945
      %v1947 = vsel %vm1319, %v1272, 0.0
      %1948 = vadd.xlane.f32.xlu0 %v1947
      %v1949 = vpop.xlane.xlu0 %1948
      %v1950 = vsel %vm1319, %v1273, 0.0
      %1951 = vadd.xlane.f32.xlu0 %v1950
      %v1952 = vpop.xlane.xlu0 %1951
      %v1953 = vsel %vm1319, %v1274, 0.0
      %1954 = vadd.xlane.f32.xlu0 %v1953
      %v1955 = vpop.xlane.xlu0 %1954
      %v1956 = vsel %vm1319, %v1275, 0.0
      %1957 = vadd.xlane.f32.xlu0 %v1956
      %v1958 = vpop.xlane.xlu0 %1957
      %v1959 = vsel %vm1319, %v1276, 0.0
      %1960 = vadd.xlane.f32.xlu0 %v1959
      %v1961 = vpop.xlane.xlu0 %1960
      %v1962 = vsel %vm1319, %v1277, 0.0
      %1963 = vadd.xlane.f32.xlu0 %v1962
      %v1964 = vpop.xlane.xlu0 %1963
      %v1965 = vsel %vm1319, %v1278, 0.0
      %1966 = vadd.xlane.f32.xlu0 %v1965
      %v1967 = vpop.xlane.xlu0 %1966
      %v1968 = vsel %vm1319, %v1279, 0.0
      %1969 = vadd.xlane.f32.xlu0 %v1968
      %v1970 = vpop.xlane.xlu0 %1969
      %v1971 = vsel %vm1319, %v1280, 0.0
      %1972 = vadd.xlane.f32.xlu0 %v1971
      %v1973 = vpop.xlane.xlu0 %1972
      %v1974 = vsel %vm1319, %v1281, 0.0
      %1975 = vadd.xlane.f32.xlu0 %v1974
      %v1976 = vpop.xlane.xlu0 %1975
      %v1977 = vsel %vm1319, %v1282, 0.0
      %1978 = vadd.xlane.f32.xlu0 %v1977
      %v1979 = vpop.xlane.xlu0 %1978
      %v1980 = vsel %vm1319, %v1283, 0.0
      %1981 = vadd.xlane.f32.xlu0 %v1980
      %v1982 = vpop.xlane.xlu0 %1981
      %v1983 = vsel %vm1319, %v1284, 0.0
      %1984 = vadd.xlane.f32.xlu0 %v1983
      %v1985 = vpop.xlane.xlu0 %1984
      %v1986 = vsel %vm1319, %v1285, 0.0
      %1987 = vadd.xlane.f32.xlu0 %v1986
      %v1988 = vpop.xlane.xlu0 %1987
      %v1989 = vsel %vm1319, %v1286, 0.0
      %1990 = vadd.xlane.f32.xlu0 %v1989
      %v1991 = vpop.xlane.xlu0 %1990
      %v1992 = vsel %vm1319, %v1287, 0.0
      %1993 = vadd.xlane.f32.xlu0 %v1992
      %v1994 = vpop.xlane.xlu0 %1993
      %v1995 = vsel %vm1319, %v1288, 0.0
      %1996 = vadd.xlane.f32.xlu0 %v1995
      %v1997 = vpop.xlane.xlu0 %1996
      %v1998 = vsel %vm1319, %v1289, 0.0
      %1999 = vadd.xlane.f32.xlu0 %v1998
      %v2000 = vpop.xlane.xlu0 %1999
      %v2001 = vsel %vm1319, %v1290, 0.0
      %2002 = vadd.xlane.f32.xlu0 %v2001
      %v2003 = vpop.xlane.xlu0 %2002
      %v2004 = vsel %vm1319, %v1291, 0.0
      %2005 = vadd.xlane.f32.xlu0 %v2004
      %v2006 = vpop.xlane.xlu0 %2005
      %v2007 = vsel %vm1319, %v1292, 0.0
      %2008 = vadd.xlane.f32.xlu0 %v2007
      %v2009 = vpop.xlane.xlu0 %2008
      %v2010 = vsel %vm1319, %v1293, 0.0
      %2011 = vadd.xlane.f32.xlu0 %v2010
      %v2012 = vpop.xlane.xlu0 %2011
      %v2013 = vsel %vm1319, %v1294, 0.0
      %2014 = vadd.xlane.f32.xlu0 %v2013
      %v2015 = vpop.xlane.xlu0 %2014
      %v2016 = vsel %vm1319, %v1295, 0.0
      %2017 = vadd.xlane.f32.xlu0 %v2016
      %v2018 = vpop.xlane.xlu0 %2017
      %v2019 = vsel %vm1319, %v1296, 0.0
      %2020 = vadd.xlane.f32.xlu0 %v2019
      %v2021 = vpop.xlane.xlu0 %2020
      %v2022 = vsel %vm1319, %v1297, 0.0
      %2023 = vadd.xlane.f32.xlu0 %v2022
      %v2024 = vpop.xlane.xlu0 %2023
      %v2025 = vsel %vm1319, %v1298, 0.0
      %2026 = vadd.xlane.f32.xlu0 %v2025
      %v2027 = vpop.xlane.xlu0 %2026
      %v2028 = vsel %vm1319, %v1299, 0.0
      %2029 = vadd.xlane.f32.xlu0 %v2028
      %v2030 = vpop.xlane.xlu0 %2029
      %v2031 = vsel %vm1319, %v1300, 0.0
      %2032 = vadd.xlane.f32.xlu0 %v2031
      %v2033 = vpop.xlane.xlu0 %2032
      %v2034 = vsel %vm1319, %v1301, 0.0
      %2035 = vadd.xlane.f32.xlu0 %v2034
      %v2036 = vpop.xlane.xlu0 %2035
      %v2037 = vsel %vm1319, %v1302, 0.0
      %2038 = vadd.xlane.f32.xlu0 %v2037
      %v2039 = vpop.xlane.xlu0 %2038
      %v2040 = vsel %vm1319, %v1303, 0.0
      %2041 = vadd.xlane.f32.xlu0 %v2040
      %v2042 = vpop.xlane.xlu0 %2041
      %v2043 = vsel %vm1319, %v1304, 0.0
      %2044 = vadd.xlane.f32.xlu0 %v2043
      %v2045 = vpop.xlane.xlu0 %2044
      %v2046 = vsel %vm1319, %v1305, 0.0
      %2047 = vadd.xlane.f32.xlu0 %v2046
      %v2048 = vpop.xlane.xlu0 %2047
      %v2049 = vsel %vm1319, %v1306, 0.0
      %2050 = vadd.xlane.f32.xlu0 %v2049
      %v2051 = vpop.xlane.xlu0 %2050
      %v2052 = vsel %vm1319, %v1307, 0.0
      %2053 = vadd.xlane.f32.xlu0 %v2052
      %v2054 = vpop.xlane.xlu0 %2053
      %v2055 = vsel %vm1319, %v1308, 0.0
      %2056 = vadd.xlane.f32.xlu0 %v2055
      %v2057 = vpop.xlane.xlu0 %2056
      %v2058 = vsel %vm1319, %v1309, 0.0
      %2059 = vadd.xlane.f32.xlu0 %v2058
      %v2060 = vpop.xlane.xlu0 %2059
      %v2061 = vsel %vm1319, %v1310, 0.0
      %2062 = vadd.xlane.f32.xlu0 %v2061
      %v2063 = vpop.xlane.xlu0 %2062
      %v2064 = vsel %vm1319, %v1311, 0.0
      %2065 = vadd.xlane.f32.xlu0 %v2064
      %v2066 = vpop.xlane.xlu0 %2065
      %v2067 = vsel %vm1319, %v1312, 0.0
      %2068 = vadd.xlane.f32.xlu0 %v2067
      %v2069 = vpop.xlane.xlu0 %2068
      %v2070 = vsel %vm1319, %v1313, 0.0
      %2071 = vadd.xlane.f32.xlu0 %v2070
      %v2072 = vpop.xlane.xlu0 %2071
      %v2073 = vsel %vm1319, %v1314, 0.0
      %2074 = vadd.xlane.f32.xlu0 %v2073
      %v2075 = vpop.xlane.xlu0 %2074
      %v2076 = vsel %vm1319, %v1315, 0.0
      %2077 = vadd.xlane.f32.xlu0 %v2076
      %v2078 = vpop.xlane.xlu0 %2077
      %v2079 = vsel %vm1319, %v1316, 0.0
      %2080 = vadd.xlane.f32.xlu0 %v2079
      %v2081 = vpop.xlane.xlu0 %2080
      %v2082 = vsel %vm1319, %v1317, 0.0
      %2083 = vadd.xlane.f32.xlu0 %v2082
      %v2084 = vpop.xlane.xlu0 %2083
      %v2085 = vsel %vm1319, %v1318, 0.0
      %2086 = vadd.xlane.f32.xlu0 %v2085
      %v2087 = vpop.xlane.xlu0 %2086
      %v2344 = vlaneseq
      %v2345 = vand.u32 %v2344, 127
      %v2346 = vperm.slane %v1322, %v2345
      %v2347 = vadd.s32 %v2345, 4294967288
      %v2348 = vperm.slane %v1325, %v2347
      %vm2349 = vcmask 130112
      %v2350 = vsel %vm2349, %v2348, %v2346
      %v2351 = vadd.s32 %v2345, 4294967280
      %v2352 = vperm.slane %v1328, %v2351
      %vm2353 = vcmask 195712
      %v2354 = vsel %vm2353, %v2352, %v2350
      %v2355 = vadd.s32 %v2345, 4294967272
      %v2356 = vperm.slane %v1331, %v2355
      %vm2357 = vcmask 261312
      %v2358 = vsel %vm2357, %v2356, %v2354
      %v2359 = vadd.s32 %v2345, 4294967264
      %v2360 = vperm.slane %v1334, %v2359
      %vm2361 = vcmask 326912
      %v2362 = vsel %vm2361, %v2360, %v2358
      %v2363 = vadd.s32 %v2345, 4294967256
      %v2364 = vperm.slane %v1337, %v2363
      %vm2365 = vcmask 392512
      %v2366 = vsel %vm2365, %v2364, %v2362
      %v2367 = vadd.s32 %v2345, 4294967248
      %v2368 = vperm.slane %v1340, %v2367
      %vm2369 = vcmask 458112
      %v2370 = vsel %vm2369, %v2368, %v2366
      %v2371 = vadd.s32 %v2345, 4294967240
      %v2372 = vperm.slane %v1343, %v2371
      %vm2373 = vcmask 523712
      %v2374 = vsel %vm2373, %v2372, %v2370
      %v2375 = vadd.s32 %v2345, 4294967232
      %v2376 = vperm.slane %v1346, %v2375
      %vm2377 = vcmask 589312
      %v2378 = vsel %vm2377, %v2376, %v2374
      %v2379 = vadd.s32 %v2345, 4294967224
      %v2380 = vperm.slane %v1349, %v2379
      %vm2381 = vcmask 654912
      %v2382 = vsel %vm2381, %v2380, %v2378
      %v2383 = vadd.s32 %v2345, 4294967216
      %v2384 = vperm.slane %v1352, %v2383
      %vm2385 = vcmask 720512
      %v2386 = vsel %vm2385, %v2384, %v2382
      %v2387 = vadd.s32 %v2345, 4294967208
      %v2388 = vperm.slane %v1355, %v2387
      %vm2389 = vcmask 786112
      %v2390 = vsel %vm2389, %v2388, %v2386
      %v2391 = vadd.s32 %v2345, 4294967200
      %v2392 = vperm.slane %v1358, %v2391
      %vm2393 = vcmask 851712
      %v2394 = vsel %vm2393, %v2392, %v2390
      %v2395 = vadd.s32 %v2345, 4294967192
      %v2396 = vperm.slane %v1361, %v2395
      %vm2397 = vcmask 917312
      %v2398 = vsel %vm2397, %v2396, %v2394
      %v2399 = vadd.s32 %v2345, 4294967184
      %v2400 = vperm.slane %v1364, %v2399
      %vm2401 = vcmask 982912
      %v2402 = vsel %vm2401, %v2400, %v2398
      %v2403 = vadd.s32 %v2345, 4294967176
      %v2404 = vperm.slane %v1367, %v2403
      %vm2405 = vcmask 1048512
      %v2406 = vsel %vm2405, %v2404, %v2402
      %v2407 = vperm.slane %v1370, %v2345
      %v2408 = vperm.slane %v1373, %v2347
      %v2409 = vsel %vm2349, %v2408, %v2407
      %v2410 = vperm.slane %v1376, %v2351
      %v2411 = vsel %vm2353, %v2410, %v2409
      %v2412 = vperm.slane %v1379, %v2355
      %v2413 = vsel %vm2357, %v2412, %v2411
      %v2414 = vperm.slane %v1382, %v2359
      %v2415 = vsel %vm2361, %v2414, %v2413
      %v2416 = vperm.slane %v1385, %v2363
      %v2417 = vsel %vm2365, %v2416, %v2415
      %v2418 = vperm.slane %v1388, %v2367
      %v2419 = vsel %vm2369, %v2418, %v2417
      %v2420 = vperm.slane %v1391, %v2371
      %v2421 = vsel %vm2373, %v2420, %v2419
      %v2422 = vperm.slane %v1394, %v2375
      %v2423 = vsel %vm2377, %v2422, %v2421
      %v2424 = vperm.slane %v1397, %v2379
      %v2425 = vsel %vm2381, %v2424, %v2423
      %v2426 = vperm.slane %v1400, %v2383
      %v2427 = vsel %vm2385, %v2426, %v2425
      %v2428 = vperm.slane %v1403, %v2387
      %v2429 = vsel %vm2389, %v2428, %v2427
      %v2430 = vperm.slane %v1406, %v2391
      %v2431 = vsel %vm2393, %v2430, %v2429
      %v2432 = vperm.slane %v1409, %v2395
      %v2433 = vsel %vm2397, %v2432, %v2431
      %v2434 = vperm.slane %v1412, %v2399
      %v2435 = vsel %vm2401, %v2434, %v2433
      %v2436 = vperm.slane %v1415, %v2403
      %v2437 = vsel %vm2405, %v2436, %v2435
      %v2438 = vperm.slane %v1418, %v2345
      %v2439 = vperm.slane %v1421, %v2347
      %v2440 = vsel %vm2349, %v2439, %v2438
      %v2441 = vperm.slane %v1424, %v2351
      %v2442 = vsel %vm2353, %v2441, %v2440
      %v2443 = vperm.slane %v1427, %v2355
      %v2444 = vsel %vm2357, %v2443, %v2442
      %v2445 = vperm.slane %v1430, %v2359
      %v2446 = vsel %vm2361, %v2445, %v2444
      %v2447 = vperm.slane %v1433, %v2363
      %v2448 = vsel %vm2365, %v2447, %v2446
      %v2449 = vperm.slane %v1436, %v2367
      %v2450 = vsel %vm2369, %v2449, %v2448
      %v2451 = vperm.slane %v1439, %v2371
      %v2452 = vsel %vm2373, %v2451, %v2450
      %v2453 = vperm.slane %v1442, %v2375
      %v2454 = vsel %vm2377, %v2453, %v2452
      %v2455 = vperm.slane %v1445, %v2379
      %v2456 = vsel %vm2381, %v2455, %v2454
      %v2457 = vperm.slane %v1448, %v2383
      %v2458 = vsel %vm2385, %v2457, %v2456
      %v2459 = vperm.slane %v1451, %v2387
      %v2460 = vsel %vm2389, %v2459, %v2458
      %v2461 = vperm.slane %v1454, %v2391
      %v2462 = vsel %vm2393, %v2461, %v2460
      %v2463 = vperm.slane %v1457, %v2395
      %v2464 = vsel %vm2397, %v2463, %v2462
      %v2465 = vperm.slane %v1460, %v2399
      %v2466 = vsel %vm2401, %v2465, %v2464
      %v2467 = vperm.slane %v1463, %v2403
      %v2468 = vsel %vm2405, %v2467, %v2466
      %v2469 = vperm.slane %v1466, %v2345
      %v2470 = vperm.slane %v1469, %v2347
      %v2471 = vsel %vm2349, %v2470, %v2469
      %v2472 = vperm.slane %v1472, %v2351
      %v2473 = vsel %vm2353, %v2472, %v2471
      %v2474 = vperm.slane %v1475, %v2355
      %v2475 = vsel %vm2357, %v2474, %v2473
      %v2476 = vperm.slane %v1478, %v2359
      %v2477 = vsel %vm2361, %v2476, %v2475
      %v2478 = vperm.slane %v1481, %v2363
      %v2479 = vsel %vm2365, %v2478, %v2477
      %v2480 = vperm.slane %v1484, %v2367
      %v2481 = vsel %vm2369, %v2480, %v2479
      %v2482 = vperm.slane %v1487, %v2371
      %v2483 = vsel %vm2373, %v2482, %v2481
      %v2484 = vperm.slane %v1490, %v2375
      %v2485 = vsel %vm2377, %v2484, %v2483
      %v2486 = vperm.slane %v1493, %v2379
      %v2487 = vsel %vm2381, %v2486, %v2485
      %v2488 = vperm.slane %v1496, %v2383
      %v2489 = vsel %vm2385, %v2488, %v2487
      %v2490 = vperm.slane %v1499, %v2387
      %v2491 = vsel %vm2389, %v2490, %v2489
      %v2492 = vperm.slane %v1502, %v2391
      %v2493 = vsel %vm2393, %v2492, %v2491
      %v2494 = vperm.slane %v1505, %v2395
      %v2495 = vsel %vm2397, %v2494, %v2493
      %v2496 = vperm.slane %v1508, %v2399
      %v2497 = vsel %vm2401, %v2496, %v2495
      %v2498 = vperm.slane %v1511, %v2403
      %v2499 = vsel %vm2405, %v2498, %v2497
      %v2500 = vperm.slane %v1514, %v2345
      %v2501 = vperm.slane %v1517, %v2347
      %v2502 = vsel %vm2349, %v2501, %v2500
      %v2503 = vperm.slane %v1520, %v2351
      %v2504 = vsel %vm2353, %v2503, %v2502
      %v2505 = vperm.slane %v1523, %v2355
      %v2506 = vsel %vm2357, %v2505, %v2504
      %v2507 = vperm.slane %v1526, %v2359
      %v2508 = vsel %vm2361, %v2507, %v2506
      %v2509 = vperm.slane %v1529, %v2363
      %v2510 = vsel %vm2365, %v2509, %v2508
      %v2511 = vperm.slane %v1532, %v2367
      %v2512 = vsel %vm2369, %v2511, %v2510
      %v2513 = vperm.slane %v1535, %v2371
      %v2514 = vsel %vm2373, %v2513, %v2512
      %v2515 = vperm.slane %v1538, %v2375
      %v2516 = vsel %vm2377, %v2515, %v2514
      %v2517 = vperm.slane %v1541, %v2379
      %v2518 = vsel %vm2381, %v2517, %v2516
      %v2519 = vperm.slane %v1544, %v2383
      %v2520 = vsel %vm2385, %v2519, %v2518
      %v2521 = vperm.slane %v1547, %v2387
      %v2522 = vsel %vm2389, %v2521, %v2520
      %v2523 = vperm.slane %v1550, %v2391
      %v2524 = vsel %vm2393, %v2523, %v2522
      %v2525 = vperm.slane %v1553, %v2395
      %v2526 = vsel %vm2397, %v2525, %v2524
      %v2527 = vperm.slane %v1556, %v2399
      %v2528 = vsel %vm2401, %v2527, %v2526
      %v2529 = vperm.slane %v1559, %v2403
      %v2530 = vsel %vm2405, %v2529, %v2528
      %v2531 = vperm.slane %v1562, %v2345
      %v2532 = vperm.slane %v1565, %v2347
      %v2533 = vsel %vm2349, %v2532, %v2531
      %v2534 = vperm.slane %v1568, %v2351
      %v2535 = vsel %vm2353, %v2534, %v2533
      %v2536 = vperm.slane %v1571, %v2355
      %v2537 = vsel %vm2357, %v2536, %v2535
      %v2538 = vperm.slane %v1574, %v2359
      %v2539 = vsel %vm2361, %v2538, %v2537
      %v2540 = vperm.slane %v1577, %v2363
      %v2541 = vsel %vm2365, %v2540, %v2539
      %v2542 = vperm.slane %v1580, %v2367
      %v2543 = vsel %vm2369, %v2542, %v2541
      %v2544 = vperm.slane %v1583, %v2371
      %v2545 = vsel %vm2373, %v2544, %v2543
      %v2546 = vperm.slane %v1586, %v2375
      %v2547 = vsel %vm2377, %v2546, %v2545
      %v2548 = vperm.slane %v1589, %v2379
      %v2549 = vsel %vm2381, %v2548, %v2547
      %v2550 = vperm.slane %v1592, %v2383
      %v2551 = vsel %vm2385, %v2550, %v2549
      %v2552 = vperm.slane %v1595, %v2387
      %v2553 = vsel %vm2389, %v2552, %v2551
      %v2554 = vperm.slane %v1598, %v2391
      %v2555 = vsel %vm2393, %v2554, %v2553
      %v2556 = vperm.slane %v1601, %v2395
      %v2557 = vsel %vm2397, %v2556, %v2555
      %v2558 = vperm.slane %v1604, %v2399
      %v2559 = vsel %vm2401, %v2558, %v2557
      %v2560 = vperm.slane %v1607, %v2403
      %v2561 = vsel %vm2405, %v2560, %v2559
      %v2562 = vperm.slane %v1610, %v2345
      %v2563 = vperm.slane %v1613, %v2347
      %v2564 = vsel %vm2349, %v2563, %v2562
      %v2565 = vperm.slane %v1616, %v2351
      %v2566 = vsel %vm2353, %v2565, %v2564
      %v2567 = vperm.slane %v1619, %v2355
      %v2568 = vsel %vm2357, %v2567, %v2566
      %v2569 = vperm.slane %v1622, %v2359
      %v2570 = vsel %vm2361, %v2569, %v2568
      %v2571 = vperm.slane %v1625, %v2363
      %v2572 = vsel %vm2365, %v2571, %v2570
      %v2573 = vperm.slane %v1628, %v2367
      %v2574 = vsel %vm2369, %v2573, %v2572
      %v2575 = vperm.slane %v1631, %v2371
      %v2576 = vsel %vm2373, %v2575, %v2574
      %v2577 = vperm.slane %v1634, %v2375
      %v2578 = vsel %vm2377, %v2577, %v2576
      %v2579 = vperm.slane %v1637, %v2379
      %v2580 = vsel %vm2381, %v2579, %v2578
      %v2581 = vperm.slane %v1640, %v2383
      %v2582 = vsel %vm2385, %v2581, %v2580
      %v2583 = vperm.slane %v1643, %v2387
      %v2584 = vsel %vm2389, %v2583, %v2582
      %v2585 = vperm.slane %v1646, %v2391
      %v2586 = vsel %vm2393, %v2585, %v2584
      %v2587 = vperm.slane %v1649, %v2395
      %v2588 = vsel %vm2397, %v2587, %v2586
      %v2589 = vperm.slane %v1652, %v2399
      %v2590 = vsel %vm2401, %v2589, %v2588
      %v2591 = vperm.slane %v1655, %v2403
      %v2592 = vsel %vm2405, %v2591, %v2590
      %v2593 = vperm.slane %v1658, %v2345
      %v2594 = vperm.slane %v1661, %v2347
      %v2595 = vsel %vm2349, %v2594, %v2593
      %v2596 = vperm.slane %v1664, %v2351
      %v2597 = vsel %vm2353, %v2596, %v2595
      %v2598 = vperm.slane %v1667, %v2355
      %v2599 = vsel %vm2357, %v2598, %v2597
      %v2600 = vperm.slane %v1670, %v2359
      %v2601 = vsel %vm2361, %v2600, %v2599
      %v2602 = vperm.slane %v1673, %v2363
      %v2603 = vsel %vm2365, %v2602, %v2601
      %v2604 = vperm.slane %v1676, %v2367
      %v2605 = vsel %vm2369, %v2604, %v2603
      %v2606 = vperm.slane %v1679, %v2371
      %v2607 = vsel %vm2373, %v2606, %v2605
      %v2608 = vperm.slane %v1682, %v2375
      %v2609 = vsel %vm2377, %v2608, %v2607
      %v2610 = vperm.slane %v1685, %v2379
      %v2611 = vsel %vm2381, %v2610, %v2609
      %v2612 = vperm.slane %v1688, %v2383
      %v2613 = vsel %vm2385, %v2612, %v2611
      %v2614 = vperm.slane %v1691, %v2387
      %v2615 = vsel %vm2389, %v2614, %v2613
      %v2616 = vperm.slane %v1694, %v2391
      %v2617 = vsel %vm2393, %v2616, %v2615
      %v2618 = vperm.slane %v1697, %v2395
      %v2619 = vsel %vm2397, %v2618, %v2617
      %v2620 = vperm.slane %v1700, %v2399
      %v2621 = vsel %vm2401, %v2620, %v2619
      %v2622 = vperm.slane %v1703, %v2403
      %v2623 = vsel %vm2405, %v2622, %v2621
      %v2624 = vperm.slane %v1706, %v2345
      %v2625 = vperm.slane %v1709, %v2347
      %v2626 = vsel %vm2349, %v2625, %v2624
      %v2627 = vperm.slane %v1712, %v2351
      %v2628 = vsel %vm2353, %v2627, %v2626
      %v2629 = vperm.slane %v1715, %v2355
      %v2630 = vsel %vm2357, %v2629, %v2628
      %v2631 = vperm.slane %v1718, %v2359
      %v2632 = vsel %vm2361, %v2631, %v2630
      %v2633 = vperm.slane %v1721, %v2363
      %v2634 = vsel %vm2365, %v2633, %v2632
      %v2635 = vperm.slane %v1724, %v2367
      %v2636 = vsel %vm2369, %v2635, %v2634
      %v2637 = vperm.slane %v1727, %v2371
      %v2638 = vsel %vm2373, %v2637, %v2636
      %v2639 = vperm.slane %v1730, %v2375
      %v2640 = vsel %vm2377, %v2639, %v2638
      %v2641 = vperm.slane %v1733, %v2379
      %v2642 = vsel %vm2381, %v2641, %v2640
      %v2643 = vperm.slane %v1736, %v2383
      %v2644 = vsel %vm2385, %v2643, %v2642
      %v2645 = vperm.slane %v1739, %v2387
      %v2646 = vsel %vm2389, %v2645, %v2644
      %v2647 = vperm.slane %v1742, %v2391
      %v2648 = vsel %vm2393, %v2647, %v2646
      %v2649 = vperm.slane %v1745, %v2395
      %v2650 = vsel %vm2397, %v2649, %v2648
      %v2651 = vperm.slane %v1748, %v2399
      %v2652 = vsel %vm2401, %v2651, %v2650
      %v2653 = vperm.slane %v1751, %v2403
      %v2654 = vsel %vm2405, %v2653, %v2652
      %v2655 = vperm.slane %v1754, %v2345
      %v2656 = vperm.slane %v1757, %v2347
      %v2657 = vsel %vm2349, %v2656, %v2655
      %v2658 = vperm.slane %v1760, %v2351
      %v2659 = vsel %vm2353, %v2658, %v2657
      %v2660 = vperm.slane %v1763, %v2355
      %v2661 = vsel %vm2357, %v2660, %v2659
      %v2662 = vperm.slane %v1766, %v2359
      %v2663 = vsel %vm2361, %v2662, %v2661
      %v2664 = vperm.slane %v1769, %v2363
      %v2665 = vsel %vm2365, %v2664, %v2663
      %v2666 = vperm.slane %v1772, %v2367
      %v2667 = vsel %vm2369, %v2666, %v2665
      %v2668 = vperm.slane %v1775, %v2371
      %v2669 = vsel %vm2373, %v2668, %v2667
      %v2670 = vperm.slane %v1778, %v2375
      %v2671 = vsel %vm2377, %v2670, %v2669
      %v2672 = vperm.slane %v1781, %v2379
      %v2673 = vsel %vm2381, %v2672, %v2671
      %v2674 = vperm.slane %v1784, %v2383
      %v2675 = vsel %vm2385, %v2674, %v2673
      %v2676 = vperm.slane %v1787, %v2387
      %v2677 = vsel %vm2389, %v2676, %v2675
      %v2678 = vperm.slane %v1790, %v2391
      %v2679 = vsel %vm2393, %v2678, %v2677
      %v2680 = vperm.slane %v1793, %v2395
      %v2681 = vsel %vm2397, %v2680, %v2679
      %v2682 = vperm.slane %v1796, %v2399
      %v2683 = vsel %vm2401, %v2682, %v2681
      %v2684 = vperm.slane %v1799, %v2403
      %v2685 = vsel %vm2405, %v2684, %v2683
      %v2686 = vperm.slane %v1802, %v2345
      %v2687 = vperm.slane %v1805, %v2347
      %v2688 = vsel %vm2349, %v2687, %v2686
      %v2689 = vperm.slane %v1808, %v2351
      %v2690 = vsel %vm2353, %v2689, %v2688
      %v2691 = vperm.slane %v1811, %v2355
      %v2692 = vsel %vm2357, %v2691, %v2690
      %v2693 = vperm.slane %v1814, %v2359
      %v2694 = vsel %vm2361, %v2693, %v2692
      %v2695 = vperm.slane %v1817, %v2363
      %v2696 = vsel %vm2365, %v2695, %v2694
      %v2697 = vperm.slane %v1820, %v2367
      %v2698 = vsel %vm2369, %v2697, %v2696
      %v2699 = vperm.slane %v1823, %v2371
      %v2700 = vsel %vm2373, %v2699, %v2698
      %v2701 = vperm.slane %v1826, %v2375
      %v2702 = vsel %vm2377, %v2701, %v2700
      %v2703 = vperm.slane %v1829, %v2379
      %v2704 = vsel %vm2381, %v2703, %v2702
      %v2705 = vperm.slane %v1832, %v2383
      %v2706 = vsel %vm2385, %v2705, %v2704
      %v2707 = vperm.slane %v1835, %v2387
      %v2708 = vsel %vm2389, %v2707, %v2706
      %v2709 = vperm.slane %v1838, %v2391
      %v2710 = vsel %vm2393, %v2709, %v2708
      %v2711 = vperm.slane %v1841, %v2395
      %v2712 = vsel %vm2397, %v2711, %v2710
      %v2713 = vperm.slane %v1844, %v2399
      %v2714 = vsel %vm2401, %v2713, %v2712
      %v2715 = vperm.slane %v1847, %v2403
      %v2716 = vsel %vm2405, %v2715, %v2714
      %v2717 = vperm.slane %v1850, %v2345
      %v2718 = vperm.slane %v1853, %v2347
      %v2719 = vsel %vm2349, %v2718, %v2717
      %v2720 = vperm.slane %v1856, %v2351
      %v2721 = vsel %vm2353, %v2720, %v2719
      %v2722 = vperm.slane %v1859, %v2355
      %v2723 = vsel %vm2357, %v2722, %v2721
      %v2724 = vperm.slane %v1862, %v2359
      %v2725 = vsel %vm2361, %v2724, %v2723
      %v2726 = vperm.slane %v1865, %v2363
      %v2727 = vsel %vm2365, %v2726, %v2725
      %v2728 = vperm.slane %v1868, %v2367
      %v2729 = vsel %vm2369, %v2728, %v2727
      %v2730 = vperm.slane %v1871, %v2371
      %v2731 = vsel %vm2373, %v2730, %v2729
      %v2732 = vperm.slane %v1874, %v2375
      %v2733 = vsel %vm2377, %v2732, %v2731
      %v2734 = vperm.slane %v1877, %v2379
      %v2735 = vsel %vm2381, %v2734, %v2733
      %v2736 = vperm.slane %v1880, %v2383
      %v2737 = vsel %vm2385, %v2736, %v2735
      %v2738 = vperm.slane %v1883, %v2387
      %v2739 = vsel %vm2389, %v2738, %v2737
      %v2740 = vperm.slane %v1886, %v2391
      %v2741 = vsel %vm2393, %v2740, %v2739
      %v2742 = vperm.slane %v1889, %v2395
      %v2743 = vsel %vm2397, %v2742, %v2741
      %v2744 = vperm.slane %v1892, %v2399
      %v2745 = vsel %vm2401, %v2744, %v2743
      %v2746 = vperm.slane %v1895, %v2403
      %v2747 = vsel %vm2405, %v2746, %v2745
      %v2748 = vperm.slane %v1898, %v2345
      %v2749 = vperm.slane %v1901, %v2347
      %v2750 = vsel %vm2349, %v2749, %v2748
      %v2751 = vperm.slane %v1904, %v2351
      %v2752 = vsel %vm2353, %v2751, %v2750
      %v2753 = vperm.slane %v1907, %v2355
      %v2754 = vsel %vm2357, %v2753, %v2752
      %v2755 = vperm.slane %v1910, %v2359
      %v2756 = vsel %vm2361, %v2755, %v2754
      %v2757 = vperm.slane %v1913, %v2363
      %v2758 = vsel %vm2365, %v2757, %v2756
      %v2759 = vperm.slane %v1916, %v2367
      %v2760 = vsel %vm2369, %v2759, %v2758
      %v2761 = vperm.slane %v1919, %v2371
      %v2762 = vsel %vm2373, %v2761, %v2760
      %v2763 = vperm.slane %v1922, %v2375
      %v2764 = vsel %vm2377, %v2763, %v2762
      %v2765 = vperm.slane %v1925, %v2379
      %v2766 = vsel %vm2381, %v2765, %v2764
      %v2767 = vperm.slane %v1928, %v2383
      %v2768 = vsel %vm2385, %v2767, %v2766
      %v2769 = vperm.slane %v1931, %v2387
      %v2770 = vsel %vm2389, %v2769, %v2768
      %v2771 = vperm.slane %v1934, %v2391
      %v2772 = vsel %vm2393, %v2771, %v2770
      %v2773 = vperm.slane %v1937, %v2395
      %v2774 = vsel %vm2397, %v2773, %v2772
      %v2775 = vperm.slane %v1940, %v2399
      %v2776 = vsel %vm2401, %v2775, %v2774
      %v2777 = vperm.slane %v1943, %v2403
      %v2778 = vsel %vm2405, %v2777, %v2776
      %v2779 = vperm.slane %v1946, %v2345
      %v2780 = vperm.slane %v1949, %v2347
      %v2781 = vsel %vm2349, %v2780, %v2779
      %v2782 = vperm.slane %v1952, %v2351
      %v2783 = vsel %vm2353, %v2782, %v2781
      %v2784 = vperm.slane %v1955, %v2355
      %v2785 = vsel %vm2357, %v2784, %v2783
      %v2786 = vperm.slane %v1958, %v2359
      %v2787 = vsel %vm2361, %v2786, %v2785
      %v2788 = vperm.slane %v1961, %v2363
      %v2789 = vsel %vm2365, %v2788, %v2787
      %v2790 = vperm.slane %v1964, %v2367
      %v2791 = vsel %vm2369, %v2790, %v2789
      %v2792 = vperm.slane %v1967, %v2371
      %v2793 = vsel %vm2373, %v2792, %v2791
      %v2794 = vperm.slane %v1970, %v2375
      %v2795 = vsel %vm2377, %v2794, %v2793
      %v2796 = vperm.slane %v1973, %v2379
      %v2797 = vsel %vm2381, %v2796, %v2795
      %v2798 = vperm.slane %v1976, %v2383
      %v2799 = vsel %vm2385, %v2798, %v2797
      %v2800 = vperm.slane %v1979, %v2387
      %v2801 = vsel %vm2389, %v2800, %v2799
      %v2802 = vperm.slane %v1982, %v2391
      %v2803 = vsel %vm2393, %v2802, %v2801
      %v2804 = vperm.slane %v1985, %v2395
      %v2805 = vsel %vm2397, %v2804, %v2803
      %v2806 = vperm.slane %v1988, %v2399
      %v2807 = vsel %vm2401, %v2806, %v2805
      %v2808 = vperm.slane %v1991, %v2403
      %v2809 = vsel %vm2405, %v2808, %v2807
      %v2810 = vperm.slane %v1994, %v2345
      %v2811 = vperm.slane %v1997, %v2347
      %v2812 = vsel %vm2349, %v2811, %v2810
      %v2813 = vperm.slane %v2000, %v2351
      %v2814 = vsel %vm2353, %v2813, %v2812
      %v2815 = vperm.slane %v2003, %v2355
      %v2816 = vsel %vm2357, %v2815, %v2814
      %v2817 = vperm.slane %v2006, %v2359
      %v2818 = vsel %vm2361, %v2817, %v2816
      %v2819 = vperm.slane %v2009, %v2363
      %v2820 = vsel %vm2365, %v2819, %v2818
      %v2821 = vperm.slane %v2012, %v2367
      %v2822 = vsel %vm2369, %v2821, %v2820
      %v2823 = vperm.slane %v2015, %v2371
      %v2824 = vsel %vm2373, %v2823, %v2822
      %v2825 = vperm.slane %v2018, %v2375
      %v2826 = vsel %vm2377, %v2825, %v2824
      %v2827 = vperm.slane %v2021, %v2379
      %v2828 = vsel %vm2381, %v2827, %v2826
      %v2829 = vperm.slane %v2024, %v2383
      %v2830 = vsel %vm2385, %v2829, %v2828
      %v2831 = vperm.slane %v2027, %v2387
      %v2832 = vsel %vm2389, %v2831, %v2830
      %v2833 = vperm.slane %v2030, %v2391
      %v2834 = vsel %vm2393, %v2833, %v2832
      %v2835 = vperm.slane %v2033, %v2395
      %v2836 = vsel %vm2397, %v2835, %v2834
      %v2837 = vperm.slane %v2036, %v2399
      %v2838 = vsel %vm2401, %v2837, %v2836
      %v2839 = vperm.slane %v2039, %v2403
      %v2840 = vsel %vm2405, %v2839, %v2838
      %v2841 = vperm.slane %v2042, %v2345
      %v2842 = vperm.slane %v2045, %v2347
      %v2843 = vsel %vm2349, %v2842, %v2841
      %v2844 = vperm.slane %v2048, %v2351
      %v2845 = vsel %vm2353, %v2844, %v2843
      %v2846 = vperm.slane %v2051, %v2355
      %v2847 = vsel %vm2357, %v2846, %v2845
      %v2848 = vperm.slane %v2054, %v2359
      %v2849 = vsel %vm2361, %v2848, %v2847
      %v2850 = vperm.slane %v2057, %v2363
      %v2851 = vsel %vm2365, %v2850, %v2849
      %v2852 = vperm.slane %v2060, %v2367
      %v2853 = vsel %vm2369, %v2852, %v2851
      %v2854 = vperm.slane %v2063, %v2371
      %v2855 = vsel %vm2373, %v2854, %v2853
      %v2856 = vperm.slane %v2066, %v2375
      %v2857 = vsel %vm2377, %v2856, %v2855
      %v2858 = vperm.slane %v2069, %v2379
      %v2859 = vsel %vm2381, %v2858, %v2857
      %v2860 = vperm.slane %v2072, %v2383
      %v2861 = vsel %vm2385, %v2860, %v2859
      %v2862 = vperm.slane %v2075, %v2387
      %v2863 = vsel %vm2389, %v2862, %v2861
      %v2864 = vperm.slane %v2078, %v2391
      %v2865 = vsel %vm2393, %v2864, %v2863
      %v2866 = vperm.slane %v2081, %v2395
      %v2867 = vsel %vm2397, %v2866, %v2865
      %v2868 = vperm.slane %v2084, %v2399
      %v2869 = vsel %vm2401, %v2868, %v2867
      %v2870 = vperm.slane %v2087, %v2403
      %v2871 = vsel %vm2405, %v2870, %v2869
      %vm2872 = vcmask 1041409
      %v2873 = vsel %vm2872, %v2468, %v2406
      %vm2874 = vcmask 1042434
      %v2875 = vsel %vm2874, %v2530, %v2873
      %vm2876 = vcmask 1043459
      %v2877 = vsel %vm2876, %v2592, %v2875
      %vm2878 = vcmask 1044484
      %v2879 = vsel %vm2878, %v2654, %v2877
      %vm2880 = vcmask 1045509
      %v2881 = vsel %vm2880, %v2716, %v2879
      %vm2882 = vcmask 1046534
      %v2883 = vsel %vm2882, %v2778, %v2881
      %vm2884 = vcmask 1047559
      %v2885 = vsel %vm2884, %v2840, %v2883
      %v2886 = vsel %vm2872, %v2499, %v2437
      %v2887 = vsel %vm2874, %v2561, %v2886
      %v2888 = vsel %vm2876, %v2623, %v2887
      %v2889 = vsel %vm2878, %v2685, %v2888
      %v2890 = vsel %vm2880, %v2747, %v2889
      %v2891 = vsel %vm2882, %v2809, %v2890
      %v2892 = vsel %vm2884, %v2871, %v2891
      %v2895 = vmax.f32 %v2885, %v2892
      %2896 = vmax.xlane.f32.xlu0 %v2895
      %v2897 = vpop.xlane.xlu0 %2896
      %v2899 = vperm.slane %v2897, 0
      %v2900 = vperm.slane %v2897, 1
      %v2901 = vperm.slane %v2897, 2
      %v2902 = vperm.slane %v2897, 3
      %v2903 = vperm.slane %v2897, 4
      %v2904 = vperm.slane %v2897, 5
      %v2905 = vperm.slane %v2897, 6
      %v2906 = vperm.slane %v2897, 7
      %v2915 = vsub.f32 %v1322, %v2899
      %v2916 = vsub.f32 %v1325, %v2899
      %v2917 = vsub.f32 %v1328, %v2899
      %v2918 = vsub.f32 %v1331, %v2899
      %v2919 = vsub.f32 %v1334, %v2899
      %v2920 = vsub.f32 %v1337, %v2899
      %v2921 = vsub.f32 %v1340, %v2899
      %v2922 = vsub.f32 %v1343, %v2899
      %v2923 = vsub.f32 %v1346, %v2899
      %v2924 = vsub.f32 %v1349, %v2899
      %v2925 = vsub.f32 %v1352, %v2899
      %v2926 = vsub.f32 %v1355, %v2899
      %v2927 = vsub.f32 %v1358, %v2899
      %v2928 = vsub.f32 %v1361, %v2899
      %v2929 = vsub.f32 %v1364, %v2899
      %v2930 = vsub.f32 %v1367, %v2899
      %v2931 = vsub.f32 %v1370, %v2899
      %v2932 = vsub.f32 %v1373, %v2899
      %v2933 = vsub.f32 %v1376, %v2899
      %v2934 = vsub.f32 %v1379, %v2899
      %v2935 = vsub.f32 %v1382, %v2899
      %v2936 = vsub.f32 %v1385, %v2899
      %v2937 = vsub.f32 %v1388, %v2899
      %v2938 = vsub.f32 %v1391, %v2899
      %v2939 = vsub.f32 %v1394, %v2899
      %v2940 = vsub.f32 %v1397, %v2899
      %v2941 = vsub.f32 %v1400, %v2899
      %v2942 = vsub.f32 %v1403, %v2899
      %v2943 = vsub.f32 %v1406, %v2899
      %v2944 = vsub.f32 %v1409, %v2899
      %v2945 = vsub.f32 %v1412, %v2899
      %v2946 = vsub.f32 %v1415, %v2899
      %v2947 = vsub.f32 %v1418, %v2900
      %v2948 = vsub.f32 %v1421, %v2900
      %v2949 = vsub.f32 %v1424, %v2900
      %v2950 = vsub.f32 %v1427, %v2900
      %v2951 = vsub.f32 %v1430, %v2900
      %v2952 = vsub.f32 %v1433, %v2900
      %v2953 = vsub.f32 %v1436, %v2900
      %v2954 = vsub.f32 %v1439, %v2900
      %v2955 = vsub.f32 %v1442, %v2900
      %v2956 = vsub.f32 %v1445, %v2900
      %v2957 = vsub.f32 %v1448, %v2900
      %v2958 = vsub.f32 %v1451, %v2900
      %v2959 = vsub.f32 %v1454, %v2900
      %v2960 = vsub.f32 %v1457, %v2900
      %v2961 = vsub.f32 %v1460, %v2900
      %v2962 = vsub.f32 %v1463, %v2900
      %v2963 = vsub.f32 %v1466, %v2900
      %v2964 = vsub.f32 %v1469, %v2900
      %v2965 = vsub.f32 %v1472, %v2900
      %v2966 = vsub.f32 %v1475, %v2900
      %v2967 = vsub.f32 %v1478, %v2900
      %v2968 = vsub.f32 %v1481, %v2900
      %v2969 = vsub.f32 %v1484, %v2900
      %v2970 = vsub.f32 %v1487, %v2900
      %v2971 = vsub.f32 %v1490, %v2900
      %v2972 = vsub.f32 %v1493, %v2900
      %v2973 = vsub.f32 %v1496, %v2900
      %v2974 = vsub.f32 %v1499, %v2900
      %v2975 = vsub.f32 %v1502, %v2900
      %v2976 = vsub.f32 %v1505, %v2900
      %v2977 = vsub.f32 %v1508, %v2900
      %v2978 = vsub.f32 %v1511, %v2900
      %v2979 = vsub.f32 %v1514, %v2901
      %v2980 = vsub.f32 %v1517, %v2901
      %v2981 = vsub.f32 %v1520, %v2901
      %v2982 = vsub.f32 %v1523, %v2901
      %v2983 = vsub.f32 %v1526, %v2901
      %v2984 = vsub.f32 %v1529, %v2901
      %v2985 = vsub.f32 %v1532, %v2901
      %v2986 = vsub.f32 %v1535, %v2901
      %v2987 = vsub.f32 %v1538, %v2901
      %v2988 = vsub.f32 %v1541, %v2901
      %v2989 = vsub.f32 %v1544, %v2901
      %v2990 = vsub.f32 %v1547, %v2901
      %v2991 = vsub.f32 %v1550, %v2901
      %v2992 = vsub.f32 %v1553, %v2901
      %v2993 = vsub.f32 %v1556, %v2901
      %v2994 = vsub.f32 %v1559, %v2901
      %v2995 = vsub.f32 %v1562, %v2901
      %v2996 = vsub.f32 %v1565, %v2901
      %v2997 = vsub.f32 %v1568, %v2901
      %v2998 = vsub.f32 %v1571, %v2901
      %v2999 = vsub.f32 %v1574, %v2901
      %v3000 = vsub.f32 %v1577, %v2901
      %v3001 = vsub.f32 %v1580, %v2901
      %v3002 = vsub.f32 %v1583, %v2901
      %v3003 = vsub.f32 %v1586, %v2901
      %v3004 = vsub.f32 %v1589, %v2901
      %v3005 = vsub.f32 %v1592, %v2901
      %v3006 = vsub.f32 %v1595, %v2901
      %v3007 = vsub.f32 %v1598, %v2901
      %v3008 = vsub.f32 %v1601, %v2901
      %v3009 = vsub.f32 %v1604, %v2901
      %v3010 = vsub.f32 %v1607, %v2901
      %v3011 = vsub.f32 %v1610, %v2902
      %v3012 = vsub.f32 %v1613, %v2902
      %v3013 = vsub.f32 %v1616, %v2902
      %v3014 = vsub.f32 %v1619, %v2902
      %v3015 = vsub.f32 %v1622, %v2902
      %v3016 = vsub.f32 %v1625, %v2902
      %v3017 = vsub.f32 %v1628, %v2902
      %v3018 = vsub.f32 %v1631, %v2902
      %v3019 = vsub.f32 %v1634, %v2902
      %v3020 = vsub.f32 %v1637, %v2902
      %v3021 = vsub.f32 %v1640, %v2902
      %v3022 = vsub.f32 %v1643, %v2902
      %v3023 = vsub.f32 %v1646, %v2902
      %v3024 = vsub.f32 %v1649, %v2902
      %v3025 = vsub.f32 %v1652, %v2902
      %v3026 = vsub.f32 %v1655, %v2902
      %v3027 = vsub.f32 %v1658, %v2902
      %v3028 = vsub.f32 %v1661, %v2902
      %v3029 = vsub.f32 %v1664, %v2902
      %v3030 = vsub.f32 %v1667, %v2902
      %v3031 = vsub.f32 %v1670, %v2902
      %v3032 = vsub.f32 %v1673, %v2902
      %v3033 = vsub.f32 %v1676, %v2902
      %v3034 = vsub.f32 %v1679, %v2902
      %v3035 = vsub.f32 %v1682, %v2902
      %v3036 = vsub.f32 %v1685, %v2902
      %v3037 = vsub.f32 %v1688, %v2902
      %v3038 = vsub.f32 %v1691, %v2902
      %v3039 = vsub.f32 %v1694, %v2902
      %v3040 = vsub.f32 %v1697, %v2902
      %v3041 = vsub.f32 %v1700, %v2902
      %v3042 = vsub.f32 %v1703, %v2902
      %v3043 = vsub.f32 %v1706, %v2903
      %v3044 = vsub.f32 %v1709, %v2903
      %v3045 = vsub.f32 %v1712, %v2903
      %v3046 = vsub.f32 %v1715, %v2903
      %v3047 = vsub.f32 %v1718, %v2903
      %v3048 = vsub.f32 %v1721, %v2903
      %v3049 = vsub.f32 %v1724, %v2903
      %v3050 = vsub.f32 %v1727, %v2903
      %v3051 = vsub.f32 %v1730, %v2903
      %v3052 = vsub.f32 %v1733, %v2903
      %v3053 = vsub.f32 %v1736, %v2903
      %v3054 = vsub.f32 %v1739, %v2903
      %v3055 = vsub.f32 %v1742, %v2903
      %v3056 = vsub.f32 %v1745, %v2903
      %v3057 = vsub.f32 %v1748, %v2903
      %v3058 = vsub.f32 %v1751, %v2903
      %v3059 = vsub.f32 %v1754, %v2903
      %v3060 = vsub.f32 %v1757, %v2903
      %v3061 = vsub.f32 %v1760, %v2903
      %v3062 = vsub.f32 %v1763, %v2903
      %v3063 = vsub.f32 %v1766, %v2903
      %v3064 = vsub.f32 %v1769, %v2903
      %v3065 = vsub.f32 %v1772, %v2903
      %v3066 = vsub.f32 %v1775, %v2903
      %v3067 = vsub.f32 %v1778, %v2903
      %v3068 = vsub.f32 %v1781, %v2903
      %v3069 = vsub.f32 %v1784, %v2903
      %v3070 = vsub.f32 %v1787, %v2903
      %v3071 = vsub.f32 %v1790, %v2903
      %v3072 = vsub.f32 %v1793, %v2903
      %v3073 = vsub.f32 %v1796, %v2903
      %v3074 = vsub.f32 %v1799, %v2903
      %v3075 = vsub.f32 %v1802, %v2904
      %v3076 = vsub.f32 %v1805, %v2904
      %v3077 = vsub.f32 %v1808, %v2904
      %v3078 = vsub.f32 %v1811, %v2904
      %v3079 = vsub.f32 %v1814, %v2904
      %v3080 = vsub.f32 %v1817, %v2904
      %v3081 = vsub.f32 %v1820, %v2904
      %v3082 = vsub.f32 %v1823, %v2904
      %v3083 = vsub.f32 %v1826, %v2904
      %v3084 = vsub.f32 %v1829, %v2904
      %v3085 = vsub.f32 %v1832, %v2904
      %v3086 = vsub.f32 %v1835, %v2904
      %v3087 = vsub.f32 %v1838, %v2904
      %v3088 = vsub.f32 %v1841, %v2904
      %v3089 = vsub.f32 %v1844, %v2904
      %v3090 = vsub.f32 %v1847, %v2904
      %v3091 = vsub.f32 %v1850, %v2904
      %v3092 = vsub.f32 %v1853, %v2904
      %v3093 = vsub.f32 %v1856, %v2904
      %v3094 = vsub.f32 %v1859, %v2904
      %v3095 = vsub.f32 %v1862, %v2904
      %v3096 = vsub.f32 %v1865, %v2904
      %v3097 = vsub.f32 %v1868, %v2904
      %v3098 = vsub.f32 %v1871, %v2904
      %v3099 = vsub.f32 %v1874, %v2904
      %v3100 = vsub.f32 %v1877, %v2904
      %v3101 = vsub.f32 %v1880, %v2904
      %v3102 = vsub.f32 %v1883, %v2904
      %v3103 = vsub.f32 %v1886, %v2904
      %v3104 = vsub.f32 %v1889, %v2904
      %v3105 = vsub.f32 %v1892, %v2904
      %v3106 = vsub.f32 %v1895, %v2904
      %v3107 = vsub.f32 %v1898, %v2905
      %v3108 = vsub.f32 %v1901, %v2905
      %v3109 = vsub.f32 %v1904, %v2905
      %v3110 = vsub.f32 %v1907, %v2905
      %v3111 = vsub.f32 %v1910, %v2905
      %v3112 = vsub.f32 %v1913, %v2905
      %v3113 = vsub.f32 %v1916, %v2905
      %v3114 = vsub.f32 %v1919, %v2905
      %v3115 = vsub.f32 %v1922, %v2905
      %v3116 = vsub.f32 %v1925, %v2905
      %v3117 = vsub.f32 %v1928, %v2905
      %v3118 = vsub.f32 %v1931, %v2905
      %v3119 = vsub.f32 %v1934, %v2905
      %v3120 = vsub.f32 %v1937, %v2905
      %v3121 = vsub.f32 %v1940, %v2905
      %v3122 = vsub.f32 %v1943, %v2905
      %v3123 = vsub.f32 %v1946, %v2905
      %v3124 = vsub.f32 %v1949, %v2905
      %v3125 = vsub.f32 %v1952, %v2905
      %v3126 = vsub.f32 %v1955, %v2905
      %v3127 = vsub.f32 %v1958, %v2905
      %v3128 = vsub.f32 %v1961, %v2905
      %v3129 = vsub.f32 %v1964, %v2905
      %v3130 = vsub.f32 %v1967, %v2905
      %v3131 = vsub.f32 %v1970, %v2905
      %v3132 = vsub.f32 %v1973, %v2905
      %v3133 = vsub.f32 %v1976, %v2905
      %v3134 = vsub.f32 %v1979, %v2905
      %v3135 = vsub.f32 %v1982, %v2905
      %v3136 = vsub.f32 %v1985, %v2905
      %v3137 = vsub.f32 %v1988, %v2905
      %v3138 = vsub.f32 %v1991, %v2905
      %v3139 = vsub.f32 %v1994, %v2906
      %v3140 = vsub.f32 %v1997, %v2906
      %v3141 = vsub.f32 %v2000, %v2906
      %v3142 = vsub.f32 %v2003, %v2906
      %v3143 = vsub.f32 %v2006, %v2906
      %v3144 = vsub.f32 %v2009, %v2906
      %v3145 = vsub.f32 %v2012, %v2906
      %v3146 = vsub.f32 %v2015, %v2906
      %v3147 = vsub.f32 %v2018, %v2906
      %v3148 = vsub.f32 %v2021, %v2906
      %v3149 = vsub.f32 %v2024, %v2906
      %v3150 = vsub.f32 %v2027, %v2906
      %v3151 = vsub.f32 %v2030, %v2906
      %v3152 = vsub.f32 %v2033, %v2906
      %v3153 = vsub.f32 %v2036, %v2906
      %v3154 = vsub.f32 %v2039, %v2906
      %v3155 = vsub.f32 %v2042, %v2906
      %v3156 = vsub.f32 %v2045, %v2906
      %v3157 = vsub.f32 %v2048, %v2906
      %v3158 = vsub.f32 %v2051, %v2906
      %v3159 = vsub.f32 %v2054, %v2906
      %v3160 = vsub.f32 %v2057, %v2906
      %v3161 = vsub.f32 %v2060, %v2906
      %v3162 = vsub.f32 %v2063, %v2906
      %v3163 = vsub.f32 %v2066, %v2906
      %v3164 = vsub.f32 %v2069, %v2906
      %v3165 = vsub.f32 %v2072, %v2906
      %v3166 = vsub.f32 %v2075, %v2906
      %v3167 = vsub.f32 %v2078, %v2906
      %v3168 = vsub.f32 %v2081, %v2906
      %v3169 = vsub.f32 %v2084, %v2906
      %v3170 = vsub.f32 %v2087, %v2906
      %v3171 = vmul.f32 %v2915, 1.442695
      %v3172 = vpow.pop %v3171
      %v3173 = vmul.f32 %v2916, 1.442695
      %v3174 = vpow.pop %v3173
      %v3175 = vmul.f32 %v2917, 1.442695
      %v3176 = vpow.pop %v3175
      %v3177 = vmul.f32 %v2918, 1.442695
      %v3178 = vpow.pop %v3177
      %v3179 = vmul.f32 %v2919, 1.442695
      %v3180 = vpow.pop %v3179
      %v3181 = vmul.f32 %v2920, 1.442695
      %v3182 = vpow.pop %v3181
      %v3183 = vmul.f32 %v2921, 1.442695
      %v3184 = vpow.pop %v3183
      %v3185 = vmul.f32 %v2922, 1.442695
      %v3186 = vpow.pop %v3185
      %v3187 = vmul.f32 %v2923, 1.442695
      %v3188 = vpow.pop %v3187
      %v3189 = vmul.f32 %v2924, 1.442695
      %v3190 = vpow.pop %v3189
      %v3191 = vmul.f32 %v2925, 1.442695
      %v3192 = vpow.pop %v3191
      %v3193 = vmul.f32 %v2926, 1.442695
      %v3194 = vpow.pop %v3193
      %v3195 = vmul.f32 %v2927, 1.442695
      %v3196 = vpow.pop %v3195
      %v3197 = vmul.f32 %v2928, 1.442695
      %v3198 = vpow.pop %v3197
      %v3199 = vmul.f32 %v2929, 1.442695
      %v3200 = vpow.pop %v3199
      %v3201 = vmul.f32 %v2930, 1.442695
      %v3202 = vpow.pop %v3201
      %v3203 = vmul.f32 %v2931, 1.442695
      %v3204 = vpow.pop %v3203
      %v3205 = vmul.f32 %v2932, 1.442695
      %v3206 = vpow.pop %v3205
      %v3207 = vmul.f32 %v2933, 1.442695
      %v3208 = vpow.pop %v3207
      %v3209 = vmul.f32 %v2934, 1.442695
      %v3210 = vpow.pop %v3209
      %v3211 = vmul.f32 %v2935, 1.442695
      %v3212 = vpow.pop %v3211
      %v3213 = vmul.f32 %v2936, 1.442695
      %v3214 = vpow.pop %v3213
      %v3215 = vmul.f32 %v2937, 1.442695
      %v3216 = vpow.pop %v3215
      %v3217 = vmul.f32 %v2938, 1.442695
      %v3218 = vpow.pop %v3217
      %v3219 = vmul.f32 %v2939, 1.442695
      %v3220 = vpow.pop %v3219
      %v3221 = vmul.f32 %v2940, 1.442695
      %v3222 = vpow.pop %v3221
      %v3223 = vmul.f32 %v2941, 1.442695
      %v3224 = vpow.pop %v3223
      %v3225 = vmul.f32 %v2942, 1.442695
      %v3226 = vpow.pop %v3225
      %v3227 = vmul.f32 %v2943, 1.442695
      %v3228 = vpow.pop %v3227
      %v3229 = vmul.f32 %v2944, 1.442695
      %v3230 = vpow.pop %v3229
      %v3231 = vmul.f32 %v2945, 1.442695
      %v3232 = vpow.pop %v3231
      %v3233 = vmul.f32 %v2946, 1.442695
      %v3234 = vpow.pop %v3233
      %v3235 = vmul.f32 %v2947, 1.442695
      %v3236 = vpow.pop %v3235
      %v3237 = vmul.f32 %v2948, 1.442695
      %v3238 = vpow.pop %v3237
      %v3239 = vmul.f32 %v2949, 1.442695
      %v3240 = vpow.pop %v3239
      %v3241 = vmul.f32 %v2950, 1.442695
      %v3242 = vpow.pop %v3241
      %v3243 = vmul.f32 %v2951, 1.442695
      %v3244 = vpow.pop %v3243
      %v3245 = vmul.f32 %v2952, 1.442695
      %v3246 = vpow.pop %v3245
      %v3247 = vmul.f32 %v2953, 1.442695
      %v3248 = vpow.pop %v3247
      %v3249 = vmul.f32 %v2954, 1.442695
      %v3250 = vpow.pop %v3249
      %v3251 = vmul.f32 %v2955, 1.442695
      %v3252 = vpow.pop %v3251
      %v3253 = vmul.f32 %v2956, 1.442695
      %v3254 = vpow.pop %v3253
      %v3255 = vmul.f32 %v2957, 1.442695
      %v3256 = vpow.pop %v3255
      %v3257 = vmul.f32 %v2958, 1.442695
      %v3258 = vpow.pop %v3257
      %v3259 = vmul.f32 %v2959, 1.442695
      %v3260 = vpow.pop %v3259
      %v3261 = vmul.f32 %v2960, 1.442695
      %v3262 = vpow.pop %v3261
      %v3263 = vmul.f32 %v2961, 1.442695
      %v3264 = vpow.pop %v3263
      %v3265 = vmul.f32 %v2962, 1.442695
      %v3266 = vpow.pop %v3265
      %v3267 = vmul.f32 %v2963, 1.442695
      %v3268 = vpow.pop %v3267
      %v3269 = vmul.f32 %v2964, 1.442695
      %v3270 = vpow.pop %v3269
      %v3271 = vmul.f32 %v2965, 1.442695
      %v3272 = vpow.pop %v3271
      %v3273 = vmul.f32 %v2966, 1.442695
      %v3274 = vpow.pop %v3273
      %v3275 = vmul.f32 %v2967, 1.442695
      %v3276 = vpow.pop %v3275
      %v3277 = vmul.f32 %v2968, 1.442695
      %v3278 = vpow.pop %v3277
      %v3279 = vmul.f32 %v2969, 1.442695
      %v3280 = vpow.pop %v3279
      %v3281 = vmul.f32 %v2970, 1.442695
      %v3282 = vpow.pop %v3281
      %v3283 = vmul.f32 %v2971, 1.442695
      %v3284 = vpow.pop %v3283
      %v3285 = vmul.f32 %v2972, 1.442695
      %v3286 = vpow.pop %v3285
      %v3287 = vmul.f32 %v2973, 1.442695
      %v3288 = vpow.pop %v3287
      %v3289 = vmul.f32 %v2974, 1.442695
      %v3290 = vpow.pop %v3289
      %v3291 = vmul.f32 %v2975, 1.442695
      %v3292 = vpow.pop %v3291
      %v3293 = vmul.f32 %v2976, 1.442695
      %v3294 = vpow.pop %v3293
      %v3295 = vmul.f32 %v2977, 1.442695
      %v3296 = vpow.pop %v3295
      %v3297 = vmul.f32 %v2978, 1.442695
      %v3298 = vpow.pop %v3297
      %v3299 = vmul.f32 %v2979, 1.442695
      %v3300 = vpow.pop %v3299
      %v3301 = vmul.f32 %v2980, 1.442695
      %v3302 = vpow.pop %v3301
      %v3303 = vmul.f32 %v2981, 1.442695
      %v3304 = vpow.pop %v3303
      %v3305 = vmul.f32 %v2982, 1.442695
      %v3306 = vpow.pop %v3305
      %v3307 = vmul.f32 %v2983, 1.442695
      %v3308 = vpow.pop %v3307
      %v3309 = vmul.f32 %v2984, 1.442695
      %v3310 = vpow.pop %v3309
      %v3311 = vmul.f32 %v2985, 1.442695
      %v3312 = vpow.pop %v3311
      %v3313 = vmul.f32 %v2986, 1.442695
      %v3314 = vpow.pop %v3313
      %v3315 = vmul.f32 %v2987, 1.442695
      %v3316 = vpow.pop %v3315
      %v3317 = vmul.f32 %v2988, 1.442695
      %v3318 = vpow.pop %v3317
      %v3319 = vmul.f32 %v2989, 1.442695
      %v3320 = vpow.pop %v3319
      %v3321 = vmul.f32 %v2990, 1.442695
      %v3322 = vpow.pop %v3321
      %v3323 = vmul.f32 %v2991, 1.442695
      %v3324 = vpow.pop %v3323
      %v3325 = vmul.f32 %v2992, 1.442695
      %v3326 = vpow.pop %v3325
      %v3327 = vmul.f32 %v2993, 1.442695
      %v3328 = vpow.pop %v3327
      %v3329 = vmul.f32 %v2994, 1.442695
      %v3330 = vpow.pop %v3329
      %v3331 = vmul.f32 %v2995, 1.442695
      %v3332 = vpow.pop %v3331
      %v3333 = vmul.f32 %v2996, 1.442695
      %v3334 = vpow.pop %v3333
      %v3335 = vmul.f32 %v2997, 1.442695
      %v3336 = vpow.pop %v3335
      %v3337 = vmul.f32 %v2998, 1.442695
      %v3338 = vpow.pop %v3337
      %v3339 = vmul.f32 %v2999, 1.442695
      %v3340 = vpow.pop %v3339
      %v3341 = vmul.f32 %v3000, 1.442695
      %v3342 = vpow.pop %v3341
      %v3343 = vmul.f32 %v3001, 1.442695
      %v3344 = vpow.pop %v3343
      %v3345 = vmul.f32 %v3002, 1.442695
      %v3346 = vpow.pop %v3345
      %v3347 = vmul.f32 %v3003, 1.442695
      %v3348 = vpow.pop %v3347
      %v3349 = vmul.f32 %v3004, 1.442695
      %v3350 = vpow.pop %v3349
      %v3351 = vmul.f32 %v3005, 1.442695
      %v3352 = vpow.pop %v3351
      %v3353 = vmul.f32 %v3006, 1.442695
      %v3354 = vpow.pop %v3353
      %v3355 = vmul.f32 %v3007, 1.442695
      %v3356 = vpow.pop %v3355
      %v3357 = vmul.f32 %v3008, 1.442695
      %v3358 = vpow.pop %v3357
      %v3359 = vmul.f32 %v3009, 1.442695
      %v3360 = vpow.pop %v3359
      %v3361 = vmul.f32 %v3010, 1.442695
      %v3362 = vpow.pop %v3361
      %v3363 = vmul.f32 %v3011, 1.442695
      %v3364 = vpow.pop %v3363
      %v3365 = vmul.f32 %v3012, 1.442695
      %v3366 = vpow.pop %v3365
      %v3367 = vmul.f32 %v3013, 1.442695
      %v3368 = vpow.pop %v3367
      %v3369 = vmul.f32 %v3014, 1.442695
      %v3370 = vpow.pop %v3369
      %v3371 = vmul.f32 %v3015, 1.442695
      %v3372 = vpow.pop %v3371
      %v3373 = vmul.f32 %v3016, 1.442695
      %v3374 = vpow.pop %v3373
      %v3375 = vmul.f32 %v3017, 1.442695
      %v3376 = vpow.pop %v3375
      %v3377 = vmul.f32 %v3018, 1.442695
      %v3378 = vpow.pop %v3377
      %v3379 = vmul.f32 %v3019, 1.442695
      %v3380 = vpow.pop %v3379
      %v3381 = vmul.f32 %v3020, 1.442695
      %v3382 = vpow.pop %v3381
      %v3383 = vmul.f32 %v3021, 1.442695
      %v3384 = vpow.pop %v3383
      %v3385 = vmul.f32 %v3022, 1.442695
      %v3386 = vpow.pop %v3385
      %v3387 = vmul.f32 %v3023, 1.442695
      %v3388 = vpow.pop %v3387
      %v3389 = vmul.f32 %v3024, 1.442695
      %v3390 = vpow.pop %v3389
      %v3391 = vmul.f32 %v3025, 1.442695
      %v3392 = vpow.pop %v3391
      %v3393 = vmul.f32 %v3026, 1.442695
      %v3394 = vpow.pop %v3393
      %v3395 = vmul.f32 %v3027, 1.442695
      %v3396 = vpow.pop %v3395
      %v3397 = vmul.f32 %v3028, 1.442695
      %v3398 = vpow.pop %v3397
      %v3399 = vmul.f32 %v3029, 1.442695
      %v3400 = vpow.pop %v3399
      %v3401 = vmul.f32 %v3030, 1.442695
      %v3402 = vpow.pop %v3401
      %v3403 = vmul.f32 %v3031, 1.442695
      %v3404 = vpow.pop %v3403
      %v3405 = vmul.f32 %v3032, 1.442695
      %v3406 = vpow.pop %v3405
      %v3407 = vmul.f32 %v3033, 1.442695
      %v3408 = vpow.pop %v3407
      %v3409 = vmul.f32 %v3034, 1.442695
      %v3410 = vpow.pop %v3409
      %v3411 = vmul.f32 %v3035, 1.442695
      %v3412 = vpow.pop %v3411
      %v3413 = vmul.f32 %v3036, 1.442695
      %v3414 = vpow.pop %v3413
      %v3415 = vmul.f32 %v3037, 1.442695
      %v3416 = vpow.pop %v3415
      %v3417 = vmul.f32 %v3038, 1.442695
      %v3418 = vpow.pop %v3417
      %v3419 = vmul.f32 %v3039, 1.442695
      %v3420 = vpow.pop %v3419
      %v3421 = vmul.f32 %v3040, 1.442695
      %v3422 = vpow.pop %v3421
      %v3423 = vmul.f32 %v3041, 1.442695
      %v3424 = vpow.pop %v3423
      %v3425 = vmul.f32 %v3042, 1.442695
      %v3426 = vpow.pop %v3425
      %v3427 = vmul.f32 %v3043, 1.442695
      %v3428 = vpow.pop %v3427
      %v3429 = vmul.f32 %v3044, 1.442695
      %v3430 = vpow.pop %v3429
      %v3431 = vmul.f32 %v3045, 1.442695
      %v3432 = vpow.pop %v3431
      %v3433 = vmul.f32 %v3046, 1.442695
      %v3434 = vpow.pop %v3433
      %v3435 = vmul.f32 %v3047, 1.442695
      %v3436 = vpow.pop %v3435
      %v3437 = vmul.f32 %v3048, 1.442695
      %v3438 = vpow.pop %v3437
      %v3439 = vmul.f32 %v3049, 1.442695
      %v3440 = vpow.pop %v3439
      %v3441 = vmul.f32 %v3050, 1.442695
      %v3442 = vpow.pop %v3441
      %v3443 = vmul.f32 %v3051, 1.442695
      %v3444 = vpow.pop %v3443
      %v3445 = vmul.f32 %v3052, 1.442695
      %v3446 = vpow.pop %v3445
      %v3447 = vmul.f32 %v3053, 1.442695
      %v3448 = vpow.pop %v3447
      %v3449 = vmul.f32 %v3054, 1.442695
      %v3450 = vpow.pop %v3449
      %v3451 = vmul.f32 %v3055, 1.442695
      %v3452 = vpow.pop %v3451
      %v3453 = vmul.f32 %v3056, 1.442695
      %v3454 = vpow.pop %v3453
      %v3455 = vmul.f32 %v3057, 1.442695
      %v3456 = vpow.pop %v3455
      %v3457 = vmul.f32 %v3058, 1.442695
      %v3458 = vpow.pop %v3457
      %v3459 = vmul.f32 %v3059, 1.442695
      %v3460 = vpow.pop %v3459
      %v3461 = vmul.f32 %v3060, 1.442695
      %v3462 = vpow.pop %v3461
      %v3463 = vmul.f32 %v3061, 1.442695
      %v3464 = vpow.pop %v3463
      %v3465 = vmul.f32 %v3062, 1.442695
      %v3466 = vpow.pop %v3465
      %v3467 = vmul.f32 %v3063, 1.442695
      %v3468 = vpow.pop %v3467
      %v3469 = vmul.f32 %v3064, 1.442695
      %v3470 = vpow.pop %v3469
      %v3471 = vmul.f32 %v3065, 1.442695
      %v3472 = vpow.pop %v3471
      %v3473 = vmul.f32 %v3066, 1.442695
      %v3474 = vpow.pop %v3473
      %v3475 = vmul.f32 %v3067, 1.442695
      %v3476 = vpow.pop %v3475
      %v3477 = vmul.f32 %v3068, 1.442695
      %v3478 = vpow.pop %v3477
      %v3479 = vmul.f32 %v3069, 1.442695
      %v3480 = vpow.pop %v3479
      %v3481 = vmul.f32 %v3070, 1.442695
      %v3482 = vpow.pop %v3481
      %v3483 = vmul.f32 %v3071, 1.442695
      %v3484 = vpow.pop %v3483
      %v3485 = vmul.f32 %v3072, 1.442695
      %v3486 = vpow.pop %v3485
      %v3487 = vmul.f32 %v3073, 1.442695
      %v3488 = vpow.pop %v3487
      %v3489 = vmul.f32 %v3074, 1.442695
      %v3490 = vpow.pop %v3489
      %v3491 = vmul.f32 %v3075, 1.442695
      %v3492 = vpow.pop %v3491
      %v3493 = vmul.f32 %v3076, 1.442695
      %v3494 = vpow.pop %v3493
      %v3495 = vmul.f32 %v3077, 1.442695
      %v3496 = vpow.pop %v3495
      %v3497 = vmul.f32 %v3078, 1.442695
      %v3498 = vpow.pop %v3497
      %v3499 = vmul.f32 %v3079, 1.442695
      %v3500 = vpow.pop %v3499
      %v3501 = vmul.f32 %v3080, 1.442695
      %v3502 = vpow.pop %v3501
      %v3503 = vmul.f32 %v3081, 1.442695
      %v3504 = vpow.pop %v3503
      %v3505 = vmul.f32 %v3082, 1.442695
      %v3506 = vpow.pop %v3505
      %v3507 = vmul.f32 %v3083, 1.442695
      %v3508 = vpow.pop %v3507
      %v3509 = vmul.f32 %v3084, 1.442695
      %v3510 = vpow.pop %v3509
      %v3511 = vmul.f32 %v3085, 1.442695
      %v3512 = vpow.pop %v3511
      %v3513 = vmul.f32 %v3086, 1.442695
      %v3514 = vpow.pop %v3513
      %v3515 = vmul.f32 %v3087, 1.442695
      %v3516 = vpow.pop %v3515
      %v3517 = vmul.f32 %v3088, 1.442695
      %v3518 = vpow.pop %v3517
      %v3519 = vmul.f32 %v3089, 1.442695
      %v3520 = vpow.pop %v3519
      %v3521 = vmul.f32 %v3090, 1.442695
      %v3522 = vpow.pop %v3521
      %v3523 = vmul.f32 %v3091, 1.442695
      %v3524 = vpow.pop %v3523
      %v3525 = vmul.f32 %v3092, 1.442695
      %v3526 = vpow.pop %v3525
      %v3527 = vmul.f32 %v3093, 1.442695
      %v3528 = vpow.pop %v3527
      %v3529 = vmul.f32 %v3094, 1.442695
      %v3530 = vpow.pop %v3529
      %v3531 = vmul.f32 %v3095, 1.442695
      %v3532 = vpow.pop %v3531
      %v3533 = vmul.f32 %v3096, 1.442695
      %v3534 = vpow.pop %v3533
      %v3535 = vmul.f32 %v3097, 1.442695
      %v3536 = vpow.pop %v3535
      %v3537 = vmul.f32 %v3098, 1.442695
      %v3538 = vpow.pop %v3537
      %v3539 = vmul.f32 %v3099, 1.442695
      %v3540 = vpow.pop %v3539
      %v3541 = vmul.f32 %v3100, 1.442695
      %v3542 = vpow.pop %v3541
      %v3543 = vmul.f32 %v3101, 1.442695
      %v3544 = vpow.pop %v3543
      %v3545 = vmul.f32 %v3102, 1.442695
      %v3546 = vpow.pop %v3545
      %v3547 = vmul.f32 %v3103, 1.442695
      %v3548 = vpow.pop %v3547
      %v3549 = vmul.f32 %v3104, 1.442695
      %v3550 = vpow.pop %v3549
      %v3551 = vmul.f32 %v3105, 1.442695
      %v3552 = vpow.pop %v3551
      %v3553 = vmul.f32 %v3106, 1.442695
      %v3554 = vpow.pop %v3553
      %v3555 = vmul.f32 %v3107, 1.442695
      %v3556 = vpow.pop %v3555
      %v3557 = vmul.f32 %v3108, 1.442695
      %v3558 = vpow.pop %v3557
      %v3559 = vmul.f32 %v3109, 1.442695
      %v3560 = vpow.pop %v3559
      %v3561 = vmul.f32 %v3110, 1.442695
      %v3562 = vpow.pop %v3561
      %v3563 = vmul.f32 %v3111, 1.442695
      %v3564 = vpow.pop %v3563
      %v3565 = vmul.f32 %v3112, 1.442695
      %v3566 = vpow.pop %v3565
      %v3567 = vmul.f32 %v3113, 1.442695
      %v3568 = vpow.pop %v3567
      %v3569 = vmul.f32 %v3114, 1.442695
      %v3570 = vpow.pop %v3569
      %v3571 = vmul.f32 %v3115, 1.442695
      %v3572 = vpow.pop %v3571
      %v3573 = vmul.f32 %v3116, 1.442695
      %v3574 = vpow.pop %v3573
      %v3575 = vmul.f32 %v3117, 1.442695
      %v3576 = vpow.pop %v3575
      %v3577 = vmul.f32 %v3118, 1.442695
      %v3578 = vpow.pop %v3577
      %v3579 = vmul.f32 %v3119, 1.442695
      %v3580 = vpow.pop %v3579
      %v3581 = vmul.f32 %v3120, 1.442695
      %v3582 = vpow.pop %v3581
      %v3583 = vmul.f32 %v3121, 1.442695
      %v3584 = vpow.pop %v3583
      %v3585 = vmul.f32 %v3122, 1.442695
      %v3586 = vpow.pop %v3585
      %v3587 = vmul.f32 %v3123, 1.442695
      %v3588 = vpow.pop %v3587
      %v3589 = vmul.f32 %v3124, 1.442695
      %v3590 = vpow.pop %v3589
      %v3591 = vmul.f32 %v3125, 1.442695
      %v3592 = vpow.pop %v3591
      %v3593 = vmul.f32 %v3126, 1.442695
      %v3594 = vpow.pop %v3593
      %v3595 = vmul.f32 %v3127, 1.442695
      %v3596 = vpow.pop %v3595
      %v3597 = vmul.f32 %v3128, 1.442695
      %v3598 = vpow.pop %v3597
      %v3599 = vmul.f32 %v3129, 1.442695
      %v3600 = vpow.pop %v3599
      %v3601 = vmul.f32 %v3130, 1.442695
      %v3602 = vpow.pop %v3601
      %v3603 = vmul.f32 %v3131, 1.442695
      %v3604 = vpow.pop %v3603
      %v3605 = vmul.f32 %v3132, 1.442695
      %v3606 = vpow.pop %v3605
      %v3607 = vmul.f32 %v3133, 1.442695
      %v3608 = vpow.pop %v3607
      %v3609 = vmul.f32 %v3134, 1.442695
      %v3610 = vpow.pop %v3609
      %v3611 = vmul.f32 %v3135, 1.442695
      %v3612 = vpow.pop %v3611
      %v3613 = vmul.f32 %v3136, 1.442695
      %v3614 = vpow.pop %v3613
      %v3615 = vmul.f32 %v3137, 1.442695
      %v3616 = vpow.pop %v3615
      %v3617 = vmul.f32 %v3138, 1.442695
      %v3618 = vpow.pop %v3617
      %v3619 = vmul.f32 %v3139, 1.442695
      %v3620 = vpow.pop %v3619
      %v3621 = vmul.f32 %v3140, 1.442695
      %v3622 = vpow.pop %v3621
      %v3623 = vmul.f32 %v3141, 1.442695
      %v3624 = vpow.pop %v3623
      %v3625 = vmul.f32 %v3142, 1.442695
      %v3626 = vpow.pop %v3625
      %v3627 = vmul.f32 %v3143, 1.442695
      %v3628 = vpow.pop %v3627
      %v3629 = vmul.f32 %v3144, 1.442695
      %v3630 = vpow.pop %v3629
      %v3631 = vmul.f32 %v3145, 1.442695
      %v3632 = vpow.pop %v3631
      %v3633 = vmul.f32 %v3146, 1.442695
      %v3634 = vpow.pop %v3633
      %v3635 = vmul.f32 %v3147, 1.442695
      %v3636 = vpow.pop %v3635
      %v3637 = vmul.f32 %v3148, 1.442695
      %v3638 = vpow.pop %v3637
      %v3639 = vmul.f32 %v3149, 1.442695
      %v3640 = vpow.pop %v3639
      %v3641 = vmul.f32 %v3150, 1.442695
      %v3642 = vpow.pop %v3641
      %v3643 = vmul.f32 %v3151, 1.442695
      %v3644 = vpow.pop %v3643
      %v3645 = vmul.f32 %v3152, 1.442695
      %v3646 = vpow.pop %v3645
      %v3647 = vmul.f32 %v3153, 1.442695
      %v3648 = vpow.pop %v3647
      %v3649 = vmul.f32 %v3154, 1.442695
      %v3650 = vpow.pop %v3649
      %v3651 = vmul.f32 %v3155, 1.442695
      %v3652 = vpow.pop %v3651
      %v3653 = vmul.f32 %v3156, 1.442695
      %v3654 = vpow.pop %v3653
      %v3655 = vmul.f32 %v3157, 1.442695
      %v3656 = vpow.pop %v3655
      %v3657 = vmul.f32 %v3158, 1.442695
      %v3658 = vpow.pop %v3657
      %v3659 = vmul.f32 %v3159, 1.442695
      %v3660 = vpow.pop %v3659
      %v3661 = vmul.f32 %v3160, 1.442695
      %v3662 = vpow.pop %v3661
      %v3663 = vmul.f32 %v3161, 1.442695
      %v3664 = vpow.pop %v3663
      %v3665 = vmul.f32 %v3162, 1.442695
      %v3666 = vpow.pop %v3665
      %v3667 = vmul.f32 %v3163, 1.442695
      %v3668 = vpow.pop %v3667
      %v3669 = vmul.f32 %v3164, 1.442695
      %v3670 = vpow.pop %v3669
      %v3671 = vmul.f32 %v3165, 1.442695
      %v3672 = vpow.pop %v3671
      %v3673 = vmul.f32 %v3166, 1.442695
      %v3674 = vpow.pop %v3673
      %v3675 = vmul.f32 %v3167, 1.442695
      %v3676 = vpow.pop %v3675
      %v3677 = vmul.f32 %v3168, 1.442695
      %v3678 = vpow.pop %v3677
      %v3679 = vmul.f32 %v3169, 1.442695
      %v3680 = vpow.pop %v3679
      %v3681 = vmul.f32 %v3170, 1.442695
      %v3682 = vpow.pop %v3681
      %3939 = vset.pattern.permute.xlu0 0
      %3940 = vperm.xlu0 %3939, %v3172
      %v3941 = vpop.permute.xlu0 %3940
      %3942 = vset.pattern.permute.xlu0 0
      %3943 = vperm.xlu0 %3942, %v3174
      %v3944 = vpop.permute.xlu0 %3943
      %3945 = vset.pattern.permute.xlu0 0
      %3946 = vperm.xlu0 %3945, %v3176
      %v3947 = vpop.permute.xlu0 %3946
      %3948 = vset.pattern.permute.xlu0 0
      %3949 = vperm.xlu0 %3948, %v3178
      %v3950 = vpop.permute.xlu0 %3949
      %3951 = vset.pattern.permute.xlu0 0
      %3952 = vperm.xlu0 %3951, %v3180
      %v3953 = vpop.permute.xlu0 %3952
      %3954 = vset.pattern.permute.xlu0 0
      %3955 = vperm.xlu0 %3954, %v3182
      %v3956 = vpop.permute.xlu0 %3955
      %3957 = vset.pattern.permute.xlu0 0
      %3958 = vperm.xlu0 %3957, %v3184
      %v3959 = vpop.permute.xlu0 %3958
      %3960 = vset.pattern.permute.xlu0 0
      %3961 = vperm.xlu0 %3960, %v3186
      %v3962 = vpop.permute.xlu0 %3961
      %3963 = vset.pattern.permute.xlu0 0
      %3964 = vperm.xlu0 %3963, %v3188
      %v3965 = vpop.permute.xlu0 %3964
      %3966 = vset.pattern.permute.xlu0 0
      %3967 = vperm.xlu0 %3966, %v3190
      %v3968 = vpop.permute.xlu0 %3967
      %3969 = vset.pattern.permute.xlu0 0
      %3970 = vperm.xlu0 %3969, %v3192
      %v3971 = vpop.permute.xlu0 %3970
      %3972 = vset.pattern.permute.xlu0 0
      %3973 = vperm.xlu0 %3972, %v3194
      %v3974 = vpop.permute.xlu0 %3973
      %3975 = vset.pattern.permute.xlu0 0
      %3976 = vperm.xlu0 %3975, %v3196
      %v3977 = vpop.permute.xlu0 %3976
      %3978 = vset.pattern.permute.xlu0 0
      %3979 = vperm.xlu0 %3978, %v3198
      %v3980 = vpop.permute.xlu0 %3979
      %3981 = vset.pattern.permute.xlu0 0
      %3982 = vperm.xlu0 %3981, %v3200
      %v3983 = vpop.permute.xlu0 %3982
      %3984 = vset.pattern.permute.xlu0 0
      %3985 = vperm.xlu0 %3984, %v3202
      %v3986 = vpop.permute.xlu0 %3985
      %3987 = vset.pattern.permute.xlu0 0
      %3988 = vperm.xlu0 %3987, %v3204
      %v3989 = vpop.permute.xlu0 %3988
      %3990 = vset.pattern.permute.xlu0 0
      %3991 = vperm.xlu0 %3990, %v3206
      %v3992 = vpop.permute.xlu0 %3991
      %3993 = vset.pattern.permute.xlu0 0
      %3994 = vperm.xlu0 %3993, %v3208
      %v3995 = vpop.permute.xlu0 %3994
      %3996 = vset.pattern.permute.xlu0 0
      %3997 = vperm.xlu0 %3996, %v3210
      %v3998 = vpop.permute.xlu0 %3997
      %3999 = vset.pattern.permute.xlu0 0
      %4000 = vperm.xlu0 %3999, %v3212
      %v4001 = vpop.permute.xlu0 %4000
      %4002 = vset.pattern.permute.xlu0 0
      %4003 = vperm.xlu0 %4002, %v3214
      %v4004 = vpop.permute.xlu0 %4003
      %4005 = vset.pattern.permute.xlu0 0
      %4006 = vperm.xlu0 %4005, %v3216
      %v4007 = vpop.permute.xlu0 %4006
      %4008 = vset.pattern.permute.xlu0 0
      %4009 = vperm.xlu0 %4008, %v3218
      %v4010 = vpop.permute.xlu0 %4009
      %4011 = vset.pattern.permute.xlu0 0
      %4012 = vperm.xlu0 %4011, %v3220
      %v4013 = vpop.permute.xlu0 %4012
      %4014 = vset.pattern.permute.xlu0 0
      %4015 = vperm.xlu0 %4014, %v3222
      %v4016 = vpop.permute.xlu0 %4015
      %4017 = vset.pattern.permute.xlu0 0
      %4018 = vperm.xlu0 %4017, %v3224
      %v4019 = vpop.permute.xlu0 %4018
      %4020 = vset.pattern.permute.xlu0 0
      %4021 = vperm.xlu0 %4020, %v3226
      %v4022 = vpop.permute.xlu0 %4021
      %4023 = vset.pattern.permute.xlu0 0
      %4024 = vperm.xlu0 %4023, %v3228
      %v4025 = vpop.permute.xlu0 %4024
      %4026 = vset.pattern.permute.xlu0 0
      %4027 = vperm.xlu0 %4026, %v3230
      %v4028 = vpop.permute.xlu0 %4027
      %4029 = vset.pattern.permute.xlu0 0
      %4030 = vperm.xlu0 %4029, %v3232
      %v4031 = vpop.permute.xlu0 %4030
      %4032 = vset.pattern.permute.xlu0 0
      %4033 = vperm.xlu0 %4032, %v3234
      %v4034 = vpop.permute.xlu0 %4033
      %4035 = vset.pattern.permute.xlu0 0
      %4036 = vperm.xlu0 %4035, %v3236
      %v4037 = vpop.permute.xlu0 %4036
      %4038 = vset.pattern.permute.xlu0 0
      %4039 = vperm.xlu0 %4038, %v3238
      %v4040 = vpop.permute.xlu0 %4039
      %4041 = vset.pattern.permute.xlu0 0
      %4042 = vperm.xlu0 %4041, %v3240
      %v4043 = vpop.permute.xlu0 %4042
      %4044 = vset.pattern.permute.xlu0 0
      %4045 = vperm.xlu0 %4044, %v3242
      %v4046 = vpop.permute.xlu0 %4045
      %4047 = vset.pattern.permute.xlu0 0
      %4048 = vperm.xlu0 %4047, %v3244
      %v4049 = vpop.permute.xlu0 %4048
      %4050 = vset.pattern.permute.xlu0 0
      %4051 = vperm.xlu0 %4050, %v3246
      %v4052 = vpop.permute.xlu0 %4051
      %4053 = vset.pattern.permute.xlu0 0
      %4054 = vperm.xlu0 %4053, %v3248
      %v4055 = vpop.permute.xlu0 %4054
      %4056 = vset.pattern.permute.xlu0 0
      %4057 = vperm.xlu0 %4056, %v3250
      %v4058 = vpop.permute.xlu0 %4057
      %4059 = vset.pattern.permute.xlu0 0
      %4060 = vperm.xlu0 %4059, %v3252
      %v4061 = vpop.permute.xlu0 %4060
      %4062 = vset.pattern.permute.xlu0 0
      %4063 = vperm.xlu0 %4062, %v3254
      %v4064 = vpop.permute.xlu0 %4063
      %4065 = vset.pattern.permute.xlu0 0
      %4066 = vperm.xlu0 %4065, %v3256
      %v4067 = vpop.permute.xlu0 %4066
      %4068 = vset.pattern.permute.xlu0 0
      %4069 = vperm.xlu0 %4068, %v3258
      %v4070 = vpop.permute.xlu0 %4069
      %4071 = vset.pattern.permute.xlu0 0
      %4072 = vperm.xlu0 %4071, %v3260
      %v4073 = vpop.permute.xlu0 %4072
      %4074 = vset.pattern.permute.xlu0 0
      %4075 = vperm.xlu0 %4074, %v3262
      %v4076 = vpop.permute.xlu0 %4075
      %4077 = vset.pattern.permute.xlu0 0
      %4078 = vperm.xlu0 %4077, %v3264
      %v4079 = vpop.permute.xlu0 %4078
      %4080 = vset.pattern.permute.xlu0 0
      %4081 = vperm.xlu0 %4080, %v3266
      %v4082 = vpop.permute.xlu0 %4081
      %4083 = vset.pattern.permute.xlu0 0
      %4084 = vperm.xlu0 %4083, %v3268
      %v4085 = vpop.permute.xlu0 %4084
      %4086 = vset.pattern.permute.xlu0 0
      %4087 = vperm.xlu0 %4086, %v3270
      %v4088 = vpop.permute.xlu0 %4087
      %4089 = vset.pattern.permute.xlu0 0
      %4090 = vperm.xlu0 %4089, %v3272
      %v4091 = vpop.permute.xlu0 %4090
      %4092 = vset.pattern.permute.xlu0 0
      %4093 = vperm.xlu0 %4092, %v3274
      %v4094 = vpop.permute.xlu0 %4093
      %4095 = vset.pattern.permute.xlu0 0
      %4096 = vperm.xlu0 %4095, %v3276
      %v4097 = vpop.permute.xlu0 %4096
      %4098 = vset.pattern.permute.xlu0 0
      %4099 = vperm.xlu0 %4098, %v3278
      %v4100 = vpop.permute.xlu0 %4099
      %4101 = vset.pattern.permute.xlu0 0
      %4102 = vperm.xlu0 %4101, %v3280
      %v4103 = vpop.permute.xlu0 %4102
      %4104 = vset.pattern.permute.xlu0 0
      %4105 = vperm.xlu0 %4104, %v3282
      %v4106 = vpop.permute.xlu0 %4105
      %4107 = vset.pattern.permute.xlu0 0
      %4108 = vperm.xlu0 %4107, %v3284
      %v4109 = vpop.permute.xlu0 %4108
      %4110 = vset.pattern.permute.xlu0 0
      %4111 = vperm.xlu0 %4110, %v3286
      %v4112 = vpop.permute.xlu0 %4111
      %4113 = vset.pattern.permute.xlu0 0
      %4114 = vperm.xlu0 %4113, %v3288
      %v4115 = vpop.permute.xlu0 %4114
      %4116 = vset.pattern.permute.xlu0 0
      %4117 = vperm.xlu0 %4116, %v3290
      %v4118 = vpop.permute.xlu0 %4117
      %4119 = vset.pattern.permute.xlu0 0
      %4120 = vperm.xlu0 %4119, %v3292
      %v4121 = vpop.permute.xlu0 %4120
      %4122 = vset.pattern.permute.xlu0 0
      %4123 = vperm.xlu0 %4122, %v3294
      %v4124 = vpop.permute.xlu0 %4123
      %4125 = vset.pattern.permute.xlu0 0
      %4126 = vperm.xlu0 %4125, %v3296
      %v4127 = vpop.permute.xlu0 %4126
      %4128 = vset.pattern.permute.xlu0 0
      %4129 = vperm.xlu0 %4128, %v3298
      %v4130 = vpop.permute.xlu0 %4129
      %4131 = vset.pattern.permute.xlu0 0
      %4132 = vperm.xlu0 %4131, %v3300
      %v4133 = vpop.permute.xlu0 %4132
      %4134 = vset.pattern.permute.xlu0 0
      %4135 = vperm.xlu0 %4134, %v3302
      %v4136 = vpop.permute.xlu0 %4135
      %4137 = vset.pattern.permute.xlu0 0
      %4138 = vperm.xlu0 %4137, %v3304
      %v4139 = vpop.permute.xlu0 %4138
      %4140 = vset.pattern.permute.xlu0 0
      %4141 = vperm.xlu0 %4140, %v3306
      %v4142 = vpop.permute.xlu0 %4141
      %4143 = vset.pattern.permute.xlu0 0
      %4144 = vperm.xlu0 %4143, %v3308
      %v4145 = vpop.permute.xlu0 %4144
      %4146 = vset.pattern.permute.xlu0 0
      %4147 = vperm.xlu0 %4146, %v3310
      %v4148 = vpop.permute.xlu0 %4147
      %4149 = vset.pattern.permute.xlu0 0
      %4150 = vperm.xlu0 %4149, %v3312
      %v4151 = vpop.permute.xlu0 %4150
      %4152 = vset.pattern.permute.xlu0 0
      %4153 = vperm.xlu0 %4152, %v3314
      %v4154 = vpop.permute.xlu0 %4153
      %4155 = vset.pattern.permute.xlu0 0
      %4156 = vperm.xlu0 %4155, %v3316
      %v4157 = vpop.permute.xlu0 %4156
      %4158 = vset.pattern.permute.xlu0 0
      %4159 = vperm.xlu0 %4158, %v3318
      %v4160 = vpop.permute.xlu0 %4159
      %4161 = vset.pattern.permute.xlu0 0
      %4162 = vperm.xlu0 %4161, %v3320
      %v4163 = vpop.permute.xlu0 %4162
      %4164 = vset.pattern.permute.xlu0 0
      %4165 = vperm.xlu0 %4164, %v3322
      %v4166 = vpop.permute.xlu0 %4165
      %4167 = vset.pattern.permute.xlu0 0
      %4168 = vperm.xlu0 %4167, %v3324
      %v4169 = vpop.permute.xlu0 %4168
      %4170 = vset.pattern.permute.xlu0 0
      %4171 = vperm.xlu0 %4170, %v3326
      %v4172 = vpop.permute.xlu0 %4171
      %4173 = vset.pattern.permute.xlu0 0
      %4174 = vperm.xlu0 %4173, %v3328
      %v4175 = vpop.permute.xlu0 %4174
      %4176 = vset.pattern.permute.xlu0 0
      %4177 = vperm.xlu0 %4176, %v3330
      %v4178 = vpop.permute.xlu0 %4177
      %4179 = vset.pattern.permute.xlu0 0
      %4180 = vperm.xlu0 %4179, %v3332
      %v4181 = vpop.permute.xlu0 %4180
      %4182 = vset.pattern.permute.xlu0 0
      %4183 = vperm.xlu0 %4182, %v3334
      %v4184 = vpop.permute.xlu0 %4183
      %4185 = vset.pattern.permute.xlu0 0
      %4186 = vperm.xlu0 %4185, %v3336
      %v4187 = vpop.permute.xlu0 %4186
      %4188 = vset.pattern.permute.xlu0 0
      %4189 = vperm.xlu0 %4188, %v3338
      %v4190 = vpop.permute.xlu0 %4189
      %4191 = vset.pattern.permute.xlu0 0
      %4192 = vperm.xlu0 %4191, %v3340
      %v4193 = vpop.permute.xlu0 %4192
      %4194 = vset.pattern.permute.xlu0 0
      %4195 = vperm.xlu0 %4194, %v3342
      %v4196 = vpop.permute.xlu0 %4195
      %4197 = vset.pattern.permute.xlu0 0
      %4198 = vperm.xlu0 %4197, %v3344
      %v4199 = vpop.permute.xlu0 %4198
      %4200 = vset.pattern.permute.xlu0 0
      %4201 = vperm.xlu0 %4200, %v3346
      %v4202 = vpop.permute.xlu0 %4201
      %4203 = vset.pattern.permute.xlu0 0
      %4204 = vperm.xlu0 %4203, %v3348
      %v4205 = vpop.permute.xlu0 %4204
      %4206 = vset.pattern.permute.xlu0 0
      %4207 = vperm.xlu0 %4206, %v3350
      %v4208 = vpop.permute.xlu0 %4207
      %4209 = vset.pattern.permute.xlu0 0
      %4210 = vperm.xlu0 %4209, %v3352
      %v4211 = vpop.permute.xlu0 %4210
      %4212 = vset.pattern.permute.xlu0 0
      %4213 = vperm.xlu0 %4212, %v3354
      %v4214 = vpop.permute.xlu0 %4213
      %4215 = vset.pattern.permute.xlu0 0
      %4216 = vperm.xlu0 %4215, %v3356
      %v4217 = vpop.permute.xlu0 %4216
      %4218 = vset.pattern.permute.xlu0 0
      %4219 = vperm.xlu0 %4218, %v3358
      %v4220 = vpop.permute.xlu0 %4219
      %4221 = vset.pattern.permute.xlu0 0
      %4222 = vperm.xlu0 %4221, %v3360
      %v4223 = vpop.permute.xlu0 %4222
      %4224 = vset.pattern.permute.xlu0 0
      %4225 = vperm.xlu0 %4224, %v3362
      %v4226 = vpop.permute.xlu0 %4225
      %4227 = vset.pattern.permute.xlu0 0
      %4228 = vperm.xlu0 %4227, %v3364
      %v4229 = vpop.permute.xlu0 %4228
      %4230 = vset.pattern.permute.xlu0 0
      %4231 = vperm.xlu0 %4230, %v3366
      %v4232 = vpop.permute.xlu0 %4231
      %4233 = vset.pattern.permute.xlu0 0
      %4234 = vperm.xlu0 %4233, %v3368
      %v4235 = vpop.permute.xlu0 %4234
      %4236 = vset.pattern.permute.xlu0 0
      %4237 = vperm.xlu0 %4236, %v3370
      %v4238 = vpop.permute.xlu0 %4237
      %4239 = vset.pattern.permute.xlu0 0
      %4240 = vperm.xlu0 %4239, %v3372
      %v4241 = vpop.permute.xlu0 %4240
      %4242 = vset.pattern.permute.xlu0 0
      %4243 = vperm.xlu0 %4242, %v3374
      %v4244 = vpop.permute.xlu0 %4243
      %4245 = vset.pattern.permute.xlu0 0
      %4246 = vperm.xlu0 %4245, %v3376
      %v4247 = vpop.permute.xlu0 %4246
      %4248 = vset.pattern.permute.xlu0 0
      %4249 = vperm.xlu0 %4248, %v3378
      %v4250 = vpop.permute.xlu0 %4249
      %4251 = vset.pattern.permute.xlu0 0
      %4252 = vperm.xlu0 %4251, %v3380
      %v4253 = vpop.permute.xlu0 %4252
      %4254 = vset.pattern.permute.xlu0 0
      %4255 = vperm.xlu0 %4254, %v3382
      %v4256 = vpop.permute.xlu0 %4255
      %4257 = vset.pattern.permute.xlu0 0
      %4258 = vperm.xlu0 %4257, %v3384
      %v4259 = vpop.permute.xlu0 %4258
      %4260 = vset.pattern.permute.xlu0 0
      %4261 = vperm.xlu0 %4260, %v3386
      %v4262 = vpop.permute.xlu0 %4261
      %4263 = vset.pattern.permute.xlu0 0
      %4264 = vperm.xlu0 %4263, %v3388
      %v4265 = vpop.permute.xlu0 %4264
      %4266 = vset.pattern.permute.xlu0 0
      %4267 = vperm.xlu0 %4266, %v3390
      %v4268 = vpop.permute.xlu0 %4267
      %4269 = vset.pattern.permute.xlu0 0
      %4270 = vperm.xlu0 %4269, %v3392
      %v4271 = vpop.permute.xlu0 %4270
      %4272 = vset.pattern.permute.xlu0 0
      %4273 = vperm.xlu0 %4272, %v3394
      %v4274 = vpop.permute.xlu0 %4273
      %4275 = vset.pattern.permute.xlu0 0
      %4276 = vperm.xlu0 %4275, %v3396
      %v4277 = vpop.permute.xlu0 %4276
      %4278 = vset.pattern.permute.xlu0 0
      %4279 = vperm.xlu0 %4278, %v3398
      %v4280 = vpop.permute.xlu0 %4279
      %4281 = vset.pattern.permute.xlu0 0
      %4282 = vperm.xlu0 %4281, %v3400
      %v4283 = vpop.permute.xlu0 %4282
      %4284 = vset.pattern.permute.xlu0 0
      %4285 = vperm.xlu0 %4284, %v3402
      %v4286 = vpop.permute.xlu0 %4285
      %4287 = vset.pattern.permute.xlu0 0
      %4288 = vperm.xlu0 %4287, %v3404
      %v4289 = vpop.permute.xlu0 %4288
      %4290 = vset.pattern.permute.xlu0 0
      %4291 = vperm.xlu0 %4290, %v3406
      %v4292 = vpop.permute.xlu0 %4291
      %4293 = vset.pattern.permute.xlu0 0
      %4294 = vperm.xlu0 %4293, %v3408
      %v4295 = vpop.permute.xlu0 %4294
      %4296 = vset.pattern.permute.xlu0 0
      %4297 = vperm.xlu0 %4296, %v3410
      %v4298 = vpop.permute.xlu0 %4297
      %4299 = vset.pattern.permute.xlu0 0
      %4300 = vperm.xlu0 %4299, %v3412
      %v4301 = vpop.permute.xlu0 %4300
      %4302 = vset.pattern.permute.xlu0 0
      %4303 = vperm.xlu0 %4302, %v3414
      %v4304 = vpop.permute.xlu0 %4303
      %4305 = vset.pattern.permute.xlu0 0
      %4306 = vperm.xlu0 %4305, %v3416
      %v4307 = vpop.permute.xlu0 %4306
      %4308 = vset.pattern.permute.xlu0 0
      %4309 = vperm.xlu0 %4308, %v3418
      %v4310 = vpop.permute.xlu0 %4309
      %4311 = vset.pattern.permute.xlu0 0
      %4312 = vperm.xlu0 %4311, %v3420
      %v4313 = vpop.permute.xlu0 %4312
      %4314 = vset.pattern.permute.xlu0 0
      %4315 = vperm.xlu0 %4314, %v3422
      %v4316 = vpop.permute.xlu0 %4315
      %4317 = vset.pattern.permute.xlu0 0
      %4318 = vperm.xlu0 %4317, %v3424
      %v4319 = vpop.permute.xlu0 %4318
      %4320 = vset.pattern.permute.xlu0 0
      %4321 = vperm.xlu0 %4320, %v3426
      %v4322 = vpop.permute.xlu0 %4321
      %4323 = vset.pattern.permute.xlu0 0
      %4324 = vperm.xlu0 %4323, %v3428
      %v4325 = vpop.permute.xlu0 %4324
      %4326 = vset.pattern.permute.xlu0 0
      %4327 = vperm.xlu0 %4326, %v3430
      %v4328 = vpop.permute.xlu0 %4327
      %4329 = vset.pattern.permute.xlu0 0
      %4330 = vperm.xlu0 %4329, %v3432
      %v4331 = vpop.permute.xlu0 %4330
      %4332 = vset.pattern.permute.xlu0 0
      %4333 = vperm.xlu0 %4332, %v3434
      %v4334 = vpop.permute.xlu0 %4333
      %4335 = vset.pattern.permute.xlu0 0
      %4336 = vperm.xlu0 %4335, %v3436
      %v4337 = vpop.permute.xlu0 %4336
      %4338 = vset.pattern.permute.xlu0 0
      %4339 = vperm.xlu0 %4338, %v3438
      %v4340 = vpop.permute.xlu0 %4339
      %4341 = vset.pattern.permute.xlu0 0
      %4342 = vperm.xlu0 %4341, %v3440
      %v4343 = vpop.permute.xlu0 %4342
      %4344 = vset.pattern.permute.xlu0 0
      %4345 = vperm.xlu0 %4344, %v3442
      %v4346 = vpop.permute.xlu0 %4345
      %4347 = vset.pattern.permute.xlu0 0
      %4348 = vperm.xlu0 %4347, %v3444
      %v4349 = vpop.permute.xlu0 %4348
      %4350 = vset.pattern.permute.xlu0 0
      %4351 = vperm.xlu0 %4350, %v3446
      %v4352 = vpop.permute.xlu0 %4351
      %4353 = vset.pattern.permute.xlu0 0
      %4354 = vperm.xlu0 %4353, %v3448
      %v4355 = vpop.permute.xlu0 %4354
      %4356 = vset.pattern.permute.xlu0 0
      %4357 = vperm.xlu0 %4356, %v3450
      %v4358 = vpop.permute.xlu0 %4357
      %4359 = vset.pattern.permute.xlu0 0
      %4360 = vperm.xlu0 %4359, %v3452
      %v4361 = vpop.permute.xlu0 %4360
      %4362 = vset.pattern.permute.xlu0 0
      %4363 = vperm.xlu0 %4362, %v3454
      %v4364 = vpop.permute.xlu0 %4363
      %4365 = vset.pattern.permute.xlu0 0
      %4366 = vperm.xlu0 %4365, %v3456
      %v4367 = vpop.permute.xlu0 %4366
      %4368 = vset.pattern.permute.xlu0 0
      %4369 = vperm.xlu0 %4368, %v3458
      %v4370 = vpop.permute.xlu0 %4369
      %4371 = vset.pattern.permute.xlu0 0
      %4372 = vperm.xlu0 %4371, %v3460
      %v4373 = vpop.permute.xlu0 %4372
      %4374 = vset.pattern.permute.xlu0 0
      %4375 = vperm.xlu0 %4374, %v3462
      %v4376 = vpop.permute.xlu0 %4375
      %4377 = vset.pattern.permute.xlu0 0
      %4378 = vperm.xlu0 %4377, %v3464
      %v4379 = vpop.permute.xlu0 %4378
      %4380 = vset.pattern.permute.xlu0 0
      %4381 = vperm.xlu0 %4380, %v3466
      %v4382 = vpop.permute.xlu0 %4381
      %4383 = vset.pattern.permute.xlu0 0
      %4384 = vperm.xlu0 %4383, %v3468
      %v4385 = vpop.permute.xlu0 %4384
      %4386 = vset.pattern.permute.xlu0 0
      %4387 = vperm.xlu0 %4386, %v3470
      %v4388 = vpop.permute.xlu0 %4387
      %4389 = vset.pattern.permute.xlu0 0
      %4390 = vperm.xlu0 %4389, %v3472
      %v4391 = vpop.permute.xlu0 %4390
      %4392 = vset.pattern.permute.xlu0 0
      %4393 = vperm.xlu0 %4392, %v3474
      %v4394 = vpop.permute.xlu0 %4393
      %4395 = vset.pattern.permute.xlu0 0
      %4396 = vperm.xlu0 %4395, %v3476
      %v4397 = vpop.permute.xlu0 %4396
      %4398 = vset.pattern.permute.xlu0 0
      %4399 = vperm.xlu0 %4398, %v3478
      %v4400 = vpop.permute.xlu0 %4399
      %4401 = vset.pattern.permute.xlu0 0
      %4402 = vperm.xlu0 %4401, %v3480
      %v4403 = vpop.permute.xlu0 %4402
      %4404 = vset.pattern.permute.xlu0 0
      %4405 = vperm.xlu0 %4404, %v3482
      %v4406 = vpop.permute.xlu0 %4405
      %4407 = vset.pattern.permute.xlu0 0
      %4408 = vperm.xlu0 %4407, %v3484
      %v4409 = vpop.permute.xlu0 %4408
      %4410 = vset.pattern.permute.xlu0 0
      %4411 = vperm.xlu0 %4410, %v3486
      %v4412 = vpop.permute.xlu0 %4411
      %4413 = vset.pattern.permute.xlu0 0
      %4414 = vperm.xlu0 %4413, %v3488
      %v4415 = vpop.permute.xlu0 %4414
      %4416 = vset.pattern.permute.xlu0 0
      %4417 = vperm.xlu0 %4416, %v3490
      %v4418 = vpop.permute.xlu0 %4417
      %4419 = vset.pattern.permute.xlu0 0
      %4420 = vperm.xlu0 %4419, %v3492
      %v4421 = vpop.permute.xlu0 %4420
      %4422 = vset.pattern.permute.xlu0 0
      %4423 = vperm.xlu0 %4422, %v3494
      %v4424 = vpop.permute.xlu0 %4423
      %4425 = vset.pattern.permute.xlu0 0
      %4426 = vperm.xlu0 %4425, %v3496
      %v4427 = vpop.permute.xlu0 %4426
      %4428 = vset.pattern.permute.xlu0 0
      %4429 = vperm.xlu0 %4428, %v3498
      %v4430 = vpop.permute.xlu0 %4429
      %4431 = vset.pattern.permute.xlu0 0
      %4432 = vperm.xlu0 %4431, %v3500
      %v4433 = vpop.permute.xlu0 %4432
      %4434 = vset.pattern.permute.xlu0 0
      %4435 = vperm.xlu0 %4434, %v3502
      %v4436 = vpop.permute.xlu0 %4435
      %4437 = vset.pattern.permute.xlu0 0
      %4438 = vperm.xlu0 %4437, %v3504
      %v4439 = vpop.permute.xlu0 %4438
      %4440 = vset.pattern.permute.xlu0 0
      %4441 = vperm.xlu0 %4440, %v3506
      %v4442 = vpop.permute.xlu0 %4441
      %4443 = vset.pattern.permute.xlu0 0
      %4444 = vperm.xlu0 %4443, %v3508
      %v4445 = vpop.permute.xlu0 %4444
      %4446 = vset.pattern.permute.xlu0 0
      %4447 = vperm.xlu0 %4446, %v3510
      %v4448 = vpop.permute.xlu0 %4447
      %4449 = vset.pattern.permute.xlu0 0
      %4450 = vperm.xlu0 %4449, %v3512
      %v4451 = vpop.permute.xlu0 %4450
      %4452 = vset.pattern.permute.xlu0 0
      %4453 = vperm.xlu0 %4452, %v3514
      %v4454 = vpop.permute.xlu0 %4453
      %4455 = vset.pattern.permute.xlu0 0
      %4456 = vperm.xlu0 %4455, %v3516
      %v4457 = vpop.permute.xlu0 %4456
      %4458 = vset.pattern.permute.xlu0 0
      %4459 = vperm.xlu0 %4458, %v3518
      %v4460 = vpop.permute.xlu0 %4459
      %4461 = vset.pattern.permute.xlu0 0
      %4462 = vperm.xlu0 %4461, %v3520
      %v4463 = vpop.permute.xlu0 %4462
      %4464 = vset.pattern.permute.xlu0 0
      %4465 = vperm.xlu0 %4464, %v3522
      %v4466 = vpop.permute.xlu0 %4465
      %4467 = vset.pattern.permute.xlu0 0
      %4468 = vperm.xlu0 %4467, %v3524
      %v4469 = vpop.permute.xlu0 %4468
      %4470 = vset.pattern.permute.xlu0 0
      %4471 = vperm.xlu0 %4470, %v3526
      %v4472 = vpop.permute.xlu0 %4471
      %4473 = vset.pattern.permute.xlu0 0
      %4474 = vperm.xlu0 %4473, %v3528
      %v4475 = vpop.permute.xlu0 %4474
      %4476 = vset.pattern.permute.xlu0 0
      %4477 = vperm.xlu0 %4476, %v3530
      %v4478 = vpop.permute.xlu0 %4477
      %4479 = vset.pattern.permute.xlu0 0
      %4480 = vperm.xlu0 %4479, %v3532
      %v4481 = vpop.permute.xlu0 %4480
      %4482 = vset.pattern.permute.xlu0 0
      %4483 = vperm.xlu0 %4482, %v3534
      %v4484 = vpop.permute.xlu0 %4483
      %4485 = vset.pattern.permute.xlu0 0
      %4486 = vperm.xlu0 %4485, %v3536
      %v4487 = vpop.permute.xlu0 %4486
      %4488 = vset.pattern.permute.xlu0 0
      %4489 = vperm.xlu0 %4488, %v3538
      %v4490 = vpop.permute.xlu0 %4489
      %4491 = vset.pattern.permute.xlu0 0
      %4492 = vperm.xlu0 %4491, %v3540
      %v4493 = vpop.permute.xlu0 %4492
      %4494 = vset.pattern.permute.xlu0 0
      %4495 = vperm.xlu0 %4494, %v3542
      %v4496 = vpop.permute.xlu0 %4495
      %4497 = vset.pattern.permute.xlu0 0
      %4498 = vperm.xlu0 %4497, %v3544
      %v4499 = vpop.permute.xlu0 %4498
      %4500 = vset.pattern.permute.xlu0 0
      %4501 = vperm.xlu0 %4500, %v3546
      %v4502 = vpop.permute.xlu0 %4501
      %4503 = vset.pattern.permute.xlu0 0
      %4504 = vperm.xlu0 %4503, %v3548
      %v4505 = vpop.permute.xlu0 %4504
      %4506 = vset.pattern.permute.xlu0 0
      %4507 = vperm.xlu0 %4506, %v3550
      %v4508 = vpop.permute.xlu0 %4507
      %4509 = vset.pattern.permute.xlu0 0
      %4510 = vperm.xlu0 %4509, %v3552
      %v4511 = vpop.permute.xlu0 %4510
      %4512 = vset.pattern.permute.xlu0 0
      %4513 = vperm.xlu0 %4512, %v3554
      %v4514 = vpop.permute.xlu0 %4513
      %4515 = vset.pattern.permute.xlu0 0
      %4516 = vperm.xlu0 %4515, %v3556
      %v4517 = vpop.permute.xlu0 %4516
      %4518 = vset.pattern.permute.xlu0 0
      %4519 = vperm.xlu0 %4518, %v3558
      %v4520 = vpop.permute.xlu0 %4519
      %4521 = vset.pattern.permute.xlu0 0
      %4522 = vperm.xlu0 %4521, %v3560
      %v4523 = vpop.permute.xlu0 %4522
      %4524 = vset.pattern.permute.xlu0 0
      %4525 = vperm.xlu0 %4524, %v3562
      %v4526 = vpop.permute.xlu0 %4525
      %4527 = vset.pattern.permute.xlu0 0
      %4528 = vperm.xlu0 %4527, %v3564
      %v4529 = vpop.permute.xlu0 %4528
      %4530 = vset.pattern.permute.xlu0 0
      %4531 = vperm.xlu0 %4530, %v3566
      %v4532 = vpop.permute.xlu0 %4531
      %4533 = vset.pattern.permute.xlu0 0
      %4534 = vperm.xlu0 %4533, %v3568
      %v4535 = vpop.permute.xlu0 %4534
      %4536 = vset.pattern.permute.xlu0 0
      %4537 = vperm.xlu0 %4536, %v3570
      %v4538 = vpop.permute.xlu0 %4537
      %4539 = vset.pattern.permute.xlu0 0
      %4540 = vperm.xlu0 %4539, %v3572
      %v4541 = vpop.permute.xlu0 %4540
      %4542 = vset.pattern.permute.xlu0 0
      %4543 = vperm.xlu0 %4542, %v3574
      %v4544 = vpop.permute.xlu0 %4543
      %4545 = vset.pattern.permute.xlu0 0
      %4546 = vperm.xlu0 %4545, %v3576
      %v4547 = vpop.permute.xlu0 %4546
      %4548 = vset.pattern.permute.xlu0 0
      %4549 = vperm.xlu0 %4548, %v3578
      %v4550 = vpop.permute.xlu0 %4549
      %4551 = vset.pattern.permute.xlu0 0
      %4552 = vperm.xlu0 %4551, %v3580
      %v4553 = vpop.permute.xlu0 %4552
      %4554 = vset.pattern.permute.xlu0 0
      %4555 = vperm.xlu0 %4554, %v3582
      %v4556 = vpop.permute.xlu0 %4555
      %4557 = vset.pattern.permute.xlu0 0
      %4558 = vperm.xlu0 %4557, %v3584
      %v4559 = vpop.permute.xlu0 %4558
      %4560 = vset.pattern.permute.xlu0 0
      %4561 = vperm.xlu0 %4560, %v3586
      %v4562 = vpop.permute.xlu0 %4561
      %4563 = vset.pattern.permute.xlu0 0
      %4564 = vperm.xlu0 %4563, %v3588
      %v4565 = vpop.permute.xlu0 %4564
      %4566 = vset.pattern.permute.xlu0 0
      %4567 = vperm.xlu0 %4566, %v3590
      %v4568 = vpop.permute.xlu0 %4567
      %4569 = vset.pattern.permute.xlu0 0
      %4570 = vperm.xlu0 %4569, %v3592
      %v4571 = vpop.permute.xlu0 %4570
      %4572 = vset.pattern.permute.xlu0 0
      %4573 = vperm.xlu0 %4572, %v3594
      %v4574 = vpop.permute.xlu0 %4573
      %4575 = vset.pattern.permute.xlu0 0
      %4576 = vperm.xlu0 %4575, %v3596
      %v4577 = vpop.permute.xlu0 %4576
      %4578 = vset.pattern.permute.xlu0 0
      %4579 = vperm.xlu0 %4578, %v3598
      %v4580 = vpop.permute.xlu0 %4579
      %4581 = vset.pattern.permute.xlu0 0
      %4582 = vperm.xlu0 %4581, %v3600
      %v4583 = vpop.permute.xlu0 %4582
      %4584 = vset.pattern.permute.xlu0 0
      %4585 = vperm.xlu0 %4584, %v3602
      %v4586 = vpop.permute.xlu0 %4585
      %4587 = vset.pattern.permute.xlu0 0
      %4588 = vperm.xlu0 %4587, %v3604
      %v4589 = vpop.permute.xlu0 %4588
      %4590 = vset.pattern.permute.xlu0 0
      %4591 = vperm.xlu0 %4590, %v3606
      %v4592 = vpop.permute.xlu0 %4591
      %4593 = vset.pattern.permute.xlu0 0
      %4594 = vperm.xlu0 %4593, %v3608
      %v4595 = vpop.permute.xlu0 %4594
      %4596 = vset.pattern.permute.xlu0 0
      %4597 = vperm.xlu0 %4596, %v3610
      %v4598 = vpop.permute.xlu0 %4597
      %4599 = vset.pattern.permute.xlu0 0
      %4600 = vperm.xlu0 %4599, %v3612
      %v4601 = vpop.permute.xlu0 %4600
      %4602 = vset.pattern.permute.xlu0 0
      %4603 = vperm.xlu0 %4602, %v3614
      %v4604 = vpop.permute.xlu0 %4603
      %4605 = vset.pattern.permute.xlu0 0
      %4606 = vperm.xlu0 %4605, %v3616
      %v4607 = vpop.permute.xlu0 %4606
      %4608 = vset.pattern.permute.xlu0 0
      %4609 = vperm.xlu0 %4608, %v3618
      %v4610 = vpop.permute.xlu0 %4609
      %4611 = vset.pattern.permute.xlu0 0
      %4612 = vperm.xlu0 %4611, %v3620
      %v4613 = vpop.permute.xlu0 %4612
      %4614 = vset.pattern.permute.xlu0 0
      %4615 = vperm.xlu0 %4614, %v3622
      %v4616 = vpop.permute.xlu0 %4615
      %4617 = vset.pattern.permute.xlu0 0
      %4618 = vperm.xlu0 %4617, %v3624
      %v4619 = vpop.permute.xlu0 %4618
      %4620 = vset.pattern.permute.xlu0 0
      %4621 = vperm.xlu0 %4620, %v3626
      %v4622 = vpop.permute.xlu0 %4621
      %4623 = vset.pattern.permute.xlu0 0
      %4624 = vperm.xlu0 %4623, %v3628
      %v4625 = vpop.permute.xlu0 %4624
      %4626 = vset.pattern.permute.xlu0 0
      %4627 = vperm.xlu0 %4626, %v3630
      %v4628 = vpop.permute.xlu0 %4627
      %4629 = vset.pattern.permute.xlu0 0
      %4630 = vperm.xlu0 %4629, %v3632
      %v4631 = vpop.permute.xlu0 %4630
      %4632 = vset.pattern.permute.xlu0 0
      %4633 = vperm.xlu0 %4632, %v3634
      %v4634 = vpop.permute.xlu0 %4633
      %4635 = vset.pattern.permute.xlu0 0
      %4636 = vperm.xlu0 %4635, %v3636
      %v4637 = vpop.permute.xlu0 %4636
      %4638 = vset.pattern.permute.xlu0 0
      %4639 = vperm.xlu0 %4638, %v3638
      %v4640 = vpop.permute.xlu0 %4639
      %4641 = vset.pattern.permute.xlu0 0
      %4642 = vperm.xlu0 %4641, %v3640
      %v4643 = vpop.permute.xlu0 %4642
      %4644 = vset.pattern.permute.xlu0 0
      %4645 = vperm.xlu0 %4644, %v3642
      %v4646 = vpop.permute.xlu0 %4645
      %4647 = vset.pattern.permute.xlu0 0
      %4648 = vperm.xlu0 %4647, %v3644
      %v4649 = vpop.permute.xlu0 %4648
      %4650 = vset.pattern.permute.xlu0 0
      %4651 = vperm.xlu0 %4650, %v3646
      %v4652 = vpop.permute.xlu0 %4651
      %4653 = vset.pattern.permute.xlu0 0
      %4654 = vperm.xlu0 %4653, %v3648
      %v4655 = vpop.permute.xlu0 %4654
      %4656 = vset.pattern.permute.xlu0 0
      %4657 = vperm.xlu0 %4656, %v3650
      %v4658 = vpop.permute.xlu0 %4657
      %4659 = vset.pattern.permute.xlu0 0
      %4660 = vperm.xlu0 %4659, %v3652
      %v4661 = vpop.permute.xlu0 %4660
      %4662 = vset.pattern.permute.xlu0 0
      %4663 = vperm.xlu0 %4662, %v3654
      %v4664 = vpop.permute.xlu0 %4663
      %4665 = vset.pattern.permute.xlu0 0
      %4666 = vperm.xlu0 %4665, %v3656
      %v4667 = vpop.permute.xlu0 %4666
      %4668 = vset.pattern.permute.xlu0 0
      %4669 = vperm.xlu0 %4668, %v3658
      %v4670 = vpop.permute.xlu0 %4669
      %4671 = vset.pattern.permute.xlu0 0
      %4672 = vperm.xlu0 %4671, %v3660
      %v4673 = vpop.permute.xlu0 %4672
      %4674 = vset.pattern.permute.xlu0 0
      %4675 = vperm.xlu0 %4674, %v3662
      %v4676 = vpop.permute.xlu0 %4675
      %4677 = vset.pattern.permute.xlu0 0
      %4678 = vperm.xlu0 %4677, %v3664
      %v4679 = vpop.permute.xlu0 %4678
      %4680 = vset.pattern.permute.xlu0 0
      %4681 = vperm.xlu0 %4680, %v3666
      %v4682 = vpop.permute.xlu0 %4681
      %4683 = vset.pattern.permute.xlu0 0
      %4684 = vperm.xlu0 %4683, %v3668
      %v4685 = vpop.permute.xlu0 %4684
      %4686 = vset.pattern.permute.xlu0 0
      %4687 = vperm.xlu0 %4686, %v3670
      %v4688 = vpop.permute.xlu0 %4687
      %4689 = vset.pattern.permute.xlu0 0
      %4690 = vperm.xlu0 %4689, %v3672
      %v4691 = vpop.permute.xlu0 %4690
      %4692 = vset.pattern.permute.xlu0 0
      %4693 = vperm.xlu0 %4692, %v3674
      %v4694 = vpop.permute.xlu0 %4693
      %4695 = vset.pattern.permute.xlu0 0
      %4696 = vperm.xlu0 %4695, %v3676
      %v4697 = vpop.permute.xlu0 %4696
      %4698 = vset.pattern.permute.xlu0 0
      %4699 = vperm.xlu0 %4698, %v3678
      %v4700 = vpop.permute.xlu0 %4699
      %4701 = vset.pattern.permute.xlu0 0
      %4702 = vperm.xlu0 %4701, %v3680
      %v4703 = vpop.permute.xlu0 %4702
      %4704 = vset.pattern.permute.xlu0 0
      %4705 = vperm.xlu0 %4704, %v3682
      %v4706 = vpop.permute.xlu0 %4705
      %v4707 = vperm.slane %v3941, %v2345
      %v4708 = vperm.slane %v3944, %v2347
      %v4709 = vsel %vm2349, %v4708, %v4707
      %v4710 = vperm.slane %v3947, %v2351
      %v4711 = vsel %vm2353, %v4710, %v4709
      %v4712 = vperm.slane %v3950, %v2355
      %v4713 = vsel %vm2357, %v4712, %v4711
      %v4714 = vperm.slane %v3953, %v2359
      %v4715 = vsel %vm2361, %v4714, %v4713
      %v4716 = vperm.slane %v3956, %v2363
      %v4717 = vsel %vm2365, %v4716, %v4715
      %v4718 = vperm.slane %v3959, %v2367
      %v4719 = vsel %vm2369, %v4718, %v4717
      %v4720 = vperm.slane %v3962, %v2371
      %v4721 = vsel %vm2373, %v4720, %v4719
      %v4722 = vperm.slane %v3965, %v2375
      %v4723 = vsel %vm2377, %v4722, %v4721
      %v4724 = vperm.slane %v3968, %v2379
      %v4725 = vsel %vm2381, %v4724, %v4723
      %v4726 = vperm.slane %v3971, %v2383
      %v4727 = vsel %vm2385, %v4726, %v4725
      %v4728 = vperm.slane %v3974, %v2387
      %v4729 = vsel %vm2389, %v4728, %v4727
      %v4730 = vperm.slane %v3977, %v2391
      %v4731 = vsel %vm2393, %v4730, %v4729
      %v4732 = vperm.slane %v3980, %v2395
      %v4733 = vsel %vm2397, %v4732, %v4731
      %v4734 = vperm.slane %v3983, %v2399
      %v4735 = vsel %vm2401, %v4734, %v4733
      %v4736 = vperm.slane %v3986, %v2403
      %v4737 = vsel %vm2405, %v4736, %v4735
      %v4738 = vperm.slane %v3989, %v2345
      %v4739 = vperm.slane %v3992, %v2347
      %v4740 = vsel %vm2349, %v4739, %v4738
      %v4741 = vperm.slane %v3995, %v2351
      %v4742 = vsel %vm2353, %v4741, %v4740
      %v4743 = vperm.slane %v3998, %v2355
      %v4744 = vsel %vm2357, %v4743, %v4742
      %v4745 = vperm.slane %v4001, %v2359
      %v4746 = vsel %vm2361, %v4745, %v4744
      %v4747 = vperm.slane %v4004, %v2363
      %v4748 = vsel %vm2365, %v4747, %v4746
      %v4749 = vperm.slane %v4007, %v2367
      %v4750 = vsel %vm2369, %v4749, %v4748
      %v4751 = vperm.slane %v4010, %v2371
      %v4752 = vsel %vm2373, %v4751, %v4750
      %v4753 = vperm.slane %v4013, %v2375
      %v4754 = vsel %vm2377, %v4753, %v4752
      %v4755 = vperm.slane %v4016, %v2379
      %v4756 = vsel %vm2381, %v4755, %v4754
      %v4757 = vperm.slane %v4019, %v2383
      %v4758 = vsel %vm2385, %v4757, %v4756
      %v4759 = vperm.slane %v4022, %v2387
      %v4760 = vsel %vm2389, %v4759, %v4758
      %v4761 = vperm.slane %v4025, %v2391
      %v4762 = vsel %vm2393, %v4761, %v4760
      %v4763 = vperm.slane %v4028, %v2395
      %v4764 = vsel %vm2397, %v4763, %v4762
      %v4765 = vperm.slane %v4031, %v2399
      %v4766 = vsel %vm2401, %v4765, %v4764
      %v4767 = vperm.slane %v4034, %v2403
      %v4768 = vsel %vm2405, %v4767, %v4766
      %v4769 = vperm.slane %v4037, %v2345
      %v4770 = vperm.slane %v4040, %v2347
      %v4771 = vsel %vm2349, %v4770, %v4769
      %v4772 = vperm.slane %v4043, %v2351
      %v4773 = vsel %vm2353, %v4772, %v4771
      %v4774 = vperm.slane %v4046, %v2355
      %v4775 = vsel %vm2357, %v4774, %v4773
      %v4776 = vperm.slane %v4049, %v2359
      %v4777 = vsel %vm2361, %v4776, %v4775
      %v4778 = vperm.slane %v4052, %v2363
      %v4779 = vsel %vm2365, %v4778, %v4777
      %v4780 = vperm.slane %v4055, %v2367
      %v4781 = vsel %vm2369, %v4780, %v4779
      %v4782 = vperm.slane %v4058, %v2371
      %v4783 = vsel %vm2373, %v4782, %v4781
      %v4784 = vperm.slane %v4061, %v2375
      %v4785 = vsel %vm2377, %v4784, %v4783
      %v4786 = vperm.slane %v4064, %v2379
      %v4787 = vsel %vm2381, %v4786, %v4785
      %v4788 = vperm.slane %v4067, %v2383
      %v4789 = vsel %vm2385, %v4788, %v4787
      %v4790 = vperm.slane %v4070, %v2387
      %v4791 = vsel %vm2389, %v4790, %v4789
      %v4792 = vperm.slane %v4073, %v2391
      %v4793 = vsel %vm2393, %v4792, %v4791
      %v4794 = vperm.slane %v4076, %v2395
      %v4795 = vsel %vm2397, %v4794, %v4793
      %v4796 = vperm.slane %v4079, %v2399
      %v4797 = vsel %vm2401, %v4796, %v4795
      %v4798 = vperm.slane %v4082, %v2403
      %v4799 = vsel %vm2405, %v4798, %v4797
      %v4800 = vperm.slane %v4085, %v2345
      %v4801 = vperm.slane %v4088, %v2347
      %v4802 = vsel %vm2349, %v4801, %v4800
      %v4803 = vperm.slane %v4091, %v2351
      %v4804 = vsel %vm2353, %v4803, %v4802
      %v4805 = vperm.slane %v4094, %v2355
      %v4806 = vsel %vm2357, %v4805, %v4804
      %v4807 = vperm.slane %v4097, %v2359
      %v4808 = vsel %vm2361, %v4807, %v4806
      %v4809 = vperm.slane %v4100, %v2363
      %v4810 = vsel %vm2365, %v4809, %v4808
      %v4811 = vperm.slane %v4103, %v2367
      %v4812 = vsel %vm2369, %v4811, %v4810
      %v4813 = vperm.slane %v4106, %v2371
      %v4814 = vsel %vm2373, %v4813, %v4812
      %v4815 = vperm.slane %v4109, %v2375
      %v4816 = vsel %vm2377, %v4815, %v4814
      %v4817 = vperm.slane %v4112, %v2379
      %v4818 = vsel %vm2381, %v4817, %v4816
      %v4819 = vperm.slane %v4115, %v2383
      %v4820 = vsel %vm2385, %v4819, %v4818
      %v4821 = vperm.slane %v4118, %v2387
      %v4822 = vsel %vm2389, %v4821, %v4820
      %v4823 = vperm.slane %v4121, %v2391
      %v4824 = vsel %vm2393, %v4823, %v4822
      %v4825 = vperm.slane %v4124, %v2395
      %v4826 = vsel %vm2397, %v4825, %v4824
      %v4827 = vperm.slane %v4127, %v2399
      %v4828 = vsel %vm2401, %v4827, %v4826
      %v4829 = vperm.slane %v4130, %v2403
      %v4830 = vsel %vm2405, %v4829, %v4828
      %v4831 = vperm.slane %v4133, %v2345
      %v4832 = vperm.slane %v4136, %v2347
      %v4833 = vsel %vm2349, %v4832, %v4831
      %v4834 = vperm.slane %v4139, %v2351
      %v4835 = vsel %vm2353, %v4834, %v4833
      %v4836 = vperm.slane %v4142, %v2355
      %v4837 = vsel %vm2357, %v4836, %v4835
      %v4838 = vperm.slane %v4145, %v2359
      %v4839 = vsel %vm2361, %v4838, %v4837
      %v4840 = vperm.slane %v4148, %v2363
      %v4841 = vsel %vm2365, %v4840, %v4839
      %v4842 = vperm.slane %v4151, %v2367
      %v4843 = vsel %vm2369, %v4842, %v4841
      %v4844 = vperm.slane %v4154, %v2371
      %v4845 = vsel %vm2373, %v4844, %v4843
      %v4846 = vperm.slane %v4157, %v2375
      %v4847 = vsel %vm2377, %v4846, %v4845
      %v4848 = vperm.slane %v4160, %v2379
      %v4849 = vsel %vm2381, %v4848, %v4847
      %v4850 = vperm.slane %v4163, %v2383
      %v4851 = vsel %vm2385, %v4850, %v4849
      %v4852 = vperm.slane %v4166, %v2387
      %v4853 = vsel %vm2389, %v4852, %v4851
      %v4854 = vperm.slane %v4169, %v2391
      %v4855 = vsel %vm2393, %v4854, %v4853
      %v4856 = vperm.slane %v4172, %v2395
      %v4857 = vsel %vm2397, %v4856, %v4855
      %v4858 = vperm.slane %v4175, %v2399
      %v4859 = vsel %vm2401, %v4858, %v4857
      %v4860 = vperm.slane %v4178, %v2403
      %v4861 = vsel %vm2405, %v4860, %v4859
      %v4862 = vperm.slane %v4181, %v2345
      %v4863 = vperm.slane %v4184, %v2347
      %v4864 = vsel %vm2349, %v4863, %v4862
      %v4865 = vperm.slane %v4187, %v2351
      %v4866 = vsel %vm2353, %v4865, %v4864
      %v4867 = vperm.slane %v4190, %v2355
      %v4868 = vsel %vm2357, %v4867, %v4866
      %v4869 = vperm.slane %v4193, %v2359
      %v4870 = vsel %vm2361, %v4869, %v4868
      %v4871 = vperm.slane %v4196, %v2363
      %v4872 = vsel %vm2365, %v4871, %v4870
      %v4873 = vperm.slane %v4199, %v2367
      %v4874 = vsel %vm2369, %v4873, %v4872
      %v4875 = vperm.slane %v4202, %v2371
      %v4876 = vsel %vm2373, %v4875, %v4874
      %v4877 = vperm.slane %v4205, %v2375
      %v4878 = vsel %vm2377, %v4877, %v4876
      %v4879 = vperm.slane %v4208, %v2379
      %v4880 = vsel %vm2381, %v4879, %v4878
      %v4881 = vperm.slane %v4211, %v2383
      %v4882 = vsel %vm2385, %v4881, %v4880
      %v4883 = vperm.slane %v4214, %v2387
      %v4884 = vsel %vm2389, %v4883, %v4882
      %v4885 = vperm.slane %v4217, %v2391
      %v4886 = vsel %vm2393, %v4885, %v4884
      %v4887 = vperm.slane %v4220, %v2395
      %v4888 = vsel %vm2397, %v4887, %v4886
      %v4889 = vperm.slane %v4223, %v2399
      %v4890 = vsel %vm2401, %v4889, %v4888
      %v4891 = vperm.slane %v4226, %v2403
      %v4892 = vsel %vm2405, %v4891, %v4890
      %v4893 = vperm.slane %v4229, %v2345
      %v4894 = vperm.slane %v4232, %v2347
      %v4895 = vsel %vm2349, %v4894, %v4893
      %v4896 = vperm.slane %v4235, %v2351
      %v4897 = vsel %vm2353, %v4896, %v4895
      %v4898 = vperm.slane %v4238, %v2355
      %v4899 = vsel %vm2357, %v4898, %v4897
      %v4900 = vperm.slane %v4241, %v2359
      %v4901 = vsel %vm2361, %v4900, %v4899
      %v4902 = vperm.slane %v4244, %v2363
      %v4903 = vsel %vm2365, %v4902, %v4901
      %v4904 = vperm.slane %v4247, %v2367
      %v4905 = vsel %vm2369, %v4904, %v4903
      %v4906 = vperm.slane %v4250, %v2371
      %v4907 = vsel %vm2373, %v4906, %v4905
      %v4908 = vperm.slane %v4253, %v2375
      %v4909 = vsel %vm2377, %v4908, %v4907
      %v4910 = vperm.slane %v4256, %v2379
      %v4911 = vsel %vm2381, %v4910, %v4909
      %v4912 = vperm.slane %v4259, %v2383
      %v4913 = vsel %vm2385, %v4912, %v4911
      %v4914 = vperm.slane %v4262, %v2387
      %v4915 = vsel %vm2389, %v4914, %v4913
      %v4916 = vperm.slane %v4265, %v2391
      %v4917 = vsel %vm2393, %v4916, %v4915
      %v4918 = vperm.slane %v4268, %v2395
      %v4919 = vsel %vm2397, %v4918, %v4917
      %v4920 = vperm.slane %v4271, %v2399
      %v4921 = vsel %vm2401, %v4920, %v4919
      %v4922 = vperm.slane %v4274, %v2403
      %v4923 = vsel %vm2405, %v4922, %v4921
      %v4924 = vperm.slane %v4277, %v2345
      %v4925 = vperm.slane %v4280, %v2347
      %v4926 = vsel %vm2349, %v4925, %v4924
      %v4927 = vperm.slane %v4283, %v2351
      %v4928 = vsel %vm2353, %v4927, %v4926
      %v4929 = vperm.slane %v4286, %v2355
      %v4930 = vsel %vm2357, %v4929, %v4928
      %v4931 = vperm.slane %v4289, %v2359
      %v4932 = vsel %vm2361, %v4931, %v4930
      %v4933 = vperm.slane %v4292, %v2363
      %v4934 = vsel %vm2365, %v4933, %v4932
      %v4935 = vperm.slane %v4295, %v2367
      %v4936 = vsel %vm2369, %v4935, %v4934
      %v4937 = vperm.slane %v4298, %v2371
      %v4938 = vsel %vm2373, %v4937, %v4936
      %v4939 = vperm.slane %v4301, %v2375
      %v4940 = vsel %vm2377, %v4939, %v4938
      %v4941 = vperm.slane %v4304, %v2379
      %v4942 = vsel %vm2381, %v4941, %v4940
      %v4943 = vperm.slane %v4307, %v2383
      %v4944 = vsel %vm2385, %v4943, %v4942
      %v4945 = vperm.slane %v4310, %v2387
      %v4946 = vsel %vm2389, %v4945, %v4944
      %v4947 = vperm.slane %v4313, %v2391
      %v4948 = vsel %vm2393, %v4947, %v4946
      %v4949 = vperm.slane %v4316, %v2395
      %v4950 = vsel %vm2397, %v4949, %v4948
      %v4951 = vperm.slane %v4319, %v2399
      %v4952 = vsel %vm2401, %v4951, %v4950
      %v4953 = vperm.slane %v4322, %v2403
      %v4954 = vsel %vm2405, %v4953, %v4952
      %v4955 = vperm.slane %v4325, %v2345
      %v4956 = vperm.slane %v4328, %v2347
      %v4957 = vsel %vm2349, %v4956, %v4955
      %v4958 = vperm.slane %v4331, %v2351
      %v4959 = vsel %vm2353, %v4958, %v4957
      %v4960 = vperm.slane %v4334, %v2355
      %v4961 = vsel %vm2357, %v4960, %v4959
      %v4962 = vperm.slane %v4337, %v2359
      %v4963 = vsel %vm2361, %v4962, %v4961
      %v4964 = vperm.slane %v4340, %v2363
      %v4965 = vsel %vm2365, %v4964, %v4963
      %v4966 = vperm.slane %v4343, %v2367
      %v4967 = vsel %vm2369, %v4966, %v4965
      %v4968 = vperm.slane %v4346, %v2371
      %v4969 = vsel %vm2373, %v4968, %v4967
      %v4970 = vperm.slane %v4349, %v2375
      %v4971 = vsel %vm2377, %v4970, %v4969
      %v4972 = vperm.slane %v4352, %v2379
      %v4973 = vsel %vm2381, %v4972, %v4971
      %v4974 = vperm.slane %v4355, %v2383
      %v4975 = vsel %vm2385, %v4974, %v4973
      %v4976 = vperm.slane %v4358, %v2387
      %v4977 = vsel %vm2389, %v4976, %v4975
      %v4978 = vperm.slane %v4361, %v2391
      %v4979 = vsel %vm2393, %v4978, %v4977
      %v4980 = vperm.slane %v4364, %v2395
      %v4981 = vsel %vm2397, %v4980, %v4979
      %v4982 = vperm.slane %v4367, %v2399
      %v4983 = vsel %vm2401, %v4982, %v4981
      %v4984 = vperm.slane %v4370, %v2403
      %v4985 = vsel %vm2405, %v4984, %v4983
      %v4986 = vperm.slane %v4373, %v2345
      %v4987 = vperm.slane %v4376, %v2347
      %v4988 = vsel %vm2349, %v4987, %v4986
      %v4989 = vperm.slane %v4379, %v2351
      %v4990 = vsel %vm2353, %v4989, %v4988
      %v4991 = vperm.slane %v4382, %v2355
      %v4992 = vsel %vm2357, %v4991, %v4990
      %v4993 = vperm.slane %v4385, %v2359
      %v4994 = vsel %vm2361, %v4993, %v4992
      %v4995 = vperm.slane %v4388, %v2363
      %v4996 = vsel %vm2365, %v4995, %v4994
      %v4997 = vperm.slane %v4391, %v2367
      %v4998 = vsel %vm2369, %v4997, %v4996
      %v4999 = vperm.slane %v4394, %v2371
      %v5000 = vsel %vm2373, %v4999, %v4998
      %v5001 = vperm.slane %v4397, %v2375
      %v5002 = vsel %vm2377, %v5001, %v5000
      %v5003 = vperm.slane %v4400, %v2379
      %v5004 = vsel %vm2381, %v5003, %v5002
      %v5005 = vperm.slane %v4403, %v2383
      %v5006 = vsel %vm2385, %v5005, %v5004
      %v5007 = vperm.slane %v4406, %v2387
      %v5008 = vsel %vm2389, %v5007, %v5006
      %v5009 = vperm.slane %v4409, %v2391
      %v5010 = vsel %vm2393, %v5009, %v5008
      %v5011 = vperm.slane %v4412, %v2395
      %v5012 = vsel %vm2397, %v5011, %v5010
      %v5013 = vperm.slane %v4415, %v2399
      %v5014 = vsel %vm2401, %v5013, %v5012
      %v5015 = vperm.slane %v4418, %v2403
      %v5016 = vsel %vm2405, %v5015, %v5014
      %v5017 = vperm.slane %v4421, %v2345
      %v5018 = vperm.slane %v4424, %v2347
      %v5019 = vsel %vm2349, %v5018, %v5017
      %v5020 = vperm.slane %v4427, %v2351
      %v5021 = vsel %vm2353, %v5020, %v5019
      %v5022 = vperm.slane %v4430, %v2355
      %v5023 = vsel %vm2357, %v5022, %v5021
      %v5024 = vperm.slane %v4433, %v2359
      %v5025 = vsel %vm2361, %v5024, %v5023
      %v5026 = vperm.slane %v4436, %v2363
      %v5027 = vsel %vm2365, %v5026, %v5025
      %v5028 = vperm.slane %v4439, %v2367
      %v5029 = vsel %vm2369, %v5028, %v5027
      %v5030 = vperm.slane %v4442, %v2371
      %v5031 = vsel %vm2373, %v5030, %v5029
      %v5032 = vperm.slane %v4445, %v2375
      %v5033 = vsel %vm2377, %v5032, %v5031
      %v5034 = vperm.slane %v4448, %v2379
      %v5035 = vsel %vm2381, %v5034, %v5033
      %v5036 = vperm.slane %v4451, %v2383
      %v5037 = vsel %vm2385, %v5036, %v5035
      %v5038 = vperm.slane %v4454, %v2387
      %v5039 = vsel %vm2389, %v5038, %v5037
      %v5040 = vperm.slane %v4457, %v2391
      %v5041 = vsel %vm2393, %v5040, %v5039
      %v5042 = vperm.slane %v4460, %v2395
      %v5043 = vsel %vm2397, %v5042, %v5041
      %v5044 = vperm.slane %v4463, %v2399
      %v5045 = vsel %vm2401, %v5044, %v5043
      %v5046 = vperm.slane %v4466, %v2403
      %v5047 = vsel %vm2405, %v5046, %v5045
      %v5048 = vperm.slane %v4469, %v2345
      %v5049 = vperm.slane %v4472, %v2347
      %v5050 = vsel %vm2349, %v5049, %v5048
      %v5051 = vperm.slane %v4475, %v2351
      %v5052 = vsel %vm2353, %v5051, %v5050
      %v5053 = vperm.slane %v4478, %v2355
      %v5054 = vsel %vm2357, %v5053, %v5052
      %v5055 = vperm.slane %v4481, %v2359
      %v5056 = vsel %vm2361, %v5055, %v5054
      %v5057 = vperm.slane %v4484, %v2363
      %v5058 = vsel %vm2365, %v5057, %v5056
      %v5059 = vperm.slane %v4487, %v2367
      %v5060 = vsel %vm2369, %v5059, %v5058
      %v5061 = vperm.slane %v4490, %v2371
      %v5062 = vsel %vm2373, %v5061, %v5060
      %v5063 = vperm.slane %v4493, %v2375
      %v5064 = vsel %vm2377, %v5063, %v5062
      %v5065 = vperm.slane %v4496, %v2379
      %v5066 = vsel %vm2381, %v5065, %v5064
      %v5067 = vperm.slane %v4499, %v2383
      %v5068 = vsel %vm2385, %v5067, %v5066
      %v5069 = vperm.slane %v4502, %v2387
      %v5070 = vsel %vm2389, %v5069, %v5068
      %v5071 = vperm.slane %v4505, %v2391
      %v5072 = vsel %vm2393, %v5071, %v5070
      %v5073 = vperm.slane %v4508, %v2395
      %v5074 = vsel %vm2397, %v5073, %v5072
      %v5075 = vperm.slane %v4511, %v2399
      %v5076 = vsel %vm2401, %v5075, %v5074
      %v5077 = vperm.slane %v4514, %v2403
      %v5078 = vsel %vm2405, %v5077, %v5076
      %v5079 = vperm.slane %v4517, %v2345
      %v5080 = vperm.slane %v4520, %v2347
      %v5081 = vsel %vm2349, %v5080, %v5079
      %v5082 = vperm.slane %v4523, %v2351
      %v5083 = vsel %vm2353, %v5082, %v5081
      %v5084 = vperm.slane %v4526, %v2355
      %v5085 = vsel %vm2357, %v5084, %v5083
      %v5086 = vperm.slane %v4529, %v2359
      %v5087 = vsel %vm2361, %v5086, %v5085
      %v5088 = vperm.slane %v4532, %v2363
      %v5089 = vsel %vm2365, %v5088, %v5087
      %v5090 = vperm.slane %v4535, %v2367
      %v5091 = vsel %vm2369, %v5090, %v5089
      %v5092 = vperm.slane %v4538, %v2371
      %v5093 = vsel %vm2373, %v5092, %v5091
      %v5094 = vperm.slane %v4541, %v2375
      %v5095 = vsel %vm2377, %v5094, %v5093
      %v5096 = vperm.slane %v4544, %v2379
      %v5097 = vsel %vm2381, %v5096, %v5095
      %v5098 = vperm.slane %v4547, %v2383
      %v5099 = vsel %vm2385, %v5098, %v5097
      %v5100 = vperm.slane %v4550, %v2387
      %v5101 = vsel %vm2389, %v5100, %v5099
      %v5102 = vperm.slane %v4553, %v2391
      %v5103 = vsel %vm2393, %v5102, %v5101
      %v5104 = vperm.slane %v4556, %v2395
      %v5105 = vsel %vm2397, %v5104, %v5103
      %v5106 = vperm.slane %v4559, %v2399
      %v5107 = vsel %vm2401, %v5106, %v5105
      %v5108 = vperm.slane %v4562, %v2403
      %v5109 = vsel %vm2405, %v5108, %v5107
      %v5110 = vperm.slane %v4565, %v2345
      %v5111 = vperm.slane %v4568, %v2347
      %v5112 = vsel %vm2349, %v5111, %v5110
      %v5113 = vperm.slane %v4571, %v2351
      %v5114 = vsel %vm2353, %v5113, %v5112
      %v5115 = vperm.slane %v4574, %v2355
      %v5116 = vsel %vm2357, %v5115, %v5114
      %v5117 = vperm.slane %v4577, %v2359
      %v5118 = vsel %vm2361, %v5117, %v5116
      %v5119 = vperm.slane %v4580, %v2363
      %v5120 = vsel %vm2365, %v5119, %v5118
      %v5121 = vperm.slane %v4583, %v2367
      %v5122 = vsel %vm2369, %v5121, %v5120
      %v5123 = vperm.slane %v4586, %v2371
      %v5124 = vsel %vm2373, %v5123, %v5122
      %v5125 = vperm.slane %v4589, %v2375
      %v5126 = vsel %vm2377, %v5125, %v5124
      %v5127 = vperm.slane %v4592, %v2379
      %v5128 = vsel %vm2381, %v5127, %v5126
      %v5129 = vperm.slane %v4595, %v2383
      %v5130 = vsel %vm2385, %v5129, %v5128
      %v5131 = vperm.slane %v4598, %v2387
      %v5132 = vsel %vm2389, %v5131, %v5130
      %v5133 = vperm.slane %v4601, %v2391
      %v5134 = vsel %vm2393, %v5133, %v5132
      %v5135 = vperm.slane %v4604, %v2395
      %v5136 = vsel %vm2397, %v5135, %v5134
      %v5137 = vperm.slane %v4607, %v2399
      %v5138 = vsel %vm2401, %v5137, %v5136
      %v5139 = vperm.slane %v4610, %v2403
      %v5140 = vsel %vm2405, %v5139, %v5138
      %v5141 = vperm.slane %v4613, %v2345
      %v5142 = vperm.slane %v4616, %v2347
      %v5143 = vsel %vm2349, %v5142, %v5141
      %v5144 = vperm.slane %v4619, %v2351
      %v5145 = vsel %vm2353, %v5144, %v5143
      %v5146 = vperm.slane %v4622, %v2355
      %v5147 = vsel %vm2357, %v5146, %v5145
      %v5148 = vperm.slane %v4625, %v2359
      %v5149 = vsel %vm2361, %v5148, %v5147
      %v5150 = vperm.slane %v4628, %v2363
      %v5151 = vsel %vm2365, %v5150, %v5149
      %v5152 = vperm.slane %v4631, %v2367
      %v5153 = vsel %vm2369, %v5152, %v5151
      %v5154 = vperm.slane %v4634, %v2371
      %v5155 = vsel %vm2373, %v5154, %v5153
      %v5156 = vperm.slane %v4637, %v2375
      %v5157 = vsel %vm2377, %v5156, %v5155
      %v5158 = vperm.slane %v4640, %v2379
      %v5159 = vsel %vm2381, %v5158, %v5157
      %v5160 = vperm.slane %v4643, %v2383
      %v5161 = vsel %vm2385, %v5160, %v5159
      %v5162 = vperm.slane %v4646, %v2387
      %v5163 = vsel %vm2389, %v5162, %v5161
      %v5164 = vperm.slane %v4649, %v2391
      %v5165 = vsel %vm2393, %v5164, %v5163
      %v5166 = vperm.slane %v4652, %v2395
      %v5167 = vsel %vm2397, %v5166, %v5165
      %v5168 = vperm.slane %v4655, %v2399
      %v5169 = vsel %vm2401, %v5168, %v5167
      %v5170 = vperm.slane %v4658, %v2403
      %v5171 = vsel %vm2405, %v5170, %v5169
      %v5172 = vperm.slane %v4661, %v2345
      %v5173 = vperm.slane %v4664, %v2347
      %v5174 = vsel %vm2349, %v5173, %v5172
      %v5175 = vperm.slane %v4667, %v2351
      %v5176 = vsel %vm2353, %v5175, %v5174
      %v5177 = vperm.slane %v4670, %v2355
      %v5178 = vsel %vm2357, %v5177, %v5176
      %v5179 = vperm.slane %v4673, %v2359
      %v5180 = vsel %vm2361, %v5179, %v5178
      %v5181 = vperm.slane %v4676, %v2363
      %v5182 = vsel %vm2365, %v5181, %v5180
      %v5183 = vperm.slane %v4679, %v2367
      %v5184 = vsel %vm2369, %v5183, %v5182
      %v5185 = vperm.slane %v4682, %v2371
      %v5186 = vsel %vm2373, %v5185, %v5184
      %v5187 = vperm.slane %v4685, %v2375
      %v5188 = vsel %vm2377, %v5187, %v5186
      %v5189 = vperm.slane %v4688, %v2379
      %v5190 = vsel %vm2381, %v5189, %v5188
      %v5191 = vperm.slane %v4691, %v2383
      %v5192 = vsel %vm2385, %v5191, %v5190
      %v5193 = vperm.slane %v4694, %v2387
      %v5194 = vsel %vm2389, %v5193, %v5192
      %v5195 = vperm.slane %v4697, %v2391
      %v5196 = vsel %vm2393, %v5195, %v5194
      %v5197 = vperm.slane %v4700, %v2395
      %v5198 = vsel %vm2397, %v5197, %v5196
      %v5199 = vperm.slane %v4703, %v2399
      %v5200 = vsel %vm2401, %v5199, %v5198
      %v5201 = vperm.slane %v4706, %v2403
      %v5202 = vsel %vm2405, %v5201, %v5200
      %v5203 = vsel %vm2872, %v4799, %v4737
      %v5204 = vsel %vm2874, %v4861, %v5203
      %v5205 = vsel %vm2876, %v4923, %v5204
      %v5206 = vsel %vm2878, %v4985, %v5205
      %v5207 = vsel %vm2880, %v5047, %v5206
      %v5208 = vsel %vm2882, %v5109, %v5207
      %v5209 = vsel %vm2884, %v5171, %v5208
      %v5210 = vsel %vm2872, %v4830, %v4768
      %v5211 = vsel %vm2874, %v4892, %v5210
      %v5212 = vsel %vm2876, %v4954, %v5211
      %v5213 = vsel %vm2878, %v5016, %v5212
      %v5214 = vsel %vm2880, %v5078, %v5213
      %v5215 = vsel %vm2882, %v5140, %v5214
      %v5216 = vsel %vm2884, %v5202, %v5215
      %v5219 = vadd.f32 %v5209, %v5216
      %5220 = vadd.xlane.f32.xlu0 %v5219
      %v5221 = vpop.xlane.xlu0 %5220
      %v5222 = vrcp.pop %v5221
      %v5224 = vperm.slane %v5222, 0
      %v5225 = vperm.slane %v5222, 1
      %v5226 = vperm.slane %v5222, 2
      %v5227 = vperm.slane %v5222, 3
      %v5228 = vperm.slane %v5222, 4
      %v5229 = vperm.slane %v5222, 5
      %v5230 = vperm.slane %v5222, 6
      %v5231 = vperm.slane %v5222, 7
      %v5240 = vmul.f32 %v3172, %v5224
      %v5241 = vmul.f32 %v3174, %v5224
      %v5242 = vmul.f32 %v3176, %v5224
      %v5243 = vmul.f32 %v3178, %v5224
      %v5244 = vmul.f32 %v3180, %v5224
      %v5245 = vmul.f32 %v3182, %v5224
      %v5246 = vmul.f32 %v3184, %v5224
      %v5247 = vmul.f32 %v3186, %v5224
      %v5248 = vmul.f32 %v3188, %v5224
      %v5249 = vmul.f32 %v3190, %v5224
      %v5250 = vmul.f32 %v3192, %v5224
      %v5251 = vmul.f32 %v3194, %v5224
      %v5252 = vmul.f32 %v3196, %v5224
      %v5253 = vmul.f32 %v3198, %v5224
      %v5254 = vmul.f32 %v3200, %v5224
      %v5255 = vmul.f32 %v3202, %v5224
      %v5256 = vmul.f32 %v3204, %v5224
      %v5257 = vmul.f32 %v3206, %v5224
      %v5258 = vmul.f32 %v3208, %v5224
      %v5259 = vmul.f32 %v3210, %v5224
      %v5260 = vmul.f32 %v3212, %v5224
      %v5261 = vmul.f32 %v3214, %v5224
      %v5262 = vmul.f32 %v3216, %v5224
      %v5263 = vmul.f32 %v3218, %v5224
      %v5264 = vmul.f32 %v3220, %v5224
      %v5265 = vmul.f32 %v3222, %v5224
      %v5266 = vmul.f32 %v3224, %v5224
      %v5267 = vmul.f32 %v3226, %v5224
      %v5268 = vmul.f32 %v3228, %v5224
      %v5269 = vmul.f32 %v3230, %v5224
      %v5270 = vmul.f32 %v3232, %v5224
      %v5271 = vmul.f32 %v3234, %v5224
      %v5272 = vmul.f32 %v3236, %v5225
      %v5273 = vmul.f32 %v3238, %v5225
      %v5274 = vmul.f32 %v3240, %v5225
      %v5275 = vmul.f32 %v3242, %v5225
      %v5276 = vmul.f32 %v3244, %v5225
      %v5277 = vmul.f32 %v3246, %v5225
      %v5278 = vmul.f32 %v3248, %v5225
      %v5279 = vmul.f32 %v3250, %v5225
      %v5280 = vmul.f32 %v3252, %v5225
      %v5281 = vmul.f32 %v3254, %v5225
      %v5282 = vmul.f32 %v3256, %v5225
      %v5283 = vmul.f32 %v3258, %v5225
      %v5284 = vmul.f32 %v3260, %v5225
      %v5285 = vmul.f32 %v3262, %v5225
      %v5286 = vmul.f32 %v3264, %v5225
      %v5287 = vmul.f32 %v3266, %v5225
      %v5288 = vmul.f32 %v3268, %v5225
      %v5289 = vmul.f32 %v3270, %v5225
      %v5290 = vmul.f32 %v3272, %v5225
      %v5291 = vmul.f32 %v3274, %v5225
      %v5292 = vmul.f32 %v3276, %v5225
      %v5293 = vmul.f32 %v3278, %v5225
      %v5294 = vmul.f32 %v3280, %v5225
      %v5295 = vmul.f32 %v3282, %v5225
      %v5296 = vmul.f32 %v3284, %v5225
      %v5297 = vmul.f32 %v3286, %v5225
      %v5298 = vmul.f32 %v3288, %v5225
      %v5299 = vmul.f32 %v3290, %v5225
      %v5300 = vmul.f32 %v3292, %v5225
      %v5301 = vmul.f32 %v3294, %v5225
      %v5302 = vmul.f32 %v3296, %v5225
      %v5303 = vmul.f32 %v3298, %v5225
      %v5304 = vmul.f32 %v3300, %v5226
      %v5305 = vmul.f32 %v3302, %v5226
      %v5306 = vmul.f32 %v3304, %v5226
      %v5307 = vmul.f32 %v3306, %v5226
      %v5308 = vmul.f32 %v3308, %v5226
      %v5309 = vmul.f32 %v3310, %v5226
      %v5310 = vmul.f32 %v3312, %v5226
      %v5311 = vmul.f32 %v3314, %v5226
      %v5312 = vmul.f32 %v3316, %v5226
      %v5313 = vmul.f32 %v3318, %v5226
      %v5314 = vmul.f32 %v3320, %v5226
      %v5315 = vmul.f32 %v3322, %v5226
      %v5316 = vmul.f32 %v3324, %v5226
      %v5317 = vmul.f32 %v3326, %v5226
      %v5318 = vmul.f32 %v3328, %v5226
      %v5319 = vmul.f32 %v3330, %v5226
      %v5320 = vmul.f32 %v3332, %v5226
      %v5321 = vmul.f32 %v3334, %v5226
      %v5322 = vmul.f32 %v3336, %v5226
      %v5323 = vmul.f32 %v3338, %v5226
      %v5324 = vmul.f32 %v3340, %v5226
      %v5325 = vmul.f32 %v3342, %v5226
      %v5326 = vmul.f32 %v3344, %v5226
      %v5327 = vmul.f32 %v3346, %v5226
      %v5328 = vmul.f32 %v3348, %v5226
      %v5329 = vmul.f32 %v3350, %v5226
      %v5330 = vmul.f32 %v3352, %v5226
      %v5331 = vmul.f32 %v3354, %v5226
      %v5332 = vmul.f32 %v3356, %v5226
      %v5333 = vmul.f32 %v3358, %v5226
      %v5334 = vmul.f32 %v3360, %v5226
      %v5335 = vmul.f32 %v3362, %v5226
      %v5336 = vmul.f32 %v3364, %v5227
      %v5337 = vmul.f32 %v3366, %v5227
      %v5338 = vmul.f32 %v3368, %v5227
      %v5339 = vmul.f32 %v3370, %v5227
      %v5340 = vmul.f32 %v3372, %v5227
      %v5341 = vmul.f32 %v3374, %v5227
      %v5342 = vmul.f32 %v3376, %v5227
      %v5343 = vmul.f32 %v3378, %v5227
      %v5344 = vmul.f32 %v3380, %v5227
      %v5345 = vmul.f32 %v3382, %v5227
      %v5346 = vmul.f32 %v3384, %v5227
      %v5347 = vmul.f32 %v3386, %v5227
      %v5348 = vmul.f32 %v3388, %v5227
      %v5349 = vmul.f32 %v3390, %v5227
      %v5350 = vmul.f32 %v3392, %v5227
      %v5351 = vmul.f32 %v3394, %v5227
      %v5352 = vmul.f32 %v3396, %v5227
      %v5353 = vmul.f32 %v3398, %v5227
      %v5354 = vmul.f32 %v3400, %v5227
      %v5355 = vmul.f32 %v3402, %v5227
      %v5356 = vmul.f32 %v3404, %v5227
      %v5357 = vmul.f32 %v3406, %v5227
      %v5358 = vmul.f32 %v3408, %v5227
      %v5359 = vmul.f32 %v3410, %v5227
      %v5360 = vmul.f32 %v3412, %v5227
      %v5361 = vmul.f32 %v3414, %v5227
      %v5362 = vmul.f32 %v3416, %v5227
      %v5363 = vmul.f32 %v3418, %v5227
      %v5364 = vmul.f32 %v3420, %v5227
      %v5365 = vmul.f32 %v3422, %v5227
      %v5366 = vmul.f32 %v3424, %v5227
      %v5367 = vmul.f32 %v3426, %v5227
      %v5368 = vmul.f32 %v3428, %v5228
      %v5369 = vmul.f32 %v3430, %v5228
      %v5370 = vmul.f32 %v3432, %v5228
      %v5371 = vmul.f32 %v3434, %v5228
      %v5372 = vmul.f32 %v3436, %v5228
      %v5373 = vmul.f32 %v3438, %v5228
      %v5374 = vmul.f32 %v3440, %v5228
      %v5375 = vmul.f32 %v3442, %v5228
      %v5376 = vmul.f32 %v3444, %v5228
      %v5377 = vmul.f32 %v3446, %v5228
      %v5378 = vmul.f32 %v3448, %v5228
      %v5379 = vmul.f32 %v3450, %v5228
      %v5380 = vmul.f32 %v3452, %v5228
      %v5381 = vmul.f32 %v3454, %v5228
      %v5382 = vmul.f32 %v3456, %v5228
      %v5383 = vmul.f32 %v3458, %v5228
      %v5384 = vmul.f32 %v3460, %v5228
      %v5385 = vmul.f32 %v3462, %v5228
      %v5386 = vmul.f32 %v3464, %v5228
      %v5387 = vmul.f32 %v3466, %v5228
      %v5388 = vmul.f32 %v3468, %v5228
      %v5389 = vmul.f32 %v3470, %v5228
      %v5390 = vmul.f32 %v3472, %v5228
      %v5391 = vmul.f32 %v3474, %v5228
      %v5392 = vmul.f32 %v3476, %v5228
      %v5393 = vmul.f32 %v3478, %v5228
      %v5394 = vmul.f32 %v3480, %v5228
      %v5395 = vmul.f32 %v3482, %v5228
      %v5396 = vmul.f32 %v3484, %v5228
      %v5397 = vmul.f32 %v3486, %v5228
      %v5398 = vmul.f32 %v3488, %v5228
      %v5399 = vmul.f32 %v3490, %v5228
      %v5400 = vmul.f32 %v3492, %v5229
      %v5401 = vmul.f32 %v3494, %v5229
      %v5402 = vmul.f32 %v3496, %v5229
      %v5403 = vmul.f32 %v3498, %v5229
      %v5404 = vmul.f32 %v3500, %v5229
      %v5405 = vmul.f32 %v3502, %v5229
      %v5406 = vmul.f32 %v3504, %v5229
      %v5407 = vmul.f32 %v3506, %v5229
      %v5408 = vmul.f32 %v3508, %v5229
      %v5409 = vmul.f32 %v3510, %v5229
      %v5410 = vmul.f32 %v3512, %v5229
      %v5411 = vmul.f32 %v3514, %v5229
      %v5412 = vmul.f32 %v3516, %v5229
      %v5413 = vmul.f32 %v3518, %v5229
      %v5414 = vmul.f32 %v3520, %v5229
      %v5415 = vmul.f32 %v3522, %v5229
      %v5416 = vmul.f32 %v3524, %v5229
      %v5417 = vmul.f32 %v3526, %v5229
      %v5418 = vmul.f32 %v3528, %v5229
      %v5419 = vmul.f32 %v3530, %v5229
      %v5420 = vmul.f32 %v3532, %v5229
      %v5421 = vmul.f32 %v3534, %v5229
      %v5422 = vmul.f32 %v3536, %v5229
      %v5423 = vmul.f32 %v3538, %v5229
      %v5424 = vmul.f32 %v3540, %v5229
      %v5425 = vmul.f32 %v3542, %v5229
      %v5426 = vmul.f32 %v3544, %v5229
      %v5427 = vmul.f32 %v3546, %v5229
      %v5428 = vmul.f32 %v3548, %v5229
      %v5429 = vmul.f32 %v3550, %v5229
      %v5430 = vmul.f32 %v3552, %v5229
      %v5431 = vmul.f32 %v3554, %v5229
      %v5432 = vmul.f32 %v3556, %v5230
      %v5433 = vmul.f32 %v3558, %v5230
      %v5434 = vmul.f32 %v3560, %v5230
      %v5435 = vmul.f32 %v3562, %v5230
      %v5436 = vmul.f32 %v3564, %v5230
      %v5437 = vmul.f32 %v3566, %v5230
      %v5438 = vmul.f32 %v3568, %v5230
      %v5439 = vmul.f32 %v3570, %v5230
      %v5440 = vmul.f32 %v3572, %v5230
      %v5441 = vmul.f32 %v3574, %v5230
      %v5442 = vmul.f32 %v3576, %v5230
      %v5443 = vmul.f32 %v3578, %v5230
      %v5444 = vmul.f32 %v3580, %v5230
      %v5445 = vmul.f32 %v3582, %v5230
      %v5446 = vmul.f32 %v3584, %v5230
      %v5447 = vmul.f32 %v3586, %v5230
      %v5448 = vmul.f32 %v3588, %v5230
      %v5449 = vmul.f32 %v3590, %v5230
      %v5450 = vmul.f32 %v3592, %v5230
      %v5451 = vmul.f32 %v3594, %v5230
      %v5452 = vmul.f32 %v3596, %v5230
      %v5453 = vmul.f32 %v3598, %v5230
      %v5454 = vmul.f32 %v3600, %v5230
      %v5455 = vmul.f32 %v3602, %v5230
      %v5456 = vmul.f32 %v3604, %v5230
      %v5457 = vmul.f32 %v3606, %v5230
      %v5458 = vmul.f32 %v3608, %v5230
      %v5459 = vmul.f32 %v3610, %v5230
      %v5460 = vmul.f32 %v3612, %v5230
      %v5461 = vmul.f32 %v3614, %v5230
      %v5462 = vmul.f32 %v3616, %v5230
      %v5463 = vmul.f32 %v3618, %v5230
      %v5464 = vmul.f32 %v3620, %v5231
      %v5465 = vmul.f32 %v3622, %v5231
      %v5466 = vmul.f32 %v3624, %v5231
      %v5467 = vmul.f32 %v3626, %v5231
      %v5468 = vmul.f32 %v3628, %v5231
      %v5469 = vmul.f32 %v3630, %v5231
      %v5470 = vmul.f32 %v3632, %v5231
      %v5471 = vmul.f32 %v3634, %v5231
      %v5472 = vmul.f32 %v3636, %v5231
      %v5473 = vmul.f32 %v3638, %v5231
      %v5474 = vmul.f32 %v3640, %v5231
      %v5475 = vmul.f32 %v3642, %v5231
      %v5476 = vmul.f32 %v3644, %v5231
      %v5477 = vmul.f32 %v3646, %v5231
      %v5478 = vmul.f32 %v3648, %v5231
      %v5479 = vmul.f32 %v3650, %v5231
      %v5480 = vmul.f32 %v3652, %v5231
      %v5481 = vmul.f32 %v3654, %v5231
      %v5482 = vmul.f32 %v3656, %v5231
      %v5483 = vmul.f32 %v3658, %v5231
      %v5484 = vmul.f32 %v3660, %v5231
      %v5485 = vmul.f32 %v3662, %v5231
      %v5486 = vmul.f32 %v3664, %v5231
      %v5487 = vmul.f32 %v3666, %v5231
      %v5488 = vmul.f32 %v3668, %v5231
      %v5489 = vmul.f32 %v3670, %v5231
      %v5490 = vmul.f32 %v3672, %v5231
      %v5491 = vmul.f32 %v3674, %v5231
      %v5492 = vmul.f32 %v3676, %v5231
      %v5493 = vmul.f32 %v3678, %v5231
      %v5494 = vmul.f32 %v3680, %v5231
      %v5495 = vmul.f32 %v3682, %v5231
      %5752 = vset.pattern.permute.xlu0 0
      %5753 = vperm.xlu0 %5752, %v5240
      %v5754 = vpop.permute.xlu0 %5753
      %5755 = vset.pattern.permute.xlu0 0
      %5756 = vperm.xlu0 %5755, %v5241
      %v5757 = vpop.permute.xlu0 %5756
      %5758 = vset.pattern.permute.xlu0 0
      %5759 = vperm.xlu0 %5758, %v5242
      %v5760 = vpop.permute.xlu0 %5759
      %5761 = vset.pattern.permute.xlu0 0
      %5762 = vperm.xlu0 %5761, %v5243
      %v5763 = vpop.permute.xlu0 %5762
      %5764 = vset.pattern.permute.xlu0 0
      %5765 = vperm.xlu0 %5764, %v5244
      %v5766 = vpop.permute.xlu0 %5765
      %5767 = vset.pattern.permute.xlu0 0
      %5768 = vperm.xlu0 %5767, %v5245
      %v5769 = vpop.permute.xlu0 %5768
      %5770 = vset.pattern.permute.xlu0 0
      %5771 = vperm.xlu0 %5770, %v5246
      %v5772 = vpop.permute.xlu0 %5771
      %5773 = vset.pattern.permute.xlu0 0
      %5774 = vperm.xlu0 %5773, %v5247
      %v5775 = vpop.permute.xlu0 %5774
      %5776 = vset.pattern.permute.xlu0 0
      %5777 = vperm.xlu0 %5776, %v5248
      %v5778 = vpop.permute.xlu0 %5777
      %5779 = vset.pattern.permute.xlu0 0
      %5780 = vperm.xlu0 %5779, %v5249
      %v5781 = vpop.permute.xlu0 %5780
      %5782 = vset.pattern.permute.xlu0 0
      %5783 = vperm.xlu0 %5782, %v5250
      %v5784 = vpop.permute.xlu0 %5783
      %5785 = vset.pattern.permute.xlu0 0
      %5786 = vperm.xlu0 %5785, %v5251
      %v5787 = vpop.permute.xlu0 %5786
      %5788 = vset.pattern.permute.xlu0 0
      %5789 = vperm.xlu0 %5788, %v5252
      %v5790 = vpop.permute.xlu0 %5789
      %5791 = vset.pattern.permute.xlu0 0
      %5792 = vperm.xlu0 %5791, %v5253
      %v5793 = vpop.permute.xlu0 %5792
      %5794 = vset.pattern.permute.xlu0 0
      %5795 = vperm.xlu0 %5794, %v5254
      %v5796 = vpop.permute.xlu0 %5795
      %5797 = vset.pattern.permute.xlu0 0
      %5798 = vperm.xlu0 %5797, %v5255
      %v5799 = vpop.permute.xlu0 %5798
      %5800 = vset.pattern.permute.xlu0 0
      %5801 = vperm.xlu0 %5800, %v5256
      %v5802 = vpop.permute.xlu0 %5801
      %5803 = vset.pattern.permute.xlu0 0
      %5804 = vperm.xlu0 %5803, %v5257
      %v5805 = vpop.permute.xlu0 %5804
      %5806 = vset.pattern.permute.xlu0 0
      %5807 = vperm.xlu0 %5806, %v5258
      %v5808 = vpop.permute.xlu0 %5807
      %5809 = vset.pattern.permute.xlu0 0
      %5810 = vperm.xlu0 %5809, %v5259
      %v5811 = vpop.permute.xlu0 %5810
      %5812 = vset.pattern.permute.xlu0 0
      %5813 = vperm.xlu0 %5812, %v5260
      %v5814 = vpop.permute.xlu0 %5813
      %5815 = vset.pattern.permute.xlu0 0
      %5816 = vperm.xlu0 %5815, %v5261
      %v5817 = vpop.permute.xlu0 %5816
      %5818 = vset.pattern.permute.xlu0 0
      %5819 = vperm.xlu0 %5818, %v5262
      %v5820 = vpop.permute.xlu0 %5819
      %5821 = vset.pattern.permute.xlu0 0
      %5822 = vperm.xlu0 %5821, %v5263
      %v5823 = vpop.permute.xlu0 %5822
      %5824 = vset.pattern.permute.xlu0 0
      %5825 = vperm.xlu0 %5824, %v5264
      %v5826 = vpop.permute.xlu0 %5825
      %5827 = vset.pattern.permute.xlu0 0
      %5828 = vperm.xlu0 %5827, %v5265
      %v5829 = vpop.permute.xlu0 %5828
      %5830 = vset.pattern.permute.xlu0 0
      %5831 = vperm.xlu0 %5830, %v5266
      %v5832 = vpop.permute.xlu0 %5831
      %5833 = vset.pattern.permute.xlu0 0
      %5834 = vperm.xlu0 %5833, %v5267
      %v5835 = vpop.permute.xlu0 %5834
      %5836 = vset.pattern.permute.xlu0 0
      %5837 = vperm.xlu0 %5836, %v5268
      %v5838 = vpop.permute.xlu0 %5837
      %5839 = vset.pattern.permute.xlu0 0
      %5840 = vperm.xlu0 %5839, %v5269
      %v5841 = vpop.permute.xlu0 %5840
      %5842 = vset.pattern.permute.xlu0 0
      %5843 = vperm.xlu0 %5842, %v5270
      %v5844 = vpop.permute.xlu0 %5843
      %5845 = vset.pattern.permute.xlu0 0
      %5846 = vperm.xlu0 %5845, %v5271
      %v5847 = vpop.permute.xlu0 %5846
      %5848 = vset.pattern.permute.xlu0 0
      %5849 = vperm.xlu0 %5848, %v5272
      %v5850 = vpop.permute.xlu0 %5849
      %5851 = vset.pattern.permute.xlu0 0
      %5852 = vperm.xlu0 %5851, %v5273
      %v5853 = vpop.permute.xlu0 %5852
      %5854 = vset.pattern.permute.xlu0 0
      %5855 = vperm.xlu0 %5854, %v5274
      %v5856 = vpop.permute.xlu0 %5855
      %5857 = vset.pattern.permute.xlu0 0
      %5858 = vperm.xlu0 %5857, %v5275
      %v5859 = vpop.permute.xlu0 %5858
      %5860 = vset.pattern.permute.xlu0 0
      %5861 = vperm.xlu0 %5860, %v5276
      %v5862 = vpop.permute.xlu0 %5861
      %5863 = vset.pattern.permute.xlu0 0
      %5864 = vperm.xlu0 %5863, %v5277
      %v5865 = vpop.permute.xlu0 %5864
      %5866 = vset.pattern.permute.xlu0 0
      %5867 = vperm.xlu0 %5866, %v5278
      %v5868 = vpop.permute.xlu0 %5867
      %5869 = vset.pattern.permute.xlu0 0
      %5870 = vperm.xlu0 %5869, %v5279
      %v5871 = vpop.permute.xlu0 %5870
      %5872 = vset.pattern.permute.xlu0 0
      %5873 = vperm.xlu0 %5872, %v5280
      %v5874 = vpop.permute.xlu0 %5873
      %5875 = vset.pattern.permute.xlu0 0
      %5876 = vperm.xlu0 %5875, %v5281
      %v5877 = vpop.permute.xlu0 %5876
      %5878 = vset.pattern.permute.xlu0 0
      %5879 = vperm.xlu0 %5878, %v5282
      %v5880 = vpop.permute.xlu0 %5879
      %5881 = vset.pattern.permute.xlu0 0
      %5882 = vperm.xlu0 %5881, %v5283
      %v5883 = vpop.permute.xlu0 %5882
      %5884 = vset.pattern.permute.xlu0 0
      %5885 = vperm.xlu0 %5884, %v5284
      %v5886 = vpop.permute.xlu0 %5885
      %5887 = vset.pattern.permute.xlu0 0
      %5888 = vperm.xlu0 %5887, %v5285
      %v5889 = vpop.permute.xlu0 %5888
      %5890 = vset.pattern.permute.xlu0 0
      %5891 = vperm.xlu0 %5890, %v5286
      %v5892 = vpop.permute.xlu0 %5891
      %5893 = vset.pattern.permute.xlu0 0
      %5894 = vperm.xlu0 %5893, %v5287
      %v5895 = vpop.permute.xlu0 %5894
      %5896 = vset.pattern.permute.xlu0 0
      %5897 = vperm.xlu0 %5896, %v5288
      %v5898 = vpop.permute.xlu0 %5897
      %5899 = vset.pattern.permute.xlu0 0
      %5900 = vperm.xlu0 %5899, %v5289
      %v5901 = vpop.permute.xlu0 %5900
      %5902 = vset.pattern.permute.xlu0 0
      %5903 = vperm.xlu0 %5902, %v5290
      %v5904 = vpop.permute.xlu0 %5903
      %5905 = vset.pattern.permute.xlu0 0
      %5906 = vperm.xlu0 %5905, %v5291
      %v5907 = vpop.permute.xlu0 %5906
      %5908 = vset.pattern.permute.xlu0 0
      %5909 = vperm.xlu0 %5908, %v5292
      %v5910 = vpop.permute.xlu0 %5909
      %5911 = vset.pattern.permute.xlu0 0
      %5912 = vperm.xlu0 %5911, %v5293
      %v5913 = vpop.permute.xlu0 %5912
      %5914 = vset.pattern.permute.xlu0 0
      %5915 = vperm.xlu0 %5914, %v5294
      %v5916 = vpop.permute.xlu0 %5915
      %5917 = vset.pattern.permute.xlu0 0
      %5918 = vperm.xlu0 %5917, %v5295
      %v5919 = vpop.permute.xlu0 %5918
      %5920 = vset.pattern.permute.xlu0 0
      %5921 = vperm.xlu0 %5920, %v5296
      %v5922 = vpop.permute.xlu0 %5921
      %5923 = vset.pattern.permute.xlu0 0
      %5924 = vperm.xlu0 %5923, %v5297
      %v5925 = vpop.permute.xlu0 %5924
      %5926 = vset.pattern.permute.xlu0 0
      %5927 = vperm.xlu0 %5926, %v5298
      %v5928 = vpop.permute.xlu0 %5927
      %5929 = vset.pattern.permute.xlu0 0
      %5930 = vperm.xlu0 %5929, %v5299
      %v5931 = vpop.permute.xlu0 %5930
      %5932 = vset.pattern.permute.xlu0 0
      %5933 = vperm.xlu0 %5932, %v5300
      %v5934 = vpop.permute.xlu0 %5933
      %5935 = vset.pattern.permute.xlu0 0
      %5936 = vperm.xlu0 %5935, %v5301
      %v5937 = vpop.permute.xlu0 %5936
      %5938 = vset.pattern.permute.xlu0 0
      %5939 = vperm.xlu0 %5938, %v5302
      %v5940 = vpop.permute.xlu0 %5939
      %5941 = vset.pattern.permute.xlu0 0
      %5942 = vperm.xlu0 %5941, %v5303
      %v5943 = vpop.permute.xlu0 %5942
      %5944 = vset.pattern.permute.xlu0 0
      %5945 = vperm.xlu0 %5944, %v5304
      %v5946 = vpop.permute.xlu0 %5945
      %5947 = vset.pattern.permute.xlu0 0
      %5948 = vperm.xlu0 %5947, %v5305
      %v5949 = vpop.permute.xlu0 %5948
      %5950 = vset.pattern.permute.xlu0 0
      %5951 = vperm.xlu0 %5950, %v5306
      %v5952 = vpop.permute.xlu0 %5951
      %5953 = vset.pattern.permute.xlu0 0
      %5954 = vperm.xlu0 %5953, %v5307
      %v5955 = vpop.permute.xlu0 %5954
      %5956 = vset.pattern.permute.xlu0 0
      %5957 = vperm.xlu0 %5956, %v5308
      %v5958 = vpop.permute.xlu0 %5957
      %5959 = vset.pattern.permute.xlu0 0
      %5960 = vperm.xlu0 %5959, %v5309
      %v5961 = vpop.permute.xlu0 %5960
      %5962 = vset.pattern.permute.xlu0 0
      %5963 = vperm.xlu0 %5962, %v5310
      %v5964 = vpop.permute.xlu0 %5963
      %5965 = vset.pattern.permute.xlu0 0
      %5966 = vperm.xlu0 %5965, %v5311
      %v5967 = vpop.permute.xlu0 %5966
      %5968 = vset.pattern.permute.xlu0 0
      %5969 = vperm.xlu0 %5968, %v5312
      %v5970 = vpop.permute.xlu0 %5969
      %5971 = vset.pattern.permute.xlu0 0
      %5972 = vperm.xlu0 %5971, %v5313
      %v5973 = vpop.permute.xlu0 %5972
      %5974 = vset.pattern.permute.xlu0 0
      %5975 = vperm.xlu0 %5974, %v5314
      %v5976 = vpop.permute.xlu0 %5975
      %5977 = vset.pattern.permute.xlu0 0
      %5978 = vperm.xlu0 %5977, %v5315
      %v5979 = vpop.permute.xlu0 %5978
      %5980 = vset.pattern.permute.xlu0 0
      %5981 = vperm.xlu0 %5980, %v5316
      %v5982 = vpop.permute.xlu0 %5981
      %5983 = vset.pattern.permute.xlu0 0
      %5984 = vperm.xlu0 %5983, %v5317
      %v5985 = vpop.permute.xlu0 %5984
      %5986 = vset.pattern.permute.xlu0 0
      %5987 = vperm.xlu0 %5986, %v5318
      %v5988 = vpop.permute.xlu0 %5987
      %5989 = vset.pattern.permute.xlu0 0
      %5990 = vperm.xlu0 %5989, %v5319
      %v5991 = vpop.permute.xlu0 %5990
      %5992 = vset.pattern.permute.xlu0 0
      %5993 = vperm.xlu0 %5992, %v5320
      %v5994 = vpop.permute.xlu0 %5993
      %5995 = vset.pattern.permute.xlu0 0
      %5996 = vperm.xlu0 %5995, %v5321
      %v5997 = vpop.permute.xlu0 %5996
      %5998 = vset.pattern.permute.xlu0 0
      %5999 = vperm.xlu0 %5998, %v5322
      %v6000 = vpop.permute.xlu0 %5999
      %6001 = vset.pattern.permute.xlu0 0
      %6002 = vperm.xlu0 %6001, %v5323
      %v6003 = vpop.permute.xlu0 %6002
      %6004 = vset.pattern.permute.xlu0 0
      %6005 = vperm.xlu0 %6004, %v5324
      %v6006 = vpop.permute.xlu0 %6005
      %6007 = vset.pattern.permute.xlu0 0
      %6008 = vperm.xlu0 %6007, %v5325
      %v6009 = vpop.permute.xlu0 %6008
      %6010 = vset.pattern.permute.xlu0 0
      %6011 = vperm.xlu0 %6010, %v5326
      %v6012 = vpop.permute.xlu0 %6011
      %6013 = vset.pattern.permute.xlu0 0
      %6014 = vperm.xlu0 %6013, %v5327
      %v6015 = vpop.permute.xlu0 %6014
      %6016 = vset.pattern.permute.xlu0 0
      %6017 = vperm.xlu0 %6016, %v5328
      %v6018 = vpop.permute.xlu0 %6017
      %6019 = vset.pattern.permute.xlu0 0
      %6020 = vperm.xlu0 %6019, %v5329
      %v6021 = vpop.permute.xlu0 %6020
      %6022 = vset.pattern.permute.xlu0 0
      %6023 = vperm.xlu0 %6022, %v5330
      %v6024 = vpop.permute.xlu0 %6023
      %6025 = vset.pattern.permute.xlu0 0
      %6026 = vperm.xlu0 %6025, %v5331
      %v6027 = vpop.permute.xlu0 %6026
      %6028 = vset.pattern.permute.xlu0 0
      %6029 = vperm.xlu0 %6028, %v5332
      %v6030 = vpop.permute.xlu0 %6029
      %6031 = vset.pattern.permute.xlu0 0
      %6032 = vperm.xlu0 %6031, %v5333
      %v6033 = vpop.permute.xlu0 %6032
      %6034 = vset.pattern.permute.xlu0 0
      %6035 = vperm.xlu0 %6034, %v5334
      %v6036 = vpop.permute.xlu0 %6035
      %6037 = vset.pattern.permute.xlu0 0
      %6038 = vperm.xlu0 %6037, %v5335
      %v6039 = vpop.permute.xlu0 %6038
      %6040 = vset.pattern.permute.xlu0 0
      %6041 = vperm.xlu0 %6040, %v5336
      %v6042 = vpop.permute.xlu0 %6041
      %6043 = vset.pattern.permute.xlu0 0
      %6044 = vperm.xlu0 %6043, %v5337
      %v6045 = vpop.permute.xlu0 %6044
      %6046 = vset.pattern.permute.xlu0 0
      %6047 = vperm.xlu0 %6046, %v5338
      %v6048 = vpop.permute.xlu0 %6047
      %6049 = vset.pattern.permute.xlu0 0
      %6050 = vperm.xlu0 %6049, %v5339
      %v6051 = vpop.permute.xlu0 %6050
      %6052 = vset.pattern.permute.xlu0 0
      %6053 = vperm.xlu0 %6052, %v5340
      %v6054 = vpop.permute.xlu0 %6053
      %6055 = vset.pattern.permute.xlu0 0
      %6056 = vperm.xlu0 %6055, %v5341
      %v6057 = vpop.permute.xlu0 %6056
      %6058 = vset.pattern.permute.xlu0 0
      %6059 = vperm.xlu0 %6058, %v5342
      %v6060 = vpop.permute.xlu0 %6059
      %6061 = vset.pattern.permute.xlu0 0
      %6062 = vperm.xlu0 %6061, %v5343
      %v6063 = vpop.permute.xlu0 %6062
      %6064 = vset.pattern.permute.xlu0 0
      %6065 = vperm.xlu0 %6064, %v5344
      %v6066 = vpop.permute.xlu0 %6065
      %6067 = vset.pattern.permute.xlu0 0
      %6068 = vperm.xlu0 %6067, %v5345
      %v6069 = vpop.permute.xlu0 %6068
      %6070 = vset.pattern.permute.xlu0 0
      %6071 = vperm.xlu0 %6070, %v5346
      %v6072 = vpop.permute.xlu0 %6071
      %6073 = vset.pattern.permute.xlu0 0
      %6074 = vperm.xlu0 %6073, %v5347
      %v6075 = vpop.permute.xlu0 %6074
      %6076 = vset.pattern.permute.xlu0 0
      %6077 = vperm.xlu0 %6076, %v5348
      %v6078 = vpop.permute.xlu0 %6077
      %6079 = vset.pattern.permute.xlu0 0
      %6080 = vperm.xlu0 %6079, %v5349
      %v6081 = vpop.permute.xlu0 %6080
      %6082 = vset.pattern.permute.xlu0 0
      %6083 = vperm.xlu0 %6082, %v5350
      %v6084 = vpop.permute.xlu0 %6083
      %6085 = vset.pattern.permute.xlu0 0
      %6086 = vperm.xlu0 %6085, %v5351
      %v6087 = vpop.permute.xlu0 %6086
      %6088 = vset.pattern.permute.xlu0 0
      %6089 = vperm.xlu0 %6088, %v5352
      %v6090 = vpop.permute.xlu0 %6089
      %6091 = vset.pattern.permute.xlu0 0
      %6092 = vperm.xlu0 %6091, %v5353
      %v6093 = vpop.permute.xlu0 %6092
      %6094 = vset.pattern.permute.xlu0 0
      %6095 = vperm.xlu0 %6094, %v5354
      %v6096 = vpop.permute.xlu0 %6095
      %6097 = vset.pattern.permute.xlu0 0
      %6098 = vperm.xlu0 %6097, %v5355
      %v6099 = vpop.permute.xlu0 %6098
      %6100 = vset.pattern.permute.xlu0 0
      %6101 = vperm.xlu0 %6100, %v5356
      %v6102 = vpop.permute.xlu0 %6101
      %6103 = vset.pattern.permute.xlu0 0
      %6104 = vperm.xlu0 %6103, %v5357
      %v6105 = vpop.permute.xlu0 %6104
      %6106 = vset.pattern.permute.xlu0 0
      %6107 = vperm.xlu0 %6106, %v5358
      %v6108 = vpop.permute.xlu0 %6107
      %6109 = vset.pattern.permute.xlu0 0
      %6110 = vperm.xlu0 %6109, %v5359
      %v6111 = vpop.permute.xlu0 %6110
      %6112 = vset.pattern.permute.xlu0 0
      %6113 = vperm.xlu0 %6112, %v5360
      %v6114 = vpop.permute.xlu0 %6113
      %6115 = vset.pattern.permute.xlu0 0
      %6116 = vperm.xlu0 %6115, %v5361
      %v6117 = vpop.permute.xlu0 %6116
      %6118 = vset.pattern.permute.xlu0 0
      %6119 = vperm.xlu0 %6118, %v5362
      %v6120 = vpop.permute.xlu0 %6119
      %6121 = vset.pattern.permute.xlu0 0
      %6122 = vperm.xlu0 %6121, %v5363
      %v6123 = vpop.permute.xlu0 %6122
      %6124 = vset.pattern.permute.xlu0 0
      %6125 = vperm.xlu0 %6124, %v5364
      %v6126 = vpop.permute.xlu0 %6125
      %6127 = vset.pattern.permute.xlu0 0
      %6128 = vperm.xlu0 %6127, %v5365
      %v6129 = vpop.permute.xlu0 %6128
      %6130 = vset.pattern.permute.xlu0 0
      %6131 = vperm.xlu0 %6130, %v5366
      %v6132 = vpop.permute.xlu0 %6131
      %6133 = vset.pattern.permute.xlu0 0
      %6134 = vperm.xlu0 %6133, %v5367
      %v6135 = vpop.permute.xlu0 %6134
      %6136 = vset.pattern.permute.xlu0 0
      %6137 = vperm.xlu0 %6136, %v5368
      %v6138 = vpop.permute.xlu0 %6137
      %6139 = vset.pattern.permute.xlu0 0
      %6140 = vperm.xlu0 %6139, %v5369
      %v6141 = vpop.permute.xlu0 %6140
      %6142 = vset.pattern.permute.xlu0 0
      %6143 = vperm.xlu0 %6142, %v5370
      %v6144 = vpop.permute.xlu0 %6143
      %6145 = vset.pattern.permute.xlu0 0
      %6146 = vperm.xlu0 %6145, %v5371
      %v6147 = vpop.permute.xlu0 %6146
      %6148 = vset.pattern.permute.xlu0 0
      %6149 = vperm.xlu0 %6148, %v5372
      %v6150 = vpop.permute.xlu0 %6149
      %6151 = vset.pattern.permute.xlu0 0
      %6152 = vperm.xlu0 %6151, %v5373
      %v6153 = vpop.permute.xlu0 %6152
      %6154 = vset.pattern.permute.xlu0 0
      %6155 = vperm.xlu0 %6154, %v5374
      %v6156 = vpop.permute.xlu0 %6155
      %6157 = vset.pattern.permute.xlu0 0
      %6158 = vperm.xlu0 %6157, %v5375
      %v6159 = vpop.permute.xlu0 %6158
      %6160 = vset.pattern.permute.xlu0 0
      %6161 = vperm.xlu0 %6160, %v5376
      %v6162 = vpop.permute.xlu0 %6161
      %6163 = vset.pattern.permute.xlu0 0
      %6164 = vperm.xlu0 %6163, %v5377
      %v6165 = vpop.permute.xlu0 %6164
      %6166 = vset.pattern.permute.xlu0 0
      %6167 = vperm.xlu0 %6166, %v5378
      %v6168 = vpop.permute.xlu0 %6167
      %6169 = vset.pattern.permute.xlu0 0
      %6170 = vperm.xlu0 %6169, %v5379
      %v6171 = vpop.permute.xlu0 %6170
      %6172 = vset.pattern.permute.xlu0 0
      %6173 = vperm.xlu0 %6172, %v5380
      %v6174 = vpop.permute.xlu0 %6173
      %6175 = vset.pattern.permute.xlu0 0
      %6176 = vperm.xlu0 %6175, %v5381
      %v6177 = vpop.permute.xlu0 %6176
      %6178 = vset.pattern.permute.xlu0 0
      %6179 = vperm.xlu0 %6178, %v5382
      %v6180 = vpop.permute.xlu0 %6179
      %6181 = vset.pattern.permute.xlu0 0
      %6182 = vperm.xlu0 %6181, %v5383
      %v6183 = vpop.permute.xlu0 %6182
      %6184 = vset.pattern.permute.xlu0 0
      %6185 = vperm.xlu0 %6184, %v5384
      %v6186 = vpop.permute.xlu0 %6185
      %6187 = vset.pattern.permute.xlu0 0
      %6188 = vperm.xlu0 %6187, %v5385
      %v6189 = vpop.permute.xlu0 %6188
      %6190 = vset.pattern.permute.xlu0 0
      %6191 = vperm.xlu0 %6190, %v5386
      %v6192 = vpop.permute.xlu0 %6191
      %6193 = vset.pattern.permute.xlu0 0
      %6194 = vperm.xlu0 %6193, %v5387
      %v6195 = vpop.permute.xlu0 %6194
      %6196 = vset.pattern.permute.xlu0 0
      %6197 = vperm.xlu0 %6196, %v5388
      %v6198 = vpop.permute.xlu0 %6197
      %6199 = vset.pattern.permute.xlu0 0
      %6200 = vperm.xlu0 %6199, %v5389
      %v6201 = vpop.permute.xlu0 %6200
      %6202 = vset.pattern.permute.xlu0 0
      %6203 = vperm.xlu0 %6202, %v5390
      %v6204 = vpop.permute.xlu0 %6203
      %6205 = vset.pattern.permute.xlu0 0
      %6206 = vperm.xlu0 %6205, %v5391
      %v6207 = vpop.permute.xlu0 %6206
      %6208 = vset.pattern.permute.xlu0 0
      %6209 = vperm.xlu0 %6208, %v5392
      %v6210 = vpop.permute.xlu0 %6209
      %6211 = vset.pattern.permute.xlu0 0
      %6212 = vperm.xlu0 %6211, %v5393
      %v6213 = vpop.permute.xlu0 %6212
      %6214 = vset.pattern.permute.xlu0 0
      %6215 = vperm.xlu0 %6214, %v5394
      %v6216 = vpop.permute.xlu0 %6215
      %6217 = vset.pattern.permute.xlu0 0
      %6218 = vperm.xlu0 %6217, %v5395
      %v6219 = vpop.permute.xlu0 %6218
      %6220 = vset.pattern.permute.xlu0 0
      %6221 = vperm.xlu0 %6220, %v5396
      %v6222 = vpop.permute.xlu0 %6221
      %6223 = vset.pattern.permute.xlu0 0
      %6224 = vperm.xlu0 %6223, %v5397
      %v6225 = vpop.permute.xlu0 %6224
      %6226 = vset.pattern.permute.xlu0 0
      %6227 = vperm.xlu0 %6226, %v5398
      %v6228 = vpop.permute.xlu0 %6227
      %6229 = vset.pattern.permute.xlu0 0
      %6230 = vperm.xlu0 %6229, %v5399
      %v6231 = vpop.permute.xlu0 %6230
      %6232 = vset.pattern.permute.xlu0 0
      %6233 = vperm.xlu0 %6232, %v5400
      %v6234 = vpop.permute.xlu0 %6233
      %6235 = vset.pattern.permute.xlu0 0
      %6236 = vperm.xlu0 %6235, %v5401
      %v6237 = vpop.permute.xlu0 %6236
      %6238 = vset.pattern.permute.xlu0 0
      %6239 = vperm.xlu0 %6238, %v5402
      %v6240 = vpop.permute.xlu0 %6239
      %6241 = vset.pattern.permute.xlu0 0
      %6242 = vperm.xlu0 %6241, %v5403
      %v6243 = vpop.permute.xlu0 %6242
      %6244 = vset.pattern.permute.xlu0 0
      %6245 = vperm.xlu0 %6244, %v5404
      %v6246 = vpop.permute.xlu0 %6245
      %6247 = vset.pattern.permute.xlu0 0
      %6248 = vperm.xlu0 %6247, %v5405
      %v6249 = vpop.permute.xlu0 %6248
      %6250 = vset.pattern.permute.xlu0 0
      %6251 = vperm.xlu0 %6250, %v5406
      %v6252 = vpop.permute.xlu0 %6251
      %6253 = vset.pattern.permute.xlu0 0
      %6254 = vperm.xlu0 %6253, %v5407
      %v6255 = vpop.permute.xlu0 %6254
      %6256 = vset.pattern.permute.xlu0 0
      %6257 = vperm.xlu0 %6256, %v5408
      %v6258 = vpop.permute.xlu0 %6257
      %6259 = vset.pattern.permute.xlu0 0
      %6260 = vperm.xlu0 %6259, %v5409
      %v6261 = vpop.permute.xlu0 %6260
      %6262 = vset.pattern.permute.xlu0 0
      %6263 = vperm.xlu0 %6262, %v5410
      %v6264 = vpop.permute.xlu0 %6263
      %6265 = vset.pattern.permute.xlu0 0
      %6266 = vperm.xlu0 %6265, %v5411
      %v6267 = vpop.permute.xlu0 %6266
      %6268 = vset.pattern.permute.xlu0 0
      %6269 = vperm.xlu0 %6268, %v5412
      %v6270 = vpop.permute.xlu0 %6269
      %6271 = vset.pattern.permute.xlu0 0
      %6272 = vperm.xlu0 %6271, %v5413
      %v6273 = vpop.permute.xlu0 %6272
      %6274 = vset.pattern.permute.xlu0 0
      %6275 = vperm.xlu0 %6274, %v5414
      %v6276 = vpop.permute.xlu0 %6275
      %6277 = vset.pattern.permute.xlu0 0
      %6278 = vperm.xlu0 %6277, %v5415
      %v6279 = vpop.permute.xlu0 %6278
      %6280 = vset.pattern.permute.xlu0 0
      %6281 = vperm.xlu0 %6280, %v5416
      %v6282 = vpop.permute.xlu0 %6281
      %6283 = vset.pattern.permute.xlu0 0
      %6284 = vperm.xlu0 %6283, %v5417
      %v6285 = vpop.permute.xlu0 %6284
      %6286 = vset.pattern.permute.xlu0 0
      %6287 = vperm.xlu0 %6286, %v5418
      %v6288 = vpop.permute.xlu0 %6287
      %6289 = vset.pattern.permute.xlu0 0
      %6290 = vperm.xlu0 %6289, %v5419
      %v6291 = vpop.permute.xlu0 %6290
      %6292 = vset.pattern.permute.xlu0 0
      %6293 = vperm.xlu0 %6292, %v5420
      %v6294 = vpop.permute.xlu0 %6293
      %6295 = vset.pattern.permute.xlu0 0
      %6296 = vperm.xlu0 %6295, %v5421
      %v6297 = vpop.permute.xlu0 %6296
      %6298 = vset.pattern.permute.xlu0 0
      %6299 = vperm.xlu0 %6298, %v5422
      %v6300 = vpop.permute.xlu0 %6299
      %6301 = vset.pattern.permute.xlu0 0
      %6302 = vperm.xlu0 %6301, %v5423
      %v6303 = vpop.permute.xlu0 %6302
      %6304 = vset.pattern.permute.xlu0 0
      %6305 = vperm.xlu0 %6304, %v5424
      %v6306 = vpop.permute.xlu0 %6305
      %6307 = vset.pattern.permute.xlu0 0
      %6308 = vperm.xlu0 %6307, %v5425
      %v6309 = vpop.permute.xlu0 %6308
      %6310 = vset.pattern.permute.xlu0 0
      %6311 = vperm.xlu0 %6310, %v5426
      %v6312 = vpop.permute.xlu0 %6311
      %6313 = vset.pattern.permute.xlu0 0
      %6314 = vperm.xlu0 %6313, %v5427
      %v6315 = vpop.permute.xlu0 %6314
      %6316 = vset.pattern.permute.xlu0 0
      %6317 = vperm.xlu0 %6316, %v5428
      %v6318 = vpop.permute.xlu0 %6317
      %6319 = vset.pattern.permute.xlu0 0
      %6320 = vperm.xlu0 %6319, %v5429
      %v6321 = vpop.permute.xlu0 %6320
      %6322 = vset.pattern.permute.xlu0 0
      %6323 = vperm.xlu0 %6322, %v5430
      %v6324 = vpop.permute.xlu0 %6323
      %6325 = vset.pattern.permute.xlu0 0
      %6326 = vperm.xlu0 %6325, %v5431
      %v6327 = vpop.permute.xlu0 %6326
      %6328 = vset.pattern.permute.xlu0 0
      %6329 = vperm.xlu0 %6328, %v5432
      %v6330 = vpop.permute.xlu0 %6329
      %6331 = vset.pattern.permute.xlu0 0
      %6332 = vperm.xlu0 %6331, %v5433
      %v6333 = vpop.permute.xlu0 %6332
      %6334 = vset.pattern.permute.xlu0 0
      %6335 = vperm.xlu0 %6334, %v5434
      %v6336 = vpop.permute.xlu0 %6335
      %6337 = vset.pattern.permute.xlu0 0
      %6338 = vperm.xlu0 %6337, %v5435
      %v6339 = vpop.permute.xlu0 %6338
      %6340 = vset.pattern.permute.xlu0 0
      %6341 = vperm.xlu0 %6340, %v5436
      %v6342 = vpop.permute.xlu0 %6341
      %6343 = vset.pattern.permute.xlu0 0
      %6344 = vperm.xlu0 %6343, %v5437
      %v6345 = vpop.permute.xlu0 %6344
      %6346 = vset.pattern.permute.xlu0 0
      %6347 = vperm.xlu0 %6346, %v5438
      %v6348 = vpop.permute.xlu0 %6347
      %6349 = vset.pattern.permute.xlu0 0
      %6350 = vperm.xlu0 %6349, %v5439
      %v6351 = vpop.permute.xlu0 %6350
      %6352 = vset.pattern.permute.xlu0 0
      %6353 = vperm.xlu0 %6352, %v5440
      %v6354 = vpop.permute.xlu0 %6353
      %6355 = vset.pattern.permute.xlu0 0
      %6356 = vperm.xlu0 %6355, %v5441
      %v6357 = vpop.permute.xlu0 %6356
      %6358 = vset.pattern.permute.xlu0 0
      %6359 = vperm.xlu0 %6358, %v5442
      %v6360 = vpop.permute.xlu0 %6359
      %6361 = vset.pattern.permute.xlu0 0
      %6362 = vperm.xlu0 %6361, %v5443
      %v6363 = vpop.permute.xlu0 %6362
      %6364 = vset.pattern.permute.xlu0 0
      %6365 = vperm.xlu0 %6364, %v5444
      %v6366 = vpop.permute.xlu0 %6365
      %6367 = vset.pattern.permute.xlu0 0
      %6368 = vperm.xlu0 %6367, %v5445
      %v6369 = vpop.permute.xlu0 %6368
      %6370 = vset.pattern.permute.xlu0 0
      %6371 = vperm.xlu0 %6370, %v5446
      %v6372 = vpop.permute.xlu0 %6371
      %6373 = vset.pattern.permute.xlu0 0
      %6374 = vperm.xlu0 %6373, %v5447
      %v6375 = vpop.permute.xlu0 %6374
      %6376 = vset.pattern.permute.xlu0 0
      %6377 = vperm.xlu0 %6376, %v5448
      %v6378 = vpop.permute.xlu0 %6377
      %6379 = vset.pattern.permute.xlu0 0
      %6380 = vperm.xlu0 %6379, %v5449
      %v6381 = vpop.permute.xlu0 %6380
      %6382 = vset.pattern.permute.xlu0 0
      %6383 = vperm.xlu0 %6382, %v5450
      %v6384 = vpop.permute.xlu0 %6383
      %6385 = vset.pattern.permute.xlu0 0
      %6386 = vperm.xlu0 %6385, %v5451
      %v6387 = vpop.permute.xlu0 %6386
      %6388 = vset.pattern.permute.xlu0 0
      %6389 = vperm.xlu0 %6388, %v5452
      %v6390 = vpop.permute.xlu0 %6389
      %6391 = vset.pattern.permute.xlu0 0
      %6392 = vperm.xlu0 %6391, %v5453
      %v6393 = vpop.permute.xlu0 %6392
      %6394 = vset.pattern.permute.xlu0 0
      %6395 = vperm.xlu0 %6394, %v5454
      %v6396 = vpop.permute.xlu0 %6395
      %6397 = vset.pattern.permute.xlu0 0
      %6398 = vperm.xlu0 %6397, %v5455
      %v6399 = vpop.permute.xlu0 %6398
      %6400 = vset.pattern.permute.xlu0 0
      %6401 = vperm.xlu0 %6400, %v5456
      %v6402 = vpop.permute.xlu0 %6401
      %6403 = vset.pattern.permute.xlu0 0
      %6404 = vperm.xlu0 %6403, %v5457
      %v6405 = vpop.permute.xlu0 %6404
      %6406 = vset.pattern.permute.xlu0 0
      %6407 = vperm.xlu0 %6406, %v5458
      %v6408 = vpop.permute.xlu0 %6407
      %6409 = vset.pattern.permute.xlu0 0
      %6410 = vperm.xlu0 %6409, %v5459
      %v6411 = vpop.permute.xlu0 %6410
      %6412 = vset.pattern.permute.xlu0 0
      %6413 = vperm.xlu0 %6412, %v5460
      %v6414 = vpop.permute.xlu0 %6413
      %6415 = vset.pattern.permute.xlu0 0
      %6416 = vperm.xlu0 %6415, %v5461
      %v6417 = vpop.permute.xlu0 %6416
      %6418 = vset.pattern.permute.xlu0 0
      %6419 = vperm.xlu0 %6418, %v5462
      %v6420 = vpop.permute.xlu0 %6419
      %6421 = vset.pattern.permute.xlu0 0
      %6422 = vperm.xlu0 %6421, %v5463
      %v6423 = vpop.permute.xlu0 %6422
      %6424 = vset.pattern.permute.xlu0 0
      %6425 = vperm.xlu0 %6424, %v5464
      %v6426 = vpop.permute.xlu0 %6425
      %6427 = vset.pattern.permute.xlu0 0
      %6428 = vperm.xlu0 %6427, %v5465
      %v6429 = vpop.permute.xlu0 %6428
      %6430 = vset.pattern.permute.xlu0 0
      %6431 = vperm.xlu0 %6430, %v5466
      %v6432 = vpop.permute.xlu0 %6431
      %6433 = vset.pattern.permute.xlu0 0
      %6434 = vperm.xlu0 %6433, %v5467
      %v6435 = vpop.permute.xlu0 %6434
      %6436 = vset.pattern.permute.xlu0 0
      %6437 = vperm.xlu0 %6436, %v5468
      %v6438 = vpop.permute.xlu0 %6437
      %6439 = vset.pattern.permute.xlu0 0
      %6440 = vperm.xlu0 %6439, %v5469
      %v6441 = vpop.permute.xlu0 %6440
      %6442 = vset.pattern.permute.xlu0 0
      %6443 = vperm.xlu0 %6442, %v5470
      %v6444 = vpop.permute.xlu0 %6443
      %6445 = vset.pattern.permute.xlu0 0
      %6446 = vperm.xlu0 %6445, %v5471
      %v6447 = vpop.permute.xlu0 %6446
      %6448 = vset.pattern.permute.xlu0 0
      %6449 = vperm.xlu0 %6448, %v5472
      %v6450 = vpop.permute.xlu0 %6449
      %6451 = vset.pattern.permute.xlu0 0
      %6452 = vperm.xlu0 %6451, %v5473
      %v6453 = vpop.permute.xlu0 %6452
      %6454 = vset.pattern.permute.xlu0 0
      %6455 = vperm.xlu0 %6454, %v5474
      %v6456 = vpop.permute.xlu0 %6455
      %6457 = vset.pattern.permute.xlu0 0
      %6458 = vperm.xlu0 %6457, %v5475
      %v6459 = vpop.permute.xlu0 %6458
      %6460 = vset.pattern.permute.xlu0 0
      %6461 = vperm.xlu0 %6460, %v5476
      %v6462 = vpop.permute.xlu0 %6461
      %6463 = vset.pattern.permute.xlu0 0
      %6464 = vperm.xlu0 %6463, %v5477
      %v6465 = vpop.permute.xlu0 %6464
      %6466 = vset.pattern.permute.xlu0 0
      %6467 = vperm.xlu0 %6466, %v5478
      %v6468 = vpop.permute.xlu0 %6467
      %6469 = vset.pattern.permute.xlu0 0
      %6470 = vperm.xlu0 %6469, %v5479
      %v6471 = vpop.permute.xlu0 %6470
      %6472 = vset.pattern.permute.xlu0 0
      %6473 = vperm.xlu0 %6472, %v5480
      %v6474 = vpop.permute.xlu0 %6473
      %6475 = vset.pattern.permute.xlu0 0
      %6476 = vperm.xlu0 %6475, %v5481
      %v6477 = vpop.permute.xlu0 %6476
      %6478 = vset.pattern.permute.xlu0 0
      %6479 = vperm.xlu0 %6478, %v5482
      %v6480 = vpop.permute.xlu0 %6479
      %6481 = vset.pattern.permute.xlu0 0
      %6482 = vperm.xlu0 %6481, %v5483
      %v6483 = vpop.permute.xlu0 %6482
      %6484 = vset.pattern.permute.xlu0 0
      %6485 = vperm.xlu0 %6484, %v5484
      %v6486 = vpop.permute.xlu0 %6485
      %6487 = vset.pattern.permute.xlu0 0
      %6488 = vperm.xlu0 %6487, %v5485
      %v6489 = vpop.permute.xlu0 %6488
      %6490 = vset.pattern.permute.xlu0 0
      %6491 = vperm.xlu0 %6490, %v5486
      %v6492 = vpop.permute.xlu0 %6491
      %6493 = vset.pattern.permute.xlu0 0
      %6494 = vperm.xlu0 %6493, %v5487
      %v6495 = vpop.permute.xlu0 %6494
      %6496 = vset.pattern.permute.xlu0 0
      %6497 = vperm.xlu0 %6496, %v5488
      %v6498 = vpop.permute.xlu0 %6497
      %6499 = vset.pattern.permute.xlu0 0
      %6500 = vperm.xlu0 %6499, %v5489
      %v6501 = vpop.permute.xlu0 %6500
      %6502 = vset.pattern.permute.xlu0 0
      %6503 = vperm.xlu0 %6502, %v5490
      %v6504 = vpop.permute.xlu0 %6503
      %6505 = vset.pattern.permute.xlu0 0
      %6506 = vperm.xlu0 %6505, %v5491
      %v6507 = vpop.permute.xlu0 %6506
      %6508 = vset.pattern.permute.xlu0 0
      %6509 = vperm.xlu0 %6508, %v5492
      %v6510 = vpop.permute.xlu0 %6509
      %6511 = vset.pattern.permute.xlu0 0
      %6512 = vperm.xlu0 %6511, %v5493
      %v6513 = vpop.permute.xlu0 %6512
      %6514 = vset.pattern.permute.xlu0 0
      %6515 = vperm.xlu0 %6514, %v5494
      %v6516 = vpop.permute.xlu0 %6515
      %6517 = vset.pattern.permute.xlu0 0
      %6518 = vperm.xlu0 %6517, %v5495
      %v6519 = vpop.permute.xlu0 %6518
      %v6520 = vperm.slane %v5754, %v2345
      %v6521 = vperm.slane %v5757, %v2347
      %v6522 = vsel %vm2349, %v6521, %v6520
      %v6523 = vperm.slane %v5760, %v2351
      %v6524 = vsel %vm2353, %v6523, %v6522
      %v6525 = vperm.slane %v5763, %v2355
      %v6526 = vsel %vm2357, %v6525, %v6524
      %v6527 = vperm.slane %v5766, %v2359
      %v6528 = vsel %vm2361, %v6527, %v6526
      %v6529 = vperm.slane %v5769, %v2363
      %v6530 = vsel %vm2365, %v6529, %v6528
      %v6531 = vperm.slane %v5772, %v2367
      %v6532 = vsel %vm2369, %v6531, %v6530
      %v6533 = vperm.slane %v5775, %v2371
      %v6534 = vsel %vm2373, %v6533, %v6532
      %v6535 = vperm.slane %v5778, %v2375
      %v6536 = vsel %vm2377, %v6535, %v6534
      %v6537 = vperm.slane %v5781, %v2379
      %v6538 = vsel %vm2381, %v6537, %v6536
      %v6539 = vperm.slane %v5784, %v2383
      %v6540 = vsel %vm2385, %v6539, %v6538
      %v6541 = vperm.slane %v5787, %v2387
      %v6542 = vsel %vm2389, %v6541, %v6540
      %v6543 = vperm.slane %v5790, %v2391
      %v6544 = vsel %vm2393, %v6543, %v6542
      %v6545 = vperm.slane %v5793, %v2395
      %v6546 = vsel %vm2397, %v6545, %v6544
      %v6547 = vperm.slane %v5796, %v2399
      %v6548 = vsel %vm2401, %v6547, %v6546
      %v6549 = vperm.slane %v5799, %v2403
      %v6550 = vsel %vm2405, %v6549, %v6548
      %v6551 = vperm.slane %v5802, %v2345
      %v6552 = vperm.slane %v5805, %v2347
      %v6553 = vsel %vm2349, %v6552, %v6551
      %v6554 = vperm.slane %v5808, %v2351
      %v6555 = vsel %vm2353, %v6554, %v6553
      %v6556 = vperm.slane %v5811, %v2355
      %v6557 = vsel %vm2357, %v6556, %v6555
      %v6558 = vperm.slane %v5814, %v2359
      %v6559 = vsel %vm2361, %v6558, %v6557
      %v6560 = vperm.slane %v5817, %v2363
      %v6561 = vsel %vm2365, %v6560, %v6559
      %v6562 = vperm.slane %v5820, %v2367
      %v6563 = vsel %vm2369, %v6562, %v6561
      %v6564 = vperm.slane %v5823, %v2371
      %v6565 = vsel %vm2373, %v6564, %v6563
      %v6566 = vperm.slane %v5826, %v2375
      %v6567 = vsel %vm2377, %v6566, %v6565
      %v6568 = vperm.slane %v5829, %v2379
      %v6569 = vsel %vm2381, %v6568, %v6567
      %v6570 = vperm.slane %v5832, %v2383
      %v6571 = vsel %vm2385, %v6570, %v6569
      %v6572 = vperm.slane %v5835, %v2387
      %v6573 = vsel %vm2389, %v6572, %v6571
      %v6574 = vperm.slane %v5838, %v2391
      %v6575 = vsel %vm2393, %v6574, %v6573
      %v6576 = vperm.slane %v5841, %v2395
      %v6577 = vsel %vm2397, %v6576, %v6575
      %v6578 = vperm.slane %v5844, %v2399
      %v6579 = vsel %vm2401, %v6578, %v6577
      %v6580 = vperm.slane %v5847, %v2403
      %v6581 = vsel %vm2405, %v6580, %v6579
      %v6582 = vperm.slane %v5850, %v2345
      %v6583 = vperm.slane %v5853, %v2347
      %v6584 = vsel %vm2349, %v6583, %v6582
      %v6585 = vperm.slane %v5856, %v2351
      %v6586 = vsel %vm2353, %v6585, %v6584
      %v6587 = vperm.slane %v5859, %v2355
      %v6588 = vsel %vm2357, %v6587, %v6586
      %v6589 = vperm.slane %v5862, %v2359
      %v6590 = vsel %vm2361, %v6589, %v6588
      %v6591 = vperm.slane %v5865, %v2363
      %v6592 = vsel %vm2365, %v6591, %v6590
      %v6593 = vperm.slane %v5868, %v2367
      %v6594 = vsel %vm2369, %v6593, %v6592
      %v6595 = vperm.slane %v5871, %v2371
      %v6596 = vsel %vm2373, %v6595, %v6594
      %v6597 = vperm.slane %v5874, %v2375
      %v6598 = vsel %vm2377, %v6597, %v6596
      %v6599 = vperm.slane %v5877, %v2379
      %v6600 = vsel %vm2381, %v6599, %v6598
      %v6601 = vperm.slane %v5880, %v2383
      %v6602 = vsel %vm2385, %v6601, %v6600
      %v6603 = vperm.slane %v5883, %v2387
      %v6604 = vsel %vm2389, %v6603, %v6602
      %v6605 = vperm.slane %v5886, %v2391
      %v6606 = vsel %vm2393, %v6605, %v6604
      %v6607 = vperm.slane %v5889, %v2395
      %v6608 = vsel %vm2397, %v6607, %v6606
      %v6609 = vperm.slane %v5892, %v2399
      %v6610 = vsel %vm2401, %v6609, %v6608
      %v6611 = vperm.slane %v5895, %v2403
      %v6612 = vsel %vm2405, %v6611, %v6610
      %v6613 = vperm.slane %v5898, %v2345
      %v6614 = vperm.slane %v5901, %v2347
      %v6615 = vsel %vm2349, %v6614, %v6613
      %v6616 = vperm.slane %v5904, %v2351
      %v6617 = vsel %vm2353, %v6616, %v6615
      %v6618 = vperm.slane %v5907, %v2355
      %v6619 = vsel %vm2357, %v6618, %v6617
      %v6620 = vperm.slane %v5910, %v2359
      %v6621 = vsel %vm2361, %v6620, %v6619
      %v6622 = vperm.slane %v5913, %v2363
      %v6623 = vsel %vm2365, %v6622, %v6621
      %v6624 = vperm.slane %v5916, %v2367
      %v6625 = vsel %vm2369, %v6624, %v6623
      %v6626 = vperm.slane %v5919, %v2371
      %v6627 = vsel %vm2373, %v6626, %v6625
      %v6628 = vperm.slane %v5922, %v2375
      %v6629 = vsel %vm2377, %v6628, %v6627
      %v6630 = vperm.slane %v5925, %v2379
      %v6631 = vsel %vm2381, %v6630, %v6629
      %v6632 = vperm.slane %v5928, %v2383
      %v6633 = vsel %vm2385, %v6632, %v6631
      %v6634 = vperm.slane %v5931, %v2387
      %v6635 = vsel %vm2389, %v6634, %v6633
      %v6636 = vperm.slane %v5934, %v2391
      %v6637 = vsel %vm2393, %v6636, %v6635
      %v6638 = vperm.slane %v5937, %v2395
      %v6639 = vsel %vm2397, %v6638, %v6637
      %v6640 = vperm.slane %v5940, %v2399
      %v6641 = vsel %vm2401, %v6640, %v6639
      %v6642 = vperm.slane %v5943, %v2403
      %v6643 = vsel %vm2405, %v6642, %v6641
      %v6644 = vperm.slane %v5946, %v2345
      %v6645 = vperm.slane %v5949, %v2347
      %v6646 = vsel %vm2349, %v6645, %v6644
      %v6647 = vperm.slane %v5952, %v2351
      %v6648 = vsel %vm2353, %v6647, %v6646
      %v6649 = vperm.slane %v5955, %v2355
      %v6650 = vsel %vm2357, %v6649, %v6648
      %v6651 = vperm.slane %v5958, %v2359
      %v6652 = vsel %vm2361, %v6651, %v6650
      %v6653 = vperm.slane %v5961, %v2363
      %v6654 = vsel %vm2365, %v6653, %v6652
      %v6655 = vperm.slane %v5964, %v2367
      %v6656 = vsel %vm2369, %v6655, %v6654
      %v6657 = vperm.slane %v5967, %v2371
      %v6658 = vsel %vm2373, %v6657, %v6656
      %v6659 = vperm.slane %v5970, %v2375
      %v6660 = vsel %vm2377, %v6659, %v6658
      %v6661 = vperm.slane %v5973, %v2379
      %v6662 = vsel %vm2381, %v6661, %v6660
      %v6663 = vperm.slane %v5976, %v2383
      %v6664 = vsel %vm2385, %v6663, %v6662
      %v6665 = vperm.slane %v5979, %v2387
      %v6666 = vsel %vm2389, %v6665, %v6664
      %v6667 = vperm.slane %v5982, %v2391
      %v6668 = vsel %vm2393, %v6667, %v6666
      %v6669 = vperm.slane %v5985, %v2395
      %v6670 = vsel %vm2397, %v6669, %v6668
      %v6671 = vperm.slane %v5988, %v2399
      %v6672 = vsel %vm2401, %v6671, %v6670
      %v6673 = vperm.slane %v5991, %v2403
      %v6674 = vsel %vm2405, %v6673, %v6672
      %v6675 = vperm.slane %v5994, %v2345
      %v6676 = vperm.slane %v5997, %v2347
      %v6677 = vsel %vm2349, %v6676, %v6675
      %v6678 = vperm.slane %v6000, %v2351
      %v6679 = vsel %vm2353, %v6678, %v6677
      %v6680 = vperm.slane %v6003, %v2355
      %v6681 = vsel %vm2357, %v6680, %v6679
      %v6682 = vperm.slane %v6006, %v2359
      %v6683 = vsel %vm2361, %v6682, %v6681
      %v6684 = vperm.slane %v6009, %v2363
      %v6685 = vsel %vm2365, %v6684, %v6683
      %v6686 = vperm.slane %v6012, %v2367
      %v6687 = vsel %vm2369, %v6686, %v6685
      %v6688 = vperm.slane %v6015, %v2371
      %v6689 = vsel %vm2373, %v6688, %v6687
      %v6690 = vperm.slane %v6018, %v2375
      %v6691 = vsel %vm2377, %v6690, %v6689
      %v6692 = vperm.slane %v6021, %v2379
      %v6693 = vsel %vm2381, %v6692, %v6691
      %v6694 = vperm.slane %v6024, %v2383
      %v6695 = vsel %vm2385, %v6694, %v6693
      %v6696 = vperm.slane %v6027, %v2387
      %v6697 = vsel %vm2389, %v6696, %v6695
      %v6698 = vperm.slane %v6030, %v2391
      %v6699 = vsel %vm2393, %v6698, %v6697
      %v6700 = vperm.slane %v6033, %v2395
      %v6701 = vsel %vm2397, %v6700, %v6699
      %v6702 = vperm.slane %v6036, %v2399
      %v6703 = vsel %vm2401, %v6702, %v6701
      %v6704 = vperm.slane %v6039, %v2403
      %v6705 = vsel %vm2405, %v6704, %v6703
      %v6706 = vperm.slane %v6042, %v2345
      %v6707 = vperm.slane %v6045, %v2347
      %v6708 = vsel %vm2349, %v6707, %v6706
      %v6709 = vperm.slane %v6048, %v2351
      %v6710 = vsel %vm2353, %v6709, %v6708
      %v6711 = vperm.slane %v6051, %v2355
      %v6712 = vsel %vm2357, %v6711, %v6710
      %v6713 = vperm.slane %v6054, %v2359
      %v6714 = vsel %vm2361, %v6713, %v6712
      %v6715 = vperm.slane %v6057, %v2363
      %v6716 = vsel %vm2365, %v6715, %v6714
      %v6717 = vperm.slane %v6060, %v2367
      %v6718 = vsel %vm2369, %v6717, %v6716
      %v6719 = vperm.slane %v6063, %v2371
      %v6720 = vsel %vm2373, %v6719, %v6718
      %v6721 = vperm.slane %v6066, %v2375
      %v6722 = vsel %vm2377, %v6721, %v6720
      %v6723 = vperm.slane %v6069, %v2379
      %v6724 = vsel %vm2381, %v6723, %v6722
      %v6725 = vperm.slane %v6072, %v2383
      %v6726 = vsel %vm2385, %v6725, %v6724
      %v6727 = vperm.slane %v6075, %v2387
      %v6728 = vsel %vm2389, %v6727, %v6726
      %v6729 = vperm.slane %v6078, %v2391
      %v6730 = vsel %vm2393, %v6729, %v6728
      %v6731 = vperm.slane %v6081, %v2395
      %v6732 = vsel %vm2397, %v6731, %v6730
      %v6733 = vperm.slane %v6084, %v2399
      %v6734 = vsel %vm2401, %v6733, %v6732
      %v6735 = vperm.slane %v6087, %v2403
      %v6736 = vsel %vm2405, %v6735, %v6734
      %v6737 = vperm.slane %v6090, %v2345
      %v6738 = vperm.slane %v6093, %v2347
      %v6739 = vsel %vm2349, %v6738, %v6737
      %v6740 = vperm.slane %v6096, %v2351
      %v6741 = vsel %vm2353, %v6740, %v6739
      %v6742 = vperm.slane %v6099, %v2355
      %v6743 = vsel %vm2357, %v6742, %v6741
      %v6744 = vperm.slane %v6102, %v2359
      %v6745 = vsel %vm2361, %v6744, %v6743
      %v6746 = vperm.slane %v6105, %v2363
      %v6747 = vsel %vm2365, %v6746, %v6745
      %v6748 = vperm.slane %v6108, %v2367
      %v6749 = vsel %vm2369, %v6748, %v6747
      %v6750 = vperm.slane %v6111, %v2371
      %v6751 = vsel %vm2373, %v6750, %v6749
      %v6752 = vperm.slane %v6114, %v2375
      %v6753 = vsel %vm2377, %v6752, %v6751
      %v6754 = vperm.slane %v6117, %v2379
      %v6755 = vsel %vm2381, %v6754, %v6753
      %v6756 = vperm.slane %v6120, %v2383
      %v6757 = vsel %vm2385, %v6756, %v6755
      %v6758 = vperm.slane %v6123, %v2387
      %v6759 = vsel %vm2389, %v6758, %v6757
      %v6760 = vperm.slane %v6126, %v2391
      %v6761 = vsel %vm2393, %v6760, %v6759
      %v6762 = vperm.slane %v6129, %v2395
      %v6763 = vsel %vm2397, %v6762, %v6761
      %v6764 = vperm.slane %v6132, %v2399
      %v6765 = vsel %vm2401, %v6764, %v6763
      %v6766 = vperm.slane %v6135, %v2403
      %v6767 = vsel %vm2405, %v6766, %v6765
      %v6768 = vperm.slane %v6138, %v2345
      %v6769 = vperm.slane %v6141, %v2347
      %v6770 = vsel %vm2349, %v6769, %v6768
      %v6771 = vperm.slane %v6144, %v2351
      %v6772 = vsel %vm2353, %v6771, %v6770
      %v6773 = vperm.slane %v6147, %v2355
      %v6774 = vsel %vm2357, %v6773, %v6772
      %v6775 = vperm.slane %v6150, %v2359
      %v6776 = vsel %vm2361, %v6775, %v6774
      %v6777 = vperm.slane %v6153, %v2363
      %v6778 = vsel %vm2365, %v6777, %v6776
      %v6779 = vperm.slane %v6156, %v2367
      %v6780 = vsel %vm2369, %v6779, %v6778
      %v6781 = vperm.slane %v6159, %v2371
      %v6782 = vsel %vm2373, %v6781, %v6780
      %v6783 = vperm.slane %v6162, %v2375
      %v6784 = vsel %vm2377, %v6783, %v6782
      %v6785 = vperm.slane %v6165, %v2379
      %v6786 = vsel %vm2381, %v6785, %v6784
      %v6787 = vperm.slane %v6168, %v2383
      %v6788 = vsel %vm2385, %v6787, %v6786
      %v6789 = vperm.slane %v6171, %v2387
      %v6790 = vsel %vm2389, %v6789, %v6788
      %v6791 = vperm.slane %v6174, %v2391
      %v6792 = vsel %vm2393, %v6791, %v6790
      %v6793 = vperm.slane %v6177, %v2395
      %v6794 = vsel %vm2397, %v6793, %v6792
      %v6795 = vperm.slane %v6180, %v2399
      %v6796 = vsel %vm2401, %v6795, %v6794
      %v6797 = vperm.slane %v6183, %v2403
      %v6798 = vsel %vm2405, %v6797, %v6796
      %v6799 = vperm.slane %v6186, %v2345
      %v6800 = vperm.slane %v6189, %v2347
      %v6801 = vsel %vm2349, %v6800, %v6799
      %v6802 = vperm.slane %v6192, %v2351
      %v6803 = vsel %vm2353, %v6802, %v6801
      %v6804 = vperm.slane %v6195, %v2355
      %v6805 = vsel %vm2357, %v6804, %v6803
      %v6806 = vperm.slane %v6198, %v2359
      %v6807 = vsel %vm2361, %v6806, %v6805
      %v6808 = vperm.slane %v6201, %v2363
      %v6809 = vsel %vm2365, %v6808, %v6807
      %v6810 = vperm.slane %v6204, %v2367
      %v6811 = vsel %vm2369, %v6810, %v6809
      %v6812 = vperm.slane %v6207, %v2371
      %v6813 = vsel %vm2373, %v6812, %v6811
      %v6814 = vperm.slane %v6210, %v2375
      %v6815 = vsel %vm2377, %v6814, %v6813
      %v6816 = vperm.slane %v6213, %v2379
      %v6817 = vsel %vm2381, %v6816, %v6815
      %v6818 = vperm.slane %v6216, %v2383
      %v6819 = vsel %vm2385, %v6818, %v6817
      %v6820 = vperm.slane %v6219, %v2387
      %v6821 = vsel %vm2389, %v6820, %v6819
      %v6822 = vperm.slane %v6222, %v2391
      %v6823 = vsel %vm2393, %v6822, %v6821
      %v6824 = vperm.slane %v6225, %v2395
      %v6825 = vsel %vm2397, %v6824, %v6823
      %v6826 = vperm.slane %v6228, %v2399
      %v6827 = vsel %vm2401, %v6826, %v6825
      %v6828 = vperm.slane %v6231, %v2403
      %v6829 = vsel %vm2405, %v6828, %v6827
      %v6830 = vperm.slane %v6234, %v2345
      %v6831 = vperm.slane %v6237, %v2347
      %v6832 = vsel %vm2349, %v6831, %v6830
      %v6833 = vperm.slane %v6240, %v2351
      %v6834 = vsel %vm2353, %v6833, %v6832
      %v6835 = vperm.slane %v6243, %v2355
      %v6836 = vsel %vm2357, %v6835, %v6834
      %v6837 = vperm.slane %v6246, %v2359
      %v6838 = vsel %vm2361, %v6837, %v6836
      %v6839 = vperm.slane %v6249, %v2363
      %v6840 = vsel %vm2365, %v6839, %v6838
      %v6841 = vperm.slane %v6252, %v2367
      %v6842 = vsel %vm2369, %v6841, %v6840
      %v6843 = vperm.slane %v6255, %v2371
      %v6844 = vsel %vm2373, %v6843, %v6842
      %v6845 = vperm.slane %v6258, %v2375
      %v6846 = vsel %vm2377, %v6845, %v6844
      %v6847 = vperm.slane %v6261, %v2379
      %v6848 = vsel %vm2381, %v6847, %v6846
      %v6849 = vperm.slane %v6264, %v2383
      %v6850 = vsel %vm2385, %v6849, %v6848
      %v6851 = vperm.slane %v6267, %v2387
      %v6852 = vsel %vm2389, %v6851, %v6850
      %v6853 = vperm.slane %v6270, %v2391
      %v6854 = vsel %vm2393, %v6853, %v6852
      %v6855 = vperm.slane %v6273, %v2395
      %v6856 = vsel %vm2397, %v6855, %v6854
      %v6857 = vperm.slane %v6276, %v2399
      %v6858 = vsel %vm2401, %v6857, %v6856
      %v6859 = vperm.slane %v6279, %v2403
      %v6860 = vsel %vm2405, %v6859, %v6858
      %v6861 = vperm.slane %v6282, %v2345
      %v6862 = vperm.slane %v6285, %v2347
      %v6863 = vsel %vm2349, %v6862, %v6861
      %v6864 = vperm.slane %v6288, %v2351
      %v6865 = vsel %vm2353, %v6864, %v6863
      %v6866 = vperm.slane %v6291, %v2355
      %v6867 = vsel %vm2357, %v6866, %v6865
      %v6868 = vperm.slane %v6294, %v2359
      %v6869 = vsel %vm2361, %v6868, %v6867
      %v6870 = vperm.slane %v6297, %v2363
      %v6871 = vsel %vm2365, %v6870, %v6869
      %v6872 = vperm.slane %v6300, %v2367
      %v6873 = vsel %vm2369, %v6872, %v6871
      %v6874 = vperm.slane %v6303, %v2371
      %v6875 = vsel %vm2373, %v6874, %v6873
      %v6876 = vperm.slane %v6306, %v2375
      %v6877 = vsel %vm2377, %v6876, %v6875
      %v6878 = vperm.slane %v6309, %v2379
      %v6879 = vsel %vm2381, %v6878, %v6877
      %v6880 = vperm.slane %v6312, %v2383
      %v6881 = vsel %vm2385, %v6880, %v6879
      %v6882 = vperm.slane %v6315, %v2387
      %v6883 = vsel %vm2389, %v6882, %v6881
      %v6884 = vperm.slane %v6318, %v2391
      %v6885 = vsel %vm2393, %v6884, %v6883
      %v6886 = vperm.slane %v6321, %v2395
      %v6887 = vsel %vm2397, %v6886, %v6885
      %v6888 = vperm.slane %v6324, %v2399
      %v6889 = vsel %vm2401, %v6888, %v6887
      %v6890 = vperm.slane %v6327, %v2403
      %v6891 = vsel %vm2405, %v6890, %v6889
      %v6892 = vperm.slane %v6330, %v2345
      %v6893 = vperm.slane %v6333, %v2347
      %v6894 = vsel %vm2349, %v6893, %v6892
      %v6895 = vperm.slane %v6336, %v2351
      %v6896 = vsel %vm2353, %v6895, %v6894
      %v6897 = vperm.slane %v6339, %v2355
      %v6898 = vsel %vm2357, %v6897, %v6896
      %v6899 = vperm.slane %v6342, %v2359
      %v6900 = vsel %vm2361, %v6899, %v6898
      %v6901 = vperm.slane %v6345, %v2363
      %v6902 = vsel %vm2365, %v6901, %v6900
      %v6903 = vperm.slane %v6348, %v2367
      %v6904 = vsel %vm2369, %v6903, %v6902
      %v6905 = vperm.slane %v6351, %v2371
      %v6906 = vsel %vm2373, %v6905, %v6904
      %v6907 = vperm.slane %v6354, %v2375
      %v6908 = vsel %vm2377, %v6907, %v6906
      %v6909 = vperm.slane %v6357, %v2379
      %v6910 = vsel %vm2381, %v6909, %v6908
      %v6911 = vperm.slane %v6360, %v2383
      %v6912 = vsel %vm2385, %v6911, %v6910
      %v6913 = vperm.slane %v6363, %v2387
      %v6914 = vsel %vm2389, %v6913, %v6912
      %v6915 = vperm.slane %v6366, %v2391
      %v6916 = vsel %vm2393, %v6915, %v6914
      %v6917 = vperm.slane %v6369, %v2395
      %v6918 = vsel %vm2397, %v6917, %v6916
      %v6919 = vperm.slane %v6372, %v2399
      %v6920 = vsel %vm2401, %v6919, %v6918
      %v6921 = vperm.slane %v6375, %v2403
      %v6922 = vsel %vm2405, %v6921, %v6920
      %v6923 = vperm.slane %v6378, %v2345
      %v6924 = vperm.slane %v6381, %v2347
      %v6925 = vsel %vm2349, %v6924, %v6923
      %v6926 = vperm.slane %v6384, %v2351
      %v6927 = vsel %vm2353, %v6926, %v6925
      %v6928 = vperm.slane %v6387, %v2355
      %v6929 = vsel %vm2357, %v6928, %v6927
      %v6930 = vperm.slane %v6390, %v2359
      %v6931 = vsel %vm2361, %v6930, %v6929
      %v6932 = vperm.slane %v6393, %v2363
      %v6933 = vsel %vm2365, %v6932, %v6931
      %v6934 = vperm.slane %v6396, %v2367
      %v6935 = vsel %vm2369, %v6934, %v6933
      %v6936 = vperm.slane %v6399, %v2371
      %v6937 = vsel %vm2373, %v6936, %v6935
      %v6938 = vperm.slane %v6402, %v2375
      %v6939 = vsel %vm2377, %v6938, %v6937
      %v6940 = vperm.slane %v6405, %v2379
      %v6941 = vsel %vm2381, %v6940, %v6939
      %v6942 = vperm.slane %v6408, %v2383
      %v6943 = vsel %vm2385, %v6942, %v6941
      %v6944 = vperm.slane %v6411, %v2387
      %v6945 = vsel %vm2389, %v6944, %v6943
      %v6946 = vperm.slane %v6414, %v2391
      %v6947 = vsel %vm2393, %v6946, %v6945
      %v6948 = vperm.slane %v6417, %v2395
      %v6949 = vsel %vm2397, %v6948, %v6947
      %v6950 = vperm.slane %v6420, %v2399
      %v6951 = vsel %vm2401, %v6950, %v6949
      %v6952 = vperm.slane %v6423, %v2403
      %v6953 = vsel %vm2405, %v6952, %v6951
      %v6954 = vperm.slane %v6426, %v2345
      %v6955 = vperm.slane %v6429, %v2347
      %v6956 = vsel %vm2349, %v6955, %v6954
      %v6957 = vperm.slane %v6432, %v2351
      %v6958 = vsel %vm2353, %v6957, %v6956
      %v6959 = vperm.slane %v6435, %v2355
      %v6960 = vsel %vm2357, %v6959, %v6958
      %v6961 = vperm.slane %v6438, %v2359
      %v6962 = vsel %vm2361, %v6961, %v6960
      %v6963 = vperm.slane %v6441, %v2363
      %v6964 = vsel %vm2365, %v6963, %v6962
      %v6965 = vperm.slane %v6444, %v2367
      %v6966 = vsel %vm2369, %v6965, %v6964
      %v6967 = vperm.slane %v6447, %v2371
      %v6968 = vsel %vm2373, %v6967, %v6966
      %v6969 = vperm.slane %v6450, %v2375
      %v6970 = vsel %vm2377, %v6969, %v6968
      %v6971 = vperm.slane %v6453, %v2379
      %v6972 = vsel %vm2381, %v6971, %v6970
      %v6973 = vperm.slane %v6456, %v2383
      %v6974 = vsel %vm2385, %v6973, %v6972
      %v6975 = vperm.slane %v6459, %v2387
      %v6976 = vsel %vm2389, %v6975, %v6974
      %v6977 = vperm.slane %v6462, %v2391
      %v6978 = vsel %vm2393, %v6977, %v6976
      %v6979 = vperm.slane %v6465, %v2395
      %v6980 = vsel %vm2397, %v6979, %v6978
      %v6981 = vperm.slane %v6468, %v2399
      %v6982 = vsel %vm2401, %v6981, %v6980
      %v6983 = vperm.slane %v6471, %v2403
      %v6984 = vsel %vm2405, %v6983, %v6982
      %v6985 = vperm.slane %v6474, %v2345
      %v6986 = vperm.slane %v6477, %v2347
      %v6987 = vsel %vm2349, %v6986, %v6985
      %v6988 = vperm.slane %v6480, %v2351
      %v6989 = vsel %vm2353, %v6988, %v6987
      %v6990 = vperm.slane %v6483, %v2355
      %v6991 = vsel %vm2357, %v6990, %v6989
      %v6992 = vperm.slane %v6486, %v2359
      %v6993 = vsel %vm2361, %v6992, %v6991
      %v6994 = vperm.slane %v6489, %v2363
      %v6995 = vsel %vm2365, %v6994, %v6993
      %v6996 = vperm.slane %v6492, %v2367
      %v6997 = vsel %vm2369, %v6996, %v6995
      %v6998 = vperm.slane %v6495, %v2371
      %v6999 = vsel %vm2373, %v6998, %v6997
      %v7000 = vperm.slane %v6498, %v2375
      %v7001 = vsel %vm2377, %v7000, %v6999
      %v7002 = vperm.slane %v6501, %v2379
      %v7003 = vsel %vm2381, %v7002, %v7001
      %v7004 = vperm.slane %v6504, %v2383
      %v7005 = vsel %vm2385, %v7004, %v7003
      %v7006 = vperm.slane %v6507, %v2387
      %v7007 = vsel %vm2389, %v7006, %v7005
      %v7008 = vperm.slane %v6510, %v2391
      %v7009 = vsel %vm2393, %v7008, %v7007
      %v7010 = vperm.slane %v6513, %v2395
      %v7011 = vsel %vm2397, %v7010, %v7009
      %v7012 = vperm.slane %v6516, %v2399
      %v7013 = vsel %vm2401, %v7012, %v7011
      %v7014 = vperm.slane %v6519, %v2403
      %v7015 = vsel %vm2405, %v7014, %v7013
      %v7016 = vsel %vm2872, %v6612, %v6550
      %v7017 = vsel %vm2874, %v6674, %v7016
      %v7018 = vsel %vm2876, %v6736, %v7017
      %v7019 = vsel %vm2878, %v6798, %v7018
      %v7020 = vsel %vm2880, %v6860, %v7019
      %v7021 = vsel %vm2882, %v6922, %v7020
      %v7022 = vsel %vm2884, %v6984, %v7021
      %v7023 = vsel %vm2872, %v6643, %v6581
      %v7024 = vsel %vm2874, %v6705, %v7023
      %v7025 = vsel %vm2876, %v6767, %v7024
      %v7026 = vsel %vm2878, %v6829, %v7025
      %v7027 = vsel %vm2880, %v6891, %v7026
      %v7028 = vsel %vm2882, %v6953, %v7027
      %v7029 = vsel %vm2884, %v7015, %v7028
      %7032 = vst [vmem:[%s314] sm:$0xff] %v7022
      %7033 = vst [vmem:[%s314 + $0x8] sm:$0xff] %v7029
      %7034 = vmatpush.msra.mxu0 %v346
      %7035 = vmatpush.msra.mxu0 %v345
      %7036 = vmatpush.msra.mxu0 %v344
      %7037 = vmatpush.msra.mxu0 %v343
      %7038 = vmatpush.msra.mxu0 %v342
      %7039 = vmatpush.msra.mxu0 %v341
      %7040 = vmatpush.msra.mxu0 %v340
      %7041 = vmatpush.msra.mxu0 %v339
      %7042 = vmatpush.msra.mxu0 %v338
      %7043 = vmatpush.msra.mxu0 %v337
      %7044 = vmatpush.msra.mxu0 %v336
      %7045 = vmatpush.msra.mxu0 %v335
      %7046 = vmatpush.msra.mxu0 %v334
      %7047 = vmatpush.msra.mxu0 %v333
      %7048 = vmatpush.msra.mxu0 %v332
      %7049 = vmatpush.msra.mxu0 %v331
      %7050 = vmatmul.f32.gmra.mxu0 %v7022
      %v7051 = vpop.f32.mrf.mxu0
      %v7052 = vadd.f32 0.0, %v7051
      %7053 = vdwg.mxu0
      %7054 = vmatpush.msra.mxu0 %v362
      %7055 = vmatpush.msra.mxu0 %v361
      %7056 = vmatpush.msra.mxu0 %v360
      %7057 = vmatpush.msra.mxu0 %v359
      %7058 = vmatpush.msra.mxu0 %v358
      %7059 = vmatpush.msra.mxu0 %v357
      %7060 = vmatpush.msra.mxu0 %v356
      %7061 = vmatpush.msra.mxu0 %v355
      %7062 = vmatpush.msra.mxu0 %v354
      %7063 = vmatpush.msra.mxu0 %v353
      %7064 = vmatpush.msra.mxu0 %v352
      %7065 = vmatpush.msra.mxu0 %v351
      %7066 = vmatpush.msra.mxu0 %v350
      %7067 = vmatpush.msra.mxu0 %v349
      %7068 = vmatpush.msra.mxu0 %v348
      %7069 = vmatpush.msra.mxu0 %v347
      %7070 = vmatmul.f32.gmra.mxu0 %v7029
      %v7071 = vpop.f32.mrf.mxu0
      %v7072 = vadd.f32 %v7052, %v7071
      %7073 = vdwg.mxu0
      %7074 = vst.msk [vmem:[%s329] sm:$0xff] %vm380, %v7072
      %7075 = vxpose.xlu0.b32.start [1/16] %v7022, 128
      %7076 = vxpose.xlu0.b32.cont [2/16] 0.0, 128
      %7077 = vxpose.xlu0.b32.cont [3/16] 0.0, 128
      %7078 = vxpose.xlu0.b32.cont [4/16] 0.0, 128
      %7079 = vxpose.xlu0.b32.cont [5/16] 0.0, 128
      %7080 = vxpose.xlu0.b32.cont [6/16] 0.0, 128
      %7081 = vxpose.xlu0.b32.cont [7/16] 0.0, 128
      %7082 = vxpose.xlu0.b32.cont [8/16] 0.0, 128
      %7083 = vxpose.xlu0.b32.cont [9/16] 0.0, 128
      %7084 = vxpose.xlu0.b32.cont [10/16] 0.0, 128
      %7085 = vxpose.xlu0.b32.cont [11/16] 0.0, 128
      %7086 = vxpose.xlu0.b32.cont [12/16] 0.0, 128
      %7087 = vxpose.xlu0.b32.cont [13/16] 0.0, 128
      %7088 = vxpose.xlu0.b32.cont [14/16] 0.0, 128
      %7089 = vxpose.xlu0.b32.cont [15/16] 0.0, 128
      %7090 = vxpose.xlu0.b32.end [16/16] 0.0, 128
      %v7091 = vpop.trf.xlu0
      %v7092 = vpop.trf.xlu0
      %v7093 = vpop.trf.xlu0
      %v7094 = vpop.trf.xlu0
      %v7095 = vpop.trf.xlu0
      %v7096 = vpop.trf.xlu0
      %v7097 = vpop.trf.xlu0
      %v7098 = vpop.trf.xlu0
      %v7099 = vpop.trf.xlu0
      %v7100 = vpop.trf.xlu0
      %v7101 = vpop.trf.xlu0
      %v7102 = vpop.trf.xlu0
      %v7103 = vpop.trf.xlu0
      %v7104 = vpop.trf.xlu0
      %v7105 = vpop.trf.xlu0
      %v7106 = vpop.trf.xlu0
      %7107 = vxpose.xlu0.b32.start [1/16] %v7029, 128
      %7108 = vxpose.xlu0.b32.cont [2/16] 0.0, 128
      %7109 = vxpose.xlu0.b32.cont [3/16] 0.0, 128
      %7110 = vxpose.xlu0.b32.cont [4/16] 0.0, 128
      %7111 = vxpose.xlu0.b32.cont [5/16] 0.0, 128
      %7112 = vxpose.xlu0.b32.cont [6/16] 0.0, 128
      %7113 = vxpose.xlu0.b32.cont [7/16] 0.0, 128
      %7114 = vxpose.xlu0.b32.cont [8/16] 0.0, 128
      %7115 = vxpose.xlu0.b32.cont [9/16] 0.0, 128
      %7116 = vxpose.xlu0.b32.cont [10/16] 0.0, 128
      %7117 = vxpose.xlu0.b32.cont [11/16] 0.0, 128
      %7118 = vxpose.xlu0.b32.cont [12/16] 0.0, 128
      %7119 = vxpose.xlu0.b32.cont [13/16] 0.0, 128
      %7120 = vxpose.xlu0.b32.cont [14/16] 0.0, 128
      %7121 = vxpose.xlu0.b32.cont [15/16] 0.0, 128
      %7122 = vxpose.xlu0.b32.end [16/16] 0.0, 128
      %v7123 = vpop.trf.xlu0
      %v7124 = vpop.trf.xlu0
      %v7125 = vpop.trf.xlu0
      %v7126 = vpop.trf.xlu0
      %v7127 = vpop.trf.xlu0
      %v7128 = vpop.trf.xlu0
      %v7129 = vpop.trf.xlu0
      %v7130 = vpop.trf.xlu0
      %v7131 = vpop.trf.xlu0
      %v7132 = vpop.trf.xlu0
      %v7133 = vpop.trf.xlu0
      %v7134 = vpop.trf.xlu0
      %v7135 = vpop.trf.xlu0
      %v7136 = vpop.trf.xlu0
      %v7137 = vpop.trf.xlu0
      %v7138 = vpop.trf.xlu0
      %v7171 = vrot.slane %v331, 1
      %v7172 = vrot.slane %v331, 2
      %v7173 = vrot.slane %v331, 3
      %v7174 = vrot.slane %v331, 4
      %v7175 = vrot.slane %v331, 5
      %v7176 = vrot.slane %v331, 6
      %v7177 = vrot.slane %v331, 7
      %v7178 = vrot.slane %v332, 1
      %v7179 = vrot.slane %v332, 2
      %v7180 = vrot.slane %v332, 3
      %v7181 = vrot.slane %v332, 4
      %v7182 = vrot.slane %v332, 5
      %v7183 = vrot.slane %v332, 6
      %v7184 = vrot.slane %v332, 7
      %v7185 = vrot.slane %v333, 1
      %v7186 = vrot.slane %v333, 2
      %v7187 = vrot.slane %v333, 3
      %v7188 = vrot.slane %v333, 4
      %v7189 = vrot.slane %v333, 5
      %v7190 = vrot.slane %v333, 6
      %v7191 = vrot.slane %v333, 7
      %v7192 = vrot.slane %v334, 1
      %v7193 = vrot.slane %v334, 2
      %v7194 = vrot.slane %v334, 3
      %v7195 = vrot.slane %v334, 4
      %v7196 = vrot.slane %v334, 5
      %v7197 = vrot.slane %v334, 6
      %v7198 = vrot.slane %v334, 7
      %v7199 = vrot.slane %v335, 1
      %v7200 = vrot.slane %v335, 2
      %v7201 = vrot.slane %v335, 3
      %v7202 = vrot.slane %v335, 4
      %v7203 = vrot.slane %v335, 5
      %v7204 = vrot.slane %v335, 6
      %v7205 = vrot.slane %v335, 7
      %v7206 = vrot.slane %v336, 1
      %v7207 = vrot.slane %v336, 2
      %v7208 = vrot.slane %v336, 3
      %v7209 = vrot.slane %v336, 4
      %v7210 = vrot.slane %v336, 5
      %v7211 = vrot.slane %v336, 6
      %v7212 = vrot.slane %v336, 7
      %v7213 = vrot.slane %v337, 1
      %v7214 = vrot.slane %v337, 2
      %v7215 = vrot.slane %v337, 3
      %v7216 = vrot.slane %v337, 4
      %v7217 = vrot.slane %v337, 5
      %v7218 = vrot.slane %v337, 6
      %v7219 = vrot.slane %v337, 7
      %v7220 = vrot.slane %v338, 1
      %v7221 = vrot.slane %v338, 2
      %v7222 = vrot.slane %v338, 3
      %v7223 = vrot.slane %v338, 4
      %v7224 = vrot.slane %v338, 5
      %v7225 = vrot.slane %v338, 6
      %v7226 = vrot.slane %v338, 7
      %v7227 = vrot.slane %v339, 1
      %v7228 = vrot.slane %v339, 2
      %v7229 = vrot.slane %v339, 3
      %v7230 = vrot.slane %v339, 4
      %v7231 = vrot.slane %v339, 5
      %v7232 = vrot.slane %v339, 6
      %v7233 = vrot.slane %v339, 7
      %v7234 = vrot.slane %v340, 1
      %v7235 = vrot.slane %v340, 2
      %v7236 = vrot.slane %v340, 3
      %v7237 = vrot.slane %v340, 4
      %v7238 = vrot.slane %v340, 5
      %v7239 = vrot.slane %v340, 6
      %v7240 = vrot.slane %v340, 7
      %v7241 = vrot.slane %v341, 1
      %v7242 = vrot.slane %v341, 2
      %v7243 = vrot.slane %v341, 3
      %v7244 = vrot.slane %v341, 4
      %v7245 = vrot.slane %v341, 5
      %v7246 = vrot.slane %v341, 6
      %v7247 = vrot.slane %v341, 7
      %v7248 = vrot.slane %v342, 1
      %v7249 = vrot.slane %v342, 2
      %v7250 = vrot.slane %v342, 3
      %v7251 = vrot.slane %v342, 4
      %v7252 = vrot.slane %v342, 5
      %v7253 = vrot.slane %v342, 6
      %v7254 = vrot.slane %v342, 7
      %v7255 = vrot.slane %v343, 1
      %v7256 = vrot.slane %v343, 2
      %v7257 = vrot.slane %v343, 3
      %v7258 = vrot.slane %v343, 4
      %v7259 = vrot.slane %v343, 5
      %v7260 = vrot.slane %v343, 6
      %v7261 = vrot.slane %v343, 7
      %v7262 = vrot.slane %v344, 1
      %v7263 = vrot.slane %v344, 2
      %v7264 = vrot.slane %v344, 3
      %v7265 = vrot.slane %v344, 4
      %v7266 = vrot.slane %v344, 5
      %v7267 = vrot.slane %v344, 6
      %v7268 = vrot.slane %v344, 7
      %v7269 = vrot.slane %v345, 1
      %v7270 = vrot.slane %v345, 2
      %v7271 = vrot.slane %v345, 3
      %v7272 = vrot.slane %v345, 4
      %v7273 = vrot.slane %v345, 5
      %v7274 = vrot.slane %v345, 6
      %v7275 = vrot.slane %v345, 7
      %v7276 = vrot.slane %v346, 1
      %v7277 = vrot.slane %v346, 2
      %v7278 = vrot.slane %v346, 3
      %v7279 = vrot.slane %v346, 4
      %v7280 = vrot.slane %v346, 5
      %v7281 = vrot.slane %v346, 6
      %v7282 = vrot.slane %v346, 7
      %v7283 = vrot.slane %v347, 1
      %v7284 = vrot.slane %v347, 2
      %v7285 = vrot.slane %v347, 3
      %v7286 = vrot.slane %v347, 4
      %v7287 = vrot.slane %v347, 5
      %v7288 = vrot.slane %v347, 6
      %v7289 = vrot.slane %v347, 7
      %v7290 = vrot.slane %v348, 1
      %v7291 = vrot.slane %v348, 2
      %v7292 = vrot.slane %v348, 3
      %v7293 = vrot.slane %v348, 4
      %v7294 = vrot.slane %v348, 5
      %v7295 = vrot.slane %v348, 6
      %v7296 = vrot.slane %v348, 7
      %v7297 = vrot.slane %v349, 1
      %v7298 = vrot.slane %v349, 2
      %v7299 = vrot.slane %v349, 3
      %v7300 = vrot.slane %v349, 4
      %v7301 = vrot.slane %v349, 5
      %v7302 = vrot.slane %v349, 6
      %v7303 = vrot.slane %v349, 7
      %v7304 = vrot.slane %v350, 1
      %v7305 = vrot.slane %v350, 2
      %v7306 = vrot.slane %v350, 3
      %v7307 = vrot.slane %v350, 4
      %v7308 = vrot.slane %v350, 5
      %v7309 = vrot.slane %v350, 6
      %v7310 = vrot.slane %v350, 7
      %v7311 = vrot.slane %v351, 1
      %v7312 = vrot.slane %v351, 2
      %v7313 = vrot.slane %v351, 3
      %v7314 = vrot.slane %v351, 4
      %v7315 = vrot.slane %v351, 5
      %v7316 = vrot.slane %v351, 6
      %v7317 = vrot.slane %v351, 7
      %v7318 = vrot.slane %v352, 1
      %v7319 = vrot.slane %v352, 2
      %v7320 = vrot.slane %v352, 3
      %v7321 = vrot.slane %v352, 4
      %v7322 = vrot.slane %v352, 5
      %v7323 = vrot.slane %v352, 6
      %v7324 = vrot.slane %v352, 7
      %v7325 = vrot.slane %v353, 1
      %v7326 = vrot.slane %v353, 2
      %v7327 = vrot.slane %v353, 3
      %v7328 = vrot.slane %v353, 4
      %v7329 = vrot.slane %v353, 5
      %v7330 = vrot.slane %v353, 6
      %v7331 = vrot.slane %v353, 7
      %v7332 = vrot.slane %v354, 1
      %v7333 = vrot.slane %v354, 2
      %v7334 = vrot.slane %v354, 3
      %v7335 = vrot.slane %v354, 4
      %v7336 = vrot.slane %v354, 5
      %v7337 = vrot.slane %v354, 6
      %v7338 = vrot.slane %v354, 7
      %v7339 = vrot.slane %v355, 1
      %v7340 = vrot.slane %v355, 2
      %v7341 = vrot.slane %v355, 3
      %v7342 = vrot.slane %v355, 4
      %v7343 = vrot.slane %v355, 5
      %v7344 = vrot.slane %v355, 6
      %v7345 = vrot.slane %v355, 7
      %v7346 = vrot.slane %v356, 1
      %v7347 = vrot.slane %v356, 2
      %v7348 = vrot.slane %v356, 3
      %v7349 = vrot.slane %v356, 4
      %v7350 = vrot.slane %v356, 5
      %v7351 = vrot.slane %v356, 6
      %v7352 = vrot.slane %v356, 7
      %v7353 = vrot.slane %v357, 1
      %v7354 = vrot.slane %v357, 2
      %v7355 = vrot.slane %v357, 3
      %v7356 = vrot.slane %v357, 4
      %v7357 = vrot.slane %v357, 5
      %v7358 = vrot.slane %v357, 6
      %v7359 = vrot.slane %v357, 7
      %v7360 = vrot.slane %v358, 1
      %v7361 = vrot.slane %v358, 2
      %v7362 = vrot.slane %v358, 3
      %v7363 = vrot.slane %v358, 4
      %v7364 = vrot.slane %v358, 5
      %v7365 = vrot.slane %v358, 6
      %v7366 = vrot.slane %v358, 7
      %v7367 = vrot.slane %v359, 1
      %v7368 = vrot.slane %v359, 2
      %v7369 = vrot.slane %v359, 3
      %v7370 = vrot.slane %v359, 4
      %v7371 = vrot.slane %v359, 5
      %v7372 = vrot.slane %v359, 6
      %v7373 = vrot.slane %v359, 7
      %v7374 = vrot.slane %v360, 1
      %v7375 = vrot.slane %v360, 2
      %v7376 = vrot.slane %v360, 3
      %v7377 = vrot.slane %v360, 4
      %v7378 = vrot.slane %v360, 5
      %v7379 = vrot.slane %v360, 6
      %v7380 = vrot.slane %v360, 7
      %v7381 = vrot.slane %v361, 1
      %v7382 = vrot.slane %v361, 2
      %v7383 = vrot.slane %v361, 3
      %v7384 = vrot.slane %v361, 4
      %v7385 = vrot.slane %v361, 5
      %v7386 = vrot.slane %v361, 6
      %v7387 = vrot.slane %v361, 7
      %v7388 = vrot.slane %v362, 1
      %v7389 = vrot.slane %v362, 2
      %v7390 = vrot.slane %v362, 3
      %v7391 = vrot.slane %v362, 4
      %v7392 = vrot.slane %v362, 5
      %v7393 = vrot.slane %v362, 6
      %v7394 = vrot.slane %v362, 7
      %v7395 = vperm.slane %v7091, 0
      %v7396 = vlaneseq
      %v7397 = vshrl.u32 %v7396, 7
      %7399 = vset.pattern.permute.xlu0 %v7397
      %7400 = vperm.xlu0 %7399, %v7395
      %v7401 = vpop.permute.xlu0 %7400
      %v7402 = vperm.slane %v7091, 1
      %v7403 = vlaneseq
      %v7404 = vshrl.u32 %v7403, 7
      %7406 = vset.pattern.permute.xlu0 %v7404
      %7407 = vperm.xlu0 %7406, %v7402
      %v7408 = vpop.permute.xlu0 %7407
      %v7409 = vperm.slane %v7091, 2
      %v7410 = vlaneseq
      %v7411 = vshrl.u32 %v7410, 7
      %7413 = vset.pattern.permute.xlu0 %v7411
      %7414 = vperm.xlu0 %7413, %v7409
      %v7415 = vpop.permute.xlu0 %7414
      %v7416 = vperm.slane %v7091, 3
      %v7417 = vlaneseq
      %v7418 = vshrl.u32 %v7417, 7
      %7420 = vset.pattern.permute.xlu0 %v7418
      %7421 = vperm.xlu0 %7420, %v7416
      %v7422 = vpop.permute.xlu0 %7421
      %v7423 = vperm.slane %v7091, 4
      %v7424 = vlaneseq
      %v7425 = vshrl.u32 %v7424, 7
      %7427 = vset.pattern.permute.xlu0 %v7425
      %7428 = vperm.xlu0 %7427, %v7423
      %v7429 = vpop.permute.xlu0 %7428
      %v7430 = vperm.slane %v7091, 5
      %v7431 = vlaneseq
      %v7432 = vshrl.u32 %v7431, 7
      %7434 = vset.pattern.permute.xlu0 %v7432
      %7435 = vperm.xlu0 %7434, %v7430
      %v7436 = vpop.permute.xlu0 %7435
      %v7437 = vperm.slane %v7091, 6
      %v7438 = vlaneseq
      %v7439 = vshrl.u32 %v7438, 7
      %7441 = vset.pattern.permute.xlu0 %v7439
      %7442 = vperm.xlu0 %7441, %v7437
      %v7443 = vpop.permute.xlu0 %7442
      %v7444 = vperm.slane %v7091, 7
      %v7445 = vlaneseq
      %v7446 = vshrl.u32 %v7445, 7
      %7448 = vset.pattern.permute.xlu0 %v7446
      %7449 = vperm.xlu0 %7448, %v7444
      %v7450 = vpop.permute.xlu0 %7449
      %v7451 = vperm.slane %v7092, 0
      %v7452 = vlaneseq
      %v7453 = vshrl.u32 %v7452, 7
      %7455 = vset.pattern.permute.xlu0 %v7453
      %7456 = vperm.xlu0 %7455, %v7451
      %v7457 = vpop.permute.xlu0 %7456
      %v7458 = vperm.slane %v7092, 1
      %v7459 = vlaneseq
      %v7460 = vshrl.u32 %v7459, 7
      %7462 = vset.pattern.permute.xlu0 %v7460
      %7463 = vperm.xlu0 %7462, %v7458
      %v7464 = vpop.permute.xlu0 %7463
      %v7465 = vperm.slane %v7092, 2
      %v7466 = vlaneseq
      %v7467 = vshrl.u32 %v7466, 7
      %7469 = vset.pattern.permute.xlu0 %v7467
      %7470 = vperm.xlu0 %7469, %v7465
      %v7471 = vpop.permute.xlu0 %7470
      %v7472 = vperm.slane %v7092, 3
      %v7473 = vlaneseq
      %v7474 = vshrl.u32 %v7473, 7
      %7476 = vset.pattern.permute.xlu0 %v7474
      %7477 = vperm.xlu0 %7476, %v7472
      %v7478 = vpop.permute.xlu0 %7477
      %v7479 = vperm.slane %v7092, 4
      %v7480 = vlaneseq
      %v7481 = vshrl.u32 %v7480, 7
      %7483 = vset.pattern.permute.xlu0 %v7481
      %7484 = vperm.xlu0 %7483, %v7479
      %v7485 = vpop.permute.xlu0 %7484
      %v7486 = vperm.slane %v7092, 5
      %v7487 = vlaneseq
      %v7488 = vshrl.u32 %v7487, 7
      %7490 = vset.pattern.permute.xlu0 %v7488
      %7491 = vperm.xlu0 %7490, %v7486
      %v7492 = vpop.permute.xlu0 %7491
      %v7493 = vperm.slane %v7092, 6
      %v7494 = vlaneseq
      %v7495 = vshrl.u32 %v7494, 7
      %7497 = vset.pattern.permute.xlu0 %v7495
      %7498 = vperm.xlu0 %7497, %v7493
      %v7499 = vpop.permute.xlu0 %7498
      %v7500 = vperm.slane %v7092, 7
      %v7501 = vlaneseq
      %v7502 = vshrl.u32 %v7501, 7
      %7504 = vset.pattern.permute.xlu0 %v7502
      %7505 = vperm.xlu0 %7504, %v7500
      %v7506 = vpop.permute.xlu0 %7505
      %v7507 = vperm.slane %v7093, 0
      %v7508 = vlaneseq
      %v7509 = vshrl.u32 %v7508, 7
      %7511 = vset.pattern.permute.xlu0 %v7509
      %7512 = vperm.xlu0 %7511, %v7507
      %v7513 = vpop.permute.xlu0 %7512
      %v7514 = vperm.slane %v7093, 1
      %v7515 = vlaneseq
      %v7516 = vshrl.u32 %v7515, 7
      %7518 = vset.pattern.permute.xlu0 %v7516
      %7519 = vperm.xlu0 %7518, %v7514
      %v7520 = vpop.permute.xlu0 %7519
      %v7521 = vperm.slane %v7093, 2
      %v7522 = vlaneseq
      %v7523 = vshrl.u32 %v7522, 7
      %7525 = vset.pattern.permute.xlu0 %v7523
      %7526 = vperm.xlu0 %7525, %v7521
      %v7527 = vpop.permute.xlu0 %7526
      %v7528 = vperm.slane %v7093, 3
      %v7529 = vlaneseq
      %v7530 = vshrl.u32 %v7529, 7
      %7532 = vset.pattern.permute.xlu0 %v7530
      %7533 = vperm.xlu0 %7532, %v7528
      %v7534 = vpop.permute.xlu0 %7533
      %v7535 = vperm.slane %v7093, 4
      %v7536 = vlaneseq
      %v7537 = vshrl.u32 %v7536, 7
      %7539 = vset.pattern.permute.xlu0 %v7537
      %7540 = vperm.xlu0 %7539, %v7535
      %v7541 = vpop.permute.xlu0 %7540
      %v7542 = vperm.slane %v7093, 5
      %v7543 = vlaneseq
      %v7544 = vshrl.u32 %v7543, 7
      %7546 = vset.pattern.permute.xlu0 %v7544
      %7547 = vperm.xlu0 %7546, %v7542
      %v7548 = vpop.permute.xlu0 %7547
      %v7549 = vperm.slane %v7093, 6
      %v7550 = vlaneseq
      %v7551 = vshrl.u32 %v7550, 7
      %7553 = vset.pattern.permute.xlu0 %v7551
      %7554 = vperm.xlu0 %7553, %v7549
      %v7555 = vpop.permute.xlu0 %7554
      %v7556 = vperm.slane %v7093, 7
      %v7557 = vlaneseq
      %v7558 = vshrl.u32 %v7557, 7
      %7560 = vset.pattern.permute.xlu0 %v7558
      %7561 = vperm.xlu0 %7560, %v7556
      %v7562 = vpop.permute.xlu0 %7561
      %v7563 = vperm.slane %v7094, 0
      %v7564 = vlaneseq
      %v7565 = vshrl.u32 %v7564, 7
      %7567 = vset.pattern.permute.xlu0 %v7565
      %7568 = vperm.xlu0 %7567, %v7563
      %v7569 = vpop.permute.xlu0 %7568
      %v7570 = vperm.slane %v7094, 1
      %v7571 = vlaneseq
      %v7572 = vshrl.u32 %v7571, 7
      %7574 = vset.pattern.permute.xlu0 %v7572
      %7575 = vperm.xlu0 %7574, %v7570
      %v7576 = vpop.permute.xlu0 %7575
      %v7577 = vperm.slane %v7094, 2
      %v7578 = vlaneseq
      %v7579 = vshrl.u32 %v7578, 7
      %7581 = vset.pattern.permute.xlu0 %v7579
      %7582 = vperm.xlu0 %7581, %v7577
      %v7583 = vpop.permute.xlu0 %7582
      %v7584 = vperm.slane %v7094, 3
      %v7585 = vlaneseq
      %v7586 = vshrl.u32 %v7585, 7
      %7588 = vset.pattern.permute.xlu0 %v7586
      %7589 = vperm.xlu0 %7588, %v7584
      %v7590 = vpop.permute.xlu0 %7589
      %v7591 = vperm.slane %v7094, 4
      %v7592 = vlaneseq
      %v7593 = vshrl.u32 %v7592, 7
      %7595 = vset.pattern.permute.xlu0 %v7593
      %7596 = vperm.xlu0 %7595, %v7591
      %v7597 = vpop.permute.xlu0 %7596
      %v7598 = vperm.slane %v7094, 5
      %v7599 = vlaneseq
      %v7600 = vshrl.u32 %v7599, 7
      %7602 = vset.pattern.permute.xlu0 %v7600
      %7603 = vperm.xlu0 %7602, %v7598
      %v7604 = vpop.permute.xlu0 %7603
      %v7605 = vperm.slane %v7094, 6
      %v7606 = vlaneseq
      %v7607 = vshrl.u32 %v7606, 7
      %7609 = vset.pattern.permute.xlu0 %v7607
      %7610 = vperm.xlu0 %7609, %v7605
      %v7611 = vpop.permute.xlu0 %7610
      %v7612 = vperm.slane %v7094, 7
      %v7613 = vlaneseq
      %v7614 = vshrl.u32 %v7613, 7
      %7616 = vset.pattern.permute.xlu0 %v7614
      %7617 = vperm.xlu0 %7616, %v7612
      %v7618 = vpop.permute.xlu0 %7617
      %v7619 = vperm.slane %v7095, 0
      %v7620 = vlaneseq
      %v7621 = vshrl.u32 %v7620, 7
      %7623 = vset.pattern.permute.xlu0 %v7621
      %7624 = vperm.xlu0 %7623, %v7619
      %v7625 = vpop.permute.xlu0 %7624
      %v7626 = vperm.slane %v7095, 1
      %v7627 = vlaneseq
      %v7628 = vshrl.u32 %v7627, 7
      %7630 = vset.pattern.permute.xlu0 %v7628
      %7631 = vperm.xlu0 %7630, %v7626
      %v7632 = vpop.permute.xlu0 %7631
      %v7633 = vperm.slane %v7095, 2
      %v7634 = vlaneseq
      %v7635 = vshrl.u32 %v7634, 7
      %7637 = vset.pattern.permute.xlu0 %v7635
      %7638 = vperm.xlu0 %7637, %v7633
      %v7639 = vpop.permute.xlu0 %7638
      %v7640 = vperm.slane %v7095, 3
      %v7641 = vlaneseq
      %v7642 = vshrl.u32 %v7641, 7
      %7644 = vset.pattern.permute.xlu0 %v7642
      %7645 = vperm.xlu0 %7644, %v7640
      %v7646 = vpop.permute.xlu0 %7645
      %v7647 = vperm.slane %v7095, 4
      %v7648 = vlaneseq
      %v7649 = vshrl.u32 %v7648, 7
      %7651 = vset.pattern.permute.xlu0 %v7649
      %7652 = vperm.xlu0 %7651, %v7647
      %v7653 = vpop.permute.xlu0 %7652
      %v7654 = vperm.slane %v7095, 5
      %v7655 = vlaneseq
      %v7656 = vshrl.u32 %v7655, 7
      %7658 = vset.pattern.permute.xlu0 %v7656
      %7659 = vperm.xlu0 %7658, %v7654
      %v7660 = vpop.permute.xlu0 %7659
      %v7661 = vperm.slane %v7095, 6
      %v7662 = vlaneseq
      %v7663 = vshrl.u32 %v7662, 7
      %7665 = vset.pattern.permute.xlu0 %v7663
      %7666 = vperm.xlu0 %7665, %v7661
      %v7667 = vpop.permute.xlu0 %7666
      %v7668 = vperm.slane %v7095, 7
      %v7669 = vlaneseq
      %v7670 = vshrl.u32 %v7669, 7
      %7672 = vset.pattern.permute.xlu0 %v7670
      %7673 = vperm.xlu0 %7672, %v7668
      %v7674 = vpop.permute.xlu0 %7673
      %v7675 = vperm.slane %v7096, 0
      %v7676 = vlaneseq
      %v7677 = vshrl.u32 %v7676, 7
      %7679 = vset.pattern.permute.xlu0 %v7677
      %7680 = vperm.xlu0 %7679, %v7675
      %v7681 = vpop.permute.xlu0 %7680
      %v7682 = vperm.slane %v7096, 1
      %v7683 = vlaneseq
      %v7684 = vshrl.u32 %v7683, 7
      %7686 = vset.pattern.permute.xlu0 %v7684
      %7687 = vperm.xlu0 %7686, %v7682
      %v7688 = vpop.permute.xlu0 %7687
      %v7689 = vperm.slane %v7096, 2
      %v7690 = vlaneseq
      %v7691 = vshrl.u32 %v7690, 7
      %7693 = vset.pattern.permute.xlu0 %v7691
      %7694 = vperm.xlu0 %7693, %v7689
      %v7695 = vpop.permute.xlu0 %7694
      %v7696 = vperm.slane %v7096, 3
      %v7697 = vlaneseq
      %v7698 = vshrl.u32 %v7697, 7
      %7700 = vset.pattern.permute.xlu0 %v7698
      %7701 = vperm.xlu0 %7700, %v7696
      %v7702 = vpop.permute.xlu0 %7701
      %v7703 = vperm.slane %v7096, 4
      %v7704 = vlaneseq
      %v7705 = vshrl.u32 %v7704, 7
      %7707 = vset.pattern.permute.xlu0 %v7705
      %7708 = vperm.xlu0 %7707, %v7703
      %v7709 = vpop.permute.xlu0 %7708
      %v7710 = vperm.slane %v7096, 5
      %v7711 = vlaneseq
      %v7712 = vshrl.u32 %v7711, 7
      %7714 = vset.pattern.permute.xlu0 %v7712
      %7715 = vperm.xlu0 %7714, %v7710
      %v7716 = vpop.permute.xlu0 %7715
      %v7717 = vperm.slane %v7096, 6
      %v7718 = vlaneseq
      %v7719 = vshrl.u32 %v7718, 7
      %7721 = vset.pattern.permute.xlu0 %v7719
      %7722 = vperm.xlu0 %7721, %v7717
      %v7723 = vpop.permute.xlu0 %7722
      %v7724 = vperm.slane %v7096, 7
      %v7725 = vlaneseq
      %v7726 = vshrl.u32 %v7725, 7
      %7728 = vset.pattern.permute.xlu0 %v7726
      %7729 = vperm.xlu0 %7728, %v7724
      %v7730 = vpop.permute.xlu0 %7729
      %v7731 = vperm.slane %v7097, 0
      %v7732 = vlaneseq
      %v7733 = vshrl.u32 %v7732, 7
      %7735 = vset.pattern.permute.xlu0 %v7733
      %7736 = vperm.xlu0 %7735, %v7731
      %v7737 = vpop.permute.xlu0 %7736
      %v7738 = vperm.slane %v7097, 1
      %v7739 = vlaneseq
      %v7740 = vshrl.u32 %v7739, 7
      %7742 = vset.pattern.permute.xlu0 %v7740
      %7743 = vperm.xlu0 %7742, %v7738
      %v7744 = vpop.permute.xlu0 %7743
      %v7745 = vperm.slane %v7097, 2
      %v7746 = vlaneseq
      %v7747 = vshrl.u32 %v7746, 7
      %7749 = vset.pattern.permute.xlu0 %v7747
      %7750 = vperm.xlu0 %7749, %v7745
      %v7751 = vpop.permute.xlu0 %7750
      %v7752 = vperm.slane %v7097, 3
      %v7753 = vlaneseq
      %v7754 = vshrl.u32 %v7753, 7
      %7756 = vset.pattern.permute.xlu0 %v7754
      %7757 = vperm.xlu0 %7756, %v7752
      %v7758 = vpop.permute.xlu0 %7757
      %v7759 = vperm.slane %v7097, 4
      %v7760 = vlaneseq
      %v7761 = vshrl.u32 %v7760, 7
      %7763 = vset.pattern.permute.xlu0 %v7761
      %7764 = vperm.xlu0 %7763, %v7759
      %v7765 = vpop.permute.xlu0 %7764
      %v7766 = vperm.slane %v7097, 5
      %v7767 = vlaneseq
      %v7768 = vshrl.u32 %v7767, 7
      %7770 = vset.pattern.permute.xlu0 %v7768
      %7771 = vperm.xlu0 %7770, %v7766
      %v7772 = vpop.permute.xlu0 %7771
      %v7773 = vperm.slane %v7097, 6
      %v7774 = vlaneseq
      %v7775 = vshrl.u32 %v7774, 7
      %7777 = vset.pattern.permute.xlu0 %v7775
      %7778 = vperm.xlu0 %7777, %v7773
      %v7779 = vpop.permute.xlu0 %7778
      %v7780 = vperm.slane %v7097, 7
      %v7781 = vlaneseq
      %v7782 = vshrl.u32 %v7781, 7
      %7784 = vset.pattern.permute.xlu0 %v7782
      %7785 = vperm.xlu0 %7784, %v7780
      %v7786 = vpop.permute.xlu0 %7785
      %v7787 = vperm.slane %v7098, 0
      %v7788 = vlaneseq
      %v7789 = vshrl.u32 %v7788, 7
      %7791 = vset.pattern.permute.xlu0 %v7789
      %7792 = vperm.xlu0 %7791, %v7787
      %v7793 = vpop.permute.xlu0 %7792
      %v7794 = vperm.slane %v7098, 1
      %v7795 = vlaneseq
      %v7796 = vshrl.u32 %v7795, 7
      %7798 = vset.pattern.permute.xlu0 %v7796
      %7799 = vperm.xlu0 %7798, %v7794
      %v7800 = vpop.permute.xlu0 %7799
      %v7801 = vperm.slane %v7098, 2
      %v7802 = vlaneseq
      %v7803 = vshrl.u32 %v7802, 7
      %7805 = vset.pattern.permute.xlu0 %v7803
      %7806 = vperm.xlu0 %7805, %v7801
      %v7807 = vpop.permute.xlu0 %7806
      %v7808 = vperm.slane %v7098, 3
      %v7809 = vlaneseq
      %v7810 = vshrl.u32 %v7809, 7
      %7812 = vset.pattern.permute.xlu0 %v7810
      %7813 = vperm.xlu0 %7812, %v7808
      %v7814 = vpop.permute.xlu0 %7813
      %v7815 = vperm.slane %v7098, 4
      %v7816 = vlaneseq
      %v7817 = vshrl.u32 %v7816, 7
      %7819 = vset.pattern.permute.xlu0 %v7817
      %7820 = vperm.xlu0 %7819, %v7815
      %v7821 = vpop.permute.xlu0 %7820
      %v7822 = vperm.slane %v7098, 5
      %v7823 = vlaneseq
      %v7824 = vshrl.u32 %v7823, 7
      %7826 = vset.pattern.permute.xlu0 %v7824
      %7827 = vperm.xlu0 %7826, %v7822
      %v7828 = vpop.permute.xlu0 %7827
      %v7829 = vperm.slane %v7098, 6
      %v7830 = vlaneseq
      %v7831 = vshrl.u32 %v7830, 7
      %7833 = vset.pattern.permute.xlu0 %v7831
      %7834 = vperm.xlu0 %7833, %v7829
      %v7835 = vpop.permute.xlu0 %7834
      %v7836 = vperm.slane %v7098, 7
      %v7837 = vlaneseq
      %v7838 = vshrl.u32 %v7837, 7
      %7840 = vset.pattern.permute.xlu0 %v7838
      %7841 = vperm.xlu0 %7840, %v7836
      %v7842 = vpop.permute.xlu0 %7841
      %v7843 = vperm.slane %v7099, 0
      %v7844 = vlaneseq
      %v7845 = vshrl.u32 %v7844, 7
      %7847 = vset.pattern.permute.xlu0 %v7845
      %7848 = vperm.xlu0 %7847, %v7843
      %v7849 = vpop.permute.xlu0 %7848
      %v7850 = vperm.slane %v7099, 1
      %v7851 = vlaneseq
      %v7852 = vshrl.u32 %v7851, 7
      %7854 = vset.pattern.permute.xlu0 %v7852
      %7855 = vperm.xlu0 %7854, %v7850
      %v7856 = vpop.permute.xlu0 %7855
      %v7857 = vperm.slane %v7099, 2
      %v7858 = vlaneseq
      %v7859 = vshrl.u32 %v7858, 7
      %7861 = vset.pattern.permute.xlu0 %v7859
      %7862 = vperm.xlu0 %7861, %v7857
      %v7863 = vpop.permute.xlu0 %7862
      %v7864 = vperm.slane %v7099, 3
      %v7865 = vlaneseq
      %v7866 = vshrl.u32 %v7865, 7
      %7868 = vset.pattern.permute.xlu0 %v7866
      %7869 = vperm.xlu0 %7868, %v7864
      %v7870 = vpop.permute.xlu0 %7869
      %v7871 = vperm.slane %v7099, 4
      %v7872 = vlaneseq
      %v7873 = vshrl.u32 %v7872, 7
      %7875 = vset.pattern.permute.xlu0 %v7873
      %7876 = vperm.xlu0 %7875, %v7871
      %v7877 = vpop.permute.xlu0 %7876
      %v7878 = vperm.slane %v7099, 5
      %v7879 = vlaneseq
      %v7880 = vshrl.u32 %v7879, 7
      %7882 = vset.pattern.permute.xlu0 %v7880
      %7883 = vperm.xlu0 %7882, %v7878
      %v7884 = vpop.permute.xlu0 %7883
      %v7885 = vperm.slane %v7099, 6
      %v7886 = vlaneseq
      %v7887 = vshrl.u32 %v7886, 7
      %7889 = vset.pattern.permute.xlu0 %v7887
      %7890 = vperm.xlu0 %7889, %v7885
      %v7891 = vpop.permute.xlu0 %7890
      %v7892 = vperm.slane %v7099, 7
      %v7893 = vlaneseq
      %v7894 = vshrl.u32 %v7893, 7
      %7896 = vset.pattern.permute.xlu0 %v7894
      %7897 = vperm.xlu0 %7896, %v7892
      %v7898 = vpop.permute.xlu0 %7897
      %v7899 = vperm.slane %v7100, 0
      %v7900 = vlaneseq
      %v7901 = vshrl.u32 %v7900, 7
      %7903 = vset.pattern.permute.xlu0 %v7901
      %7904 = vperm.xlu0 %7903, %v7899
      %v7905 = vpop.permute.xlu0 %7904
      %v7906 = vperm.slane %v7100, 1
      %v7907 = vlaneseq
      %v7908 = vshrl.u32 %v7907, 7
      %7910 = vset.pattern.permute.xlu0 %v7908
      %7911 = vperm.xlu0 %7910, %v7906
      %v7912 = vpop.permute.xlu0 %7911
      %v7913 = vperm.slane %v7100, 2
      %v7914 = vlaneseq
      %v7915 = vshrl.u32 %v7914, 7
      %7917 = vset.pattern.permute.xlu0 %v7915
      %7918 = vperm.xlu0 %7917, %v7913
      %v7919 = vpop.permute.xlu0 %7918
      %v7920 = vperm.slane %v7100, 3
      %v7921 = vlaneseq
      %v7922 = vshrl.u32 %v7921, 7
      %7924 = vset.pattern.permute.xlu0 %v7922
      %7925 = vperm.xlu0 %7924, %v7920
      %v7926 = vpop.permute.xlu0 %7925
      %v7927 = vperm.slane %v7100, 4
      %v7928 = vlaneseq
      %v7929 = vshrl.u32 %v7928, 7
      %7931 = vset.pattern.permute.xlu0 %v7929
      %7932 = vperm.xlu0 %7931, %v7927
      %v7933 = vpop.permute.xlu0 %7932
      %v7934 = vperm.slane %v7100, 5
      %v7935 = vlaneseq
      %v7936 = vshrl.u32 %v7935, 7
      %7938 = vset.pattern.permute.xlu0 %v7936
      %7939 = vperm.xlu0 %7938, %v7934
      %v7940 = vpop.permute.xlu0 %7939
      %v7941 = vperm.slane %v7100, 6
      %v7942 = vlaneseq
      %v7943 = vshrl.u32 %v7942, 7
      %7945 = vset.pattern.permute.xlu0 %v7943
      %7946 = vperm.xlu0 %7945, %v7941
      %v7947 = vpop.permute.xlu0 %7946
      %v7948 = vperm.slane %v7100, 7
      %v7949 = vlaneseq
      %v7950 = vshrl.u32 %v7949, 7
      %7952 = vset.pattern.permute.xlu0 %v7950
      %7953 = vperm.xlu0 %7952, %v7948
      %v7954 = vpop.permute.xlu0 %7953
      %v7955 = vperm.slane %v7101, 0
      %v7956 = vlaneseq
      %v7957 = vshrl.u32 %v7956, 7
      %7959 = vset.pattern.permute.xlu0 %v7957
      %7960 = vperm.xlu0 %7959, %v7955
      %v7961 = vpop.permute.xlu0 %7960
      %v7962 = vperm.slane %v7101, 1
      %v7963 = vlaneseq
      %v7964 = vshrl.u32 %v7963, 7
      %7966 = vset.pattern.permute.xlu0 %v7964
      %7967 = vperm.xlu0 %7966, %v7962
      %v7968 = vpop.permute.xlu0 %7967
      %v7969 = vperm.slane %v7101, 2
      %v7970 = vlaneseq
      %v7971 = vshrl.u32 %v7970, 7
      %7973 = vset.pattern.permute.xlu0 %v7971
      %7974 = vperm.xlu0 %7973, %v7969
      %v7975 = vpop.permute.xlu0 %7974
      %v7976 = vperm.slane %v7101, 3
      %v7977 = vlaneseq
      %v7978 = vshrl.u32 %v7977, 7
      %7980 = vset.pattern.permute.xlu0 %v7978
      %7981 = vperm.xlu0 %7980, %v7976
      %v7982 = vpop.permute.xlu0 %7981
      %v7983 = vperm.slane %v7101, 4
      %v7984 = vlaneseq
      %v7985 = vshrl.u32 %v7984, 7
      %7987 = vset.pattern.permute.xlu0 %v7985
      %7988 = vperm.xlu0 %7987, %v7983
      %v7989 = vpop.permute.xlu0 %7988
      %v7990 = vperm.slane %v7101, 5
      %v7991 = vlaneseq
      %v7992 = vshrl.u32 %v7991, 7
      %7994 = vset.pattern.permute.xlu0 %v7992
      %7995 = vperm.xlu0 %7994, %v7990
      %v7996 = vpop.permute.xlu0 %7995
      %v7997 = vperm.slane %v7101, 6
      %v7998 = vlaneseq
      %v7999 = vshrl.u32 %v7998, 7
      %8001 = vset.pattern.permute.xlu0 %v7999
      %8002 = vperm.xlu0 %8001, %v7997
      %v8003 = vpop.permute.xlu0 %8002
      %v8004 = vperm.slane %v7101, 7
      %v8005 = vlaneseq
      %v8006 = vshrl.u32 %v8005, 7
      %8008 = vset.pattern.permute.xlu0 %v8006
      %8009 = vperm.xlu0 %8008, %v8004
      %v8010 = vpop.permute.xlu0 %8009
      %v8011 = vperm.slane %v7102, 0
      %v8012 = vlaneseq
      %v8013 = vshrl.u32 %v8012, 7
      %8015 = vset.pattern.permute.xlu0 %v8013
      %8016 = vperm.xlu0 %8015, %v8011
      %v8017 = vpop.permute.xlu0 %8016
      %v8018 = vperm.slane %v7102, 1
      %v8019 = vlaneseq
      %v8020 = vshrl.u32 %v8019, 7
      %8022 = vset.pattern.permute.xlu0 %v8020
      %8023 = vperm.xlu0 %8022, %v8018
      %v8024 = vpop.permute.xlu0 %8023
      %v8025 = vperm.slane %v7102, 2
      %v8026 = vlaneseq
      %v8027 = vshrl.u32 %v8026, 7
      %8029 = vset.pattern.permute.xlu0 %v8027
      %8030 = vperm.xlu0 %8029, %v8025
      %v8031 = vpop.permute.xlu0 %8030
      %v8032 = vperm.slane %v7102, 3
      %v8033 = vlaneseq
      %v8034 = vshrl.u32 %v8033, 7
      %8036 = vset.pattern.permute.xlu0 %v8034
      %8037 = vperm.xlu0 %8036, %v8032
      %v8038 = vpop.permute.xlu0 %8037
      %v8039 = vperm.slane %v7102, 4
      %v8040 = vlaneseq
      %v8041 = vshrl.u32 %v8040, 7
      %8043 = vset.pattern.permute.xlu0 %v8041
      %8044 = vperm.xlu0 %8043, %v8039
      %v8045 = vpop.permute.xlu0 %8044
      %v8046 = vperm.slane %v7102, 5
      %v8047 = vlaneseq
      %v8048 = vshrl.u32 %v8047, 7
      %8050 = vset.pattern.permute.xlu0 %v8048
      %8051 = vperm.xlu0 %8050, %v8046
      %v8052 = vpop.permute.xlu0 %8051
      %v8053 = vperm.slane %v7102, 6
      %v8054 = vlaneseq
      %v8055 = vshrl.u32 %v8054, 7
      %8057 = vset.pattern.permute.xlu0 %v8055
      %8058 = vperm.xlu0 %8057, %v8053
      %v8059 = vpop.permute.xlu0 %8058
      %v8060 = vperm.slane %v7102, 7
      %v8061 = vlaneseq
      %v8062 = vshrl.u32 %v8061, 7
      %8064 = vset.pattern.permute.xlu0 %v8062
      %8065 = vperm.xlu0 %8064, %v8060
      %v8066 = vpop.permute.xlu0 %8065
      %v8067 = vperm.slane %v7103, 0
      %v8068 = vlaneseq
      %v8069 = vshrl.u32 %v8068, 7
      %8071 = vset.pattern.permute.xlu0 %v8069
      %8072 = vperm.xlu0 %8071, %v8067
      %v8073 = vpop.permute.xlu0 %8072
      %v8074 = vperm.slane %v7103, 1
      %v8075 = vlaneseq
      %v8076 = vshrl.u32 %v8075, 7
      %8078 = vset.pattern.permute.xlu0 %v8076
      %8079 = vperm.xlu0 %8078, %v8074
      %v8080 = vpop.permute.xlu0 %8079
      %v8081 = vperm.slane %v7103, 2
      %v8082 = vlaneseq
      %v8083 = vshrl.u32 %v8082, 7
      %8085 = vset.pattern.permute.xlu0 %v8083
      %8086 = vperm.xlu0 %8085, %v8081
      %v8087 = vpop.permute.xlu0 %8086
      %v8088 = vperm.slane %v7103, 3
      %v8089 = vlaneseq
      %v8090 = vshrl.u32 %v8089, 7
      %8092 = vset.pattern.permute.xlu0 %v8090
      %8093 = vperm.xlu0 %8092, %v8088
      %v8094 = vpop.permute.xlu0 %8093
      %v8095 = vperm.slane %v7103, 4
      %v8096 = vlaneseq
      %v8097 = vshrl.u32 %v8096, 7
      %8099 = vset.pattern.permute.xlu0 %v8097
      %8100 = vperm.xlu0 %8099, %v8095
      %v8101 = vpop.permute.xlu0 %8100
      %v8102 = vperm.slane %v7103, 5
      %v8103 = vlaneseq
      %v8104 = vshrl.u32 %v8103, 7
      %8106 = vset.pattern.permute.xlu0 %v8104
      %8107 = vperm.xlu0 %8106, %v8102
      %v8108 = vpop.permute.xlu0 %8107
      %v8109 = vperm.slane %v7103, 6
      %v8110 = vlaneseq
      %v8111 = vshrl.u32 %v8110, 7
      %8113 = vset.pattern.permute.xlu0 %v8111
      %8114 = vperm.xlu0 %8113, %v8109
      %v8115 = vpop.permute.xlu0 %8114
      %v8116 = vperm.slane %v7103, 7
      %v8117 = vlaneseq
      %v8118 = vshrl.u32 %v8117, 7
      %8120 = vset.pattern.permute.xlu0 %v8118
      %8121 = vperm.xlu0 %8120, %v8116
      %v8122 = vpop.permute.xlu0 %8121
      %v8123 = vperm.slane %v7104, 0
      %v8124 = vlaneseq
      %v8125 = vshrl.u32 %v8124, 7
      %8127 = vset.pattern.permute.xlu0 %v8125
      %8128 = vperm.xlu0 %8127, %v8123
      %v8129 = vpop.permute.xlu0 %8128
      %v8130 = vperm.slane %v7104, 1
      %v8131 = vlaneseq
      %v8132 = vshrl.u32 %v8131, 7
      %8134 = vset.pattern.permute.xlu0 %v8132
      %8135 = vperm.xlu0 %8134, %v8130
      %v8136 = vpop.permute.xlu0 %8135
      %v8137 = vperm.slane %v7104, 2
      %v8138 = vlaneseq
      %v8139 = vshrl.u32 %v8138, 7
      %8141 = vset.pattern.permute.xlu0 %v8139
      %8142 = vperm.xlu0 %8141, %v8137
      %v8143 = vpop.permute.xlu0 %8142
      %v8144 = vperm.slane %v7104, 3
      %v8145 = vlaneseq
      %v8146 = vshrl.u32 %v8145, 7
      %8148 = vset.pattern.permute.xlu0 %v8146
      %8149 = vperm.xlu0 %8148, %v8144
      %v8150 = vpop.permute.xlu0 %8149
      %v8151 = vperm.slane %v7104, 4
      %v8152 = vlaneseq
      %v8153 = vshrl.u32 %v8152, 7
      %8155 = vset.pattern.permute.xlu0 %v8153
      %8156 = vperm.xlu0 %8155, %v8151
      %v8157 = vpop.permute.xlu0 %8156
      %v8158 = vperm.slane %v7104, 5
      %v8159 = vlaneseq
      %v8160 = vshrl.u32 %v8159, 7
      %8162 = vset.pattern.permute.xlu0 %v8160
      %8163 = vperm.xlu0 %8162, %v8158
      %v8164 = vpop.permute.xlu0 %8163
      %v8165 = vperm.slane %v7104, 6
      %v8166 = vlaneseq
      %v8167 = vshrl.u32 %v8166, 7
      %8169 = vset.pattern.permute.xlu0 %v8167
      %8170 = vperm.xlu0 %8169, %v8165
      %v8171 = vpop.permute.xlu0 %8170
      %v8172 = vperm.slane %v7104, 7
      %v8173 = vlaneseq
      %v8174 = vshrl.u32 %v8173, 7
      %8176 = vset.pattern.permute.xlu0 %v8174
      %8177 = vperm.xlu0 %8176, %v8172
      %v8178 = vpop.permute.xlu0 %8177
      %v8179 = vperm.slane %v7105, 0
      %v8180 = vlaneseq
      %v8181 = vshrl.u32 %v8180, 7
      %8183 = vset.pattern.permute.xlu0 %v8181
      %8184 = vperm.xlu0 %8183, %v8179
      %v8185 = vpop.permute.xlu0 %8184
      %v8186 = vperm.slane %v7105, 1
      %v8187 = vlaneseq
      %v8188 = vshrl.u32 %v8187, 7
      %8190 = vset.pattern.permute.xlu0 %v8188
      %8191 = vperm.xlu0 %8190, %v8186
      %v8192 = vpop.permute.xlu0 %8191
      %v8193 = vperm.slane %v7105, 2
      %v8194 = vlaneseq
      %v8195 = vshrl.u32 %v8194, 7
      %8197 = vset.pattern.permute.xlu0 %v8195
      %8198 = vperm.xlu0 %8197, %v8193
      %v8199 = vpop.permute.xlu0 %8198
      %v8200 = vperm.slane %v7105, 3
      %v8201 = vlaneseq
      %v8202 = vshrl.u32 %v8201, 7
      %8204 = vset.pattern.permute.xlu0 %v8202
      %8205 = vperm.xlu0 %8204, %v8200
      %v8206 = vpop.permute.xlu0 %8205
      %v8207 = vperm.slane %v7105, 4
      %v8208 = vlaneseq
      %v8209 = vshrl.u32 %v8208, 7
      %8211 = vset.pattern.permute.xlu0 %v8209
      %8212 = vperm.xlu0 %8211, %v8207
      %v8213 = vpop.permute.xlu0 %8212
      %v8214 = vperm.slane %v7105, 5
      %v8215 = vlaneseq
      %v8216 = vshrl.u32 %v8215, 7
      %8218 = vset.pattern.permute.xlu0 %v8216
      %8219 = vperm.xlu0 %8218, %v8214
      %v8220 = vpop.permute.xlu0 %8219
      %v8221 = vperm.slane %v7105, 6
      %v8222 = vlaneseq
      %v8223 = vshrl.u32 %v8222, 7
      %8225 = vset.pattern.permute.xlu0 %v8223
      %8226 = vperm.xlu0 %8225, %v8221
      %v8227 = vpop.permute.xlu0 %8226
      %v8228 = vperm.slane %v7105, 7
      %v8229 = vlaneseq
      %v8230 = vshrl.u32 %v8229, 7
      %8232 = vset.pattern.permute.xlu0 %v8230
      %8233 = vperm.xlu0 %8232, %v8228
      %v8234 = vpop.permute.xlu0 %8233
      %v8235 = vperm.slane %v7106, 0
      %v8236 = vlaneseq
      %v8237 = vshrl.u32 %v8236, 7
      %8239 = vset.pattern.permute.xlu0 %v8237
      %8240 = vperm.xlu0 %8239, %v8235
      %v8241 = vpop.permute.xlu0 %8240
      %v8242 = vperm.slane %v7106, 1
      %v8243 = vlaneseq
      %v8244 = vshrl.u32 %v8243, 7
      %8246 = vset.pattern.permute.xlu0 %v8244
      %8247 = vperm.xlu0 %8246, %v8242
      %v8248 = vpop.permute.xlu0 %8247
      %v8249 = vperm.slane %v7106, 2
      %v8250 = vlaneseq
      %v8251 = vshrl.u32 %v8250, 7
      %8253 = vset.pattern.permute.xlu0 %v8251
      %8254 = vperm.xlu0 %8253, %v8249
      %v8255 = vpop.permute.xlu0 %8254
      %v8256 = vperm.slane %v7106, 3
      %v8257 = vlaneseq
      %v8258 = vshrl.u32 %v8257, 7
      %8260 = vset.pattern.permute.xlu0 %v8258
      %8261 = vperm.xlu0 %8260, %v8256
      %v8262 = vpop.permute.xlu0 %8261
      %v8263 = vperm.slane %v7106, 4
      %v8264 = vlaneseq
      %v8265 = vshrl.u32 %v8264, 7
      %8267 = vset.pattern.permute.xlu0 %v8265
      %8268 = vperm.xlu0 %8267, %v8263
      %v8269 = vpop.permute.xlu0 %8268
      %v8270 = vperm.slane %v7106, 5
      %v8271 = vlaneseq
      %v8272 = vshrl.u32 %v8271, 7
      %8274 = vset.pattern.permute.xlu0 %v8272
      %8275 = vperm.xlu0 %8274, %v8270
      %v8276 = vpop.permute.xlu0 %8275
      %v8277 = vperm.slane %v7106, 6
      %v8278 = vlaneseq
      %v8279 = vshrl.u32 %v8278, 7
      %8281 = vset.pattern.permute.xlu0 %v8279
      %8282 = vperm.xlu0 %8281, %v8277
      %v8283 = vpop.permute.xlu0 %8282
      %v8284 = vperm.slane %v7106, 7
      %v8285 = vlaneseq
      %v8286 = vshrl.u32 %v8285, 7
      %8288 = vset.pattern.permute.xlu0 %v8286
      %8289 = vperm.xlu0 %8288, %v8284
      %v8290 = vpop.permute.xlu0 %8289
      %v8291 = vperm.slane %v7123, 0
      %v8292 = vlaneseq
      %v8293 = vshrl.u32 %v8292, 7
      %8295 = vset.pattern.permute.xlu0 %v8293
      %8296 = vperm.xlu0 %8295, %v8291
      %v8297 = vpop.permute.xlu0 %8296
      %v8298 = vperm.slane %v7123, 1
      %v8299 = vlaneseq
      %v8300 = vshrl.u32 %v8299, 7
      %8302 = vset.pattern.permute.xlu0 %v8300
      %8303 = vperm.xlu0 %8302, %v8298
      %v8304 = vpop.permute.xlu0 %8303
      %v8305 = vperm.slane %v7123, 2
      %v8306 = vlaneseq
      %v8307 = vshrl.u32 %v8306, 7
      %8309 = vset.pattern.permute.xlu0 %v8307
      %8310 = vperm.xlu0 %8309, %v8305
      %v8311 = vpop.permute.xlu0 %8310
      %v8312 = vperm.slane %v7123, 3
      %v8313 = vlaneseq
      %v8314 = vshrl.u32 %v8313, 7
      %8316 = vset.pattern.permute.xlu0 %v8314
      %8317 = vperm.xlu0 %8316, %v8312
      %v8318 = vpop.permute.xlu0 %8317
      %v8319 = vperm.slane %v7123, 4
      %v8320 = vlaneseq
      %v8321 = vshrl.u32 %v8320, 7
      %8323 = vset.pattern.permute.xlu0 %v8321
      %8324 = vperm.xlu0 %8323, %v8319
      %v8325 = vpop.permute.xlu0 %8324
      %v8326 = vperm.slane %v7123, 5
      %v8327 = vlaneseq
      %v8328 = vshrl.u32 %v8327, 7
      %8330 = vset.pattern.permute.xlu0 %v8328
      %8331 = vperm.xlu0 %8330, %v8326
      %v8332 = vpop.permute.xlu0 %8331
      %v8333 = vperm.slane %v7123, 6
      %v8334 = vlaneseq
      %v8335 = vshrl.u32 %v8334, 7
      %8337 = vset.pattern.permute.xlu0 %v8335
      %8338 = vperm.xlu0 %8337, %v8333
      %v8339 = vpop.permute.xlu0 %8338
      %v8340 = vperm.slane %v7123, 7
      %v8341 = vlaneseq
      %v8342 = vshrl.u32 %v8341, 7
      %8344 = vset.pattern.permute.xlu0 %v8342
      %8345 = vperm.xlu0 %8344, %v8340
      %v8346 = vpop.permute.xlu0 %8345
      %v8347 = vperm.slane %v7124, 0
      %v8348 = vlaneseq
      %v8349 = vshrl.u32 %v8348, 7
      %8351 = vset.pattern.permute.xlu0 %v8349
      %8352 = vperm.xlu0 %8351, %v8347
      %v8353 = vpop.permute.xlu0 %8352
      %v8354 = vperm.slane %v7124, 1
      %v8355 = vlaneseq
      %v8356 = vshrl.u32 %v8355, 7
      %8358 = vset.pattern.permute.xlu0 %v8356
      %8359 = vperm.xlu0 %8358, %v8354
      %v8360 = vpop.permute.xlu0 %8359
      %v8361 = vperm.slane %v7124, 2
      %v8362 = vlaneseq
      %v8363 = vshrl.u32 %v8362, 7
      %8365 = vset.pattern.permute.xlu0 %v8363
      %8366 = vperm.xlu0 %8365, %v8361
      %v8367 = vpop.permute.xlu0 %8366
      %v8368 = vperm.slane %v7124, 3
      %v8369 = vlaneseq
      %v8370 = vshrl.u32 %v8369, 7
      %8372 = vset.pattern.permute.xlu0 %v8370
      %8373 = vperm.xlu0 %8372, %v8368
      %v8374 = vpop.permute.xlu0 %8373
      %v8375 = vperm.slane %v7124, 4
      %v8376 = vlaneseq
      %v8377 = vshrl.u32 %v8376, 7
      %8379 = vset.pattern.permute.xlu0 %v8377
      %8380 = vperm.xlu0 %8379, %v8375
      %v8381 = vpop.permute.xlu0 %8380
      %v8382 = vperm.slane %v7124, 5
      %v8383 = vlaneseq
      %v8384 = vshrl.u32 %v8383, 7
      %8386 = vset.pattern.permute.xlu0 %v8384
      %8387 = vperm.xlu0 %8386, %v8382
      %v8388 = vpop.permute.xlu0 %8387
      %v8389 = vperm.slane %v7124, 6
      %v8390 = vlaneseq
      %v8391 = vshrl.u32 %v8390, 7
      %8393 = vset.pattern.permute.xlu0 %v8391
      %8394 = vperm.xlu0 %8393, %v8389
      %v8395 = vpop.permute.xlu0 %8394
      %v8396 = vperm.slane %v7124, 7
      %v8397 = vlaneseq
      %v8398 = vshrl.u32 %v8397, 7
      %8400 = vset.pattern.permute.xlu0 %v8398
      %8401 = vperm.xlu0 %8400, %v8396
      %v8402 = vpop.permute.xlu0 %8401
      %v8403 = vperm.slane %v7125, 0
      %v8404 = vlaneseq
      %v8405 = vshrl.u32 %v8404, 7
      %8407 = vset.pattern.permute.xlu0 %v8405
      %8408 = vperm.xlu0 %8407, %v8403
      %v8409 = vpop.permute.xlu0 %8408
      %v8410 = vperm.slane %v7125, 1
      %v8411 = vlaneseq
      %v8412 = vshrl.u32 %v8411, 7
      %8414 = vset.pattern.permute.xlu0 %v8412
      %8415 = vperm.xlu0 %8414, %v8410
      %v8416 = vpop.permute.xlu0 %8415
      %v8417 = vperm.slane %v7125, 2
      %v8418 = vlaneseq
      %v8419 = vshrl.u32 %v8418, 7
      %8421 = vset.pattern.permute.xlu0 %v8419
      %8422 = vperm.xlu0 %8421, %v8417
      %v8423 = vpop.permute.xlu0 %8422
      %v8424 = vperm.slane %v7125, 3
      %v8425 = vlaneseq
      %v8426 = vshrl.u32 %v8425, 7
      %8428 = vset.pattern.permute.xlu0 %v8426
      %8429 = vperm.xlu0 %8428, %v8424
      %v8430 = vpop.permute.xlu0 %8429
      %v8431 = vperm.slane %v7125, 4
      %v8432 = vlaneseq
      %v8433 = vshrl.u32 %v8432, 7
      %8435 = vset.pattern.permute.xlu0 %v8433
      %8436 = vperm.xlu0 %8435, %v8431
      %v8437 = vpop.permute.xlu0 %8436
      %v8438 = vperm.slane %v7125, 5
      %v8439 = vlaneseq
      %v8440 = vshrl.u32 %v8439, 7
      %8442 = vset.pattern.permute.xlu0 %v8440
      %8443 = vperm.xlu0 %8442, %v8438
      %v8444 = vpop.permute.xlu0 %8443
      %v8445 = vperm.slane %v7125, 6
      %v8446 = vlaneseq
      %v8447 = vshrl.u32 %v8446, 7
      %8449 = vset.pattern.permute.xlu0 %v8447
      %8450 = vperm.xlu0 %8449, %v8445
      %v8451 = vpop.permute.xlu0 %8450
      %v8452 = vperm.slane %v7125, 7
      %v8453 = vlaneseq
      %v8454 = vshrl.u32 %v8453, 7
      %8456 = vset.pattern.permute.xlu0 %v8454
      %8457 = vperm.xlu0 %8456, %v8452
      %v8458 = vpop.permute.xlu0 %8457
      %v8459 = vperm.slane %v7126, 0
      %v8460 = vlaneseq
      %v8461 = vshrl.u32 %v8460, 7
      %8463 = vset.pattern.permute.xlu0 %v8461
      %8464 = vperm.xlu0 %8463, %v8459
      %v8465 = vpop.permute.xlu0 %8464
      %v8466 = vperm.slane %v7126, 1
      %v8467 = vlaneseq
      %v8468 = vshrl.u32 %v8467, 7
      %8470 = vset.pattern.permute.xlu0 %v8468
      %8471 = vperm.xlu0 %8470, %v8466
      %v8472 = vpop.permute.xlu0 %8471
      %v8473 = vperm.slane %v7126, 2
      %v8474 = vlaneseq
      %v8475 = vshrl.u32 %v8474, 7
      %8477 = vset.pattern.permute.xlu0 %v8475
      %8478 = vperm.xlu0 %8477, %v8473
      %v8479 = vpop.permute.xlu0 %8478
      %v8480 = vperm.slane %v7126, 3
      %v8481 = vlaneseq
      %v8482 = vshrl.u32 %v8481, 7
      %8484 = vset.pattern.permute.xlu0 %v8482
      %8485 = vperm.xlu0 %8484, %v8480
      %v8486 = vpop.permute.xlu0 %8485
      %v8487 = vperm.slane %v7126, 4
      %v8488 = vlaneseq
      %v8489 = vshrl.u32 %v8488, 7
      %8491 = vset.pattern.permute.xlu0 %v8489
      %8492 = vperm.xlu0 %8491, %v8487
      %v8493 = vpop.permute.xlu0 %8492
      %v8494 = vperm.slane %v7126, 5
      %v8495 = vlaneseq
      %v8496 = vshrl.u32 %v8495, 7
      %8498 = vset.pattern.permute.xlu0 %v8496
      %8499 = vperm.xlu0 %8498, %v8494
      %v8500 = vpop.permute.xlu0 %8499
      %v8501 = vperm.slane %v7126, 6
      %v8502 = vlaneseq
      %v8503 = vshrl.u32 %v8502, 7
      %8505 = vset.pattern.permute.xlu0 %v8503
      %8506 = vperm.xlu0 %8505, %v8501
      %v8507 = vpop.permute.xlu0 %8506
      %v8508 = vperm.slane %v7126, 7
      %v8509 = vlaneseq
      %v8510 = vshrl.u32 %v8509, 7
      %8512 = vset.pattern.permute.xlu0 %v8510
      %8513 = vperm.xlu0 %8512, %v8508
      %v8514 = vpop.permute.xlu0 %8513
      %v8515 = vperm.slane %v7127, 0
      %v8516 = vlaneseq
      %v8517 = vshrl.u32 %v8516, 7
      %8519 = vset.pattern.permute.xlu0 %v8517
      %8520 = vperm.xlu0 %8519, %v8515
      %v8521 = vpop.permute.xlu0 %8520
      %v8522 = vperm.slane %v7127, 1
      %v8523 = vlaneseq
      %v8524 = vshrl.u32 %v8523, 7
      %8526 = vset.pattern.permute.xlu0 %v8524
      %8527 = vperm.xlu0 %8526, %v8522
      %v8528 = vpop.permute.xlu0 %8527
      %v8529 = vperm.slane %v7127, 2
      %v8530 = vlaneseq
      %v8531 = vshrl.u32 %v8530, 7
      %8533 = vset.pattern.permute.xlu0 %v8531
      %8534 = vperm.xlu0 %8533, %v8529
      %v8535 = vpop.permute.xlu0 %8534
      %v8536 = vperm.slane %v7127, 3
      %v8537 = vlaneseq
      %v8538 = vshrl.u32 %v8537, 7
      %8540 = vset.pattern.permute.xlu0 %v8538
      %8541 = vperm.xlu0 %8540, %v8536
      %v8542 = vpop.permute.xlu0 %8541
      %v8543 = vperm.slane %v7127, 4
      %v8544 = vlaneseq
      %v8545 = vshrl.u32 %v8544, 7
      %8547 = vset.pattern.permute.xlu0 %v8545
      %8548 = vperm.xlu0 %8547, %v8543
      %v8549 = vpop.permute.xlu0 %8548
      %v8550 = vperm.slane %v7127, 5
      %v8551 = vlaneseq
      %v8552 = vshrl.u32 %v8551, 7
      %8554 = vset.pattern.permute.xlu0 %v8552
      %8555 = vperm.xlu0 %8554, %v8550
      %v8556 = vpop.permute.xlu0 %8555
      %v8557 = vperm.slane %v7127, 6
      %v8558 = vlaneseq
      %v8559 = vshrl.u32 %v8558, 7
      %8561 = vset.pattern.permute.xlu0 %v8559
      %8562 = vperm.xlu0 %8561, %v8557
      %v8563 = vpop.permute.xlu0 %8562
      %v8564 = vperm.slane %v7127, 7
      %v8565 = vlaneseq
      %v8566 = vshrl.u32 %v8565, 7
      %8568 = vset.pattern.permute.xlu0 %v8566
      %8569 = vperm.xlu0 %8568, %v8564
      %v8570 = vpop.permute.xlu0 %8569
      %v8571 = vperm.slane %v7128, 0
      %v8572 = vlaneseq
      %v8573 = vshrl.u32 %v8572, 7
      %8575 = vset.pattern.permute.xlu0 %v8573
      %8576 = vperm.xlu0 %8575, %v8571
      %v8577 = vpop.permute.xlu0 %8576
      %v8578 = vperm.slane %v7128, 1
      %v8579 = vlaneseq
      %v8580 = vshrl.u32 %v8579, 7
      %8582 = vset.pattern.permute.xlu0 %v8580
      %8583 = vperm.xlu0 %8582, %v8578
      %v8584 = vpop.permute.xlu0 %8583
      %v8585 = vperm.slane %v7128, 2
      %v8586 = vlaneseq
      %v8587 = vshrl.u32 %v8586, 7
      %8589 = vset.pattern.permute.xlu0 %v8587
      %8590 = vperm.xlu0 %8589, %v8585
      %v8591 = vpop.permute.xlu0 %8590
      %v8592 = vperm.slane %v7128, 3
      %v8593 = vlaneseq
      %v8594 = vshrl.u32 %v8593, 7
      %8596 = vset.pattern.permute.xlu0 %v8594
      %8597 = vperm.xlu0 %8596, %v8592
      %v8598 = vpop.permute.xlu0 %8597
      %v8599 = vperm.slane %v7128, 4
      %v8600 = vlaneseq
      %v8601 = vshrl.u32 %v8600, 7
      %8603 = vset.pattern.permute.xlu0 %v8601
      %8604 = vperm.xlu0 %8603, %v8599
      %v8605 = vpop.permute.xlu0 %8604
      %v8606 = vperm.slane %v7128, 5
      %v8607 = vlaneseq
      %v8608 = vshrl.u32 %v8607, 7
      %8610 = vset.pattern.permute.xlu0 %v8608
      %8611 = vperm.xlu0 %8610, %v8606
      %v8612 = vpop.permute.xlu0 %8611
      %v8613 = vperm.slane %v7128, 6
      %v8614 = vlaneseq
      %v8615 = vshrl.u32 %v8614, 7
      %8617 = vset.pattern.permute.xlu0 %v8615
      %8618 = vperm.xlu0 %8617, %v8613
      %v8619 = vpop.permute.xlu0 %8618
      %v8620 = vperm.slane %v7128, 7
      %v8621 = vlaneseq
      %v8622 = vshrl.u32 %v8621, 7
      %8624 = vset.pattern.permute.xlu0 %v8622
      %8625 = vperm.xlu0 %8624, %v8620
      %v8626 = vpop.permute.xlu0 %8625
      %v8627 = vperm.slane %v7129, 0
      %v8628 = vlaneseq
      %v8629 = vshrl.u32 %v8628, 7
      %8631 = vset.pattern.permute.xlu0 %v8629
      %8632 = vperm.xlu0 %8631, %v8627
      %v8633 = vpop.permute.xlu0 %8632
      %v8634 = vperm.slane %v7129, 1
      %v8635 = vlaneseq
      %v8636 = vshrl.u32 %v8635, 7
      %8638 = vset.pattern.permute.xlu0 %v8636
      %8639 = vperm.xlu0 %8638, %v8634
      %v8640 = vpop.permute.xlu0 %8639
      %v8641 = vperm.slane %v7129, 2
      %v8642 = vlaneseq
      %v8643 = vshrl.u32 %v8642, 7
      %8645 = vset.pattern.permute.xlu0 %v8643
      %8646 = vperm.xlu0 %8645, %v8641
      %v8647 = vpop.permute.xlu0 %8646
      %v8648 = vperm.slane %v7129, 3
      %v8649 = vlaneseq
      %v8650 = vshrl.u32 %v8649, 7
      %8652 = vset.pattern.permute.xlu0 %v8650
      %8653 = vperm.xlu0 %8652, %v8648
      %v8654 = vpop.permute.xlu0 %8653
      %v8655 = vperm.slane %v7129, 4
      %v8656 = vlaneseq
      %v8657 = vshrl.u32 %v8656, 7
      %8659 = vset.pattern.permute.xlu0 %v8657
      %8660 = vperm.xlu0 %8659, %v8655
      %v8661 = vpop.permute.xlu0 %8660
      %v8662 = vperm.slane %v7129, 5
      %v8663 = vlaneseq
      %v8664 = vshrl.u32 %v8663, 7
      %8666 = vset.pattern.permute.xlu0 %v8664
      %8667 = vperm.xlu0 %8666, %v8662
      %v8668 = vpop.permute.xlu0 %8667
      %v8669 = vperm.slane %v7129, 6
      %v8670 = vlaneseq
      %v8671 = vshrl.u32 %v8670, 7
      %8673 = vset.pattern.permute.xlu0 %v8671
      %8674 = vperm.xlu0 %8673, %v8669
      %v8675 = vpop.permute.xlu0 %8674
      %v8676 = vperm.slane %v7129, 7
      %v8677 = vlaneseq
      %v8678 = vshrl.u32 %v8677, 7
      %8680 = vset.pattern.permute.xlu0 %v8678
      %8681 = vperm.xlu0 %8680, %v8676
      %v8682 = vpop.permute.xlu0 %8681
      %v8683 = vperm.slane %v7130, 0
      %v8684 = vlaneseq
      %v8685 = vshrl.u32 %v8684, 7
      %8687 = vset.pattern.permute.xlu0 %v8685
      %8688 = vperm.xlu0 %8687, %v8683
      %v8689 = vpop.permute.xlu0 %8688
      %v8690 = vperm.slane %v7130, 1
      %v8691 = vlaneseq
      %v8692 = vshrl.u32 %v8691, 7
      %8694 = vset.pattern.permute.xlu0 %v8692
      %8695 = vperm.xlu0 %8694, %v8690
      %v8696 = vpop.permute.xlu0 %8695
      %v8697 = vperm.slane %v7130, 2
      %v8698 = vlaneseq
      %v8699 = vshrl.u32 %v8698, 7
      %8701 = vset.pattern.permute.xlu0 %v8699
      %8702 = vperm.xlu0 %8701, %v8697
      %v8703 = vpop.permute.xlu0 %8702
      %v8704 = vperm.slane %v7130, 3
      %v8705 = vlaneseq
      %v8706 = vshrl.u32 %v8705, 7
      %8708 = vset.pattern.permute.xlu0 %v8706
      %8709 = vperm.xlu0 %8708, %v8704
      %v8710 = vpop.permute.xlu0 %8709
      %v8711 = vperm.slane %v7130, 4
      %v8712 = vlaneseq
      %v8713 = vshrl.u32 %v8712, 7
      %8715 = vset.pattern.permute.xlu0 %v8713
      %8716 = vperm.xlu0 %8715, %v8711
      %v8717 = vpop.permute.xlu0 %8716
      %v8718 = vperm.slane %v7130, 5
      %v8719 = vlaneseq
      %v8720 = vshrl.u32 %v8719, 7
      %8722 = vset.pattern.permute.xlu0 %v8720
      %8723 = vperm.xlu0 %8722, %v8718
      %v8724 = vpop.permute.xlu0 %8723
      %v8725 = vperm.slane %v7130, 6
      %v8726 = vlaneseq
      %v8727 = vshrl.u32 %v8726, 7
      %8729 = vset.pattern.permute.xlu0 %v8727
      %8730 = vperm.xlu0 %8729, %v8725
      %v8731 = vpop.permute.xlu0 %8730
      %v8732 = vperm.slane %v7130, 7
      %v8733 = vlaneseq
      %v8734 = vshrl.u32 %v8733, 7
      %8736 = vset.pattern.permute.xlu0 %v8734
      %8737 = vperm.xlu0 %8736, %v8732
      %v8738 = vpop.permute.xlu0 %8737
      %v8739 = vperm.slane %v7131, 0
      %v8740 = vlaneseq
      %v8741 = vshrl.u32 %v8740, 7
      %8743 = vset.pattern.permute.xlu0 %v8741
      %8744 = vperm.xlu0 %8743, %v8739
      %v8745 = vpop.permute.xlu0 %8744
      %v8746 = vperm.slane %v7131, 1
      %v8747 = vlaneseq
      %v8748 = vshrl.u32 %v8747, 7
      %8750 = vset.pattern.permute.xlu0 %v8748
      %8751 = vperm.xlu0 %8750, %v8746
      %v8752 = vpop.permute.xlu0 %8751
      %v8753 = vperm.slane %v7131, 2
      %v8754 = vlaneseq
      %v8755 = vshrl.u32 %v8754, 7
      %8757 = vset.pattern.permute.xlu0 %v8755
      %8758 = vperm.xlu0 %8757, %v8753
      %v8759 = vpop.permute.xlu0 %8758
      %v8760 = vperm.slane %v7131, 3
      %v8761 = vlaneseq
      %v8762 = vshrl.u32 %v8761, 7
      %8764 = vset.pattern.permute.xlu0 %v8762
      %8765 = vperm.xlu0 %8764, %v8760
      %v8766 = vpop.permute.xlu0 %8765
      %v8767 = vperm.slane %v7131, 4
      %v8768 = vlaneseq
      %v8769 = vshrl.u32 %v8768, 7
      %8771 = vset.pattern.permute.xlu0 %v8769
      %8772 = vperm.xlu0 %8771, %v8767
      %v8773 = vpop.permute.xlu0 %8772
      %v8774 = vperm.slane %v7131, 5
      %v8775 = vlaneseq
      %v8776 = vshrl.u32 %v8775, 7
      %8778 = vset.pattern.permute.xlu0 %v8776
      %8779 = vperm.xlu0 %8778, %v8774
      %v8780 = vpop.permute.xlu0 %8779
      %v8781 = vperm.slane %v7131, 6
      %v8782 = vlaneseq
      %v8783 = vshrl.u32 %v8782, 7
      %8785 = vset.pattern.permute.xlu0 %v8783
      %8786 = vperm.xlu0 %8785, %v8781
      %v8787 = vpop.permute.xlu0 %8786
      %v8788 = vperm.slane %v7131, 7
      %v8789 = vlaneseq
      %v8790 = vshrl.u32 %v8789, 7
      %8792 = vset.pattern.permute.xlu0 %v8790
      %8793 = vperm.xlu0 %8792, %v8788
      %v8794 = vpop.permute.xlu0 %8793
      %v8795 = vperm.slane %v7132, 0
      %v8796 = vlaneseq
      %v8797 = vshrl.u32 %v8796, 7
      %8799 = vset.pattern.permute.xlu0 %v8797
      %8800 = vperm.xlu0 %8799, %v8795
      %v8801 = vpop.permute.xlu0 %8800
      %v8802 = vperm.slane %v7132, 1
      %v8803 = vlaneseq
      %v8804 = vshrl.u32 %v8803, 7
      %8806 = vset.pattern.permute.xlu0 %v8804
      %8807 = vperm.xlu0 %8806, %v8802
      %v8808 = vpop.permute.xlu0 %8807
      %v8809 = vperm.slane %v7132, 2
      %v8810 = vlaneseq
      %v8811 = vshrl.u32 %v8810, 7
      %8813 = vset.pattern.permute.xlu0 %v8811
      %8814 = vperm.xlu0 %8813, %v8809
      %v8815 = vpop.permute.xlu0 %8814
      %v8816 = vperm.slane %v7132, 3
      %v8817 = vlaneseq
      %v8818 = vshrl.u32 %v8817, 7
      %8820 = vset.pattern.permute.xlu0 %v8818
      %8821 = vperm.xlu0 %8820, %v8816
      %v8822 = vpop.permute.xlu0 %8821
      %v8823 = vperm.slane %v7132, 4
      %v8824 = vlaneseq
      %v8825 = vshrl.u32 %v8824, 7
      %8827 = vset.pattern.permute.xlu0 %v8825
      %8828 = vperm.xlu0 %8827, %v8823
      %v8829 = vpop.permute.xlu0 %8828
      %v8830 = vperm.slane %v7132, 5
      %v8831 = vlaneseq
      %v8832 = vshrl.u32 %v8831, 7
      %8834 = vset.pattern.permute.xlu0 %v8832
      %8835 = vperm.xlu0 %8834, %v8830
      %v8836 = vpop.permute.xlu0 %8835
      %v8837 = vperm.slane %v7132, 6
      %v8838 = vlaneseq
      %v8839 = vshrl.u32 %v8838, 7
      %8841 = vset.pattern.permute.xlu0 %v8839
      %8842 = vperm.xlu0 %8841, %v8837
      %v8843 = vpop.permute.xlu0 %8842
      %v8844 = vperm.slane %v7132, 7
      %v8845 = vlaneseq
      %v8846 = vshrl.u32 %v8845, 7
      %8848 = vset.pattern.permute.xlu0 %v8846
      %8849 = vperm.xlu0 %8848, %v8844
      %v8850 = vpop.permute.xlu0 %8849
      %v8851 = vperm.slane %v7133, 0
      %v8852 = vlaneseq
      %v8853 = vshrl.u32 %v8852, 7
      %8855 = vset.pattern.permute.xlu0 %v8853
      %8856 = vperm.xlu0 %8855, %v8851
      %v8857 = vpop.permute.xlu0 %8856
      %v8858 = vperm.slane %v7133, 1
      %v8859 = vlaneseq
      %v8860 = vshrl.u32 %v8859, 7
      %8862 = vset.pattern.permute.xlu0 %v8860
      %8863 = vperm.xlu0 %8862, %v8858
      %v8864 = vpop.permute.xlu0 %8863
      %v8865 = vperm.slane %v7133, 2
      %v8866 = vlaneseq
      %v8867 = vshrl.u32 %v8866, 7
      %8869 = vset.pattern.permute.xlu0 %v8867
      %8870 = vperm.xlu0 %8869, %v8865
      %v8871 = vpop.permute.xlu0 %8870
      %v8872 = vperm.slane %v7133, 3
      %v8873 = vlaneseq
      %v8874 = vshrl.u32 %v8873, 7
      %8876 = vset.pattern.permute.xlu0 %v8874
      %8877 = vperm.xlu0 %8876, %v8872
      %v8878 = vpop.permute.xlu0 %8877
      %v8879 = vperm.slane %v7133, 4
      %v8880 = vlaneseq
      %v8881 = vshrl.u32 %v8880, 7
      %8883 = vset.pattern.permute.xlu0 %v8881
      %8884 = vperm.xlu0 %8883, %v8879
      %v8885 = vpop.permute.xlu0 %8884
      %v8886 = vperm.slane %v7133, 5
      %v8887 = vlaneseq
      %v8888 = vshrl.u32 %v8887, 7
      %8890 = vset.pattern.permute.xlu0 %v8888
      %8891 = vperm.xlu0 %8890, %v8886
      %v8892 = vpop.permute.xlu0 %8891
      %v8893 = vperm.slane %v7133, 6
      %v8894 = vlaneseq
      %v8895 = vshrl.u32 %v8894, 7
      %8897 = vset.pattern.permute.xlu0 %v8895
      %8898 = vperm.xlu0 %8897, %v8893
      %v8899 = vpop.permute.xlu0 %8898
      %v8900 = vperm.slane %v7133, 7
      %v8901 = vlaneseq
      %v8902 = vshrl.u32 %v8901, 7
      %8904 = vset.pattern.permute.xlu0 %v8902
      %8905 = vperm.xlu0 %8904, %v8900
      %v8906 = vpop.permute.xlu0 %8905
      %v8907 = vperm.slane %v7134, 0
      %v8908 = vlaneseq
      %v8909 = vshrl.u32 %v8908, 7
      %8911 = vset.pattern.permute.xlu0 %v8909
      %8912 = vperm.xlu0 %8911, %v8907
      %v8913 = vpop.permute.xlu0 %8912
      %v8914 = vperm.slane %v7134, 1
      %v8915 = vlaneseq
      %v8916 = vshrl.u32 %v8915, 7
      %8918 = vset.pattern.permute.xlu0 %v8916
      %8919 = vperm.xlu0 %8918, %v8914
      %v8920 = vpop.permute.xlu0 %8919
      %v8921 = vperm.slane %v7134, 2
      %v8922 = vlaneseq
      %v8923 = vshrl.u32 %v8922, 7
      %8925 = vset.pattern.permute.xlu0 %v8923
      %8926 = vperm.xlu0 %8925, %v8921
      %v8927 = vpop.permute.xlu0 %8926
      %v8928 = vperm.slane %v7134, 3
      %v8929 = vlaneseq
      %v8930 = vshrl.u32 %v8929, 7
      %8932 = vset.pattern.permute.xlu0 %v8930
      %8933 = vperm.xlu0 %8932, %v8928
      %v8934 = vpop.permute.xlu0 %8933
      %v8935 = vperm.slane %v7134, 4
      %v8936 = vlaneseq
      %v8937 = vshrl.u32 %v8936, 7
      %8939 = vset.pattern.permute.xlu0 %v8937
      %8940 = vperm.xlu0 %8939, %v8935
      %v8941 = vpop.permute.xlu0 %8940
      %v8942 = vperm.slane %v7134, 5
      %v8943 = vlaneseq
      %v8944 = vshrl.u32 %v8943, 7
      %8946 = vset.pattern.permute.xlu0 %v8944
      %8947 = vperm.xlu0 %8946, %v8942
      %v8948 = vpop.permute.xlu0 %8947
      %v8949 = vperm.slane %v7134, 6
      %v8950 = vlaneseq
      %v8951 = vshrl.u32 %v8950, 7
      %8953 = vset.pattern.permute.xlu0 %v8951
      %8954 = vperm.xlu0 %8953, %v8949
      %v8955 = vpop.permute.xlu0 %8954
      %v8956 = vperm.slane %v7134, 7
      %v8957 = vlaneseq
      %v8958 = vshrl.u32 %v8957, 7
      %8960 = vset.pattern.permute.xlu0 %v8958
      %8961 = vperm.xlu0 %8960, %v8956
      %v8962 = vpop.permute.xlu0 %8961
      %v8963 = vperm.slane %v7135, 0
      %v8964 = vlaneseq
      %v8965 = vshrl.u32 %v8964, 7
      %8967 = vset.pattern.permute.xlu0 %v8965
      %8968 = vperm.xlu0 %8967, %v8963
      %v8969 = vpop.permute.xlu0 %8968
      %v8970 = vperm.slane %v7135, 1
      %v8971 = vlaneseq
      %v8972 = vshrl.u32 %v8971, 7
      %8974 = vset.pattern.permute.xlu0 %v8972
      %8975 = vperm.xlu0 %8974, %v8970
      %v8976 = vpop.permute.xlu0 %8975
      %v8977 = vperm.slane %v7135, 2
      %v8978 = vlaneseq
      %v8979 = vshrl.u32 %v8978, 7
      %8981 = vset.pattern.permute.xlu0 %v8979
      %8982 = vperm.xlu0 %8981, %v8977
      %v8983 = vpop.permute.xlu0 %8982
      %v8984 = vperm.slane %v7135, 3
      %v8985 = vlaneseq
      %v8986 = vshrl.u32 %v8985, 7
      %8988 = vset.pattern.permute.xlu0 %v8986
      %8989 = vperm.xlu0 %8988, %v8984
      %v8990 = vpop.permute.xlu0 %8989
      %v8991 = vperm.slane %v7135, 4
      %v8992 = vlaneseq
      %v8993 = vshrl.u32 %v8992, 7
      %8995 = vset.pattern.permute.xlu0 %v8993
      %8996 = vperm.xlu0 %8995, %v8991
      %v8997 = vpop.permute.xlu0 %8996
      %v8998 = vperm.slane %v7135, 5
      %v8999 = vlaneseq
      %v9000 = vshrl.u32 %v8999, 7
      %9002 = vset.pattern.permute.xlu0 %v9000
      %9003 = vperm.xlu0 %9002, %v8998
      %v9004 = vpop.permute.xlu0 %9003
      %v9005 = vperm.slane %v7135, 6
      %v9006 = vlaneseq
      %v9007 = vshrl.u32 %v9006, 7
      %9009 = vset.pattern.permute.xlu0 %v9007
      %9010 = vperm.xlu0 %9009, %v9005
      %v9011 = vpop.permute.xlu0 %9010
      %v9012 = vperm.slane %v7135, 7
      %v9013 = vlaneseq
      %v9014 = vshrl.u32 %v9013, 7
      %9016 = vset.pattern.permute.xlu0 %v9014
      %9017 = vperm.xlu0 %9016, %v9012
      %v9018 = vpop.permute.xlu0 %9017
      %v9019 = vperm.slane %v7136, 0
      %v9020 = vlaneseq
      %v9021 = vshrl.u32 %v9020, 7
      %9023 = vset.pattern.permute.xlu0 %v9021
      %9024 = vperm.xlu0 %9023, %v9019
      %v9025 = vpop.permute.xlu0 %9024
      %v9026 = vperm.slane %v7136, 1
      %v9027 = vlaneseq
      %v9028 = vshrl.u32 %v9027, 7
      %9030 = vset.pattern.permute.xlu0 %v9028
      %9031 = vperm.xlu0 %9030, %v9026
      %v9032 = vpop.permute.xlu0 %9031
      %v9033 = vperm.slane %v7136, 2
      %v9034 = vlaneseq
      %v9035 = vshrl.u32 %v9034, 7
      %9037 = vset.pattern.permute.xlu0 %v9035
      %9038 = vperm.xlu0 %9037, %v9033
      %v9039 = vpop.permute.xlu0 %9038
      %v9040 = vperm.slane %v7136, 3
      %v9041 = vlaneseq
      %v9042 = vshrl.u32 %v9041, 7
      %9044 = vset.pattern.permute.xlu0 %v9042
      %9045 = vperm.xlu0 %9044, %v9040
      %v9046 = vpop.permute.xlu0 %9045
      %v9047 = vperm.slane %v7136, 4
      %v9048 = vlaneseq
      %v9049 = vshrl.u32 %v9048, 7
      %9051 = vset.pattern.permute.xlu0 %v9049
      %9052 = vperm.xlu0 %9051, %v9047
      %v9053 = vpop.permute.xlu0 %9052
      %v9054 = vperm.slane %v7136, 5
      %v9055 = vlaneseq
      %v9056 = vshrl.u32 %v9055, 7
      %9058 = vset.pattern.permute.xlu0 %v9056
      %9059 = vperm.xlu0 %9058, %v9054
      %v9060 = vpop.permute.xlu0 %9059
      %v9061 = vperm.slane %v7136, 6
      %v9062 = vlaneseq
      %v9063 = vshrl.u32 %v9062, 7
      %9065 = vset.pattern.permute.xlu0 %v9063
      %9066 = vperm.xlu0 %9065, %v9061
      %v9067 = vpop.permute.xlu0 %9066
      %v9068 = vperm.slane %v7136, 7
      %v9069 = vlaneseq
      %v9070 = vshrl.u32 %v9069, 7
      %9072 = vset.pattern.permute.xlu0 %v9070
      %9073 = vperm.xlu0 %9072, %v9068
      %v9074 = vpop.permute.xlu0 %9073
      %v9075 = vperm.slane %v7137, 0
      %v9076 = vlaneseq
      %v9077 = vshrl.u32 %v9076, 7
      %9079 = vset.pattern.permute.xlu0 %v9077
      %9080 = vperm.xlu0 %9079, %v9075
      %v9081 = vpop.permute.xlu0 %9080
      %v9082 = vperm.slane %v7137, 1
      %v9083 = vlaneseq
      %v9084 = vshrl.u32 %v9083, 7
      %9086 = vset.pattern.permute.xlu0 %v9084
      %9087 = vperm.xlu0 %9086, %v9082
      %v9088 = vpop.permute.xlu0 %9087
      %v9089 = vperm.slane %v7137, 2
      %v9090 = vlaneseq
      %v9091 = vshrl.u32 %v9090, 7
      %9093 = vset.pattern.permute.xlu0 %v9091
      %9094 = vperm.xlu0 %9093, %v9089
      %v9095 = vpop.permute.xlu0 %9094
      %v9096 = vperm.slane %v7137, 3
      %v9097 = vlaneseq
      %v9098 = vshrl.u32 %v9097, 7
      %9100 = vset.pattern.permute.xlu0 %v9098
      %9101 = vperm.xlu0 %9100, %v9096
      %v9102 = vpop.permute.xlu0 %9101
      %v9103 = vperm.slane %v7137, 4
      %v9104 = vlaneseq
      %v9105 = vshrl.u32 %v9104, 7
      %9107 = vset.pattern.permute.xlu0 %v9105
      %9108 = vperm.xlu0 %9107, %v9103
      %v9109 = vpop.permute.xlu0 %9108
      %v9110 = vperm.slane %v7137, 5
      %v9111 = vlaneseq
      %v9112 = vshrl.u32 %v9111, 7
      %9114 = vset.pattern.permute.xlu0 %v9112
      %9115 = vperm.xlu0 %9114, %v9110
      %v9116 = vpop.permute.xlu0 %9115
      %v9117 = vperm.slane %v7137, 6
      %v9118 = vlaneseq
      %v9119 = vshrl.u32 %v9118, 7
      %9121 = vset.pattern.permute.xlu0 %v9119
      %9122 = vperm.xlu0 %9121, %v9117
      %v9123 = vpop.permute.xlu0 %9122
      %v9124 = vperm.slane %v7137, 7
      %v9125 = vlaneseq
      %v9126 = vshrl.u32 %v9125, 7
      %9128 = vset.pattern.permute.xlu0 %v9126
      %9129 = vperm.xlu0 %9128, %v9124
      %v9130 = vpop.permute.xlu0 %9129
      %v9131 = vperm.slane %v7138, 0
      %v9132 = vlaneseq
      %v9133 = vshrl.u32 %v9132, 7
      %9135 = vset.pattern.permute.xlu0 %v9133
      %9136 = vperm.xlu0 %9135, %v9131
      %v9137 = vpop.permute.xlu0 %9136
      %v9138 = vperm.slane %v7138, 1
      %v9139 = vlaneseq
      %v9140 = vshrl.u32 %v9139, 7
      %9142 = vset.pattern.permute.xlu0 %v9140
      %9143 = vperm.xlu0 %9142, %v9138
      %v9144 = vpop.permute.xlu0 %9143
      %v9145 = vperm.slane %v7138, 2
      %v9146 = vlaneseq
      %v9147 = vshrl.u32 %v9146, 7
      %9149 = vset.pattern.permute.xlu0 %v9147
      %9150 = vperm.xlu0 %9149, %v9145
      %v9151 = vpop.permute.xlu0 %9150
      %v9152 = vperm.slane %v7138, 3
      %v9153 = vlaneseq
      %v9154 = vshrl.u32 %v9153, 7
      %9156 = vset.pattern.permute.xlu0 %v9154
      %9157 = vperm.xlu0 %9156, %v9152
      %v9158 = vpop.permute.xlu0 %9157
      %v9159 = vperm.slane %v7138, 4
      %v9160 = vlaneseq
      %v9161 = vshrl.u32 %v9160, 7
      %9163 = vset.pattern.permute.xlu0 %v9161
      %9164 = vperm.xlu0 %9163, %v9159
      %v9165 = vpop.permute.xlu0 %9164
      %v9166 = vperm.slane %v7138, 5
      %v9167 = vlaneseq
      %v9168 = vshrl.u32 %v9167, 7
      %9170 = vset.pattern.permute.xlu0 %v9168
      %9171 = vperm.xlu0 %9170, %v9166
      %v9172 = vpop.permute.xlu0 %9171
      %v9173 = vperm.slane %v7138, 6
      %v9174 = vlaneseq
      %v9175 = vshrl.u32 %v9174, 7
      %9177 = vset.pattern.permute.xlu0 %v9175
      %9178 = vperm.xlu0 %9177, %v9173
      %v9179 = vpop.permute.xlu0 %9178
      %v9180 = vperm.slane %v7138, 7
      %v9181 = vlaneseq
      %v9182 = vshrl.u32 %v9181, 7
      %9184 = vset.pattern.permute.xlu0 %v9182
      %9185 = vperm.xlu0 %9184, %v9180
      %v9186 = vpop.permute.xlu0 %9185
      %v9187 = vperm.slane %v331, 0
      %v9188 = vperm.slane %v7171, 0
      %v9189 = vperm.slane %v7172, 0
      %v9190 = vperm.slane %v7173, 0
      %v9191 = vperm.slane %v7174, 0
      %v9192 = vperm.slane %v7175, 0
      %v9193 = vperm.slane %v7176, 0
      %v9194 = vperm.slane %v7177, 0
      %v9195 = vperm.slane %v332, 0
      %v9196 = vperm.slane %v7178, 0
      %v9197 = vperm.slane %v7179, 0
      %v9198 = vperm.slane %v7180, 0
      %v9199 = vperm.slane %v7181, 0
      %v9200 = vperm.slane %v7182, 0
      %v9201 = vperm.slane %v7183, 0
      %v9202 = vperm.slane %v7184, 0
      %v9203 = vperm.slane %v333, 0
      %v9204 = vperm.slane %v7185, 0
      %v9205 = vperm.slane %v7186, 0
      %v9206 = vperm.slane %v7187, 0
      %v9207 = vperm.slane %v7188, 0
      %v9208 = vperm.slane %v7189, 0
      %v9209 = vperm.slane %v7190, 0
      %v9210 = vperm.slane %v7191, 0
      %v9211 = vperm.slane %v334, 0
      %v9212 = vperm.slane %v7192, 0
      %v9213 = vperm.slane %v7193, 0
      %v9214 = vperm.slane %v7194, 0
      %v9215 = vperm.slane %v7195, 0
      %v9216 = vperm.slane %v7196, 0
      %v9217 = vperm.slane %v7197, 0
      %v9218 = vperm.slane %v7198, 0
      %v9219 = vperm.slane %v335, 0
      %v9220 = vperm.slane %v7199, 0
      %v9221 = vperm.slane %v7200, 0
      %v9222 = vperm.slane %v7201, 0
      %v9223 = vperm.slane %v7202, 0
      %v9224 = vperm.slane %v7203, 0
      %v9225 = vperm.slane %v7204, 0
      %v9226 = vperm.slane %v7205, 0
      %v9227 = vperm.slane %v336, 0
      %v9228 = vperm.slane %v7206, 0
      %v9229 = vperm.slane %v7207, 0
      %v9230 = vperm.slane %v7208, 0
      %v9231 = vperm.slane %v7209, 0
      %v9232 = vperm.slane %v7210, 0
      %v9233 = vperm.slane %v7211, 0
      %v9234 = vperm.slane %v7212, 0
      %v9235 = vperm.slane %v337, 0
      %v9236 = vperm.slane %v7213, 0
      %v9237 = vperm.slane %v7214, 0
      %v9238 = vperm.slane %v7215, 0
      %v9239 = vperm.slane %v7216, 0
      %v9240 = vperm.slane %v7217, 0
      %v9241 = vperm.slane %v7218, 0
      %v9242 = vperm.slane %v7219, 0
      %v9243 = vperm.slane %v338, 0
      %v9244 = vperm.slane %v7220, 0
      %v9245 = vperm.slane %v7221, 0
      %v9246 = vperm.slane %v7222, 0
      %v9247 = vperm.slane %v7223, 0
      %v9248 = vperm.slane %v7224, 0
      %v9249 = vperm.slane %v7225, 0
      %v9250 = vperm.slane %v7226, 0
      %v9251 = vperm.slane %v339, 0
      %v9252 = vperm.slane %v7227, 0
      %v9253 = vperm.slane %v7228, 0
      %v9254 = vperm.slane %v7229, 0
      %v9255 = vperm.slane %v7230, 0
      %v9256 = vperm.slane %v7231, 0
      %v9257 = vperm.slane %v7232, 0
      %v9258 = vperm.slane %v7233, 0
      %v9259 = vperm.slane %v340, 0
      %v9260 = vperm.slane %v7234, 0
      %v9261 = vperm.slane %v7235, 0
      %v9262 = vperm.slane %v7236, 0
      %v9263 = vperm.slane %v7237, 0
      %v9264 = vperm.slane %v7238, 0
      %v9265 = vperm.slane %v7239, 0
      %v9266 = vperm.slane %v7240, 0
      %v9267 = vperm.slane %v341, 0
      %v9268 = vperm.slane %v7241, 0
      %v9269 = vperm.slane %v7242, 0
      %v9270 = vperm.slane %v7243, 0
      %v9271 = vperm.slane %v7244, 0
      %v9272 = vperm.slane %v7245, 0
      %v9273 = vperm.slane %v7246, 0
      %v9274 = vperm.slane %v7247, 0
      %v9275 = vperm.slane %v342, 0
      %v9276 = vperm.slane %v7248, 0
      %v9277 = vperm.slane %v7249, 0
      %v9278 = vperm.slane %v7250, 0
      %v9279 = vperm.slane %v7251, 0
      %v9280 = vperm.slane %v7252, 0
      %v9281 = vperm.slane %v7253, 0
      %v9282 = vperm.slane %v7254, 0
      %v9283 = vperm.slane %v343, 0
      %v9284 = vperm.slane %v7255, 0
      %v9285 = vperm.slane %v7256, 0
      %v9286 = vperm.slane %v7257, 0
      %v9287 = vperm.slane %v7258, 0
      %v9288 = vperm.slane %v7259, 0
      %v9289 = vperm.slane %v7260, 0
      %v9290 = vperm.slane %v7261, 0
      %v9291 = vperm.slane %v344, 0
      %v9292 = vperm.slane %v7262, 0
      %v9293 = vperm.slane %v7263, 0
      %v9294 = vperm.slane %v7264, 0
      %v9295 = vperm.slane %v7265, 0
      %v9296 = vperm.slane %v7266, 0
      %v9297 = vperm.slane %v7267, 0
      %v9298 = vperm.slane %v7268, 0
      %v9299 = vperm.slane %v345, 0
      %v9300 = vperm.slane %v7269, 0
      %v9301 = vperm.slane %v7270, 0
      %v9302 = vperm.slane %v7271, 0
      %v9303 = vperm.slane %v7272, 0
      %v9304 = vperm.slane %v7273, 0
      %v9305 = vperm.slane %v7274, 0
      %v9306 = vperm.slane %v7275, 0
      %v9307 = vperm.slane %v346, 0
      %v9308 = vperm.slane %v7276, 0
      %v9309 = vperm.slane %v7277, 0
      %v9310 = vperm.slane %v7278, 0
      %v9311 = vperm.slane %v7279, 0
      %v9312 = vperm.slane %v7280, 0
      %v9313 = vperm.slane %v7281, 0
      %v9314 = vperm.slane %v7282, 0
      %v9315 = vperm.slane %v347, 0
      %v9316 = vperm.slane %v7283, 0
      %v9317 = vperm.slane %v7284, 0
      %v9318 = vperm.slane %v7285, 0
      %v9319 = vperm.slane %v7286, 0
      %v9320 = vperm.slane %v7287, 0
      %v9321 = vperm.slane %v7288, 0
      %v9322 = vperm.slane %v7289, 0
      %v9323 = vperm.slane %v348, 0
      %v9324 = vperm.slane %v7290, 0
      %v9325 = vperm.slane %v7291, 0
      %v9326 = vperm.slane %v7292, 0
      %v9327 = vperm.slane %v7293, 0
      %v9328 = vperm.slane %v7294, 0
      %v9329 = vperm.slane %v7295, 0
      %v9330 = vperm.slane %v7296, 0
      %v9331 = vperm.slane %v349, 0
      %v9332 = vperm.slane %v7297, 0
      %v9333 = vperm.slane %v7298, 0
      %v9334 = vperm.slane %v7299, 0
      %v9335 = vperm.slane %v7300, 0
      %v9336 = vperm.slane %v7301, 0
      %v9337 = vperm.slane %v7302, 0
      %v9338 = vperm.slane %v7303, 0
      %v9339 = vperm.slane %v350, 0
      %v9340 = vperm.slane %v7304, 0
      %v9341 = vperm.slane %v7305, 0
      %v9342 = vperm.slane %v7306, 0
      %v9343 = vperm.slane %v7307, 0
      %v9344 = vperm.slane %v7308, 0
      %v9345 = vperm.slane %v7309, 0
      %v9346 = vperm.slane %v7310, 0
      %v9347 = vperm.slane %v351, 0
      %v9348 = vperm.slane %v7311, 0
      %v9349 = vperm.slane %v7312, 0
      %v9350 = vperm.slane %v7313, 0
      %v9351 = vperm.slane %v7314, 0
      %v9352 = vperm.slane %v7315, 0
      %v9353 = vperm.slane %v7316, 0
      %v9354 = vperm.slane %v7317, 0
      %v9355 = vperm.slane %v352, 0
      %v9356 = vperm.slane %v7318, 0
      %v9357 = vperm.slane %v7319, 0
      %v9358 = vperm.slane %v7320, 0
      %v9359 = vperm.slane %v7321, 0
      %v9360 = vperm.slane %v7322, 0
      %v9361 = vperm.slane %v7323, 0
      %v9362 = vperm.slane %v7324, 0
      %v9363 = vperm.slane %v353, 0
      %v9364 = vperm.slane %v7325, 0
      %v9365 = vperm.slane %v7326, 0
      %v9366 = vperm.slane %v7327, 0
      %v9367 = vperm.slane %v7328, 0
      %v9368 = vperm.slane %v7329, 0
      %v9369 = vperm.slane %v7330, 0
      %v9370 = vperm.slane %v7331, 0
      %v9371 = vperm.slane %v354, 0
      %v9372 = vperm.slane %v7332, 0
      %v9373 = vperm.slane %v7333, 0
      %v9374 = vperm.slane %v7334, 0
      %v9375 = vperm.slane %v7335, 0
      %v9376 = vperm.slane %v7336, 0
      %v9377 = vperm.slane %v7337, 0
      %v9378 = vperm.slane %v7338, 0
      %v9379 = vperm.slane %v355, 0
      %v9380 = vperm.slane %v7339, 0
      %v9381 = vperm.slane %v7340, 0
      %v9382 = vperm.slane %v7341, 0
      %v9383 = vperm.slane %v7342, 0
      %v9384 = vperm.slane %v7343, 0
      %v9385 = vperm.slane %v7344, 0
      %v9386 = vperm.slane %v7345, 0
      %v9387 = vperm.slane %v356, 0
      %v9388 = vperm.slane %v7346, 0
      %v9389 = vperm.slane %v7347, 0
      %v9390 = vperm.slane %v7348, 0
      %v9391 = vperm.slane %v7349, 0
      %v9392 = vperm.slane %v7350, 0
      %v9393 = vperm.slane %v7351, 0
      %v9394 = vperm.slane %v7352, 0
      %v9395 = vperm.slane %v357, 0
      %v9396 = vperm.slane %v7353, 0
      %v9397 = vperm.slane %v7354, 0
      %v9398 = vperm.slane %v7355, 0
      %v9399 = vperm.slane %v7356, 0
      %v9400 = vperm.slane %v7357, 0
      %v9401 = vperm.slane %v7358, 0
      %v9402 = vperm.slane %v7359, 0
      %v9403 = vperm.slane %v358, 0
      %v9404 = vperm.slane %v7360, 0
      %v9405 = vperm.slane %v7361, 0
      %v9406 = vperm.slane %v7362, 0
      %v9407 = vperm.slane %v7363, 0
      %v9408 = vperm.slane %v7364, 0
      %v9409 = vperm.slane %v7365, 0
      %v9410 = vperm.slane %v7366, 0
      %v9411 = vperm.slane %v359, 0
      %v9412 = vperm.slane %v7367, 0
      %v9413 = vperm.slane %v7368, 0
      %v9414 = vperm.slane %v7369, 0
      %v9415 = vperm.slane %v7370, 0
      %v9416 = vperm.slane %v7371, 0
      %v9417 = vperm.slane %v7372, 0
      %v9418 = vperm.slane %v7373, 0
      %v9419 = vperm.slane %v360, 0
      %v9420 = vperm.slane %v7374, 0
      %v9421 = vperm.slane %v7375, 0
      %v9422 = vperm.slane %v7376, 0
      %v9423 = vperm.slane %v7377, 0
      %v9424 = vperm.slane %v7378, 0
      %v9425 = vperm.slane %v7379, 0
      %v9426 = vperm.slane %v7380, 0
      %v9427 = vperm.slane %v361, 0
      %v9428 = vperm.slane %v7381, 0
      %v9429 = vperm.slane %v7382, 0
      %v9430 = vperm.slane %v7383, 0
      %v9431 = vperm.slane %v7384, 0
      %v9432 = vperm.slane %v7385, 0
      %v9433 = vperm.slane %v7386, 0
      %v9434 = vperm.slane %v7387, 0
      %v9435 = vperm.slane %v362, 0
      %v9436 = vperm.slane %v7388, 0
      %v9437 = vperm.slane %v7389, 0
      %v9438 = vperm.slane %v7390, 0
      %v9439 = vperm.slane %v7391, 0
      %v9440 = vperm.slane %v7392, 0
      %v9441 = vperm.slane %v7393, 0
      %v9442 = vperm.slane %v7394, 0
      %v9699 = vmul.f32 %v9187, %v7401
      %v9700 = vmul.f32 %v9188, %v7408
      %v9701 = vmul.f32 %v9189, %v7415
      %v9702 = vmul.f32 %v9190, %v7422
      %v9703 = vmul.f32 %v9191, %v7429
      %v9704 = vmul.f32 %v9192, %v7436
      %v9705 = vmul.f32 %v9193, %v7443
      %v9706 = vmul.f32 %v9194, %v7450
      %v9707 = vmul.f32 %v9195, %v7457
      %v9708 = vmul.f32 %v9196, %v7464
      %v9709 = vmul.f32 %v9197, %v7471
      %v9710 = vmul.f32 %v9198, %v7478
      %v9711 = vmul.f32 %v9199, %v7485
      %v9712 = vmul.f32 %v9200, %v7492
      %v9713 = vmul.f32 %v9201, %v7499
      %v9714 = vmul.f32 %v9202, %v7506
      %v9715 = vmul.f32 %v9203, %v7513
      %v9716 = vmul.f32 %v9204, %v7520
      %v9717 = vmul.f32 %v9205, %v7527
      %v9718 = vmul.f32 %v9206, %v7534
      %v9719 = vmul.f32 %v9207, %v7541
      %v9720 = vmul.f32 %v9208, %v7548
      %v9721 = vmul.f32 %v9209, %v7555
      %v9722 = vmul.f32 %v9210, %v7562
      %v9723 = vmul.f32 %v9211, %v7569
      %v9724 = vmul.f32 %v9212, %v7576
      %v9725 = vmul.f32 %v9213, %v7583
      %v9726 = vmul.f32 %v9214, %v7590
      %v9727 = vmul.f32 %v9215, %v7597
      %v9728 = vmul.f32 %v9216, %v7604
      %v9729 = vmul.f32 %v9217, %v7611
      %v9730 = vmul.f32 %v9218, %v7618
      %v9731 = vmul.f32 %v9219, %v7625
      %v9732 = vmul.f32 %v9220, %v7632
      %v9733 = vmul.f32 %v9221, %v7639
      %v9734 = vmul.f32 %v9222, %v7646
      %v9735 = vmul.f32 %v9223, %v7653
      %v9736 = vmul.f32 %v9224, %v7660
      %v9737 = vmul.f32 %v9225, %v7667
      %v9738 = vmul.f32 %v9226, %v7674
      %v9739 = vmul.f32 %v9227, %v7681
      %v9740 = vmul.f32 %v9228, %v7688
      %v9741 = vmul.f32 %v9229, %v7695
      %v9742 = vmul.f32 %v9230, %v7702
      %v9743 = vmul.f32 %v9231, %v7709
      %v9744 = vmul.f32 %v9232, %v7716
      %v9745 = vmul.f32 %v9233, %v7723
      %v9746 = vmul.f32 %v9234, %v7730
      %v9747 = vmul.f32 %v9235, %v7737
      %v9748 = vmul.f32 %v9236, %v7744
      %v9749 = vmul.f32 %v9237, %v7751
      %v9750 = vmul.f32 %v9238, %v7758
      %v9751 = vmul.f32 %v9239, %v7765
      %v9752 = vmul.f32 %v9240, %v7772
      %v9753 = vmul.f32 %v9241, %v7779
      %v9754 = vmul.f32 %v9242, %v7786
      %v9755 = vmul.f32 %v9243, %v7793
      %v9756 = vmul.f32 %v9244, %v7800
      %v9757 = vmul.f32 %v9245, %v7807
      %v9758 = vmul.f32 %v9246, %v7814
      %v9759 = vmul.f32 %v9247, %v7821
      %v9760 = vmul.f32 %v9248, %v7828
      %v9761 = vmul.f32 %v9249, %v7835
      %v9762 = vmul.f32 %v9250, %v7842
      %v9763 = vmul.f32 %v9251, %v7849
      %v9764 = vmul.f32 %v9252, %v7856
      %v9765 = vmul.f32 %v9253, %v7863
      %v9766 = vmul.f32 %v9254, %v7870
      %v9767 = vmul.f32 %v9255, %v7877
      %v9768 = vmul.f32 %v9256, %v7884
      %v9769 = vmul.f32 %v9257, %v7891
      %v9770 = vmul.f32 %v9258, %v7898
      %v9771 = vmul.f32 %v9259, %v7905
      %v9772 = vmul.f32 %v9260, %v7912
      %v9773 = vmul.f32 %v9261, %v7919
      %v9774 = vmul.f32 %v9262, %v7926
      %v9775 = vmul.f32 %v9263, %v7933
      %v9776 = vmul.f32 %v9264, %v7940
      %v9777 = vmul.f32 %v9265, %v7947
      %v9778 = vmul.f32 %v9266, %v7954
      %v9779 = vmul.f32 %v9267, %v7961
      %v9780 = vmul.f32 %v9268, %v7968
      %v9781 = vmul.f32 %v9269, %v7975
      %v9782 = vmul.f32 %v9270, %v7982
      %v9783 = vmul.f32 %v9271, %v7989
      %v9784 = vmul.f32 %v9272, %v7996
      %v9785 = vmul.f32 %v9273, %v8003
      %v9786 = vmul.f32 %v9274, %v8010
      %v9787 = vmul.f32 %v9275, %v8017
      %v9788 = vmul.f32 %v9276, %v8024
      %v9789 = vmul.f32 %v9277, %v8031
      %v9790 = vmul.f32 %v9278, %v8038
      %v9791 = vmul.f32 %v9279, %v8045
      %v9792 = vmul.f32 %v9280, %v8052
      %v9793 = vmul.f32 %v9281, %v8059
      %v9794 = vmul.f32 %v9282, %v8066
      %v9795 = vmul.f32 %v9283, %v8073
      %v9796 = vmul.f32 %v9284, %v8080
      %v9797 = vmul.f32 %v9285, %v8087
      %v9798 = vmul.f32 %v9286, %v8094
      %v9799 = vmul.f32 %v9287, %v8101
      %v9800 = vmul.f32 %v9288, %v8108
      %v9801 = vmul.f32 %v9289, %v8115
      %v9802 = vmul.f32 %v9290, %v8122
      %v9803 = vmul.f32 %v9291, %v8129
      %v9804 = vmul.f32 %v9292, %v8136
      %v9805 = vmul.f32 %v9293, %v8143
      %v9806 = vmul.f32 %v9294, %v8150
      %v9807 = vmul.f32 %v9295, %v8157
      %v9808 = vmul.f32 %v9296, %v8164
      %v9809 = vmul.f32 %v9297, %v8171
      %v9810 = vmul.f32 %v9298, %v8178
      %v9811 = vmul.f32 %v9299, %v8185
      %v9812 = vmul.f32 %v9300, %v8192
      %v9813 = vmul.f32 %v9301, %v8199
      %v9814 = vmul.f32 %v9302, %v8206
      %v9815 = vmul.f32 %v9303, %v8213
      %v9816 = vmul.f32 %v9304, %v8220
      %v9817 = vmul.f32 %v9305, %v8227
      %v9818 = vmul.f32 %v9306, %v8234
      %v9819 = vmul.f32 %v9307, %v8241
      %v9820 = vmul.f32 %v9308, %v8248
      %v9821 = vmul.f32 %v9309, %v8255
      %v9822 = vmul.f32 %v9310, %v8262
      %v9823 = vmul.f32 %v9311, %v8269
      %v9824 = vmul.f32 %v9312, %v8276
      %v9825 = vmul.f32 %v9313, %v8283
      %v9826 = vmul.f32 %v9314, %v8290
      %v9827 = vmul.f32 %v9315, %v8297
      %v9828 = vmul.f32 %v9316, %v8304
      %v9829 = vmul.f32 %v9317, %v8311
      %v9830 = vmul.f32 %v9318, %v8318
      %v9831 = vmul.f32 %v9319, %v8325
      %v9832 = vmul.f32 %v9320, %v8332
      %v9833 = vmul.f32 %v9321, %v8339
      %v9834 = vmul.f32 %v9322, %v8346
      %v9835 = vmul.f32 %v9323, %v8353
      %v9836 = vmul.f32 %v9324, %v8360
      %v9837 = vmul.f32 %v9325, %v8367
      %v9838 = vmul.f32 %v9326, %v8374
      %v9839 = vmul.f32 %v9327, %v8381
      %v9840 = vmul.f32 %v9328, %v8388
      %v9841 = vmul.f32 %v9329, %v8395
      %v9842 = vmul.f32 %v9330, %v8402
      %v9843 = vmul.f32 %v9331, %v8409
      %v9844 = vmul.f32 %v9332, %v8416
      %v9845 = vmul.f32 %v9333, %v8423
      %v9846 = vmul.f32 %v9334, %v8430
      %v9847 = vmul.f32 %v9335, %v8437
      %v9848 = vmul.f32 %v9336, %v8444
      %v9849 = vmul.f32 %v9337, %v8451
      %v9850 = vmul.f32 %v9338, %v8458
      %v9851 = vmul.f32 %v9339, %v8465
      %v9852 = vmul.f32 %v9340, %v8472
      %v9853 = vmul.f32 %v9341, %v8479
      %v9854 = vmul.f32 %v9342, %v8486
      %v9855 = vmul.f32 %v9343, %v8493
      %v9856 = vmul.f32 %v9344, %v8500
      %v9857 = vmul.f32 %v9345, %v8507
      %v9858 = vmul.f32 %v9346, %v8514
      %v9859 = vmul.f32 %v9347, %v8521
      %v9860 = vmul.f32 %v9348, %v8528
      %v9861 = vmul.f32 %v9349, %v8535
      %v9862 = vmul.f32 %v9350, %v8542
      %v9863 = vmul.f32 %v9351, %v8549
      %v9864 = vmul.f32 %v9352, %v8556
      %v9865 = vmul.f32 %v9353, %v8563
      %v9866 = vmul.f32 %v9354, %v8570
      %v9867 = vmul.f32 %v9355, %v8577
      %v9868 = vmul.f32 %v9356, %v8584
      %v9869 = vmul.f32 %v9357, %v8591
      %v9870 = vmul.f32 %v9358, %v8598
      %v9871 = vmul.f32 %v9359, %v8605
      %v9872 = vmul.f32 %v9360, %v8612
      %v9873 = vmul.f32 %v9361, %v8619
      %v9874 = vmul.f32 %v9362, %v8626
      %v9875 = vmul.f32 %v9363, %v8633
      %v9876 = vmul.f32 %v9364, %v8640
      %v9877 = vmul.f32 %v9365, %v8647
      %v9878 = vmul.f32 %v9366, %v8654
      %v9879 = vmul.f32 %v9367, %v8661
      %v9880 = vmul.f32 %v9368, %v8668
      %v9881 = vmul.f32 %v9369, %v8675
      %v9882 = vmul.f32 %v9370, %v8682
      %v9883 = vmul.f32 %v9371, %v8689
      %v9884 = vmul.f32 %v9372, %v8696
      %v9885 = vmul.f32 %v9373, %v8703
      %v9886 = vmul.f32 %v9374, %v8710
      %v9887 = vmul.f32 %v9375, %v8717
      %v9888 = vmul.f32 %v9376, %v8724
      %v9889 = vmul.f32 %v9377, %v8731
      %v9890 = vmul.f32 %v9378, %v8738
      %v9891 = vmul.f32 %v9379, %v8745
      %v9892 = vmul.f32 %v9380, %v8752
      %v9893 = vmul.f32 %v9381, %v8759
      %v9894 = vmul.f32 %v9382, %v8766
      %v9895 = vmul.f32 %v9383, %v8773
      %v9896 = vmul.f32 %v9384, %v8780
      %v9897 = vmul.f32 %v9385, %v8787
      %v9898 = vmul.f32 %v9386, %v8794
      %v9899 = vmul.f32 %v9387, %v8801
      %v9900 = vmul.f32 %v9388, %v8808
      %v9901 = vmul.f32 %v9389, %v8815
      %v9902 = vmul.f32 %v9390, %v8822
      %v9903 = vmul.f32 %v9391, %v8829
      %v9904 = vmul.f32 %v9392, %v8836
      %v9905 = vmul.f32 %v9393, %v8843
      %v9906 = vmul.f32 %v9394, %v8850
      %v9907 = vmul.f32 %v9395, %v8857
      %v9908 = vmul.f32 %v9396, %v8864
      %v9909 = vmul.f32 %v9397, %v8871
      %v9910 = vmul.f32 %v9398, %v8878
      %v9911 = vmul.f32 %v9399, %v8885
      %v9912 = vmul.f32 %v9400, %v8892
      %v9913 = vmul.f32 %v9401, %v8899
      %v9914 = vmul.f32 %v9402, %v8906
      %v9915 = vmul.f32 %v9403, %v8913
      %v9916 = vmul.f32 %v9404, %v8920
      %v9917 = vmul.f32 %v9405, %v8927
      %v9918 = vmul.f32 %v9406, %v8934
      %v9919 = vmul.f32 %v9407, %v8941
      %v9920 = vmul.f32 %v9408, %v8948
      %v9921 = vmul.f32 %v9409, %v8955
      %v9922 = vmul.f32 %v9410, %v8962
      %v9923 = vmul.f32 %v9411, %v8969
      %v9924 = vmul.f32 %v9412, %v8976
      %v9925 = vmul.f32 %v9413, %v8983
      %v9926 = vmul.f32 %v9414, %v8990
      %v9927 = vmul.f32 %v9415, %v8997
      %v9928 = vmul.f32 %v9416, %v9004
      %v9929 = vmul.f32 %v9417, %v9011
      %v9930 = vmul.f32 %v9418, %v9018
      %v9931 = vmul.f32 %v9419, %v9025
      %v9932 = vmul.f32 %v9420, %v9032
      %v9933 = vmul.f32 %v9421, %v9039
      %v9934 = vmul.f32 %v9422, %v9046
      %v9935 = vmul.f32 %v9423, %v9053
      %v9936 = vmul.f32 %v9424, %v9060
      %v9937 = vmul.f32 %v9425, %v9067
      %v9938 = vmul.f32 %v9426, %v9074
      %v9939 = vmul.f32 %v9427, %v9081
      %v9940 = vmul.f32 %v9428, %v9088
      %v9941 = vmul.f32 %v9429, %v9095
      %v9942 = vmul.f32 %v9430, %v9102
      %v9943 = vmul.f32 %v9431, %v9109
      %v9944 = vmul.f32 %v9432, %v9116
      %v9945 = vmul.f32 %v9433, %v9123
      %v9946 = vmul.f32 %v9434, %v9130
      %v9947 = vmul.f32 %v9435, %v9137
      %v9948 = vmul.f32 %v9436, %v9144
      %v9949 = vmul.f32 %v9437, %v9151
      %v9950 = vmul.f32 %v9438, %v9158
      %v9951 = vmul.f32 %v9439, %v9165
      %v9952 = vmul.f32 %v9440, %v9172
      %v9953 = vmul.f32 %v9441, %v9179
      %v9954 = vmul.f32 %v9442, %v9186
      %9955 = vst.msk [vmem:[%s322] sm:$0xff] %vm380, %v9699
      %9956 = vst.msk [vmem:[%s322 + $0x8] sm:$0xff] %vm380, %v9700
      %9957 = vst.msk [vmem:[%s322 + $0x10] sm:$0xff] %vm380, %v9701
      %9958 = vst.msk [vmem:[%s322 + $0x18] sm:$0xff] %vm380, %v9702
      %9959 = vst.msk [vmem:[%s322 + $0x20] sm:$0xff] %vm380, %v9703
      %9960 = vst.msk [vmem:[%s322 + $0x28] sm:$0xff] %vm380, %v9704
      %9961 = vst.msk [vmem:[%s322 + $0x30] sm:$0xff] %vm380, %v9705
      %9962 = vst.msk [vmem:[%s322 + $0x38] sm:$0xff] %vm380, %v9706
      %9963 = vst.msk [vmem:[%s322 + $0x40] sm:$0xff] %vm380, %v9707
      %9964 = vst.msk [vmem:[%s322 + $0x48] sm:$0xff] %vm380, %v9708
      %9965 = vst.msk [vmem:[%s322 + $0x50] sm:$0xff] %vm380, %v9709
      %9966 = vst.msk [vmem:[%s322 + $0x58] sm:$0xff] %vm380, %v9710
      %9967 = vst.msk [vmem:[%s322 + $0x60] sm:$0xff] %vm380, %v9711
      %9968 = vst.msk [vmem:[%s322 + $0x68] sm:$0xff] %vm380, %v9712
      %9969 = vst.msk [vmem:[%s322 + $0x70] sm:$0xff] %vm380, %v9713
      %9970 = vst.msk [vmem:[%s322 + $0x78] sm:$0xff] %vm380, %v9714
      %9971 = vst.msk [vmem:[%s322 + $0x80] sm:$0xff] %vm380, %v9715
      %9972 = vst.msk [vmem:[%s322 + $0x88] sm:$0xff] %vm380, %v9716
      %9973 = vst.msk [vmem:[%s322 + $0x90] sm:$0xff] %vm380, %v9717
      %9974 = vst.msk [vmem:[%s322 + $0x98] sm:$0xff] %vm380, %v9718
      %9975 = vst.msk [vmem:[%s322 + $0xa0] sm:$0xff] %vm380, %v9719
      %9976 = vst.msk [vmem:[%s322 + $0xa8] sm:$0xff] %vm380, %v9720
      %9977 = vst.msk [vmem:[%s322 + $0xb0] sm:$0xff] %vm380, %v9721
      %9978 = vst.msk [vmem:[%s322 + $0xb8] sm:$0xff] %vm380, %v9722
      %9979 = vst.msk [vmem:[%s322 + $0xc0] sm:$0xff] %vm380, %v9723
      %9980 = vst.msk [vmem:[%s322 + $0xc8] sm:$0xff] %vm380, %v9724
      %9981 = vst.msk [vmem:[%s322 + $0xd0] sm:$0xff] %vm380, %v9725
      %9982 = vst.msk [vmem:[%s322 + $0xd8] sm:$0xff] %vm380, %v9726
      %9983 = vst.msk [vmem:[%s322 + $0xe0] sm:$0xff] %vm380, %v9727
      %9984 = vst.msk [vmem:[%s322 + $0xe8] sm:$0xff] %vm380, %v9728
      %9985 = vst.msk [vmem:[%s322 + $0xf0] sm:$0xff] %vm380, %v9729
      %9986 = vst.msk [vmem:[%s322 + $0xf8] sm:$0xff] %vm380, %v9730
      %9987 = vst.msk [vmem:[%s322 + $0x100] sm:$0xff] %vm380, %v9731
      %9988 = vst.msk [vmem:[%s322 + $0x108] sm:$0xff] %vm380, %v9732
      %9989 = vst.msk [vmem:[%s322 + $0x110] sm:$0xff] %vm380, %v9733
      %9990 = vst.msk [vmem:[%s322 + $0x118] sm:$0xff] %vm380, %v9734
      %9991 = vst.msk [vmem:[%s322 + $0x120] sm:$0xff] %vm380, %v9735
      %9992 = vst.msk [vmem:[%s322 + $0x128] sm:$0xff] %vm380, %v9736
      %9993 = vst.msk [vmem:[%s322 + $0x130] sm:$0xff] %vm380, %v9737
      %9994 = vst.msk [vmem:[%s322 + $0x138] sm:$0xff] %vm380, %v9738
      %9995 = vst.msk [vmem:[%s322 + $0x140] sm:$0xff] %vm380, %v9739
      %9996 = vst.msk [vmem:[%s322 + $0x148] sm:$0xff] %vm380, %v9740
      %9997 = vst.msk [vmem:[%s322 + $0x150] sm:$0xff] %vm380, %v9741
      %9998 = vst.msk [vmem:[%s322 + $0x158] sm:$0xff] %vm380, %v9742
      %9999 = vst.msk [vmem:[%s322 + $0x160] sm:$0xff] %vm380, %v9743
      %10000 = vst.msk [vmem:[%s322 + $0x168] sm:$0xff] %vm380, %v9744
      %10001 = vst.msk [vmem:[%s322 + $0x170] sm:$0xff] %vm380, %v9745
      %10002 = vst.msk [vmem:[%s322 + $0x178] sm:$0xff] %vm380, %v9746
      %10003 = vst.msk [vmem:[%s322 + $0x180] sm:$0xff] %vm380, %v9747
      %10004 = vst.msk [vmem:[%s322 + $0x188] sm:$0xff] %vm380, %v9748
      %10005 = vst.msk [vmem:[%s322 + $0x190] sm:$0xff] %vm380, %v9749
      %10006 = vst.msk [vmem:[%s322 + $0x198] sm:$0xff] %vm380, %v9750
      %10007 = vst.msk [vmem:[%s322 + $0x1a0] sm:$0xff] %vm380, %v9751
      %10008 = vst.msk [vmem:[%s322 + $0x1a8] sm:$0xff] %vm380, %v9752
      %10009 = vst.msk [vmem:[%s322 + $0x1b0] sm:$0xff] %vm380, %v9753
      %10010 = vst.msk [vmem:[%s322 + $0x1b8] sm:$0xff] %vm380, %v9754
      %10011 = vst.msk [vmem:[%s322 + $0x1c0] sm:$0xff] %vm380, %v9755
      %10012 = vst.msk [vmem:[%s322 + $0x1c8] sm:$0xff] %vm380, %v9756
      %10013 = vst.msk [vmem:[%s322 + $0x1d0] sm:$0xff] %vm380, %v9757
      %10014 = vst.msk [vmem:[%s322 + $0x1d8] sm:$0xff] %vm380, %v9758
      %10015 = vst.msk [vmem:[%s322 + $0x1e0] sm:$0xff] %vm380, %v9759
      %10016 = vst.msk [vmem:[%s322 + $0x1e8] sm:$0xff] %vm380, %v9760
      %10017 = vst.msk [vmem:[%s322 + $0x1f0] sm:$0xff] %vm380, %v9761
      %10018 = vst.msk [vmem:[%s322 + $0x1f8] sm:$0xff] %vm380, %v9762
      %10019 = vst.msk [vmem:[%s322 + $0x200] sm:$0xff] %vm380, %v9763
      %10020 = vst.msk [vmem:[%s322 + $0x208] sm:$0xff] %vm380, %v9764
      %10021 = vst.msk [vmem:[%s322 + $0x210] sm:$0xff] %vm380, %v9765
      %10022 = vst.msk [vmem:[%s322 + $0x218] sm:$0xff] %vm380, %v9766
      %10023 = vst.msk [vmem:[%s322 + $0x220] sm:$0xff] %vm380, %v9767
      %10024 = vst.msk [vmem:[%s322 + $0x228] sm:$0xff] %vm380, %v9768
      %10025 = vst.msk [vmem:[%s322 + $0x230] sm:$0xff] %vm380, %v9769
      %10026 = vst.msk [vmem:[%s322 + $0x238] sm:$0xff] %vm380, %v9770
      %10027 = vst.msk [vmem:[%s322 + $0x240] sm:$0xff] %vm380, %v9771
      %10028 = vst.msk [vmem:[%s322 + $0x248] sm:$0xff] %vm380, %v9772
      %10029 = vst.msk [vmem:[%s322 + $0x250] sm:$0xff] %vm380, %v9773
      %10030 = vst.msk [vmem:[%s322 + $0x258] sm:$0xff] %vm380, %v9774
      %10031 = vst.msk [vmem:[%s322 + $0x260] sm:$0xff] %vm380, %v9775
      %10032 = vst.msk [vmem:[%s322 + $0x268] sm:$0xff] %vm380, %v9776
      %10033 = vst.msk [vmem:[%s322 + $0x270] sm:$0xff] %vm380, %v9777
      %10034 = vst.msk [vmem:[%s322 + $0x278] sm:$0xff] %vm380, %v9778
      %10035 = vst.msk [vmem:[%s322 + $0x280] sm:$0xff] %vm380, %v9779
      %10036 = vst.msk [vmem:[%s322 + $0x288] sm:$0xff] %vm380, %v9780
      %10037 = vst.msk [vmem:[%s322 + $0x290] sm:$0xff] %vm380, %v9781
      %10038 = vst.msk [vmem:[%s322 + $0x298] sm:$0xff] %vm380, %v9782
      %10039 = vst.msk [vmem:[%s322 + $0x2a0] sm:$0xff] %vm380, %v9783
      %10040 = vst.msk [vmem:[%s322 + $0x2a8] sm:$0xff] %vm380, %v9784
      %10041 = vst.msk [vmem:[%s322 + $0x2b0] sm:$0xff] %vm380, %v9785
      %10042 = vst.msk [vmem:[%s322 + $0x2b8] sm:$0xff] %vm380, %v9786
      %10043 = vst.msk [vmem:[%s322 + $0x2c0] sm:$0xff] %vm380, %v9787
      %10044 = vst.msk [vmem:[%s322 + $0x2c8] sm:$0xff] %vm380, %v9788
      %10045 = vst.msk [vmem:[%s322 + $0x2d0] sm:$0xff] %vm380, %v9789
      %10046 = vst.msk [vmem:[%s322 + $0x2d8] sm:$0xff] %vm380, %v9790
      %10047 = vst.msk [vmem:[%s322 + $0x2e0] sm:$0xff] %vm380, %v9791
      %10048 = vst.msk [vmem:[%s322 + $0x2e8] sm:$0xff] %vm380, %v9792
      %10049 = vst.msk [vmem:[%s322 + $0x2f0] sm:$0xff] %vm380, %v9793
      %10050 = vst.msk [vmem:[%s322 + $0x2f8] sm:$0xff] %vm380, %v9794
      %10051 = vst.msk [vmem:[%s322 + $0x300] sm:$0xff] %vm380, %v9795
      %10052 = vst.msk [vmem:[%s322 + $0x308] sm:$0xff] %vm380, %v9796
      %10053 = vst.msk [vmem:[%s322 + $0x310] sm:$0xff] %vm380, %v9797
      %10054 = vst.msk [vmem:[%s322 + $0x318] sm:$0xff] %vm380, %v9798
      %10055 = vst.msk [vmem:[%s322 + $0x320] sm:$0xff] %vm380, %v9799
      %10056 = vst.msk [vmem:[%s322 + $0x328] sm:$0xff] %vm380, %v9800
      %10057 = vst.msk [vmem:[%s322 + $0x330] sm:$0xff] %vm380, %v9801
      %10058 = vst.msk [vmem:[%s322 + $0x338] sm:$0xff] %vm380, %v9802
      %10059 = vst.msk [vmem:[%s322 + $0x340] sm:$0xff] %vm380, %v9803
      %10060 = vst.msk [vmem:[%s322 + $0x348] sm:$0xff] %vm380, %v9804
      %10061 = vst.msk [vmem:[%s322 + $0x350] sm:$0xff] %vm380, %v9805
      %10062 = vst.msk [vmem:[%s322 + $0x358] sm:$0xff] %vm380, %v9806
      %10063 = vst.msk [vmem:[%s322 + $0x360] sm:$0xff] %vm380, %v9807
      %10064 = vst.msk [vmem:[%s322 + $0x368] sm:$0xff] %vm380, %v9808
      %10065 = vst.msk [vmem:[%s322 + $0x370] sm:$0xff] %vm380, %v9809
      %10066 = vst.msk [vmem:[%s322 + $0x378] sm:$0xff] %vm380, %v9810
      %10067 = vst.msk [vmem:[%s322 + $0x380] sm:$0xff] %vm380, %v9811
      %10068 = vst.msk [vmem:[%s322 + $0x388] sm:$0xff] %vm380, %v9812
      %10069 = vst.msk [vmem:[%s322 + $0x390] sm:$0xff] %vm380, %v9813
      %10070 = vst.msk [vmem:[%s322 + $0x398] sm:$0xff] %vm380, %v9814
      %10071 = vst.msk [vmem:[%s322 + $0x3a0] sm:$0xff] %vm380, %v9815
      %10072 = vst.msk [vmem:[%s322 + $0x3a8] sm:$0xff] %vm380, %v9816
      %10073 = vst.msk [vmem:[%s322 + $0x3b0] sm:$0xff] %vm380, %v9817
      %10074 = vst.msk [vmem:[%s322 + $0x3b8] sm:$0xff] %vm380, %v9818
      %10075 = vst.msk [vmem:[%s322 + $0x3c0] sm:$0xff] %vm380, %v9819
      %10076 = vst.msk [vmem:[%s322 + $0x3c8] sm:$0xff] %vm380, %v9820
      %10077 = vst.msk [vmem:[%s322 + $0x3d0] sm:$0xff] %vm380, %v9821
      %10078 = vst.msk [vmem:[%s322 + $0x3d8] sm:$0xff] %vm380, %v9822
      %10079 = vst.msk [vmem:[%s322 + $0x3e0] sm:$0xff] %vm380, %v9823
      %10080 = vst.msk [vmem:[%s322 + $0x3e8] sm:$0xff] %vm380, %v9824
      %10081 = vst.msk [vmem:[%s322 + $0x3f0] sm:$0xff] %vm380, %v9825
      %10082 = vst.msk [vmem:[%s322 + $0x3f8] sm:$0xff] %vm380, %v9826
      %10083 = vst.msk [vmem:[%s322 + $0x400] sm:$0xff] %vm380, %v9827
      %10084 = vst.msk [vmem:[%s322 + $0x408] sm:$0xff] %vm380, %v9828
      %10085 = vst.msk [vmem:[%s322 + $0x410] sm:$0xff] %vm380, %v9829
      %10086 = vst.msk [vmem:[%s322 + $0x418] sm:$0xff] %vm380, %v9830
      %10087 = vst.msk [vmem:[%s322 + $0x420] sm:$0xff] %vm380, %v9831
      %10088 = vst.msk [vmem:[%s322 + $0x428] sm:$0xff] %vm380, %v9832
      %10089 = vst.msk [vmem:[%s322 + $0x430] sm:$0xff] %vm380, %v9833
      %10090 = vst.msk [vmem:[%s322 + $0x438] sm:$0xff] %vm380, %v9834
      %10091 = vst.msk [vmem:[%s322 + $0x440] sm:$0xff] %vm380, %v9835
      %10092 = vst.msk [vmem:[%s322 + $0x448] sm:$0xff] %vm380, %v9836
      %10093 = vst.msk [vmem:[%s322 + $0x450] sm:$0xff] %vm380, %v9837
      %10094 = vst.msk [vmem:[%s322 + $0x458] sm:$0xff] %vm380, %v9838
      %10095 = vst.msk [vmem:[%s322 + $0x460] sm:$0xff] %vm380, %v9839
      %10096 = vst.msk [vmem:[%s322 + $0x468] sm:$0xff] %vm380, %v9840
      %10097 = vst.msk [vmem:[%s322 + $0x470] sm:$0xff] %vm380, %v9841
      %10098 = vst.msk [vmem:[%s322 + $0x478] sm:$0xff] %vm380, %v9842
      %10099 = vst.msk [vmem:[%s322 + $0x480] sm:$0xff] %vm380, %v9843
      %10100 = vst.msk [vmem:[%s322 + $0x488] sm:$0xff] %vm380, %v9844
      %10101 = vst.msk [vmem:[%s322 + $0x490] sm:$0xff] %vm380, %v9845
      %10102 = vst.msk [vmem:[%s322 + $0x498] sm:$0xff] %vm380, %v9846
      %10103 = vst.msk [vmem:[%s322 + $0x4a0] sm:$0xff] %vm380, %v9847
      %10104 = vst.msk [vmem:[%s322 + $0x4a8] sm:$0xff] %vm380, %v9848
      %10105 = vst.msk [vmem:[%s322 + $0x4b0] sm:$0xff] %vm380, %v9849
      %10106 = vst.msk [vmem:[%s322 + $0x4b8] sm:$0xff] %vm380, %v9850
      %10107 = vst.msk [vmem:[%s322 + $0x4c0] sm:$0xff] %vm380, %v9851
      %10108 = vst.msk [vmem:[%s322 + $0x4c8] sm:$0xff] %vm380, %v9852
      %10109 = vst.msk [vmem:[%s322 + $0x4d0] sm:$0xff] %vm380, %v9853
      %10110 = vst.msk [vmem:[%s322 + $0x4d8] sm:$0xff] %vm380, %v9854
      %10111 = vst.msk [vmem:[%s322 + $0x4e0] sm:$0xff] %vm380, %v9855
      %10112 = vst.msk [vmem:[%s322 + $0x4e8] sm:$0xff] %vm380, %v9856
      %10113 = vst.msk [vmem:[%s322 + $0x4f0] sm:$0xff] %vm380, %v9857
      %10114 = vst.msk [vmem:[%s322 + $0x4f8] sm:$0xff] %vm380, %v9858
      %10115 = vst.msk [vmem:[%s322 + $0x500] sm:$0xff] %vm380, %v9859
      %10116 = vst.msk [vmem:[%s322 + $0x508] sm:$0xff] %vm380, %v9860
      %10117 = vst.msk [vmem:[%s322 + $0x510] sm:$0xff] %vm380, %v9861
      %10118 = vst.msk [vmem:[%s322 + $0x518] sm:$0xff] %vm380, %v9862
      %10119 = vst.msk [vmem:[%s322 + $0x520] sm:$0xff] %vm380, %v9863
      %10120 = vst.msk [vmem:[%s322 + $0x528] sm:$0xff] %vm380, %v9864
      %10121 = vst.msk [vmem:[%s322 + $0x530] sm:$0xff] %vm380, %v9865
      %10122 = vst.msk [vmem:[%s322 + $0x538] sm:$0xff] %vm380, %v9866
      %10123 = vst.msk [vmem:[%s322 + $0x540] sm:$0xff] %vm380, %v9867
      %10124 = vst.msk [vmem:[%s322 + $0x548] sm:$0xff] %vm380, %v9868
      %10125 = vst.msk [vmem:[%s322 + $0x550] sm:$0xff] %vm380, %v9869
      %10126 = vst.msk [vmem:[%s322 + $0x558] sm:$0xff] %vm380, %v9870
      %10127 = vst.msk [vmem:[%s322 + $0x560] sm:$0xff] %vm380, %v9871
      %10128 = vst.msk [vmem:[%s322 + $0x568] sm:$0xff] %vm380, %v9872
      %10129 = vst.msk [vmem:[%s322 + $0x570] sm:$0xff] %vm380, %v9873
      %10130 = vst.msk [vmem:[%s322 + $0x578] sm:$0xff] %vm380, %v9874
      %10131 = vst.msk [vmem:[%s322 + $0x580] sm:$0xff] %vm380, %v9875
      %10132 = vst.msk [vmem:[%s322 + $0x588] sm:$0xff] %vm380, %v9876
      %10133 = vst.msk [vmem:[%s322 + $0x590] sm:$0xff] %vm380, %v9877
      %10134 = vst.msk [vmem:[%s322 + $0x598] sm:$0xff] %vm380, %v9878
      %10135 = vst.msk [vmem:[%s322 + $0x5a0] sm:$0xff] %vm380, %v9879
      %10136 = vst.msk [vmem:[%s322 + $0x5a8] sm:$0xff] %vm380, %v9880
      %10137 = vst.msk [vmem:[%s322 + $0x5b0] sm:$0xff] %vm380, %v9881
      %10138 = vst.msk [vmem:[%s322 + $0x5b8] sm:$0xff] %vm380, %v9882
      %10139 = vst.msk [vmem:[%s322 + $0x5c0] sm:$0xff] %vm380, %v9883
      %10140 = vst.msk [vmem:[%s322 + $0x5c8] sm:$0xff] %vm380, %v9884
      %10141 = vst.msk [vmem:[%s322 + $0x5d0] sm:$0xff] %vm380, %v9885
      %10142 = vst.msk [vmem:[%s322 + $0x5d8] sm:$0xff] %vm380, %v9886
      %10143 = vst.msk [vmem:[%s322 + $0x5e0] sm:$0xff] %vm380, %v9887
      %10144 = vst.msk [vmem:[%s322 + $0x5e8] sm:$0xff] %vm380, %v9888
      %10145 = vst.msk [vmem:[%s322 + $0x5f0] sm:$0xff] %vm380, %v9889
      %10146 = vst.msk [vmem:[%s322 + $0x5f8] sm:$0xff] %vm380, %v9890
      %10147 = vst.msk [vmem:[%s322 + $0x600] sm:$0xff] %vm380, %v9891
      %10148 = vst.msk [vmem:[%s322 + $0x608] sm:$0xff] %vm380, %v9892
      %10149 = vst.msk [vmem:[%s322 + $0x610] sm:$0xff] %vm380, %v9893
      %10150 = vst.msk [vmem:[%s322 + $0x618] sm:$0xff] %vm380, %v9894
      %10151 = vst.msk [vmem:[%s322 + $0x620] sm:$0xff] %vm380, %v9895
      %10152 = vst.msk [vmem:[%s322 + $0x628] sm:$0xff] %vm380, %v9896
      %10153 = vst.msk [vmem:[%s322 + $0x630] sm:$0xff] %vm380, %v9897
      %10154 = vst.msk [vmem:[%s322 + $0x638] sm:$0xff] %vm380, %v9898
      %10155 = vst.msk [vmem:[%s322 + $0x640] sm:$0xff] %vm380, %v9899
      %10156 = vst.msk [vmem:[%s322 + $0x648] sm:$0xff] %vm380, %v9900
      %10157 = vst.msk [vmem:[%s322 + $0x650] sm:$0xff] %vm380, %v9901
      %10158 = vst.msk [vmem:[%s322 + $0x658] sm:$0xff] %vm380, %v9902
      %10159 = vst.msk [vmem:[%s322 + $0x660] sm:$0xff] %vm380, %v9903
      %10160 = vst.msk [vmem:[%s322 + $0x668] sm:$0xff] %vm380, %v9904
      %10161 = vst.msk [vmem:[%s322 + $0x670] sm:$0xff] %vm380, %v9905
      %10162 = vst.msk [vmem:[%s322 + $0x678] sm:$0xff] %vm380, %v9906
      %10163 = vst.msk [vmem:[%s322 + $0x680] sm:$0xff] %vm380, %v9907
      %10164 = vst.msk [vmem:[%s322 + $0x688] sm:$0xff] %vm380, %v9908
      %10165 = vst.msk [vmem:[%s322 + $0x690] sm:$0xff] %vm380, %v9909
      %10166 = vst.msk [vmem:[%s322 + $0x698] sm:$0xff] %vm380, %v9910
      %10167 = vst.msk [vmem:[%s322 + $0x6a0] sm:$0xff] %vm380, %v9911
      %10168 = vst.msk [vmem:[%s322 + $0x6a8] sm:$0xff] %vm380, %v9912
      %10169 = vst.msk [vmem:[%s322 + $0x6b0] sm:$0xff] %vm380, %v9913
      %10170 = vst.msk [vmem:[%s322 + $0x6b8] sm:$0xff] %vm380, %v9914
      %10171 = vst.msk [vmem:[%s322 + $0x6c0] sm:$0xff] %vm380, %v9915
      %10172 = vst.msk [vmem:[%s322 + $0x6c8] sm:$0xff] %vm380, %v9916
      %10173 = vst.msk [vmem:[%s322 + $0x6d0] sm:$0xff] %vm380, %v9917
      %10174 = vst.msk [vmem:[%s322 + $0x6d8] sm:$0xff] %vm380, %v9918
      %10175 = vst.msk [vmem:[%s322 + $0x6e0] sm:$0xff] %vm380, %v9919
      %10176 = vst.msk [vmem:[%s322 + $0x6e8] sm:$0xff] %vm380, %v9920
      %10177 = vst.msk [vmem:[%s322 + $0x6f0] sm:$0xff] %vm380, %v9921
      %10178 = vst.msk [vmem:[%s322 + $0x6f8] sm:$0xff] %vm380, %v9922
      %10179 = vst.msk [vmem:[%s322 + $0x700] sm:$0xff] %vm380, %v9923
      %10180 = vst.msk [vmem:[%s322 + $0x708] sm:$0xff] %vm380, %v9924
      %10181 = vst.msk [vmem:[%s322 + $0x710] sm:$0xff] %vm380, %v9925
      %10182 = vst.msk [vmem:[%s322 + $0x718] sm:$0xff] %vm380, %v9926
      %10183 = vst.msk [vmem:[%s322 + $0x720] sm:$0xff] %vm380, %v9927
      %10184 = vst.msk [vmem:[%s322 + $0x728] sm:$0xff] %vm380, %v9928
      %10185 = vst.msk [vmem:[%s322 + $0x730] sm:$0xff] %vm380, %v9929
      %10186 = vst.msk [vmem:[%s322 + $0x738] sm:$0xff] %vm380, %v9930
      %10187 = vst.msk [vmem:[%s322 + $0x740] sm:$0xff] %vm380, %v9931
      %10188 = vst.msk [vmem:[%s322 + $0x748] sm:$0xff] %vm380, %v9932
      %10189 = vst.msk [vmem:[%s322 + $0x750] sm:$0xff] %vm380, %v9933
      %10190 = vst.msk [vmem:[%s322 + $0x758] sm:$0xff] %vm380, %v9934
      %10191 = vst.msk [vmem:[%s322 + $0x760] sm:$0xff] %vm380, %v9935
      %10192 = vst.msk [vmem:[%s322 + $0x768] sm:$0xff] %vm380, %v9936
      %10193 = vst.msk [vmem:[%s322 + $0x770] sm:$0xff] %vm380, %v9937
      %10194 = vst.msk [vmem:[%s322 + $0x778] sm:$0xff] %vm380, %v9938
      %10195 = vst.msk [vmem:[%s322 + $0x780] sm:$0xff] %vm380, %v9939
      %10196 = vst.msk [vmem:[%s322 + $0x788] sm:$0xff] %vm380, %v9940
      %10197 = vst.msk [vmem:[%s322 + $0x790] sm:$0xff] %vm380, %v9941
      %10198 = vst.msk [vmem:[%s322 + $0x798] sm:$0xff] %vm380, %v9942
      %10199 = vst.msk [vmem:[%s322 + $0x7a0] sm:$0xff] %vm380, %v9943
      %10200 = vst.msk [vmem:[%s322 + $0x7a8] sm:$0xff] %vm380, %v9944
      %10201 = vst.msk [vmem:[%s322 + $0x7b0] sm:$0xff] %vm380, %v9945
      %10202 = vst.msk [vmem:[%s322 + $0x7b8] sm:$0xff] %vm380, %v9946
      %10203 = vst.msk [vmem:[%s322 + $0x7c0] sm:$0xff] %vm380, %v9947
      %10204 = vst.msk [vmem:[%s322 + $0x7c8] sm:$0xff] %vm380, %v9948
      %10205 = vst.msk [vmem:[%s322 + $0x7d0] sm:$0xff] %vm380, %v9949
      %10206 = vst.msk [vmem:[%s322 + $0x7d8] sm:$0xff] %vm380, %v9950
      %10207 = vst.msk [vmem:[%s322 + $0x7e0] sm:$0xff] %vm380, %v9951
      %10208 = vst.msk [vmem:[%s322 + $0x7e8] sm:$0xff] %vm380, %v9952
      %10209 = vst.msk [vmem:[%s322 + $0x7f0] sm:$0xff] %vm380, %v9953
      %10210 = vst.msk [vmem:[%s322 + $0x7f8] sm:$0xff] %vm380, %v9954
      %p10211 = scmp.lt.s32.totalorder %s22, 1
      %s10212 = scalar_select %p10211, %s22, 1
      %p10213 = scmp.lt.s32.totalorder %s23, 0
      %s10214 = scalar_select %p10213, %s23, 0
      %s10215 = smul.addr %s10214, 2
      %s10216 = smul.addr %s10212, 2
      %s10217 = sadd.s32 %s10215, %s10216
      %s10218 = smul.addr %s10217, 8
      %s10219 = scalar_lea.vmem %s4, %s10218
      %p10220 = scmp.lt.s32.totalorder %s22, 1
      %s10221 = scalar_select %p10220, %s22, 1
      %p10222 = scmp.lt.s32.totalorder %s23, 0
      %s10223 = scalar_select %p10222, %s23, 0
      %s10224 = smul.addr %s10221, 256
      %s10225 = sadd.s32 %s10223, %s10224
      %s10226 = smul.addr %s10225, 8
      %s10227 = scalar_lea.vmem %s5, %s10226
      %p10228 = scmp.lt.s32.totalorder %s22, 1
      %s10229 = scalar_select %p10228, %s22, 1
      %p10230 = scmp.lt.s32.totalorder %s23, 0
      %s10231 = scalar_select %p10230, %s23, 0
      %s10232 = sadd.s32 %s10231, %s10229
      %s10233 = smul.addr %s10232, 8
      %s10234 = scalar_lea.vmem %s6, %s10233
      // Predicated region
      $region37: #{semantic_decoupling_pallas.1} parent=35 // pred_check
        %p10235 = pneg %p144
      $region38: #{semantic_decoupling_pallas.1} parent=35 // pred_check_branch
        %10237 = sbr.rel (%p10235) target = $region40
      $region39: #{semantic_decoupling_pallas.1} parent=35 // pred_region
        _
      $region40: #{semantic_decoupling_pallas.1} parent=35 // pred_fallthru
        _
      // Predicated region
      $region41: #{semantic_decoupling_pallas.1} parent=35 // pred_check
        %p10238 = pneg %p172
      $region42: #{semantic_decoupling_pallas.1} parent=35 // pred_check_branch
        %10240 = sbr.rel (%p10238) target = $region44
      $region43: #{semantic_decoupling_pallas.1} parent=35 // pred_region
        _
      $region44: #{semantic_decoupling_pallas.1} parent=35 // pred_fallthru
        _
      // Predicated region
      $region45: #{semantic_decoupling_pallas.1} parent=35 // pred_check
        %p10241 = pneg %p200
      $region46: #{semantic_decoupling_pallas.1} parent=35 // pred_check_branch
        %10243 = sbr.rel (%p10241) target = $region48
      $region47: #{semantic_decoupling_pallas.1} parent=35 // pred_region
        _
      $region48: #{semantic_decoupling_pallas.1} parent=35 // pred_fallthru
        _
    $region36: #{semantic_decoupling_pallas.1} parent=5 // pred_fallthru
      _
    %p10244 = scmp.le.s32.totalorder 2, %s13
    // Predicated region
    $region49: #{semantic_decoupling_pallas.1} parent=5 // pred_check
      %p10245 = pneg %p10244
    $region50: #{semantic_decoupling_pallas.1} parent=5 // pred_check_branch
      %10247 = sbr.rel (%p10245) target = $region52
    $region51: #{semantic_decoupling_pallas.1} parent=5 // pred_region
      %s10248 = ssub.s32 %s13, 2
      // Predicated region
      $region53: #{semantic_decoupling_pallas.1} parent=51 // pred_check
        %p10249 = pneg %p150
      $region54: #{semantic_decoupling_pallas.1} parent=51 // pred_check_branch
        %10251 = sbr.rel (%p10249) target = $region56
      $region55: #{semantic_decoupling_pallas.1} parent=51 // pred_region
        %p10252 = scmp.lt.s32.totalorder %s24, 1
        %s10253 = scalar_select %p10252, %s24, 1
        %p10254 = scmp.lt.s32.totalorder %s25, 0
        %s10255 = scalar_select %p10254, %s25, 0
        %s10256 = smul.addr %s10255, 2
        %s10257 = smul.addr %s10253, 2
        %s10258 = sadd.s32 %s10256, %s10257
        %s10259 = smul.addr %s10258, 8
        %s10260 = scalar_lea.vmem %s4, %s10259
      $region56: #{semantic_decoupling_pallas.1} parent=51 // pred_fallthru
        _
      // Predicated region
      $region57: #{semantic_decoupling_pallas.1} parent=51 // pred_check
        %p10261 = pneg %p178
      $region58: #{semantic_decoupling_pallas.1} parent=51 // pred_check_branch
        %10263 = sbr.rel (%p10261) target = $region60
      $region59: #{semantic_decoupling_pallas.1} parent=51 // pred_region
        %p10264 = scmp.lt.s32.totalorder %s24, 1
        %s10265 = scalar_select %p10264, %s24, 1
        %p10266 = scmp.lt.s32.totalorder %s25, 0
        %s10267 = scalar_select %p10266, %s25, 0
        %s10268 = smul.addr %s10265, 256
        %s10269 = sadd.s32 %s10267, %s10268
        %s10270 = smul.addr %s10269, 8
        %s10271 = scalar_lea.vmem %s5, %s10270
      $region60: #{semantic_decoupling_pallas.1} parent=51 // pred_fallthru
        _
      // Predicated region
      $region61: #{semantic_decoupling_pallas.1} parent=51 // pred_check
        %p10272 = pneg %p206
      $region62: #{semantic_decoupling_pallas.1} parent=51 // pred_check_branch
        %10274 = sbr.rel (%p10272) target = $region64
      $region63: #{semantic_decoupling_pallas.1} parent=51 // pred_region
        %p10275 = scmp.lt.s32.totalorder %s24, 1
        %s10276 = scalar_select %p10275, %s24, 1
        %p10277 = scmp.lt.s32.totalorder %s25, 0
        %s10278 = scalar_select %p10277, %s25, 0
        %s10279 = sadd.s32 %s10278, %s10276
        %s10280 = smul.addr %s10279, 8
        %s10281 = scalar_lea.vmem %s6, %s10280
      $region64: #{semantic_decoupling_pallas.1} parent=51 // pred_fallthru
        _
    $region52: #{semantic_decoupling_pallas.1} parent=5 // pred_fallthru
      _
  $region6: #{semantic_decoupling_pallas.1} parent=0 // loop_footer
    %s17 = sadd.s32 1, %s13
  $region7: #{semantic_decoupling_pallas.1} parent=0 // loop_footer_branch
    %12 = sbr.rel target = $region3
  $region8: #{semantic_decoupling_pallas.1} parent=0 // loop_exit
    _

</llo_original>
